<compile_context>
chip_gen: v7x
topology: tpu7x:2x2x1
jax: 0.10.0
libtpu: 0.0.40
codegen_flags: <defaults>
</compile_context>

<pallas_src>
import numpy as np

import jax
import jax.numpy as jnp
from jax.experimental import pallas as pl
from jax.experimental.pallas import tpu as pltpu

FRAMES_PER_VIDEO = 2
FEAT_C = 32                 # stand-in for resnet152's 2048 output channels
FEAT_HW = 7                 # resnet152 final feature-map spatial size
NUM_FTRS = FEAT_C * FEAT_HW * FEAT_HW
HEAD_IN = NUM_FTRS * FRAMES_PER_VIDEO          # 3136
N_PIX = FRAMES_PER_VIDEO * FEAT_HW * FEAT_HW   # 98 (frame, h, w) positions

DROP_P = 0.05
_KEEP_SCALE = 1.0 / (1.0 - DROP_P)
_DROP_THRESH31 = int(DROP_P * (1 << 31))       # drop iff 31-bit uniform < thresh

N_XY, N_ID = 2, 5
HEAD_PAD = 128              # lane-dense fused head output width

_VMEM = pl.BlockSpec(memory_space=pltpu.MemorySpace.VMEM)
_SMEM = pl.BlockSpec(memory_space=pltpu.MemorySpace.SMEM)


# ---------------------------------------------------------------------------
# Fused kernel: features (both frames) + head + fused output slab
# ---------------------------------------------------------------------------
def _boatnet_kernel(seed_ref, xprep_ref, wf_ref, bf_ref,
                    w1_ref, b1_ref, w2_ref, b2_ref, w3_ref, b3_ref,
                    wh_ref, bh_ref, out_ref):
    seed_u = seed_ref[0].astype(jnp.uint32)

    def dropout(v, salt):
        # Counter-based hash PRNG (lowbias32 finalizer) + integer threshold.
        r = jax.lax.broadcasted_iota(jnp.int32, v.shape, 0)
        c = jax.lax.broadcasted_iota(jnp.int32, v.shape, 1)
        x = (r * v.shape[1] + c).astype(jnp.uint32)
        x = x + seed_u * np.uint32(0x9E3779B9) \
              + np.uint32((salt * 0x85EBCA6B) & 0xFFFFFFFF)
        x = x ^ (x >> 16)
        x = x * np.uint32(0x7FEB352D)
        x = x ^ (x >> 15)
        x = x * np.uint32(0x846CA68B)
        x = x ^ (x >> 16)
        u31 = (x >> 1).astype(jnp.int32)            # uniform in [0, 2^31)
        keep = u31 >= _DROP_THRESH31                # P(keep) = 1 - DROP_P
        return jnp.where(keep, v * np.float32(_KEEP_SCALE), 0.0)

    def linear_bf16(v, w_ref, b_ref):
        # bf16 weights, bf16 MXU matmul, f32 accumulate, f32 bias.
        return jnp.dot(v.astype(jnp.bfloat16), w_ref[...],
                       preferred_element_type=jnp.float32) + b_ref[...]

    # --- stand-in feature extractor: pointwise conv as 3 VPU FMAs + ReLU ----
    # xprep: (3, B, HEAD_IN), wf: (3, 1, HEAD_IN), bf: (1, HEAD_IN)
    acc = (xprep_ref[0] * wf_ref[0]
           + xprep_ref[1] * wf_ref[1]
           + xprep_ref[2] * wf_ref[2]
           + bf_ref[...])
    h = jnp.maximum(acc, 0.0)                       # (B, HEAD_IN), f32

    # --- classification head -------------------------------------------------
    h = dropout(h, 0)
    h = jnp.maximum(linear_bf16(h, w1_ref, b1_ref), 0.0)   # (B, 512)
    h = dropout(h, 1)
    h = jnp.maximum(linear_bf16(h, w2_ref, b2_ref), 0.0)   # (B, 128)
    h = dropout(h, 2)
    h = jnp.maximum(linear_bf16(h, w3_ref, b3_ref), 0.0)   # (B, 64)

    # Fused xy + boat_id heads -> single lane-dense (B, 128) slab (f32 matmul).
    comb = jnp.dot(h, wh_ref[...], preferred_element_type=jnp.float32) + bh_ref[...]

    # log_softmax over the 5 boat-id lanes only (mask padded/xy lanes to -inf).
    lane = jax.lax.broadcasted_iota(jnp.int32, comb.shape, 1)
    is_id = jnp.logical_and(lane >= N_XY, lane < N_XY + N_ID)
    masked = jnp.where(is_id, comb, np.float32(-1e30))
    m = jnp.max(masked, axis=-1, keepdims=True)
    lse = m + jnp.log(jnp.sum(jnp.exp(masked - m), axis=-1, keepdims=True))
    out_ref[...] = jnp.where(is_id, comb - lse, comb)


def _boatnet_pallas(seed_arr, xprep, p):
    B = xprep.shape[1]
    return pl.pallas_call(
        _boatnet_kernel,
        out_shape=jax.ShapeDtypeStruct((B, HEAD_PAD), jnp.float32),
        in_specs=[_SMEM] + [_VMEM] * 11,
        out_specs=_VMEM,
    )(seed_arr, xprep, p["wf_rep"], p["bf_rep"],
      p["w1p"], p["b1"], p["w2"], p["b2"], p["w3"], p["b3"],
      p["whead"], p["bhead"])


# ---------------------------------------------------------------------------
# Wrapper (layout glue on tiny tensors only)
# ---------------------------------------------------------------------------
@jax.jit
def boatnet_forward(params, x1, x2, seed):
    """x1, x2: (B, 3, 7, 7) NCHW frames; seed: traced int.  Returns (xy, boat_id_logp)."""
    B = x1.shape[0]
    # NCHW frames -> per-input-channel values broadcast over output channels,
    # lanes ordered (frame, h, w, c_out) to match the permuted w1.
    xk = jnp.stack([x1, x2], axis=1).astype(jnp.float32)        # (B, 2, 3, 7, 7)
    xk = jnp.transpose(xk, (2, 0, 1, 3, 4))                     # (3, B, 2, 7, 7)
    xk = xk.reshape(3, B, N_PIX)                                # (3, B, 98)
    xprep = jnp.broadcast_to(xk[..., None], (3, B, N_PIX, FEAT_C)).reshape(3, B, HEAD_IN)

    seed_arr = jnp.asarray(seed, dtype=jnp.int32).reshape(1)
    out = _boatnet_pallas(seed_arr, xprep, params)              # (B, 128)
    xy = out[:, :N_XY]
    boat_id_logp = out[:, N_XY:N_XY + N_ID]
    return xy, boat_id_logp


# ---------------------------------------------------------------------------
# Parameters
# ---------------------------------------------------------------------------
def init_params(key):
    ks = jax.random.split(key, 12)

    def dense(kw, kb, fan_in, fan_out):
        bound = 1.0 / np.sqrt(fan_in)
        w = jax.random.uniform(kw, (fan_in, fan_out), jnp.float32, -bound, bound)
        b = jax.random.uniform(kb, (1, fan_out), jnp.float32, -bound, bound)
        return w, b

    wf, bf = dense(ks[0], ks[1], 3, FEAT_C)          # stand-in feature extractor
    w1, b1 = dense(ks[2], ks[3], HEAD_IN, 512)
    w2, b2 = dense(ks[4], ks[5], 512, 128)
    w3, b3 = dense(ks[6], ks[7], 128, 64)
    wxy, bxy = dense(ks[8], ks[9], 64, 2)
    wid, bid = dense(ks[10], ks[11], 64, 5)
    return dict(wf=wf, bf=bf, w1=w1, b1=b1, w2=w2, b2=b2, w3=w3, b3=b3,
                wxy=wxy, bxy=bxy, wid=wid, bid=bid)


def prepare_params(raw):
    """One-time weight preprocessing (zero runtime cost)."""
    # Fold the reference's channel-major (NCHW) flatten order into w1's rows so
    # the kernel consumes (frame, h, w, c)-ordered features with no transpose.
    perm = np.arange(HEAD_IN).reshape(FRAMES_PER_VIDEO, FEAT_C, FEAT_HW, FEAT_HW)
    perm = perm.transpose(0, 2, 3, 1).reshape(-1)
    w1p = raw["w1"][perm].astype(jnp.bfloat16)

    # Tile pointwise-conv weights over (frame, pixel) -> 3 VPU FMAs in-kernel.
    wf_rep = jnp.tile(raw["wf"], (1, N_PIX)).reshape(3, 1, HEAD_IN).astype(jnp.float32)
    bf_rep = jnp.tile(raw["bf"], (1, N_PIX)).astype(jnp.float32)

    # Fuse the two output heads into one lane-dense (64, 128) matmul.
    whead = jnp.concatenate([raw["wxy"], raw["wid"]], axis=1)          # (64, 7)
    whead = jnp.pad(whead, ((0, 0), (0, HEAD_PAD - (N_XY + N_ID))))
    bhead = jnp.concatenate([raw["bxy"], raw["bid"]], axis=1)          # (1, 7)
    bhead = jnp.pad(bhead, ((0, 0), (0, HEAD_PAD - (N_XY + N_ID))))

    return dict(
        wf_rep=wf_rep, bf_rep=bf_rep,
        w1p=w1p, b1=raw["b1"],
        w2=raw["w2"].astype(jnp.bfloat16), b2=raw["b2"],
        w3=raw["w3"].astype(jnp.bfloat16), b3=raw["b3"],
        whead=whead.astype(jnp.float32), bhead=bhead.astype(jnp.float32),
    )


if __name__ == "__main__":
    key = jax.random.PRNGKey(0)
    kp, k1, k2 = jax.random.split(key, 3)

    params = prepare_params(init_params(kp))
    B = 2
    x1 = jax.random.normal(k1, (B, 3, FEAT_HW, FEAT_HW), jnp.float32)   # NCHW, like PyTorch
    x2 = jax.random.normal(k2, (B, 3, FEAT_HW, FEAT_HW), jnp.float32)

    xy, boat_id_logp = boatnet_forward(params, x1, x2, 0)
    jax.block_until_ready((xy, boat_id_logp))

    assert xy.shape == (B, 2) and boat_id_logp.shape == (B, 5)
    # log_softmax rows must normalise to 1 in prob space
    assert jnp.allclose(jnp.sum(jnp.exp(boat_id_logp), axis=-1), 1.0, atol=1e-4)
    print("KERNEL_OK")
</pallas_src>

<mosaic_0001>
module attributes {stable_mosaic.version = 11 : i64} {
  func.func @_boatnet_kernel(%arg0: memref<1xi32, #tpu.memory_space<smem>>, %arg1: memref<3x2x3136xf32, #tpu.memory_space<vmem>>, %arg2: memref<3x1x3136xf32, #tpu.memory_space<vmem>>, %arg3: memref<1x3136xf32, #tpu.memory_space<vmem>>, %arg4: memref<3136x512xbf16, #tpu.memory_space<vmem>>, %arg5: memref<1x512xf32, #tpu.memory_space<vmem>>, %arg6: memref<512x128xbf16, #tpu.memory_space<vmem>>, %arg7: memref<1x128xf32, #tpu.memory_space<vmem>>, %arg8: memref<128x64xbf16, #tpu.memory_space<vmem>>, %arg9: memref<1x64xf32, #tpu.memory_space<vmem>>, %arg10: memref<64x128xf32, #tpu.memory_space<vmem>>, %arg11: memref<1x128xf32, #tpu.memory_space<vmem>>, %arg12: memref<2x128xf32, #tpu.memory_space<vmem>>) attributes {dimension_semantics = [], scalar_prefetch = 0 : i64, scratch_operands = 0 : i64, tpu.core_type = #tpu.core_type<tc>} {
    %c0 = arith.constant 0 : index
    %0 = memref.load %arg0[%c0] : memref<1xi32, #tpu.memory_space<smem>>
    %c0_0 = arith.constant 0 : index
    %c0_1 = arith.constant 0 : index
    %c0_2 = arith.constant 0 : index
    %1 = vector.load %arg1[%c0_0, %c0_1, %c0_2] : memref<3x2x3136xf32, #tpu.memory_space<vmem>>, vector<1x2x3136xf32>
    %2 = vector.shape_cast %1 : vector<1x2x3136xf32> to vector<2x3136xf32>
    %c0_3 = arith.constant 0 : index
    %c0_4 = arith.constant 0 : index
    %c0_5 = arith.constant 0 : index
    %3 = vector.load %arg2[%c0_3, %c0_4, %c0_5] : memref<3x1x3136xf32, #tpu.memory_space<vmem>>, vector<1x1x3136xf32>
    %4 = vector.shape_cast %3 : vector<1x1x3136xf32> to vector<1x3136xf32>
    %5 = vector.broadcast %4 : vector<1x3136xf32> to vector<2x3136xf32>
    %6 = arith.mulf %2, %5 : vector<2x3136xf32>
    %c1 = arith.constant 1 : index
    %c0_6 = arith.constant 0 : index
    %c0_7 = arith.constant 0 : index
    %7 = vector.load %arg1[%c1, %c0_6, %c0_7] : memref<3x2x3136xf32, #tpu.memory_space<vmem>>, vector<1x2x3136xf32>
    %8 = vector.shape_cast %7 : vector<1x2x3136xf32> to vector<2x3136xf32>
    %c1_8 = arith.constant 1 : index
    %c0_9 = arith.constant 0 : index
    %c0_10 = arith.constant 0 : index
    %9 = vector.load %arg2[%c1_8, %c0_9, %c0_10] : memref<3x1x3136xf32, #tpu.memory_space<vmem>>, vector<1x1x3136xf32>
    %10 = vector.shape_cast %9 : vector<1x1x3136xf32> to vector<1x3136xf32>
    %11 = vector.broadcast %10 : vector<1x3136xf32> to vector<2x3136xf32>
    %12 = arith.mulf %8, %11 : vector<2x3136xf32>
    %13 = arith.addf %6, %12 : vector<2x3136xf32>
    %c2 = arith.constant 2 : index
    %c0_11 = arith.constant 0 : index
    %c0_12 = arith.constant 0 : index
    %14 = vector.load %arg1[%c2, %c0_11, %c0_12] : memref<3x2x3136xf32, #tpu.memory_space<vmem>>, vector<1x2x3136xf32>
    %15 = vector.shape_cast %14 : vector<1x2x3136xf32> to vector<2x3136xf32>
    %c2_13 = arith.constant 2 : index
    %c0_14 = arith.constant 0 : index
    %c0_15 = arith.constant 0 : index
    %16 = vector.load %arg2[%c2_13, %c0_14, %c0_15] : memref<3x1x3136xf32, #tpu.memory_space<vmem>>, vector<1x1x3136xf32>
    %17 = vector.shape_cast %16 : vector<1x1x3136xf32> to vector<1x3136xf32>
    %18 = vector.broadcast %17 : vector<1x3136xf32> to vector<2x3136xf32>
    %19 = arith.mulf %15, %18 : vector<2x3136xf32>
    %20 = arith.addf %13, %19 : vector<2x3136xf32>
    %c0_16 = arith.constant 0 : index
    %c0_17 = arith.constant 0 : index
    %21 = vector.load %arg3[%c0_16, %c0_17] : memref<1x3136xf32, #tpu.memory_space<vmem>>, vector<1x3136xf32>
    %22 = vector.broadcast %21 : vector<1x3136xf32> to vector<2x3136xf32>
    %23 = arith.addf %20, %22 : vector<2x3136xf32>
    %cst = arith.constant 0.000000e+00 : f32
    %24 = vector.broadcast %cst : f32 to vector<2x3136xf32>
    %25 = arith.maximumf %23, %24 : vector<2x3136xf32>
    %26 = tpu.iota {dimensions = array<i32: 0>} : vector<2x3136xi32>
    %27 = tpu.iota {dimensions = array<i32: 1>} : vector<2x3136xi32>
    %c3136_i32 = arith.constant 3136 : i32
    %28 = vector.broadcast %c3136_i32 : i32 to vector<2x3136xi32>
    %29 = arith.muli %26, %28 : vector<2x3136xi32>
    %30 = arith.addi %29, %27 : vector<2x3136xi32>
    %c-1640531527_i32 = arith.constant -1640531527 : i32
    %31 = arith.muli %0, %c-1640531527_i32 : i32
    %32 = vector.broadcast %31 : i32 to vector<2x3136xi32>
    %33 = arith.addi %30, %32 : vector<2x3136xi32>
    %c0_i32 = arith.constant 0 : i32
    %34 = vector.broadcast %c0_i32 : i32 to vector<2x3136xi32>
    %35 = arith.addi %33, %34 : vector<2x3136xi32>
    %c16_i32 = arith.constant 16 : i32
    %36 = vector.broadcast %c16_i32 : i32 to vector<2x3136xi32>
    %37 = arith.shrui %35, %36 : vector<2x3136xi32>
    %38 = arith.xori %35, %37 : vector<2x3136xi32>
    %c2146121005_i32 = arith.constant 2146121005 : i32
    %39 = vector.broadcast %c2146121005_i32 : i32 to vector<2x3136xi32>
    %40 = arith.muli %38, %39 : vector<2x3136xi32>
    %c15_i32 = arith.constant 15 : i32
    %41 = vector.broadcast %c15_i32 : i32 to vector<2x3136xi32>
    %42 = arith.shrui %40, %41 : vector<2x3136xi32>
    %43 = arith.xori %40, %42 : vector<2x3136xi32>
    %c-2073254261_i32 = arith.constant -2073254261 : i32
    %44 = vector.broadcast %c-2073254261_i32 : i32 to vector<2x3136xi32>
    %45 = arith.muli %43, %44 : vector<2x3136xi32>
    %c16_i32_18 = arith.constant 16 : i32
    %46 = vector.broadcast %c16_i32_18 : i32 to vector<2x3136xi32>
    %47 = arith.shrui %45, %46 : vector<2x3136xi32>
    %48 = arith.xori %45, %47 : vector<2x3136xi32>
    %c1_i32 = arith.constant 1 : i32
    %49 = vector.broadcast %c1_i32 : i32 to vector<2x3136xi32>
    %50 = arith.shrui %48, %49 : vector<2x3136xi32>
    %c107374182_i32 = arith.constant 107374182 : i32
    %51 = vector.broadcast %c107374182_i32 : i32 to vector<2x3136xi32>
    %52 = arith.cmpi sge, %50, %51 : vector<2x3136xi32>
    %cst_19 = arith.constant 1.05263162 : f32
    %53 = vector.broadcast %cst_19 : f32 to vector<2x3136xf32>
    %54 = arith.mulf %25, %53 : vector<2x3136xf32>
    %cst_20 = arith.constant 0.000000e+00 : f32
    %55 = vector.broadcast %cst_20 : f32 to vector<2x3136xf32>
    %56 = arith.select %52, %54, %55 : vector<2x3136xi1>, vector<2x3136xf32>
    %57 = arith.truncf %56 : vector<2x3136xf32> to vector<2x3136xbf16>
    %c0_21 = arith.constant 0 : index
    %c0_22 = arith.constant 0 : index
    %58 = vector.load %arg4[%c0_21, %c0_22] : memref<3136x512xbf16, #tpu.memory_space<vmem>>, vector<3136x512xbf16>
    %cst_23 = arith.constant dense<0.000000e+00> : vector<2x512xf32>
    %59 = tpu.matmul %57, %58, %cst_23 {dimension_numbers = #tpu.dot_dimension_numbers<[1], [0], [0], [1], [0, 0, 1, 1], [], []>} : vector<2x3136xbf16>, vector<3136x512xbf16>, vector<2x512xf32> -> vector<2x512xf32>
    %c0_24 = arith.constant 0 : index
    %c0_25 = arith.constant 0 : index
    %60 = vector.load %arg5[%c0_24, %c0_25] : memref<1x512xf32, #tpu.memory_space<vmem>>, vector<1x512xf32>
    %61 = vector.broadcast %60 : vector<1x512xf32> to vector<2x512xf32>
    %62 = arith.addf %59, %61 : vector<2x512xf32>
    %cst_26 = arith.constant 0.000000e+00 : f32
    %63 = vector.broadcast %cst_26 : f32 to vector<2x512xf32>
    %64 = arith.maximumf %62, %63 : vector<2x512xf32>
    %65 = tpu.iota {dimensions = array<i32: 0>} : vector<2x512xi32>
    %66 = tpu.iota {dimensions = array<i32: 1>} : vector<2x512xi32>
    %c512_i32 = arith.constant 512 : i32
    %67 = vector.broadcast %c512_i32 : i32 to vector<2x512xi32>
    %68 = arith.muli %65, %67 : vector<2x512xi32>
    %69 = arith.addi %68, %66 : vector<2x512xi32>
    %c-1640531527_i32_27 = arith.constant -1640531527 : i32
    %70 = arith.muli %0, %c-1640531527_i32_27 : i32
    %71 = vector.broadcast %70 : i32 to vector<2x512xi32>
    %72 = arith.addi %69, %71 : vector<2x512xi32>
    %c-2048144789_i32 = arith.constant -2048144789 : i32
    %73 = vector.broadcast %c-2048144789_i32 : i32 to vector<2x512xi32>
    %74 = arith.addi %72, %73 : vector<2x512xi32>
    %c16_i32_28 = arith.constant 16 : i32
    %75 = vector.broadcast %c16_i32_28 : i32 to vector<2x512xi32>
    %76 = arith.shrui %74, %75 : vector<2x512xi32>
    %77 = arith.xori %74, %76 : vector<2x512xi32>
    %c2146121005_i32_29 = arith.constant 2146121005 : i32
    %78 = vector.broadcast %c2146121005_i32_29 : i32 to vector<2x512xi32>
    %79 = arith.muli %77, %78 : vector<2x512xi32>
    %c15_i32_30 = arith.constant 15 : i32
    %80 = vector.broadcast %c15_i32_30 : i32 to vector<2x512xi32>
    %81 = arith.shrui %79, %80 : vector<2x512xi32>
    %82 = arith.xori %79, %81 : vector<2x512xi32>
    %c-2073254261_i32_31 = arith.constant -2073254261 : i32
    %83 = vector.broadcast %c-2073254261_i32_31 : i32 to vector<2x512xi32>
    %84 = arith.muli %82, %83 : vector<2x512xi32>
    %c16_i32_32 = arith.constant 16 : i32
    %85 = vector.broadcast %c16_i32_32 : i32 to vector<2x512xi32>
    %86 = arith.shrui %84, %85 : vector<2x512xi32>
    %87 = arith.xori %84, %86 : vector<2x512xi32>
    %c1_i32_33 = arith.constant 1 : i32
    %88 = vector.broadcast %c1_i32_33 : i32 to vector<2x512xi32>
    %89 = arith.shrui %87, %88 : vector<2x512xi32>
    %c107374182_i32_34 = arith.constant 107374182 : i32
    %90 = vector.broadcast %c107374182_i32_34 : i32 to vector<2x512xi32>
    %91 = arith.cmpi sge, %89, %90 : vector<2x512xi32>
    %cst_35 = arith.constant 1.05263162 : f32
    %92 = vector.broadcast %cst_35 : f32 to vector<2x512xf32>
    %93 = arith.mulf %64, %92 : vector<2x512xf32>
    %cst_36 = arith.constant 0.000000e+00 : f32
    %94 = vector.broadcast %cst_36 : f32 to vector<2x512xf32>
    %95 = arith.select %91, %93, %94 : vector<2x512xi1>, vector<2x512xf32>
    %96 = arith.truncf %95 : vector<2x512xf32> to vector<2x512xbf16>
    %c0_37 = arith.constant 0 : index
    %c0_38 = arith.constant 0 : index
    %97 = vector.load %arg6[%c0_37, %c0_38] : memref<512x128xbf16, #tpu.memory_space<vmem>>, vector<512x128xbf16>
    %cst_39 = arith.constant dense<0.000000e+00> : vector<2x128xf32>
    %98 = tpu.matmul %96, %97, %cst_39 {dimension_numbers = #tpu.dot_dimension_numbers<[1], [0], [0], [1], [0, 0, 1, 1], [], []>} : vector<2x512xbf16>, vector<512x128xbf16>, vector<2x128xf32> -> vector<2x128xf32>
    %c0_40 = arith.constant 0 : index
    %c0_41 = arith.constant 0 : index
    %99 = vector.load %arg7[%c0_40, %c0_41] : memref<1x128xf32, #tpu.memory_space<vmem>>, vector<1x128xf32>
    %100 = vector.broadcast %99 : vector<1x128xf32> to vector<2x128xf32>
    %101 = arith.addf %98, %100 : vector<2x128xf32>
    %cst_42 = arith.constant 0.000000e+00 : f32
    %102 = vector.broadcast %cst_42 : f32 to vector<2x128xf32>
    %103 = arith.maximumf %101, %102 : vector<2x128xf32>
    %104 = tpu.iota {dimensions = array<i32: 0>} : vector<2x128xi32>
    %105 = tpu.iota {dimensions = array<i32: 1>} : vector<2x128xi32>
    %c128_i32 = arith.constant 128 : i32
    %106 = vector.broadcast %c128_i32 : i32 to vector<2x128xi32>
    %107 = arith.muli %104, %106 : vector<2x128xi32>
    %108 = arith.addi %107, %105 : vector<2x128xi32>
    %c-1640531527_i32_43 = arith.constant -1640531527 : i32
    %109 = arith.muli %0, %c-1640531527_i32_43 : i32
    %110 = vector.broadcast %109 : i32 to vector<2x128xi32>
    %111 = arith.addi %108, %110 : vector<2x128xi32>
    %c198677718_i32 = arith.constant 198677718 : i32
    %112 = vector.broadcast %c198677718_i32 : i32 to vector<2x128xi32>
    %113 = arith.addi %111, %112 : vector<2x128xi32>
    %c16_i32_44 = arith.constant 16 : i32
    %114 = vector.broadcast %c16_i32_44 : i32 to vector<2x128xi32>
    %115 = arith.shrui %113, %114 : vector<2x128xi32>
    %116 = arith.xori %113, %115 : vector<2x128xi32>
    %c2146121005_i32_45 = arith.constant 2146121005 : i32
    %117 = vector.broadcast %c2146121005_i32_45 : i32 to vector<2x128xi32>
    %118 = arith.muli %116, %117 : vector<2x128xi32>
    %c15_i32_46 = arith.constant 15 : i32
    %119 = vector.broadcast %c15_i32_46 : i32 to vector<2x128xi32>
    %120 = arith.shrui %118, %119 : vector<2x128xi32>
    %121 = arith.xori %118, %120 : vector<2x128xi32>
    %c-2073254261_i32_47 = arith.constant -2073254261 : i32
    %122 = vector.broadcast %c-2073254261_i32_47 : i32 to vector<2x128xi32>
    %123 = arith.muli %121, %122 : vector<2x128xi32>
    %c16_i32_48 = arith.constant 16 : i32
    %124 = vector.broadcast %c16_i32_48 : i32 to vector<2x128xi32>
    %125 = arith.shrui %123, %124 : vector<2x128xi32>
    %126 = arith.xori %123, %125 : vector<2x128xi32>
    %c1_i32_49 = arith.constant 1 : i32
    %127 = vector.broadcast %c1_i32_49 : i32 to vector<2x128xi32>
    %128 = arith.shrui %126, %127 : vector<2x128xi32>
    %c107374182_i32_50 = arith.constant 107374182 : i32
    %129 = vector.broadcast %c107374182_i32_50 : i32 to vector<2x128xi32>
    %130 = arith.cmpi sge, %128, %129 : vector<2x128xi32>
    %cst_51 = arith.constant 1.05263162 : f32
    %131 = vector.broadcast %cst_51 : f32 to vector<2x128xf32>
    %132 = arith.mulf %103, %131 : vector<2x128xf32>
    %cst_52 = arith.constant 0.000000e+00 : f32
    %133 = vector.broadcast %cst_52 : f32 to vector<2x128xf32>
    %134 = arith.select %130, %132, %133 : vector<2x128xi1>, vector<2x128xf32>
    %135 = arith.truncf %134 : vector<2x128xf32> to vector<2x128xbf16>
    %c0_53 = arith.constant 0 : index
    %c0_54 = arith.constant 0 : index
    %136 = vector.load %arg8[%c0_53, %c0_54] : memref<128x64xbf16, #tpu.memory_space<vmem>>, vector<128x64xbf16>
    %cst_55 = arith.constant dense<0.000000e+00> : vector<2x64xf32>
    %137 = tpu.matmul %135, %136, %cst_55 {dimension_numbers = #tpu.dot_dimension_numbers<[1], [0], [0], [1], [0, 0, 1, 1], [], []>} : vector<2x128xbf16>, vector<128x64xbf16>, vector<2x64xf32> -> vector<2x64xf32>
    %c0_56 = arith.constant 0 : index
    %c0_57 = arith.constant 0 : index
    %138 = vector.load %arg9[%c0_56, %c0_57] : memref<1x64xf32, #tpu.memory_space<vmem>>, vector<1x64xf32>
    %139 = vector.broadcast %138 : vector<1x64xf32> to vector<2x64xf32>
    %140 = arith.addf %137, %139 : vector<2x64xf32>
    %cst_58 = arith.constant 0.000000e+00 : f32
    %141 = vector.broadcast %cst_58 : f32 to vector<2x64xf32>
    %142 = arith.maximumf %140, %141 : vector<2x64xf32>
    %c0_59 = arith.constant 0 : index
    %c0_60 = arith.constant 0 : index
    %143 = vector.load %arg10[%c0_59, %c0_60] : memref<64x128xf32, #tpu.memory_space<vmem>>, vector<64x128xf32>
    %cst_61 = arith.constant dense<0.000000e+00> : vector<2x128xf32>
    %144 = tpu.matmul %142, %143, %cst_61 {dimension_numbers = #tpu.dot_dimension_numbers<[1], [0], [0], [1], [0, 0, 1, 1], [], []>} : vector<2x64xf32>, vector<64x128xf32>, vector<2x128xf32> -> vector<2x128xf32>
    %c0_62 = arith.constant 0 : index
    %c0_63 = arith.constant 0 : index
    %145 = vector.load %arg11[%c0_62, %c0_63] : memref<1x128xf32, #tpu.memory_space<vmem>>, vector<1x128xf32>
    %146 = vector.broadcast %145 : vector<1x128xf32> to vector<2x128xf32>
    %147 = arith.addf %144, %146 : vector<2x128xf32>
    %148 = tpu.iota {dimensions = array<i32: 1>} : vector<2x128xi32>
    %c2_i32 = arith.constant 2 : i32
    %149 = vector.broadcast %c2_i32 : i32 to vector<2x128xi32>
    %150 = arith.cmpi sge, %148, %149 : vector<2x128xi32>
    %c7_i32 = arith.constant 7 : i32
    %151 = vector.broadcast %c7_i32 : i32 to vector<2x128xi32>
    %152 = arith.cmpi slt, %148, %151 : vector<2x128xi32>
    %153 = arith.andi %150, %152 : vector<2x128xi1>
    %cst_64 = arith.constant -1.000000e+30 : f32
    %154 = vector.broadcast %cst_64 : f32 to vector<2x128xf32>
    %155 = arith.select %153, %147, %154 : vector<2x128xi1>, vector<2x128xf32>
    %cst_65 = arith.constant dense<0xFF800000> : vector<2xf32>
    %156 = vector.multi_reduction <maximumf>, %155, %cst_65 [1] : vector<2x128xf32> to vector<2xf32>
    %157 = vector.shape_cast %156 : vector<2xf32> to vector<2x1xf32>
    %158 = vector.broadcast %157 : vector<2x1xf32> to vector<2x128xf32>
    %159 = arith.subf %155, %158 : vector<2x128xf32>
    %160 = math.exp %159 : vector<2x128xf32>
    %cst_66 = arith.constant dense<0.000000e+00> : vector<2xf32>
    %161 = vector.multi_reduction <add>, %160, %cst_66 [1] : vector<2x128xf32> to vector<2xf32>
    %162 = vector.shape_cast %161 : vector<2xf32> to vector<2x1xf32>
    %163 = math.log %162 : vector<2x1xf32>
    %164 = arith.addf %157, %163 : vector<2x1xf32>
    %165 = vector.broadcast %164 : vector<2x1xf32> to vector<2x128xf32>
    %166 = arith.subf %147, %165 : vector<2x128xf32>
    %167 = arith.select %153, %166, %147 : vector<2x128xi1>, vector<2x128xf32>
    %c0_67 = arith.constant 0 : index
    %c0_68 = arith.constant 0 : index
    %168 = vector.load %arg12[%c0_67, %c0_68] : memref<2x128xf32, #tpu.memory_space<vmem>>, vector<2x128xf32>
    tpu.vector_store %arg12[%c0_67, %c0_68], %167 {strides = array<i32>} : memref<2x128xf32, #tpu.memory_space<vmem>>, vector<2x128xf32>,
    return
  }
}

</mosaic_0001>

<llo_original>
// kernel: boatnet_forward.1
$region0: #{boatnet_forward.1}
  #allocation0 [shape = 'u32[]', space=smem, size = 0x4, offset = 0x4, fixed_abs, tag = 'smem constant byte address 0x4 - core index']
  #allocation1 [shape = 'u32[144,128]{1,0:T(1,128)}', space=vmem, size = 0x12000, scoped, tag = 'internal scratch']
  #allocation2 [shape = 's32[1]{0:T(128)S(6)}', space=smem, size = 0x200, scoped, tag = 'scoped memory for boatnet_forward.1']
  %s0 = inlined_call_operand.<no memory space> [shape: s32[1], index: 0, kind: input, shape index: {}]
  %s1 = inlined_call_operand.vmem [shape: f32[3,2,3136], index: 1, kind: input, shape index: {}]
  %s2 = inlined_call_operand.hbm [shape: f32[3,1,3136], index: 2, kind: input, shape index: {}]
  %s3 = inlined_call_operand.hbm [shape: f32[1,3136], index: 3, kind: input, shape index: {}]
  %s4 = inlined_call_operand.hbm [shape: bf16[3136,512], index: 4, kind: input, shape index: {}]
  %s5 = inlined_call_operand.hbm [shape: f32[1,512], index: 5, kind: input, shape index: {}]
  %s6 = inlined_call_operand.hbm [shape: bf16[512,128], index: 6, kind: input, shape index: {}]
  %s7 = inlined_call_operand.hbm [shape: f32[1,128], index: 7, kind: input, shape index: {}]
  %s8 = inlined_call_operand.vmem [shape: bf16[128,64], index: 8, kind: input, shape index: {}]
  %s9 = inlined_call_operand.hbm [shape: f32[1,64], index: 9, kind: input, shape index: {}]
  %s10 = inlined_call_operand.hbm [shape: f32[64,128], index: 10, kind: input, shape index: {}]
  %s11 = inlined_call_operand.hbm [shape: f32[1,128], index: 11, kind: input, shape index: {}]
  %s12 = inlined_call_operand.vmem [shape: f32[2,128], index: 12, kind: output, shape index: {}]
  %s13 = sld [smem:[#allocation0]]
  $region94: #{boatnet_forward.1} parent=0
    _
  %s15 = ssub.s32 1, %s13
  %s16 = scalar_select 0, %s15, %s13
  %17 = sst [smem:[#allocation2]] %s0
  $region1: #{boatnet_forward.1} parent=0
    #allocation3 [shape = 'u8[38400]{0}', space=vmem, size = 0x9800, scoped, tag = 'input window, operand 2, single buffered']
    #allocation4 [shape = 's32[1]{0}', space=sflag, size = 0x4, scoped, tag = 'scoped memory for boatnet_forward.1']
    #allocation5 [shape = 'u8[12800]{0}', space=vmem, size = 0x3400, scoped, tag = 'input window, operand 3, single buffered']
    #allocation6 [shape = 's32[1]{0}', space=sflag, size = 0x4, scoped, tag = 'scoped memory for boatnet_forward.1']
    #allocation7 [shape = 'u8[3211264]{0}', space=vmem, size = 0x310000, scoped, tag = 'input window, operand 4, single buffered']
    #allocation8 [shape = 'u8[2048]{0}', space=vmem, size = 0x800, scoped, tag = 'input window, operand 5, single buffered']
    #allocation9 [shape = 's32[1]{0}', space=sflag, size = 0x4, scoped, tag = 'scoped memory for boatnet_forward.1']
    #allocation10 [shape = 'u8[131072]{0}', space=vmem, size = 0x20000, scoped, tag = 'input window, operand 6, single buffered']
    #allocation11 [shape = 'u8[512]{0}', space=vmem, size = 0x400, scoped, tag = 'input window, operand 7, single buffered']
    #allocation12 [shape = 's32[1]{0}', space=sflag, size = 0x4, scoped, tag = 'scoped memory for boatnet_forward.1']
    #allocation13 [shape = 'u8[512]{0}', space=vmem, size = 0x400, scoped, tag = 'input window, operand 9, single buffered']
    #allocation14 [shape = 'u8[32768]{0}', space=vmem, size = 0x8000, scoped, tag = 'input window, operand 10, single buffered']
    #allocation15 [shape = 's32[1]{0}', space=sflag, size = 0x4, scoped, tag = 'scoped memory for boatnet_forward.1']
    #allocation16 [shape = 'u8[512]{0}', space=vmem, size = 0x400, scoped, tag = 'input window, operand 11, single buffered']
    %18 = vsyncpa [#allocation4], 0
    %19 = vsyncpa [#allocation6], 0
    %20 = vsyncpa [#allocation9], 0
    %21 = vsyncpa [#allocation12], 0
    %22 = vsyncpa [#allocation15], 0
    // Predicated region
    $region2: #{boatnet_forward.1} parent=1 // pred_check
      _
    $region3: #{boatnet_forward.1} parent=1 // pred_check_branch
      %24 = sbr.rel (0) target = $region5
    $region4: #{boatnet_forward.1} parent=1 // pred_region
      _
    $region5: #{boatnet_forward.1} parent=1 // pred_fallthru
      _
    // Predicated region
    $region6: #{boatnet_forward.1} parent=1 // pred_check
      _
    $region7: #{boatnet_forward.1} parent=1 // pred_check_branch
      %26 = sbr.rel (0) target = $region9
    $region8: #{boatnet_forward.1} parent=1 // pred_region
      _
    $region9: #{boatnet_forward.1} parent=1 // pred_fallthru
      _
    // Predicated region
    $region10: #{boatnet_forward.1} parent=1 // pred_check
      _
    $region11: #{boatnet_forward.1} parent=1 // pred_check_branch
      %28 = sbr.rel (0) target = $region13
    $region12: #{boatnet_forward.1} parent=1 // pred_region
      %s30 = ssub.s32 1200, 1200
      %31 = vsyncadd [#allocation4], %s30
      %s32 = sshll.u32 [#allocation3], 4
      %s33 = int_to_ptr.vmem [resolvable:$true] %s32
      %38 = dma.hbm_to_vmem [thread:$0]  %s2, 1200, %s33, [#allocation4], 400, 400, 25
    $region13: #{boatnet_forward.1} parent=1 // pred_fallthru
      _
    // Predicated region
    $region14: #{boatnet_forward.1} parent=1 // pred_check
      _
    $region15: #{boatnet_forward.1} parent=1 // pred_check_branch
      %40 = sbr.rel (0) target = $region17
    $region16: #{boatnet_forward.1} parent=1 // pred_region
      %s42 = ssub.s32 400, 400
      %43 = vsyncadd [#allocation6], %s42
      %s45 = sshll.u32 [#allocation5], 4
      %s46 = int_to_ptr.vmem [resolvable:$true] %s45
      %48 = dma.hbm_to_vmem [thread:$0]  %s3, 400, %s46, [#allocation6]
    $region17: #{boatnet_forward.1} parent=1 // pred_fallthru
      _
    // Predicated region
    $region18: #{boatnet_forward.1} parent=1 // pred_check
      _
    $region19: #{boatnet_forward.1} parent=1 // pred_check_branch
      %50 = sbr.rel (0) target = $region21
    $region20: #{boatnet_forward.1} parent=1 // pred_region
      %s52 = ssub.s32 100352, 100352
      %53 = vsyncadd [#allocation6], %s52
      %s54 = sshll.u32 [#allocation7], 4
      %s55 = int_to_ptr.vmem [resolvable:$true] %s54
      %60 = dma.hbm_to_vmem [thread:$0]  %s4, 100352, %s55, [#allocation6], 256, 256, 16
    $region21: #{boatnet_forward.1} parent=1 // pred_fallthru
      _
    // Predicated region
    $region22: #{boatnet_forward.1} parent=1 // pred_check
      _
    $region23: #{boatnet_forward.1} parent=1 // pred_check_branch
      %62 = sbr.rel (0) target = $region25
    $region24: #{boatnet_forward.1} parent=1 // pred_region
      %s64 = ssub.s32 64, 64
      %65 = vsyncadd [#allocation9], %s64
      %s67 = sshll.u32 [#allocation8], 4
      %s68 = int_to_ptr.vmem [resolvable:$true] %s67
      %70 = dma.hbm_to_vmem [thread:$0]  %s5, 64, %s68, [#allocation9]
    $region25: #{boatnet_forward.1} parent=1 // pred_fallthru
      _
    // Predicated region
    $region26: #{boatnet_forward.1} parent=1 // pred_check
      _
    $region27: #{boatnet_forward.1} parent=1 // pred_check_branch
      %72 = sbr.rel (0) target = $region29
    $region28: #{boatnet_forward.1} parent=1 // pred_region
      %s74 = ssub.s32 4096, 4096
      %75 = vsyncadd [#allocation9], %s74
      %s76 = sshll.u32 [#allocation10], 4
      %s77 = int_to_ptr.vmem [resolvable:$true] %s76
      %82 = dma.hbm_to_vmem [thread:$0]  %s6, 4096, %s77, [#allocation9], 64, 64, 4
    $region29: #{boatnet_forward.1} parent=1 // pred_fallthru
      _
    // Predicated region
    $region30: #{boatnet_forward.1} parent=1 // pred_check
      _
    $region31: #{boatnet_forward.1} parent=1 // pred_check_branch
      %84 = sbr.rel (0) target = $region33
    $region32: #{boatnet_forward.1} parent=1 // pred_region
      %s86 = ssub.s32 16, 16
      %87 = vsyncadd [#allocation12], %s86
      %s89 = sshll.u32 [#allocation11], 4
      %s90 = int_to_ptr.vmem [resolvable:$true] %s89
      %92 = dma.hbm_to_vmem [thread:$0]  %s7, 16, %s90, [#allocation12]
    $region33: #{boatnet_forward.1} parent=1 // pred_fallthru
      _
    // Predicated region
    $region34: #{boatnet_forward.1} parent=1 // pred_check
      _
    $region35: #{boatnet_forward.1} parent=1 // pred_check_branch
      %94 = sbr.rel (0) target = $region37
    $region36: #{boatnet_forward.1} parent=1 // pred_region
      _
    $region37: #{boatnet_forward.1} parent=1 // pred_fallthru
      _
    // Predicated region
    $region38: #{boatnet_forward.1} parent=1 // pred_check
      _
    $region39: #{boatnet_forward.1} parent=1 // pred_check_branch
      %96 = sbr.rel (0) target = $region41
    $region40: #{boatnet_forward.1} parent=1 // pred_region
      %s98 = ssub.s32 16, 16
      %99 = vsyncadd [#allocation12], %s98
      %s101 = sshll.u32 [#allocation13], 4
      %s102 = int_to_ptr.vmem [resolvable:$true] %s101
      %104 = dma.hbm_to_vmem [thread:$0]  %s9, 16, %s102, [#allocation12]
    $region41: #{boatnet_forward.1} parent=1 // pred_fallthru
      _
    // Predicated region
    $region42: #{boatnet_forward.1} parent=1 // pred_check
      _
    $region43: #{boatnet_forward.1} parent=1 // pred_check_branch
      %106 = sbr.rel (0) target = $region45
    $region44: #{boatnet_forward.1} parent=1 // pred_region
      %s108 = ssub.s32 1024, 1024
      %109 = vsyncadd [#allocation15], %s108
      %s110 = sshll.u32 [#allocation14], 4
      %s111 = int_to_ptr.vmem [resolvable:$true] %s110
      %116 = dma.hbm_to_vmem [thread:$0]  %s10, 1024, %s111, [#allocation15], 128, 128, 8
    $region45: #{boatnet_forward.1} parent=1 // pred_fallthru
      _
    // Predicated region
    $region46: #{boatnet_forward.1} parent=1 // pred_check
      _
    $region47: #{boatnet_forward.1} parent=1 // pred_check_branch
      %118 = sbr.rel (0) target = $region49
    $region48: #{boatnet_forward.1} parent=1 // pred_region
      %s120 = ssub.s32 16, 16
      %121 = vsyncadd [#allocation15], %s120
      %s123 = sshll.u32 [#allocation16], 4
      %s124 = int_to_ptr.vmem [resolvable:$true] %s123
      %126 = dma.hbm_to_vmem [thread:$0]  %s11, 16, %s124, [#allocation15]
    $region49: #{boatnet_forward.1} parent=1 // pred_fallthru
      _
    // Predicated region
    $region50: #{boatnet_forward.1} parent=1 // pred_check
      _
    $region51: #{boatnet_forward.1} parent=1 // pred_check_branch
      %128 = sbr.rel (0) target = $region53
    $region52: #{boatnet_forward.1} parent=1 // pred_region
      %129 = dma.done [#allocation4], 1200
    $region53: #{boatnet_forward.1} parent=1 // pred_fallthru
      _
    // Predicated region
    $region54: #{boatnet_forward.1} parent=1 // pred_check
      _
    $region55: #{boatnet_forward.1} parent=1 // pred_check_branch
      %131 = sbr.rel (0) target = $region57
    $region56: #{boatnet_forward.1} parent=1 // pred_region
      %132 = dma.done [#allocation6], 400
    $region57: #{boatnet_forward.1} parent=1 // pred_fallthru
      _
    // Predicated region
    $region58: #{boatnet_forward.1} parent=1 // pred_check
      _
    $region59: #{boatnet_forward.1} parent=1 // pred_check_branch
      %134 = sbr.rel (0) target = $region61
    $region60: #{boatnet_forward.1} parent=1 // pred_region
      %135 = dma.done [#allocation6], 100352
    $region61: #{boatnet_forward.1} parent=1 // pred_fallthru
      _
    // Predicated region
    $region62: #{boatnet_forward.1} parent=1 // pred_check
      _
    $region63: #{boatnet_forward.1} parent=1 // pred_check_branch
      %137 = sbr.rel (0) target = $region65
    $region64: #{boatnet_forward.1} parent=1 // pred_region
      %138 = dma.done [#allocation9], 64
    $region65: #{boatnet_forward.1} parent=1 // pred_fallthru
      _
    // Predicated region
    $region66: #{boatnet_forward.1} parent=1 // pred_check
      _
    $region67: #{boatnet_forward.1} parent=1 // pred_check_branch
      %140 = sbr.rel (0) target = $region69
    $region68: #{boatnet_forward.1} parent=1 // pred_region
      %141 = dma.done [#allocation9], 4096
    $region69: #{boatnet_forward.1} parent=1 // pred_fallthru
      _
    // Predicated region
    $region70: #{boatnet_forward.1} parent=1 // pred_check
      _
    $region71: #{boatnet_forward.1} parent=1 // pred_check_branch
      %143 = sbr.rel (0) target = $region73
    $region72: #{boatnet_forward.1} parent=1 // pred_region
      %144 = dma.done [#allocation12], 16
    $region73: #{boatnet_forward.1} parent=1 // pred_fallthru
      _
    // Predicated region
    $region74: #{boatnet_forward.1} parent=1 // pred_check
      _
    $region75: #{boatnet_forward.1} parent=1 // pred_check_branch
      %146 = sbr.rel (0) target = $region77
    $region76: #{boatnet_forward.1} parent=1 // pred_region
      %147 = dma.done [#allocation12], 16
    $region77: #{boatnet_forward.1} parent=1 // pred_fallthru
      _
    // Predicated region
    $region78: #{boatnet_forward.1} parent=1 // pred_check
      _
    $region79: #{boatnet_forward.1} parent=1 // pred_check_branch
      %149 = sbr.rel (0) target = $region81
    $region80: #{boatnet_forward.1} parent=1 // pred_region
      %150 = dma.done [#allocation15], 1024
    $region81: #{boatnet_forward.1} parent=1 // pred_fallthru
      _
    // Predicated region
    $region82: #{boatnet_forward.1} parent=1 // pred_check
      _
    $region83: #{boatnet_forward.1} parent=1 // pred_check_branch
      %152 = sbr.rel (0) target = $region85
    $region84: #{boatnet_forward.1} parent=1 // pred_region
      %153 = dma.done [#allocation15], 16
    $region85: #{boatnet_forward.1} parent=1 // pred_fallthru
      _
    %s155 = sld [smem:[#allocation2]]
    %v156 = vld [vmem:[%s1] sm:$0xff]
    %v157 = vld [vmem:[%s1 + $0x8] sm:$0xff]
    %v158 = vld [vmem:[%s1 + $0x10] sm:$0xff]
    %v159 = vld [vmem:[%s1 + $0x18] sm:$0xff]
    %v160 = vld [vmem:[%s1 + $0x20] sm:$0xff]
    %v161 = vld [vmem:[%s1 + $0x28] sm:$0xff]
    %v162 = vld [vmem:[%s1 + $0x30] sm:$0x3]
    %v163 = vld [vmem:[#allocation3] sm:$0xff]
    %v164 = vld [vmem:[#allocation3 + $0x8] sm:$0xff]
    %v165 = vld [vmem:[#allocation3 + $0x10] sm:$0xff]
    %v166 = vld [vmem:[#allocation3 + $0x18] sm:$0x1]
    %v171 = vlaneseq
    %v172 = vshrl.u32 %v171, 7
    %v173 = vsub.s32 0, %v172
    %v174 = vrot.slane %v163, %v173
    %v175 = vlaneseq
    %v176 = vshrl.u32 %v175, 7
    %v177 = vsub.s32 1, %v176
    %v178 = vrot.slane %v163, %v177
    %v179 = vlaneseq
    %v180 = vshrl.u32 %v179, 7
    %v181 = vsub.s32 2, %v180
    %v182 = vrot.slane %v163, %v181
    %v183 = vlaneseq
    %v184 = vshrl.u32 %v183, 7
    %v185 = vsub.s32 3, %v184
    %v186 = vrot.slane %v163, %v185
    %v187 = vlaneseq
    %v188 = vshrl.u32 %v187, 7
    %v189 = vsub.s32 4, %v188
    %v190 = vrot.slane %v163, %v189
    %v191 = vlaneseq
    %v192 = vshrl.u32 %v191, 7
    %v193 = vsub.s32 5, %v192
    %v194 = vrot.slane %v163, %v193
    %v195 = vlaneseq
    %v196 = vshrl.u32 %v195, 7
    %v197 = vsub.s32 6, %v196
    %v198 = vrot.slane %v163, %v197
    %v199 = vlaneseq
    %v200 = vshrl.u32 %v199, 7
    %v201 = vsub.s32 7, %v200
    %v202 = vrot.slane %v163, %v201
    %v203 = vlaneseq
    %v204 = vshrl.u32 %v203, 7
    %v205 = vsub.s32 0, %v204
    %v206 = vrot.slane %v164, %v205
    %v207 = vlaneseq
    %v208 = vshrl.u32 %v207, 7
    %v209 = vsub.s32 1, %v208
    %v210 = vrot.slane %v164, %v209
    %v211 = vlaneseq
    %v212 = vshrl.u32 %v211, 7
    %v213 = vsub.s32 2, %v212
    %v214 = vrot.slane %v164, %v213
    %v215 = vlaneseq
    %v216 = vshrl.u32 %v215, 7
    %v217 = vsub.s32 3, %v216
    %v218 = vrot.slane %v164, %v217
    %v219 = vlaneseq
    %v220 = vshrl.u32 %v219, 7
    %v221 = vsub.s32 4, %v220
    %v222 = vrot.slane %v164, %v221
    %v223 = vlaneseq
    %v224 = vshrl.u32 %v223, 7
    %v225 = vsub.s32 5, %v224
    %v226 = vrot.slane %v164, %v225
    %v227 = vlaneseq
    %v228 = vshrl.u32 %v227, 7
    %v229 = vsub.s32 6, %v228
    %v230 = vrot.slane %v164, %v229
    %v231 = vlaneseq
    %v232 = vshrl.u32 %v231, 7
    %v233 = vsub.s32 7, %v232
    %v234 = vrot.slane %v164, %v233
    %v235 = vlaneseq
    %v236 = vshrl.u32 %v235, 7
    %v237 = vsub.s32 0, %v236
    %v238 = vrot.slane %v165, %v237
    %v239 = vlaneseq
    %v240 = vshrl.u32 %v239, 7
    %v241 = vsub.s32 1, %v240
    %v242 = vrot.slane %v165, %v241
    %v243 = vlaneseq
    %v244 = vshrl.u32 %v243, 7
    %v245 = vsub.s32 2, %v244
    %v246 = vrot.slane %v165, %v245
    %v247 = vlaneseq
    %v248 = vshrl.u32 %v247, 7
    %v249 = vsub.s32 3, %v248
    %v250 = vrot.slane %v165, %v249
    %v251 = vlaneseq
    %v252 = vshrl.u32 %v251, 7
    %v253 = vsub.s32 4, %v252
    %v254 = vrot.slane %v165, %v253
    %v255 = vlaneseq
    %v256 = vshrl.u32 %v255, 7
    %v257 = vsub.s32 5, %v256
    %v258 = vrot.slane %v165, %v257
    %v259 = vlaneseq
    %v260 = vshrl.u32 %v259, 7
    %v261 = vsub.s32 6, %v260
    %v262 = vrot.slane %v165, %v261
    %v263 = vlaneseq
    %v264 = vshrl.u32 %v263, 7
    %v265 = vsub.s32 7, %v264
    %v266 = vrot.slane %v165, %v265
    %v267 = vlaneseq
    %v268 = vshrl.u32 %v267, 7
    %v269 = vsub.s32 0, %v268
    %v270 = vrot.slane %v166, %v269
    %v271 = vcombine.low %v174, %v178
    %v272 = vcombine.low %v182, %v186
    %v274 = vunpack.c.l.s4 1983009808
    %v275 = vunpack.c.0.s8 %v274
    %v276 = vlaneseq
    %v277 = vshrl.u32 %v276, 7
    %v278 = vsub.s32 %v275, %v277
    %v279 = vrot.slane %v271, %v278
    %v281 = vunpack.c.l.s4 1983009808
    %v282 = vunpack.c.0.s8 %v281
    %v283 = vlaneseq
    %v284 = vshrl.u32 %v283, 7
    %v285 = vsub.s32 %v282, %v284
    %v286 = vrot.slane %v272, %v285
    %v287 = vcombine.low %v279, %v286
    %v288 = vcombine.low %v190, %v194
    %v289 = vcombine.low %v198, %v202
    %v291 = vunpack.c.l.s4 1983009808
    %v292 = vunpack.c.0.s8 %v291
    %v293 = vlaneseq
    %v294 = vshrl.u32 %v293, 7
    %v295 = vsub.s32 %v292, %v294
    %v296 = vrot.slane %v288, %v295
    %v298 = vunpack.c.l.s4 1983009808
    %v299 = vunpack.c.0.s8 %v298
    %v300 = vlaneseq
    %v301 = vshrl.u32 %v300, 7
    %v302 = vsub.s32 %v299, %v301
    %v303 = vrot.slane %v289, %v302
    %v304 = vcombine.low %v296, %v303
    %v305 = vcombine.low %v206, %v210
    %v306 = vcombine.low %v214, %v218
    %v308 = vunpack.c.l.s4 1983009808
    %v309 = vunpack.c.0.s8 %v308
    %v310 = vlaneseq
    %v311 = vshrl.u32 %v310, 7
    %v312 = vsub.s32 %v309, %v311
    %v313 = vrot.slane %v305, %v312
    %v315 = vunpack.c.l.s4 1983009808
    %v316 = vunpack.c.0.s8 %v315
    %v317 = vlaneseq
    %v318 = vshrl.u32 %v317, 7
    %v319 = vsub.s32 %v316, %v318
    %v320 = vrot.slane %v306, %v319
    %v321 = vcombine.low %v313, %v320
    %v322 = vcombine.low %v222, %v226
    %v323 = vcombine.low %v230, %v234
    %v325 = vunpack.c.l.s4 1983009808
    %v326 = vunpack.c.0.s8 %v325
    %v327 = vlaneseq
    %v328 = vshrl.u32 %v327, 7
    %v329 = vsub.s32 %v326, %v328
    %v330 = vrot.slane %v322, %v329
    %v332 = vunpack.c.l.s4 1983009808
    %v333 = vunpack.c.0.s8 %v332
    %v334 = vlaneseq
    %v335 = vshrl.u32 %v334, 7
    %v336 = vsub.s32 %v333, %v335
    %v337 = vrot.slane %v323, %v336
    %v338 = vcombine.low %v330, %v337
    %v339 = vcombine.low %v238, %v242
    %v340 = vcombine.low %v246, %v250
    %v342 = vunpack.c.l.s4 1983009808
    %v343 = vunpack.c.0.s8 %v342
    %v344 = vlaneseq
    %v345 = vshrl.u32 %v344, 7
    %v346 = vsub.s32 %v343, %v345
    %v347 = vrot.slane %v339, %v346
    %v349 = vunpack.c.l.s4 1983009808
    %v350 = vunpack.c.0.s8 %v349
    %v351 = vlaneseq
    %v352 = vshrl.u32 %v351, 7
    %v353 = vsub.s32 %v350, %v352
    %v354 = vrot.slane %v340, %v353
    %v355 = vcombine.low %v347, %v354
    %v356 = vcombine.low %v254, %v258
    %v357 = vcombine.low %v262, %v266
    %v359 = vunpack.c.l.s4 1983009808
    %v360 = vunpack.c.0.s8 %v359
    %v361 = vlaneseq
    %v362 = vshrl.u32 %v361, 7
    %v363 = vsub.s32 %v360, %v362
    %v364 = vrot.slane %v356, %v363
    %v366 = vunpack.c.l.s4 1983009808
    %v367 = vunpack.c.0.s8 %v366
    %v368 = vlaneseq
    %v369 = vshrl.u32 %v368, 7
    %v370 = vsub.s32 %v367, %v369
    %v371 = vrot.slane %v357, %v370
    %v372 = vcombine.low %v364, %v371
    %v374 = vunpack.c.l.s4 1983009808
    %v375 = vunpack.c.0.s8 %v374
    %v376 = vlaneseq
    %v377 = vshrl.u32 %v376, 7
    %v378 = vsub.s32 %v375, %v377
    %v379 = vrot.slane %v270, %v378
    %v387 = vmul.f32 %v156, %v287
    %v388 = vmul.f32 %v157, %v304
    %v389 = vmul.f32 %v158, %v321
    %v390 = vmul.f32 %v159, %v338
    %v391 = vmul.f32 %v160, %v355
    %v392 = vmul.f32 %v161, %v372
    %v393 = vmul.f32 %v162, %v379
    %s394 = scalar_lea.vmem %s1, 50
    %v395 = vld [vmem:[%s394] sm:$0xff]
    %v396 = vld [vmem:[%s394 + $0x8] sm:$0xff]
    %v397 = vld [vmem:[%s394 + $0x10] sm:$0xff]
    %v398 = vld [vmem:[%s394 + $0x18] sm:$0xff]
    %v399 = vld [vmem:[%s394 + $0x20] sm:$0xff]
    %v400 = vld [vmem:[%s394 + $0x28] sm:$0xff]
    %v401 = vld [vmem:[%s394 + $0x30] sm:$0x3]
    %s402 = scalar_lea.vmem [#allocation3], 25
    %v403 = vld [vmem:[%s402] sm:$0xff]
    %v404 = vld [vmem:[%s402 + $0x8] sm:$0xff]
    %v405 = vld [vmem:[%s402 + $0x10] sm:$0xff]
    %v406 = vld [vmem:[%s402 + $0x18] sm:$0x1]
    %v411 = vlaneseq
    %v412 = vshrl.u32 %v411, 7
    %v413 = vsub.s32 0, %v412
    %v414 = vrot.slane %v403, %v413
    %v415 = vlaneseq
    %v416 = vshrl.u32 %v415, 7
    %v417 = vsub.s32 1, %v416
    %v418 = vrot.slane %v403, %v417
    %v419 = vlaneseq
    %v420 = vshrl.u32 %v419, 7
    %v421 = vsub.s32 2, %v420
    %v422 = vrot.slane %v403, %v421
    %v423 = vlaneseq
    %v424 = vshrl.u32 %v423, 7
    %v425 = vsub.s32 3, %v424
    %v426 = vrot.slane %v403, %v425
    %v427 = vlaneseq
    %v428 = vshrl.u32 %v427, 7
    %v429 = vsub.s32 4, %v428
    %v430 = vrot.slane %v403, %v429
    %v431 = vlaneseq
    %v432 = vshrl.u32 %v431, 7
    %v433 = vsub.s32 5, %v432
    %v434 = vrot.slane %v403, %v433
    %v435 = vlaneseq
    %v436 = vshrl.u32 %v435, 7
    %v437 = vsub.s32 6, %v436
    %v438 = vrot.slane %v403, %v437
    %v439 = vlaneseq
    %v440 = vshrl.u32 %v439, 7
    %v441 = vsub.s32 7, %v440
    %v442 = vrot.slane %v403, %v441
    %v443 = vlaneseq
    %v444 = vshrl.u32 %v443, 7
    %v445 = vsub.s32 0, %v444
    %v446 = vrot.slane %v404, %v445
    %v447 = vlaneseq
    %v448 = vshrl.u32 %v447, 7
    %v449 = vsub.s32 1, %v448
    %v450 = vrot.slane %v404, %v449
    %v451 = vlaneseq
    %v452 = vshrl.u32 %v451, 7
    %v453 = vsub.s32 2, %v452
    %v454 = vrot.slane %v404, %v453
    %v455 = vlaneseq
    %v456 = vshrl.u32 %v455, 7
    %v457 = vsub.s32 3, %v456
    %v458 = vrot.slane %v404, %v457
    %v459 = vlaneseq
    %v460 = vshrl.u32 %v459, 7
    %v461 = vsub.s32 4, %v460
    %v462 = vrot.slane %v404, %v461
    %v463 = vlaneseq
    %v464 = vshrl.u32 %v463, 7
    %v465 = vsub.s32 5, %v464
    %v466 = vrot.slane %v404, %v465
    %v467 = vlaneseq
    %v468 = vshrl.u32 %v467, 7
    %v469 = vsub.s32 6, %v468
    %v470 = vrot.slane %v404, %v469
    %v471 = vlaneseq
    %v472 = vshrl.u32 %v471, 7
    %v473 = vsub.s32 7, %v472
    %v474 = vrot.slane %v404, %v473
    %v475 = vlaneseq
    %v476 = vshrl.u32 %v475, 7
    %v477 = vsub.s32 0, %v476
    %v478 = vrot.slane %v405, %v477
    %v479 = vlaneseq
    %v480 = vshrl.u32 %v479, 7
    %v481 = vsub.s32 1, %v480
    %v482 = vrot.slane %v405, %v481
    %v483 = vlaneseq
    %v484 = vshrl.u32 %v483, 7
    %v485 = vsub.s32 2, %v484
    %v486 = vrot.slane %v405, %v485
    %v487 = vlaneseq
    %v488 = vshrl.u32 %v487, 7
    %v489 = vsub.s32 3, %v488
    %v490 = vrot.slane %v405, %v489
    %v491 = vlaneseq
    %v492 = vshrl.u32 %v491, 7
    %v493 = vsub.s32 4, %v492
    %v494 = vrot.slane %v405, %v493
    %v495 = vlaneseq
    %v496 = vshrl.u32 %v495, 7
    %v497 = vsub.s32 5, %v496
    %v498 = vrot.slane %v405, %v497
    %v499 = vlaneseq
    %v500 = vshrl.u32 %v499, 7
    %v501 = vsub.s32 6, %v500
    %v502 = vrot.slane %v405, %v501
    %v503 = vlaneseq
    %v504 = vshrl.u32 %v503, 7
    %v505 = vsub.s32 7, %v504
    %v506 = vrot.slane %v405, %v505
    %v507 = vlaneseq
    %v508 = vshrl.u32 %v507, 7
    %v509 = vsub.s32 0, %v508
    %v510 = vrot.slane %v406, %v509
    %v511 = vcombine.low %v414, %v418
    %v512 = vcombine.low %v422, %v426
    %v514 = vunpack.c.l.s4 1983009808
    %v515 = vunpack.c.0.s8 %v514
    %v516 = vlaneseq
    %v517 = vshrl.u32 %v516, 7
    %v518 = vsub.s32 %v515, %v517
    %v519 = vrot.slane %v511, %v518
    %v521 = vunpack.c.l.s4 1983009808
    %v522 = vunpack.c.0.s8 %v521
    %v523 = vlaneseq
    %v524 = vshrl.u32 %v523, 7
    %v525 = vsub.s32 %v522, %v524
    %v526 = vrot.slane %v512, %v525
    %v527 = vcombine.low %v519, %v526
    %v528 = vcombine.low %v430, %v434
    %v529 = vcombine.low %v438, %v442
    %v531 = vunpack.c.l.s4 1983009808
    %v532 = vunpack.c.0.s8 %v531
    %v533 = vlaneseq
    %v534 = vshrl.u32 %v533, 7
    %v535 = vsub.s32 %v532, %v534
    %v536 = vrot.slane %v528, %v535
    %v538 = vunpack.c.l.s4 1983009808
    %v539 = vunpack.c.0.s8 %v538
    %v540 = vlaneseq
    %v541 = vshrl.u32 %v540, 7
    %v542 = vsub.s32 %v539, %v541
    %v543 = vrot.slane %v529, %v542
    %v544 = vcombine.low %v536, %v543
    %v545 = vcombine.low %v446, %v450
    %v546 = vcombine.low %v454, %v458
    %v548 = vunpack.c.l.s4 1983009808
    %v549 = vunpack.c.0.s8 %v548
    %v550 = vlaneseq
    %v551 = vshrl.u32 %v550, 7
    %v552 = vsub.s32 %v549, %v551
    %v553 = vrot.slane %v545, %v552
    %v555 = vunpack.c.l.s4 1983009808
    %v556 = vunpack.c.0.s8 %v555
    %v557 = vlaneseq
    %v558 = vshrl.u32 %v557, 7
    %v559 = vsub.s32 %v556, %v558
    %v560 = vrot.slane %v546, %v559
    %v561 = vcombine.low %v553, %v560
    %v562 = vcombine.low %v462, %v466
    %v563 = vcombine.low %v470, %v474
    %v565 = vunpack.c.l.s4 1983009808
    %v566 = vunpack.c.0.s8 %v565
    %v567 = vlaneseq
    %v568 = vshrl.u32 %v567, 7
    %v569 = vsub.s32 %v566, %v568
    %v570 = vrot.slane %v562, %v569
    %v572 = vunpack.c.l.s4 1983009808
    %v573 = vunpack.c.0.s8 %v572
    %v574 = vlaneseq
    %v575 = vshrl.u32 %v574, 7
    %v576 = vsub.s32 %v573, %v575
    %v577 = vrot.slane %v563, %v576
    %v578 = vcombine.low %v570, %v577
    %v579 = vcombine.low %v478, %v482
    %v580 = vcombine.low %v486, %v490
    %v582 = vunpack.c.l.s4 1983009808
    %v583 = vunpack.c.0.s8 %v582
    %v584 = vlaneseq
    %v585 = vshrl.u32 %v584, 7
    %v586 = vsub.s32 %v583, %v585
    %v587 = vrot.slane %v579, %v586
    %v589 = vunpack.c.l.s4 1983009808
    %v590 = vunpack.c.0.s8 %v589
    %v591 = vlaneseq
    %v592 = vshrl.u32 %v591, 7
    %v593 = vsub.s32 %v590, %v592
    %v594 = vrot.slane %v580, %v593
    %v595 = vcombine.low %v587, %v594
    %v596 = vcombine.low %v494, %v498
    %v597 = vcombine.low %v502, %v506
    %v599 = vunpack.c.l.s4 1983009808
    %v600 = vunpack.c.0.s8 %v599
    %v601 = vlaneseq
    %v602 = vshrl.u32 %v601, 7
    %v603 = vsub.s32 %v600, %v602
    %v604 = vrot.slane %v596, %v603
    %v606 = vunpack.c.l.s4 1983009808
    %v607 = vunpack.c.0.s8 %v606
    %v608 = vlaneseq
    %v609 = vshrl.u32 %v608, 7
    %v610 = vsub.s32 %v607, %v609
    %v611 = vrot.slane %v597, %v610
    %v612 = vcombine.low %v604, %v611
    %v614 = vunpack.c.l.s4 1983009808
    %v615 = vunpack.c.0.s8 %v614
    %v616 = vlaneseq
    %v617 = vshrl.u32 %v616, 7
    %v618 = vsub.s32 %v615, %v617
    %v619 = vrot.slane %v510, %v618
    %v627 = vmul.f32 %v395, %v527
    %v628 = vmul.f32 %v396, %v544
    %v629 = vmul.f32 %v397, %v561
    %v630 = vmul.f32 %v398, %v578
    %v631 = vmul.f32 %v399, %v595
    %v632 = vmul.f32 %v400, %v612
    %v633 = vmul.f32 %v401, %v619
    %v634 = vadd.f32 %v387, %v627
    %v635 = vadd.f32 %v388, %v628
    %v636 = vadd.f32 %v389, %v629
    %v637 = vadd.f32 %v390, %v630
    %v638 = vadd.f32 %v391, %v631
    %v639 = vadd.f32 %v392, %v632
    %v640 = vadd.f32 %v393, %v633
    %s641 = scalar_lea.vmem %s1, 100
    %v642 = vld [vmem:[%s641] sm:$0xff]
    %v643 = vld [vmem:[%s641 + $0x8] sm:$0xff]
    %v644 = vld [vmem:[%s641 + $0x10] sm:$0xff]
    %v645 = vld [vmem:[%s641 + $0x18] sm:$0xff]
    %v646 = vld [vmem:[%s641 + $0x20] sm:$0xff]
    %v647 = vld [vmem:[%s641 + $0x28] sm:$0xff]
    %v648 = vld [vmem:[%s641 + $0x30] sm:$0x3]
    %s649 = scalar_lea.vmem [#allocation3], 50
    %v650 = vld [vmem:[%s649] sm:$0xff]
    %v651 = vld [vmem:[%s649 + $0x8] sm:$0xff]
    %v652 = vld [vmem:[%s649 + $0x10] sm:$0xff]
    %v653 = vld [vmem:[%s649 + $0x18] sm:$0x1]
    %v658 = vlaneseq
    %v659 = vshrl.u32 %v658, 7
    %v660 = vsub.s32 0, %v659
    %v661 = vrot.slane %v650, %v660
    %v662 = vlaneseq
    %v663 = vshrl.u32 %v662, 7
    %v664 = vsub.s32 1, %v663
    %v665 = vrot.slane %v650, %v664
    %v666 = vlaneseq
    %v667 = vshrl.u32 %v666, 7
    %v668 = vsub.s32 2, %v667
    %v669 = vrot.slane %v650, %v668
    %v670 = vlaneseq
    %v671 = vshrl.u32 %v670, 7
    %v672 = vsub.s32 3, %v671
    %v673 = vrot.slane %v650, %v672
    %v674 = vlaneseq
    %v675 = vshrl.u32 %v674, 7
    %v676 = vsub.s32 4, %v675
    %v677 = vrot.slane %v650, %v676
    %v678 = vlaneseq
    %v679 = vshrl.u32 %v678, 7
    %v680 = vsub.s32 5, %v679
    %v681 = vrot.slane %v650, %v680
    %v682 = vlaneseq
    %v683 = vshrl.u32 %v682, 7
    %v684 = vsub.s32 6, %v683
    %v685 = vrot.slane %v650, %v684
    %v686 = vlaneseq
    %v687 = vshrl.u32 %v686, 7
    %v688 = vsub.s32 7, %v687
    %v689 = vrot.slane %v650, %v688
    %v690 = vlaneseq
    %v691 = vshrl.u32 %v690, 7
    %v692 = vsub.s32 0, %v691
    %v693 = vrot.slane %v651, %v692
    %v694 = vlaneseq
    %v695 = vshrl.u32 %v694, 7
    %v696 = vsub.s32 1, %v695
    %v697 = vrot.slane %v651, %v696
    %v698 = vlaneseq
    %v699 = vshrl.u32 %v698, 7
    %v700 = vsub.s32 2, %v699
    %v701 = vrot.slane %v651, %v700
    %v702 = vlaneseq
    %v703 = vshrl.u32 %v702, 7
    %v704 = vsub.s32 3, %v703
    %v705 = vrot.slane %v651, %v704
    %v706 = vlaneseq
    %v707 = vshrl.u32 %v706, 7
    %v708 = vsub.s32 4, %v707
    %v709 = vrot.slane %v651, %v708
    %v710 = vlaneseq
    %v711 = vshrl.u32 %v710, 7
    %v712 = vsub.s32 5, %v711
    %v713 = vrot.slane %v651, %v712
    %v714 = vlaneseq
    %v715 = vshrl.u32 %v714, 7
    %v716 = vsub.s32 6, %v715
    %v717 = vrot.slane %v651, %v716
    %v718 = vlaneseq
    %v719 = vshrl.u32 %v718, 7
    %v720 = vsub.s32 7, %v719
    %v721 = vrot.slane %v651, %v720
    %v722 = vlaneseq
    %v723 = vshrl.u32 %v722, 7
    %v724 = vsub.s32 0, %v723
    %v725 = vrot.slane %v652, %v724
    %v726 = vlaneseq
    %v727 = vshrl.u32 %v726, 7
    %v728 = vsub.s32 1, %v727
    %v729 = vrot.slane %v652, %v728
    %v730 = vlaneseq
    %v731 = vshrl.u32 %v730, 7
    %v732 = vsub.s32 2, %v731
    %v733 = vrot.slane %v652, %v732
    %v734 = vlaneseq
    %v735 = vshrl.u32 %v734, 7
    %v736 = vsub.s32 3, %v735
    %v737 = vrot.slane %v652, %v736
    %v738 = vlaneseq
    %v739 = vshrl.u32 %v738, 7
    %v740 = vsub.s32 4, %v739
    %v741 = vrot.slane %v652, %v740
    %v742 = vlaneseq
    %v743 = vshrl.u32 %v742, 7
    %v744 = vsub.s32 5, %v743
    %v745 = vrot.slane %v652, %v744
    %v746 = vlaneseq
    %v747 = vshrl.u32 %v746, 7
    %v748 = vsub.s32 6, %v747
    %v749 = vrot.slane %v652, %v748
    %v750 = vlaneseq
    %v751 = vshrl.u32 %v750, 7
    %v752 = vsub.s32 7, %v751
    %v753 = vrot.slane %v652, %v752
    %v754 = vlaneseq
    %v755 = vshrl.u32 %v754, 7
    %v756 = vsub.s32 0, %v755
    %v757 = vrot.slane %v653, %v756
    %v758 = vcombine.low %v661, %v665
    %v759 = vcombine.low %v669, %v673
    %v761 = vunpack.c.l.s4 1983009808
    %v762 = vunpack.c.0.s8 %v761
    %v763 = vlaneseq
    %v764 = vshrl.u32 %v763, 7
    %v765 = vsub.s32 %v762, %v764
    %v766 = vrot.slane %v758, %v765
    %v768 = vunpack.c.l.s4 1983009808
    %v769 = vunpack.c.0.s8 %v768
    %v770 = vlaneseq
    %v771 = vshrl.u32 %v770, 7
    %v772 = vsub.s32 %v769, %v771
    %v773 = vrot.slane %v759, %v772
    %v774 = vcombine.low %v766, %v773
    %v775 = vcombine.low %v677, %v681
    %v776 = vcombine.low %v685, %v689
    %v778 = vunpack.c.l.s4 1983009808
    %v779 = vunpack.c.0.s8 %v778
    %v780 = vlaneseq
    %v781 = vshrl.u32 %v780, 7
    %v782 = vsub.s32 %v779, %v781
    %v783 = vrot.slane %v775, %v782
    %v785 = vunpack.c.l.s4 1983009808
    %v786 = vunpack.c.0.s8 %v785
    %v787 = vlaneseq
    %v788 = vshrl.u32 %v787, 7
    %v789 = vsub.s32 %v786, %v788
    %v790 = vrot.slane %v776, %v789
    %v791 = vcombine.low %v783, %v790
    %v792 = vcombine.low %v693, %v697
    %v793 = vcombine.low %v701, %v705
    %v795 = vunpack.c.l.s4 1983009808
    %v796 = vunpack.c.0.s8 %v795
    %v797 = vlaneseq
    %v798 = vshrl.u32 %v797, 7
    %v799 = vsub.s32 %v796, %v798
    %v800 = vrot.slane %v792, %v799
    %v802 = vunpack.c.l.s4 1983009808
    %v803 = vunpack.c.0.s8 %v802
    %v804 = vlaneseq
    %v805 = vshrl.u32 %v804, 7
    %v806 = vsub.s32 %v803, %v805
    %v807 = vrot.slane %v793, %v806
    %v808 = vcombine.low %v800, %v807
    %v809 = vcombine.low %v709, %v713
    %v810 = vcombine.low %v717, %v721
    %v812 = vunpack.c.l.s4 1983009808
    %v813 = vunpack.c.0.s8 %v812
    %v814 = vlaneseq
    %v815 = vshrl.u32 %v814, 7
    %v816 = vsub.s32 %v813, %v815
    %v817 = vrot.slane %v809, %v816
    %v819 = vunpack.c.l.s4 1983009808
    %v820 = vunpack.c.0.s8 %v819
    %v821 = vlaneseq
    %v822 = vshrl.u32 %v821, 7
    %v823 = vsub.s32 %v820, %v822
    %v824 = vrot.slane %v810, %v823
    %v825 = vcombine.low %v817, %v824
    %v826 = vcombine.low %v725, %v729
    %v827 = vcombine.low %v733, %v737
    %v829 = vunpack.c.l.s4 1983009808
    %v830 = vunpack.c.0.s8 %v829
    %v831 = vlaneseq
    %v832 = vshrl.u32 %v831, 7
    %v833 = vsub.s32 %v830, %v832
    %v834 = vrot.slane %v826, %v833
    %v836 = vunpack.c.l.s4 1983009808
    %v837 = vunpack.c.0.s8 %v836
    %v838 = vlaneseq
    %v839 = vshrl.u32 %v838, 7
    %v840 = vsub.s32 %v837, %v839
    %v841 = vrot.slane %v827, %v840
    %v842 = vcombine.low %v834, %v841
    %v843 = vcombine.low %v741, %v745
    %v844 = vcombine.low %v749, %v753
    %v846 = vunpack.c.l.s4 1983009808
    %v847 = vunpack.c.0.s8 %v846
    %v848 = vlaneseq
    %v849 = vshrl.u32 %v848, 7
    %v850 = vsub.s32 %v847, %v849
    %v851 = vrot.slane %v843, %v850
    %v853 = vunpack.c.l.s4 1983009808
    %v854 = vunpack.c.0.s8 %v853
    %v855 = vlaneseq
    %v856 = vshrl.u32 %v855, 7
    %v857 = vsub.s32 %v854, %v856
    %v858 = vrot.slane %v844, %v857
    %v859 = vcombine.low %v851, %v858
    %v861 = vunpack.c.l.s4 1983009808
    %v862 = vunpack.c.0.s8 %v861
    %v863 = vlaneseq
    %v864 = vshrl.u32 %v863, 7
    %v865 = vsub.s32 %v862, %v864
    %v866 = vrot.slane %v757, %v865
    %v874 = vmul.f32 %v642, %v774
    %v875 = vmul.f32 %v643, %v791
    %v876 = vmul.f32 %v644, %v808
    %v877 = vmul.f32 %v645, %v825
    %v878 = vmul.f32 %v646, %v842
    %v879 = vmul.f32 %v647, %v859
    %v880 = vmul.f32 %v648, %v866
    %v881 = vadd.f32 %v634, %v874
    %v882 = vadd.f32 %v635, %v875
    %v883 = vadd.f32 %v636, %v876
    %v884 = vadd.f32 %v637, %v877
    %v885 = vadd.f32 %v638, %v878
    %v886 = vadd.f32 %v639, %v879
    %v887 = vadd.f32 %v640, %v880
    %v888 = vld [vmem:[#allocation5] sm:$0xff]
    %v889 = vld [vmem:[#allocation5 + $0x8] sm:$0xff]
    %v890 = vld [vmem:[#allocation5 + $0x10] sm:$0xff]
    %v891 = vld [vmem:[#allocation5 + $0x18] sm:$0x1]
    %v896 = vlaneseq
    %v897 = vshrl.u32 %v896, 7
    %v898 = vsub.s32 0, %v897
    %v899 = vrot.slane %v888, %v898
    %v900 = vlaneseq
    %v901 = vshrl.u32 %v900, 7
    %v902 = vsub.s32 1, %v901
    %v903 = vrot.slane %v888, %v902
    %v904 = vlaneseq
    %v905 = vshrl.u32 %v904, 7
    %v906 = vsub.s32 2, %v905
    %v907 = vrot.slane %v888, %v906
    %v908 = vlaneseq
    %v909 = vshrl.u32 %v908, 7
    %v910 = vsub.s32 3, %v909
    %v911 = vrot.slane %v888, %v910
    %v912 = vlaneseq
    %v913 = vshrl.u32 %v912, 7
    %v914 = vsub.s32 4, %v913
    %v915 = vrot.slane %v888, %v914
    %v916 = vlaneseq
    %v917 = vshrl.u32 %v916, 7
    %v918 = vsub.s32 5, %v917
    %v919 = vrot.slane %v888, %v918
    %v920 = vlaneseq
    %v921 = vshrl.u32 %v920, 7
    %v922 = vsub.s32 6, %v921
    %v923 = vrot.slane %v888, %v922
    %v924 = vlaneseq
    %v925 = vshrl.u32 %v924, 7
    %v926 = vsub.s32 7, %v925
    %v927 = vrot.slane %v888, %v926
    %v928 = vlaneseq
    %v929 = vshrl.u32 %v928, 7
    %v930 = vsub.s32 0, %v929
    %v931 = vrot.slane %v889, %v930
    %v932 = vlaneseq
    %v933 = vshrl.u32 %v932, 7
    %v934 = vsub.s32 1, %v933
    %v935 = vrot.slane %v889, %v934
    %v936 = vlaneseq
    %v937 = vshrl.u32 %v936, 7
    %v938 = vsub.s32 2, %v937
    %v939 = vrot.slane %v889, %v938
    %v940 = vlaneseq
    %v941 = vshrl.u32 %v940, 7
    %v942 = vsub.s32 3, %v941
    %v943 = vrot.slane %v889, %v942
    %v944 = vlaneseq
    %v945 = vshrl.u32 %v944, 7
    %v946 = vsub.s32 4, %v945
    %v947 = vrot.slane %v889, %v946
    %v948 = vlaneseq
    %v949 = vshrl.u32 %v948, 7
    %v950 = vsub.s32 5, %v949
    %v951 = vrot.slane %v889, %v950
    %v952 = vlaneseq
    %v953 = vshrl.u32 %v952, 7
    %v954 = vsub.s32 6, %v953
    %v955 = vrot.slane %v889, %v954
    %v956 = vlaneseq
    %v957 = vshrl.u32 %v956, 7
    %v958 = vsub.s32 7, %v957
    %v959 = vrot.slane %v889, %v958
    %v960 = vlaneseq
    %v961 = vshrl.u32 %v960, 7
    %v962 = vsub.s32 0, %v961
    %v963 = vrot.slane %v890, %v962
    %v964 = vlaneseq
    %v965 = vshrl.u32 %v964, 7
    %v966 = vsub.s32 1, %v965
    %v967 = vrot.slane %v890, %v966
    %v968 = vlaneseq
    %v969 = vshrl.u32 %v968, 7
    %v970 = vsub.s32 2, %v969
    %v971 = vrot.slane %v890, %v970
    %v972 = vlaneseq
    %v973 = vshrl.u32 %v972, 7
    %v974 = vsub.s32 3, %v973
    %v975 = vrot.slane %v890, %v974
    %v976 = vlaneseq
    %v977 = vshrl.u32 %v976, 7
    %v978 = vsub.s32 4, %v977
    %v979 = vrot.slane %v890, %v978
    %v980 = vlaneseq
    %v981 = vshrl.u32 %v980, 7
    %v982 = vsub.s32 5, %v981
    %v983 = vrot.slane %v890, %v982
    %v984 = vlaneseq
    %v985 = vshrl.u32 %v984, 7
    %v986 = vsub.s32 6, %v985
    %v987 = vrot.slane %v890, %v986
    %v988 = vlaneseq
    %v989 = vshrl.u32 %v988, 7
    %v990 = vsub.s32 7, %v989
    %v991 = vrot.slane %v890, %v990
    %v992 = vlaneseq
    %v993 = vshrl.u32 %v992, 7
    %v994 = vsub.s32 0, %v993
    %v995 = vrot.slane %v891, %v994
    %v996 = vcombine.low %v899, %v903
    %v997 = vcombine.low %v907, %v911
    %v999 = vunpack.c.l.s4 1983009808
    %v1000 = vunpack.c.0.s8 %v999
    %v1001 = vlaneseq
    %v1002 = vshrl.u32 %v1001, 7
    %v1003 = vsub.s32 %v1000, %v1002
    %v1004 = vrot.slane %v996, %v1003
    %v1006 = vunpack.c.l.s4 1983009808
    %v1007 = vunpack.c.0.s8 %v1006
    %v1008 = vlaneseq
    %v1009 = vshrl.u32 %v1008, 7
    %v1010 = vsub.s32 %v1007, %v1009
    %v1011 = vrot.slane %v997, %v1010
    %v1012 = vcombine.low %v1004, %v1011
    %v1013 = vcombine.low %v915, %v919
    %v1014 = vcombine.low %v923, %v927
    %v1016 = vunpack.c.l.s4 1983009808
    %v1017 = vunpack.c.0.s8 %v1016
    %v1018 = vlaneseq
    %v1019 = vshrl.u32 %v1018, 7
    %v1020 = vsub.s32 %v1017, %v1019
    %v1021 = vrot.slane %v1013, %v1020
    %v1023 = vunpack.c.l.s4 1983009808
    %v1024 = vunpack.c.0.s8 %v1023
    %v1025 = vlaneseq
    %v1026 = vshrl.u32 %v1025, 7
    %v1027 = vsub.s32 %v1024, %v1026
    %v1028 = vrot.slane %v1014, %v1027
    %v1029 = vcombine.low %v1021, %v1028
    %v1030 = vcombine.low %v931, %v935
    %v1031 = vcombine.low %v939, %v943
    %v1033 = vunpack.c.l.s4 1983009808
    %v1034 = vunpack.c.0.s8 %v1033
    %v1035 = vlaneseq
    %v1036 = vshrl.u32 %v1035, 7
    %v1037 = vsub.s32 %v1034, %v1036
    %v1038 = vrot.slane %v1030, %v1037
    %v1040 = vunpack.c.l.s4 1983009808
    %v1041 = vunpack.c.0.s8 %v1040
    %v1042 = vlaneseq
    %v1043 = vshrl.u32 %v1042, 7
    %v1044 = vsub.s32 %v1041, %v1043
    %v1045 = vrot.slane %v1031, %v1044
    %v1046 = vcombine.low %v1038, %v1045
    %v1047 = vcombine.low %v947, %v951
    %v1048 = vcombine.low %v955, %v959
    %v1050 = vunpack.c.l.s4 1983009808
    %v1051 = vunpack.c.0.s8 %v1050
    %v1052 = vlaneseq
    %v1053 = vshrl.u32 %v1052, 7
    %v1054 = vsub.s32 %v1051, %v1053
    %v1055 = vrot.slane %v1047, %v1054
    %v1057 = vunpack.c.l.s4 1983009808
    %v1058 = vunpack.c.0.s8 %v1057
    %v1059 = vlaneseq
    %v1060 = vshrl.u32 %v1059, 7
    %v1061 = vsub.s32 %v1058, %v1060
    %v1062 = vrot.slane %v1048, %v1061
    %v1063 = vcombine.low %v1055, %v1062
    %v1064 = vcombine.low %v963, %v967
    %v1065 = vcombine.low %v971, %v975
    %v1067 = vunpack.c.l.s4 1983009808
    %v1068 = vunpack.c.0.s8 %v1067
    %v1069 = vlaneseq
    %v1070 = vshrl.u32 %v1069, 7
    %v1071 = vsub.s32 %v1068, %v1070
    %v1072 = vrot.slane %v1064, %v1071
    %v1074 = vunpack.c.l.s4 1983009808
    %v1075 = vunpack.c.0.s8 %v1074
    %v1076 = vlaneseq
    %v1077 = vshrl.u32 %v1076, 7
    %v1078 = vsub.s32 %v1075, %v1077
    %v1079 = vrot.slane %v1065, %v1078
    %v1080 = vcombine.low %v1072, %v1079
    %v1081 = vcombine.low %v979, %v983
    %v1082 = vcombine.low %v987, %v991
    %v1084 = vunpack.c.l.s4 1983009808
    %v1085 = vunpack.c.0.s8 %v1084
    %v1086 = vlaneseq
    %v1087 = vshrl.u32 %v1086, 7
    %v1088 = vsub.s32 %v1085, %v1087
    %v1089 = vrot.slane %v1081, %v1088
    %v1091 = vunpack.c.l.s4 1983009808
    %v1092 = vunpack.c.0.s8 %v1091
    %v1093 = vlaneseq
    %v1094 = vshrl.u32 %v1093, 7
    %v1095 = vsub.s32 %v1092, %v1094
    %v1096 = vrot.slane %v1082, %v1095
    %v1097 = vcombine.low %v1089, %v1096
    %v1099 = vunpack.c.l.s4 1983009808
    %v1100 = vunpack.c.0.s8 %v1099
    %v1101 = vlaneseq
    %v1102 = vshrl.u32 %v1101, 7
    %v1103 = vsub.s32 %v1100, %v1102
    %v1104 = vrot.slane %v995, %v1103
    %v1112 = vadd.f32 %v881, %v1012
    %v1113 = vadd.f32 %v882, %v1029
    %v1114 = vadd.f32 %v883, %v1046
    %v1115 = vadd.f32 %v884, %v1063
    %v1116 = vadd.f32 %v885, %v1080
    %v1117 = vadd.f32 %v886, %v1097
    %v1118 = vadd.f32 %v887, %v1104
    %v1119 = vmax.f32 %v1112, 0.0
    %v1120 = vmax.f32 %v1113, 0.0
    %v1121 = vmax.f32 %v1114, 0.0
    %v1122 = vmax.f32 %v1115, 0.0
    %v1123 = vmax.f32 %v1116, 0.0
    %v1124 = vmax.f32 %v1117, 0.0
    %v1125 = vmax.f32 %v1118, 0.0
    %v1126 = vlaneseq
    %v1127 = vshrl.u32 %v1126, 7
    %v1128 = vlaneseq
    %v1129 = vand.u32 %v1128, 127
    %v1130 = vadd.s32 %v1129, 128
    %v1131 = vadd.s32 %v1129, 256
    %v1132 = vadd.s32 %v1129, 384
    %v1133 = vadd.s32 %v1129, 512
    %v1134 = vadd.s32 %v1129, 640
    %v1135 = vadd.s32 %v1129, 768
    %v1136 = vadd.s32 %v1129, 896
    %v1137 = vadd.s32 %v1129, 1024
    %v1138 = vadd.s32 %v1129, 1152
    %v1139 = vadd.s32 %v1129, 1280
    %v1140 = vadd.s32 %v1129, 1408
    %v1141 = vadd.s32 %v1129, 1536
    %v1142 = vadd.s32 %v1129, 1664
    %v1143 = vadd.s32 %v1129, 1792
    %v1144 = vadd.s32 %v1129, 1920
    %v1145 = vadd.s32 %v1129, 2048
    %v1146 = vadd.s32 %v1129, 2176
    %v1147 = vadd.s32 %v1129, 2304
    %v1148 = vadd.s32 %v1129, 2432
    %v1149 = vadd.s32 %v1129, 2560
    %v1150 = vadd.s32 %v1129, 2688
    %v1151 = vadd.s32 %v1129, 2816
    %v1152 = vadd.s32 %v1129, 2944
    %v1153 = vadd.s32 %v1129, 3072
    %v1154 = vmul.u32 %v1127, 3136
    %v1155 = vadd.s32 %v1154, %v1129
    %v1156 = vadd.s32 %v1154, %v1130
    %v1157 = vadd.s32 %v1154, %v1131
    %v1158 = vadd.s32 %v1154, %v1132
    %v1159 = vadd.s32 %v1154, %v1133
    %v1160 = vadd.s32 %v1154, %v1134
    %v1161 = vadd.s32 %v1154, %v1135
    %v1162 = vadd.s32 %v1154, %v1136
    %v1163 = vadd.s32 %v1154, %v1137
    %v1164 = vadd.s32 %v1154, %v1138
    %v1165 = vadd.s32 %v1154, %v1139
    %v1166 = vadd.s32 %v1154, %v1140
    %v1167 = vadd.s32 %v1154, %v1141
    %v1168 = vadd.s32 %v1154, %v1142
    %v1169 = vadd.s32 %v1154, %v1143
    %v1170 = vadd.s32 %v1154, %v1144
    %v1171 = vadd.s32 %v1154, %v1145
    %v1172 = vadd.s32 %v1154, %v1146
    %v1173 = vadd.s32 %v1154, %v1147
    %v1174 = vadd.s32 %v1154, %v1148
    %v1175 = vadd.s32 %v1154, %v1149
    %v1176 = vadd.s32 %v1154, %v1150
    %v1177 = vadd.s32 %v1154, %v1151
    %v1178 = vadd.s32 %v1154, %v1152
    %v1179 = vadd.s32 %v1154, %v1153
    %s1180 = smul.u32 %s155, 2654435769
    %v1181 = vstv %s1180
    %v1182 = vadd.s32 %v1155, %v1181
    %v1183 = vadd.s32 %v1156, %v1181
    %v1184 = vadd.s32 %v1157, %v1181
    %v1185 = vadd.s32 %v1158, %v1181
    %v1186 = vadd.s32 %v1159, %v1181
    %v1187 = vadd.s32 %v1160, %v1181
    %v1188 = vadd.s32 %v1161, %v1181
    %v1189 = vadd.s32 %v1162, %v1181
    %v1190 = vadd.s32 %v1163, %v1181
    %v1191 = vadd.s32 %v1164, %v1181
    %v1192 = vadd.s32 %v1165, %v1181
    %v1193 = vadd.s32 %v1166, %v1181
    %v1194 = vadd.s32 %v1167, %v1181
    %v1195 = vadd.s32 %v1168, %v1181
    %v1196 = vadd.s32 %v1169, %v1181
    %v1197 = vadd.s32 %v1170, %v1181
    %v1198 = vadd.s32 %v1171, %v1181
    %v1199 = vadd.s32 %v1172, %v1181
    %v1200 = vadd.s32 %v1173, %v1181
    %v1201 = vadd.s32 %v1174, %v1181
    %v1202 = vadd.s32 %v1175, %v1181
    %v1203 = vadd.s32 %v1176, %v1181
    %v1204 = vadd.s32 %v1177, %v1181
    %v1205 = vadd.s32 %v1178, %v1181
    %v1206 = vadd.s32 %v1179, %v1181
    %v1207 = vshrl.u32 %v1182, 16
    %v1208 = vshrl.u32 %v1183, 16
    %v1209 = vshrl.u32 %v1184, 16
    %v1210 = vshrl.u32 %v1185, 16
    %v1211 = vshrl.u32 %v1186, 16
    %v1212 = vshrl.u32 %v1187, 16
    %v1213 = vshrl.u32 %v1188, 16
    %v1214 = vshrl.u32 %v1189, 16
    %v1215 = vshrl.u32 %v1190, 16
    %v1216 = vshrl.u32 %v1191, 16
    %v1217 = vshrl.u32 %v1192, 16
    %v1218 = vshrl.u32 %v1193, 16
    %v1219 = vshrl.u32 %v1194, 16
    %v1220 = vshrl.u32 %v1195, 16
    %v1221 = vshrl.u32 %v1196, 16
    %v1222 = vshrl.u32 %v1197, 16
    %v1223 = vshrl.u32 %v1198, 16
    %v1224 = vshrl.u32 %v1199, 16
    %v1225 = vshrl.u32 %v1200, 16
    %v1226 = vshrl.u32 %v1201, 16
    %v1227 = vshrl.u32 %v1202, 16
    %v1228 = vshrl.u32 %v1203, 16
    %v1229 = vshrl.u32 %v1204, 16
    %v1230 = vshrl.u32 %v1205, 16
    %v1231 = vshrl.u32 %v1206, 16
    %v1232 = vxor.u32 %v1182, %v1207
    %v1233 = vxor.u32 %v1183, %v1208
    %v1234 = vxor.u32 %v1184, %v1209
    %v1235 = vxor.u32 %v1185, %v1210
    %v1236 = vxor.u32 %v1186, %v1211
    %v1237 = vxor.u32 %v1187, %v1212
    %v1238 = vxor.u32 %v1188, %v1213
    %v1239 = vxor.u32 %v1189, %v1214
    %v1240 = vxor.u32 %v1190, %v1215
    %v1241 = vxor.u32 %v1191, %v1216
    %v1242 = vxor.u32 %v1192, %v1217
    %v1243 = vxor.u32 %v1193, %v1218
    %v1244 = vxor.u32 %v1194, %v1219
    %v1245 = vxor.u32 %v1195, %v1220
    %v1246 = vxor.u32 %v1196, %v1221
    %v1247 = vxor.u32 %v1197, %v1222
    %v1248 = vxor.u32 %v1198, %v1223
    %v1249 = vxor.u32 %v1199, %v1224
    %v1250 = vxor.u32 %v1200, %v1225
    %v1251 = vxor.u32 %v1201, %v1226
    %v1252 = vxor.u32 %v1202, %v1227
    %v1253 = vxor.u32 %v1203, %v1228
    %v1254 = vxor.u32 %v1204, %v1229
    %v1255 = vxor.u32 %v1205, %v1230
    %v1256 = vxor.u32 %v1206, %v1231
    %v1257 = vmul.u32 %v1232, 2146121005
    %v1258 = vmul.u32 %v1233, 2146121005
    %v1259 = vmul.u32 %v1234, 2146121005
    %v1260 = vmul.u32 %v1235, 2146121005
    %v1261 = vmul.u32 %v1236, 2146121005
    %v1262 = vmul.u32 %v1237, 2146121005
    %v1263 = vmul.u32 %v1238, 2146121005
    %v1264 = vmul.u32 %v1239, 2146121005
    %v1265 = vmul.u32 %v1240, 2146121005
    %v1266 = vmul.u32 %v1241, 2146121005
    %v1267 = vmul.u32 %v1242, 2146121005
    %v1268 = vmul.u32 %v1243, 2146121005
    %v1269 = vmul.u32 %v1244, 2146121005
    %v1270 = vmul.u32 %v1245, 2146121005
    %v1271 = vmul.u32 %v1246, 2146121005
    %v1272 = vmul.u32 %v1247, 2146121005
    %v1273 = vmul.u32 %v1248, 2146121005
    %v1274 = vmul.u32 %v1249, 2146121005
    %v1275 = vmul.u32 %v1250, 2146121005
    %v1276 = vmul.u32 %v1251, 2146121005
    %v1277 = vmul.u32 %v1252, 2146121005
    %v1278 = vmul.u32 %v1253, 2146121005
    %v1279 = vmul.u32 %v1254, 2146121005
    %v1280 = vmul.u32 %v1255, 2146121005
    %v1281 = vmul.u32 %v1256, 2146121005
    %v1282 = vshrl.u32 %v1257, 15
    %v1283 = vshrl.u32 %v1258, 15
    %v1284 = vshrl.u32 %v1259, 15
    %v1285 = vshrl.u32 %v1260, 15
    %v1286 = vshrl.u32 %v1261, 15
    %v1287 = vshrl.u32 %v1262, 15
    %v1288 = vshrl.u32 %v1263, 15
    %v1289 = vshrl.u32 %v1264, 15
    %v1290 = vshrl.u32 %v1265, 15
    %v1291 = vshrl.u32 %v1266, 15
    %v1292 = vshrl.u32 %v1267, 15
    %v1293 = vshrl.u32 %v1268, 15
    %v1294 = vshrl.u32 %v1269, 15
    %v1295 = vshrl.u32 %v1270, 15
    %v1296 = vshrl.u32 %v1271, 15
    %v1297 = vshrl.u32 %v1272, 15
    %v1298 = vshrl.u32 %v1273, 15
    %v1299 = vshrl.u32 %v1274, 15
    %v1300 = vshrl.u32 %v1275, 15
    %v1301 = vshrl.u32 %v1276, 15
    %v1302 = vshrl.u32 %v1277, 15
    %v1303 = vshrl.u32 %v1278, 15
    %v1304 = vshrl.u32 %v1279, 15
    %v1305 = vshrl.u32 %v1280, 15
    %v1306 = vshrl.u32 %v1281, 15
    %v1307 = vxor.u32 %v1257, %v1282
    %v1308 = vxor.u32 %v1258, %v1283
    %v1309 = vxor.u32 %v1259, %v1284
    %v1310 = vxor.u32 %v1260, %v1285
    %v1311 = vxor.u32 %v1261, %v1286
    %v1312 = vxor.u32 %v1262, %v1287
    %v1313 = vxor.u32 %v1263, %v1288
    %v1314 = vxor.u32 %v1264, %v1289
    %v1315 = vxor.u32 %v1265, %v1290
    %v1316 = vxor.u32 %v1266, %v1291
    %v1317 = vxor.u32 %v1267, %v1292
    %v1318 = vxor.u32 %v1268, %v1293
    %v1319 = vxor.u32 %v1269, %v1294
    %v1320 = vxor.u32 %v1270, %v1295
    %v1321 = vxor.u32 %v1271, %v1296
    %v1322 = vxor.u32 %v1272, %v1297
    %v1323 = vxor.u32 %v1273, %v1298
    %v1324 = vxor.u32 %v1274, %v1299
    %v1325 = vxor.u32 %v1275, %v1300
    %v1326 = vxor.u32 %v1276, %v1301
    %v1327 = vxor.u32 %v1277, %v1302
    %v1328 = vxor.u32 %v1278, %v1303
    %v1329 = vxor.u32 %v1279, %v1304
    %v1330 = vxor.u32 %v1280, %v1305
    %v1331 = vxor.u32 %v1281, %v1306
    %v1332 = vmul.u32 %v1307, 2221713035
    %v1333 = vmul.u32 %v1308, 2221713035
    %v1334 = vmul.u32 %v1309, 2221713035
    %v1335 = vmul.u32 %v1310, 2221713035
    %v1336 = vmul.u32 %v1311, 2221713035
    %v1337 = vmul.u32 %v1312, 2221713035
    %v1338 = vmul.u32 %v1313, 2221713035
    %v1339 = vmul.u32 %v1314, 2221713035
    %v1340 = vmul.u32 %v1315, 2221713035
    %v1341 = vmul.u32 %v1316, 2221713035
    %v1342 = vmul.u32 %v1317, 2221713035
    %v1343 = vmul.u32 %v1318, 2221713035
    %v1344 = vmul.u32 %v1319, 2221713035
    %v1345 = vmul.u32 %v1320, 2221713035
    %v1346 = vmul.u32 %v1321, 2221713035
    %v1347 = vmul.u32 %v1322, 2221713035
    %v1348 = vmul.u32 %v1323, 2221713035
    %v1349 = vmul.u32 %v1324, 2221713035
    %v1350 = vmul.u32 %v1325, 2221713035
    %v1351 = vmul.u32 %v1326, 2221713035
    %v1352 = vmul.u32 %v1327, 2221713035
    %v1353 = vmul.u32 %v1328, 2221713035
    %v1354 = vmul.u32 %v1329, 2221713035
    %v1355 = vmul.u32 %v1330, 2221713035
    %v1356 = vmul.u32 %v1331, 2221713035
    %v1357 = vshrl.u32 %v1332, 16
    %v1358 = vshrl.u32 %v1333, 16
    %v1359 = vshrl.u32 %v1334, 16
    %v1360 = vshrl.u32 %v1335, 16
    %v1361 = vshrl.u32 %v1336, 16
    %v1362 = vshrl.u32 %v1337, 16
    %v1363 = vshrl.u32 %v1338, 16
    %v1364 = vshrl.u32 %v1339, 16
    %v1365 = vshrl.u32 %v1340, 16
    %v1366 = vshrl.u32 %v1341, 16
    %v1367 = vshrl.u32 %v1342, 16
    %v1368 = vshrl.u32 %v1343, 16
    %v1369 = vshrl.u32 %v1344, 16
    %v1370 = vshrl.u32 %v1345, 16
    %v1371 = vshrl.u32 %v1346, 16
    %v1372 = vshrl.u32 %v1347, 16
    %v1373 = vshrl.u32 %v1348, 16
    %v1374 = vshrl.u32 %v1349, 16
    %v1375 = vshrl.u32 %v1350, 16
    %v1376 = vshrl.u32 %v1351, 16
    %v1377 = vshrl.u32 %v1352, 16
    %v1378 = vshrl.u32 %v1353, 16
    %v1379 = vshrl.u32 %v1354, 16
    %v1380 = vshrl.u32 %v1355, 16
    %v1381 = vshrl.u32 %v1356, 16
    %v1382 = vxor.u32 %v1332, %v1357
    %v1383 = vxor.u32 %v1333, %v1358
    %v1384 = vxor.u32 %v1334, %v1359
    %v1385 = vxor.u32 %v1335, %v1360
    %v1386 = vxor.u32 %v1336, %v1361
    %v1387 = vxor.u32 %v1337, %v1362
    %v1388 = vxor.u32 %v1338, %v1363
    %v1389 = vxor.u32 %v1339, %v1364
    %v1390 = vxor.u32 %v1340, %v1365
    %v1391 = vxor.u32 %v1341, %v1366
    %v1392 = vxor.u32 %v1342, %v1367
    %v1393 = vxor.u32 %v1343, %v1368
    %v1394 = vxor.u32 %v1344, %v1369
    %v1395 = vxor.u32 %v1345, %v1370
    %v1396 = vxor.u32 %v1346, %v1371
    %v1397 = vxor.u32 %v1347, %v1372
    %v1398 = vxor.u32 %v1348, %v1373
    %v1399 = vxor.u32 %v1349, %v1374
    %v1400 = vxor.u32 %v1350, %v1375
    %v1401 = vxor.u32 %v1351, %v1376
    %v1402 = vxor.u32 %v1352, %v1377
    %v1403 = vxor.u32 %v1353, %v1378
    %v1404 = vxor.u32 %v1354, %v1379
    %v1405 = vxor.u32 %v1355, %v1380
    %v1406 = vxor.u32 %v1356, %v1381
    %v1407 = vshrl.u32 %v1382, 1
    %v1408 = vshrl.u32 %v1383, 1
    %v1409 = vshrl.u32 %v1384, 1
    %v1410 = vshrl.u32 %v1385, 1
    %v1411 = vshrl.u32 %v1386, 1
    %v1412 = vshrl.u32 %v1387, 1
    %v1413 = vshrl.u32 %v1388, 1
    %v1414 = vshrl.u32 %v1389, 1
    %v1415 = vshrl.u32 %v1390, 1
    %v1416 = vshrl.u32 %v1391, 1
    %v1417 = vshrl.u32 %v1392, 1
    %v1418 = vshrl.u32 %v1393, 1
    %v1419 = vshrl.u32 %v1394, 1
    %v1420 = vshrl.u32 %v1395, 1
    %v1421 = vshrl.u32 %v1396, 1
    %v1422 = vshrl.u32 %v1397, 1
    %v1423 = vshrl.u32 %v1398, 1
    %v1424 = vshrl.u32 %v1399, 1
    %v1425 = vshrl.u32 %v1400, 1
    %v1426 = vshrl.u32 %v1401, 1
    %v1427 = vshrl.u32 %v1402, 1
    %v1428 = vshrl.u32 %v1403, 1
    %v1429 = vshrl.u32 %v1404, 1
    %v1430 = vshrl.u32 %v1405, 1
    %v1431 = vshrl.u32 %v1406, 1
    %vm1432 = vcmp.ge.s32.totalorder %v1407, 107374182
    %vm1433 = vcmp.ge.s32.totalorder %v1408, 107374182
    %vm1434 = vcmp.ge.s32.totalorder %v1409, 107374182
    %vm1435 = vcmp.ge.s32.totalorder %v1410, 107374182
    %vm1436 = vcmp.ge.s32.totalorder %v1411, 107374182
    %vm1437 = vcmp.ge.s32.totalorder %v1412, 107374182
    %vm1438 = vcmp.ge.s32.totalorder %v1413, 107374182
    %vm1439 = vcmp.ge.s32.totalorder %v1414, 107374182
    %vm1440 = vcmp.ge.s32.totalorder %v1415, 107374182
    %vm1441 = vcmp.ge.s32.totalorder %v1416, 107374182
    %vm1442 = vcmp.ge.s32.totalorder %v1417, 107374182
    %vm1443 = vcmp.ge.s32.totalorder %v1418, 107374182
    %vm1444 = vcmp.ge.s32.totalorder %v1419, 107374182
    %vm1445 = vcmp.ge.s32.totalorder %v1420, 107374182
    %vm1446 = vcmp.ge.s32.totalorder %v1421, 107374182
    %vm1447 = vcmp.ge.s32.totalorder %v1422, 107374182
    %vm1448 = vcmp.ge.s32.totalorder %v1423, 107374182
    %vm1449 = vcmp.ge.s32.totalorder %v1424, 107374182
    %vm1450 = vcmp.ge.s32.totalorder %v1425, 107374182
    %vm1451 = vcmp.ge.s32.totalorder %v1426, 107374182
    %vm1452 = vcmp.ge.s32.totalorder %v1427, 107374182
    %vm1453 = vcmp.ge.s32.totalorder %v1428, 107374182
    %vm1454 = vcmp.ge.s32.totalorder %v1429, 107374182
    %vm1455 = vcmp.ge.s32.totalorder %v1430, 107374182
    %vm1456 = vcmp.ge.s32.totalorder %v1431, 107374182
    %v1457 = vmul.f32 %v1119, 1.0526316
    %v1458 = vmul.f32 %v1120, 1.0526316
    %v1459 = vmul.f32 %v1121, 1.0526316
    %v1460 = vmul.f32 %v1122, 1.0526316
    %v1461 = vmul.f32 %v1123, 1.0526316
    %v1462 = vmul.f32 %v1124, 1.0526316
    %v1463 = vmul.f32 %v1125, 1.0526316
    %v1471 = vcombine.high %v1457, %v1457
    %v1473 = vunpack.c.l.s4 1983009808
    %v1474 = vunpack.c.0.s8 %v1473
    %v1475 = vlaneseq
    %v1476 = vshrl.u32 %v1475, 7
    %v1477 = vsub.s32 %v1474, %v1476
    %v1478 = vrot.slane %v1457, %v1477
    %v1480 = vunpack.c.l.s4 1983009808
    %v1481 = vunpack.c.0.s8 %v1480
    %v1482 = vlaneseq
    %v1483 = vshrl.u32 %v1482, 7
    %v1484 = vsub.s32 %v1481, %v1483
    %v1485 = vrot.slane %v1471, %v1484
    %v1486 = vcombine.high %v1478, %v1478
    %v1487 = vcombine.high %v1485, %v1485
    %v1488 = vcombine.high %v1458, %v1458
    %v1490 = vunpack.c.l.s4 1983009808
    %v1491 = vunpack.c.0.s8 %v1490
    %v1492 = vlaneseq
    %v1493 = vshrl.u32 %v1492, 7
    %v1494 = vsub.s32 %v1491, %v1493
    %v1495 = vrot.slane %v1458, %v1494
    %v1497 = vunpack.c.l.s4 1983009808
    %v1498 = vunpack.c.0.s8 %v1497
    %v1499 = vlaneseq
    %v1500 = vshrl.u32 %v1499, 7
    %v1501 = vsub.s32 %v1498, %v1500
    %v1502 = vrot.slane %v1488, %v1501
    %v1503 = vcombine.high %v1495, %v1495
    %v1504 = vcombine.high %v1502, %v1502
    %v1505 = vcombine.high %v1459, %v1459
    %v1507 = vunpack.c.l.s4 1983009808
    %v1508 = vunpack.c.0.s8 %v1507
    %v1509 = vlaneseq
    %v1510 = vshrl.u32 %v1509, 7
    %v1511 = vsub.s32 %v1508, %v1510
    %v1512 = vrot.slane %v1459, %v1511
    %v1514 = vunpack.c.l.s4 1983009808
    %v1515 = vunpack.c.0.s8 %v1514
    %v1516 = vlaneseq
    %v1517 = vshrl.u32 %v1516, 7
    %v1518 = vsub.s32 %v1515, %v1517
    %v1519 = vrot.slane %v1505, %v1518
    %v1520 = vcombine.high %v1512, %v1512
    %v1521 = vcombine.high %v1519, %v1519
    %v1522 = vcombine.high %v1460, %v1460
    %v1524 = vunpack.c.l.s4 1983009808
    %v1525 = vunpack.c.0.s8 %v1524
    %v1526 = vlaneseq
    %v1527 = vshrl.u32 %v1526, 7
    %v1528 = vsub.s32 %v1525, %v1527
    %v1529 = vrot.slane %v1460, %v1528
    %v1531 = vunpack.c.l.s4 1983009808
    %v1532 = vunpack.c.0.s8 %v1531
    %v1533 = vlaneseq
    %v1534 = vshrl.u32 %v1533, 7
    %v1535 = vsub.s32 %v1532, %v1534
    %v1536 = vrot.slane %v1522, %v1535
    %v1537 = vcombine.high %v1529, %v1529
    %v1538 = vcombine.high %v1536, %v1536
    %v1539 = vcombine.high %v1461, %v1461
    %v1541 = vunpack.c.l.s4 1983009808
    %v1542 = vunpack.c.0.s8 %v1541
    %v1543 = vlaneseq
    %v1544 = vshrl.u32 %v1543, 7
    %v1545 = vsub.s32 %v1542, %v1544
    %v1546 = vrot.slane %v1461, %v1545
    %v1548 = vunpack.c.l.s4 1983009808
    %v1549 = vunpack.c.0.s8 %v1548
    %v1550 = vlaneseq
    %v1551 = vshrl.u32 %v1550, 7
    %v1552 = vsub.s32 %v1549, %v1551
    %v1553 = vrot.slane %v1539, %v1552
    %v1554 = vcombine.high %v1546, %v1546
    %v1555 = vcombine.high %v1553, %v1553
    %v1556 = vcombine.high %v1462, %v1462
    %v1558 = vunpack.c.l.s4 1983009808
    %v1559 = vunpack.c.0.s8 %v1558
    %v1560 = vlaneseq
    %v1561 = vshrl.u32 %v1560, 7
    %v1562 = vsub.s32 %v1559, %v1561
    %v1563 = vrot.slane %v1462, %v1562
    %v1565 = vunpack.c.l.s4 1983009808
    %v1566 = vunpack.c.0.s8 %v1565
    %v1567 = vlaneseq
    %v1568 = vshrl.u32 %v1567, 7
    %v1569 = vsub.s32 %v1566, %v1568
    %v1570 = vrot.slane %v1556, %v1569
    %v1571 = vcombine.high %v1563, %v1563
    %v1572 = vcombine.high %v1570, %v1570
    %v1574 = vunpack.c.l.s4 1983009808
    %v1575 = vunpack.c.0.s8 %v1574
    %v1576 = vlaneseq
    %v1577 = vshrl.u32 %v1576, 7
    %v1578 = vsub.s32 %v1575, %v1577
    %v1579 = vrot.slane %v1463, %v1578
    %v1605 = vsel %vm1432, %v1478, 0.0
    %v1606 = vsel %vm1433, %v1486, 0.0
    %v1607 = vsel %vm1434, %v1485, 0.0
    %v1608 = vsel %vm1435, %v1487, 0.0
    %v1609 = vsel %vm1436, %v1495, 0.0
    %v1610 = vsel %vm1437, %v1503, 0.0
    %v1611 = vsel %vm1438, %v1502, 0.0
    %v1612 = vsel %vm1439, %v1504, 0.0
    %v1613 = vsel %vm1440, %v1512, 0.0
    %v1614 = vsel %vm1441, %v1520, 0.0
    %v1615 = vsel %vm1442, %v1519, 0.0
    %v1616 = vsel %vm1443, %v1521, 0.0
    %v1617 = vsel %vm1444, %v1529, 0.0
    %v1618 = vsel %vm1445, %v1537, 0.0
    %v1619 = vsel %vm1446, %v1536, 0.0
    %v1620 = vsel %vm1447, %v1538, 0.0
    %v1621 = vsel %vm1448, %v1546, 0.0
    %v1622 = vsel %vm1449, %v1554, 0.0
    %v1623 = vsel %vm1450, %v1553, 0.0
    %v1624 = vsel %vm1451, %v1555, 0.0
    %v1625 = vsel %vm1452, %v1563, 0.0
    %v1626 = vsel %vm1453, %v1571, 0.0
    %v1627 = vsel %vm1454, %v1570, 0.0
    %v1628 = vsel %vm1455, %v1572, 0.0
    %v1629 = vsel %vm1456, %v1579, 0.0
    %v1630 = vpack.c.bf16 %v1605, %v1605
    %v1631 = vpack.c.bf16 %v1606, %v1606
    %v1632 = vpack.c.bf16 %v1607, %v1607
    %v1633 = vpack.c.bf16 %v1608, %v1608
    %v1634 = vpack.c.bf16 %v1609, %v1609
    %v1635 = vpack.c.bf16 %v1610, %v1610
    %v1636 = vpack.c.bf16 %v1611, %v1611
    %v1637 = vpack.c.bf16 %v1612, %v1612
    %v1638 = vpack.c.bf16 %v1613, %v1613
    %v1639 = vpack.c.bf16 %v1614, %v1614
    %v1640 = vpack.c.bf16 %v1615, %v1615
    %v1641 = vpack.c.bf16 %v1616, %v1616
    %v1642 = vpack.c.bf16 %v1617, %v1617
    %v1643 = vpack.c.bf16 %v1618, %v1618
    %v1644 = vpack.c.bf16 %v1619, %v1619
    %v1645 = vpack.c.bf16 %v1620, %v1620
    %v1646 = vpack.c.bf16 %v1621, %v1621
    %v1647 = vpack.c.bf16 %v1622, %v1622
    %v1648 = vpack.c.bf16 %v1623, %v1623
    %v1649 = vpack.c.bf16 %v1624, %v1624
    %v1650 = vpack.c.bf16 %v1625, %v1625
    %v1651 = vpack.c.bf16 %v1626, %v1626
    %v1652 = vpack.c.bf16 %v1627, %v1627
    %v1653 = vpack.c.bf16 %v1628, %v1628
    %v1654 = vpack.c.bf16 %v1629, %v1629
    %v1655 = vld [vmem:[#allocation7] sm:$0xff]
    %v1656 = vld [vmem:[#allocation7 + $0x8] sm:$0xff]
    %v1657 = vld [vmem:[#allocation7 + $0x10] sm:$0xff]
    %v1658 = vld [vmem:[#allocation7 + $0x18] sm:$0xff]
    %v1659 = vld [vmem:[#allocation7 + $0x20] sm:$0xff]
    %v1660 = vld [vmem:[#allocation7 + $0x28] sm:$0xff]
    %v1661 = vld [vmem:[#allocation7 + $0x30] sm:$0xff]
    %v1662 = vld [vmem:[#allocation7 + $0x38] sm:$0xff]
    %v1663 = vld [vmem:[#allocation7 + $0x40] sm:$0xff]
    %v1664 = vld [vmem:[#allocation7 + $0x48] sm:$0xff]
    %v1665 = vld [vmem:[#allocation7 + $0x50] sm:$0xff]
    %v1666 = vld [vmem:[#allocation7 + $0x58] sm:$0xff]
    %v1667 = vld [vmem:[#allocation7 + $0x60] sm:$0xff]
    %v1668 = vld [vmem:[#allocation7 + $0x68] sm:$0xff]
    %v1669 = vld [vmem:[#allocation7 + $0x70] sm:$0xff]
    %v1670 = vld [vmem:[#allocation7 + $0x78] sm:$0xff]
    %v1671 = vld [vmem:[#allocation7 + $0x80] sm:$0xff]
    %v1672 = vld [vmem:[#allocation7 + $0x88] sm:$0xff]
    %v1673 = vld [vmem:[#allocation7 + $0x90] sm:$0xff]
    %v1674 = vld [vmem:[#allocation7 + $0x98] sm:$0xff]
    %v1675 = vld [vmem:[#allocation7 + $0xa0] sm:$0xff]
    %v1676 = vld [vmem:[#allocation7 + $0xa8] sm:$0xff]
    %v1677 = vld [vmem:[#allocation7 + $0xb0] sm:$0xff]
    %v1678 = vld [vmem:[#allocation7 + $0xb8] sm:$0xff]
    %v1679 = vld [vmem:[#allocation7 + $0xc0] sm:$0xff]
    %v1680 = vld [vmem:[#allocation7 + $0xc8] sm:$0xff]
    %v1681 = vld [vmem:[#allocation7 + $0xd0] sm:$0xff]
    %v1682 = vld [vmem:[#allocation7 + $0xd8] sm:$0xff]
    %v1683 = vld [vmem:[#allocation7 + $0xe0] sm:$0xff]
    %v1684 = vld [vmem:[#allocation7 + $0xe8] sm:$0xff]
    %v1685 = vld [vmem:[#allocation7 + $0xf0] sm:$0xff]
    %v1686 = vld [vmem:[#allocation7 + $0xf8] sm:$0xff]
    %v1687 = vld [vmem:[#allocation7 + $0x100] sm:$0xff]
    %v1688 = vld [vmem:[#allocation7 + $0x108] sm:$0xff]
    %v1689 = vld [vmem:[#allocation7 + $0x110] sm:$0xff]
    %v1690 = vld [vmem:[#allocation7 + $0x118] sm:$0xff]
    %v1691 = vld [vmem:[#allocation7 + $0x120] sm:$0xff]
    %v1692 = vld [vmem:[#allocation7 + $0x128] sm:$0xff]
    %v1693 = vld [vmem:[#allocation7 + $0x130] sm:$0xff]
    %v1694 = vld [vmem:[#allocation7 + $0x138] sm:$0xff]
    %v1695 = vld [vmem:[#allocation7 + $0x140] sm:$0xff]
    %v1696 = vld [vmem:[#allocation7 + $0x148] sm:$0xff]
    %v1697 = vld [vmem:[#allocation7 + $0x150] sm:$0xff]
    %v1698 = vld [vmem:[#allocation7 + $0x158] sm:$0xff]
    %v1699 = vld [vmem:[#allocation7 + $0x160] sm:$0xff]
    %v1700 = vld [vmem:[#allocation7 + $0x168] sm:$0xff]
    %v1701 = vld [vmem:[#allocation7 + $0x170] sm:$0xff]
    %v1702 = vld [vmem:[#allocation7 + $0x178] sm:$0xff]
    %v1703 = vld [vmem:[#allocation7 + $0x180] sm:$0xff]
    %v1704 = vld [vmem:[#allocation7 + $0x188] sm:$0xff]
    %v1705 = vld [vmem:[#allocation7 + $0x190] sm:$0xff]
    %v1706 = vld [vmem:[#allocation7 + $0x198] sm:$0xff]
    %v1707 = vld [vmem:[#allocation7 + $0x1a0] sm:$0xff]
    %v1708 = vld [vmem:[#allocation7 + $0x1a8] sm:$0xff]
    %v1709 = vld [vmem:[#allocation7 + $0x1b0] sm:$0xff]
    %v1710 = vld [vmem:[#allocation7 + $0x1b8] sm:$0xff]
    %v1711 = vld [vmem:[#allocation7 + $0x1c0] sm:$0xff]
    %v1712 = vld [vmem:[#allocation7 + $0x1c8] sm:$0xff]
    %v1713 = vld [vmem:[#allocation7 + $0x1d0] sm:$0xff]
    %v1714 = vld [vmem:[#allocation7 + $0x1d8] sm:$0xff]
    %v1715 = vld [vmem:[#allocation7 + $0x1e0] sm:$0xff]
    %v1716 = vld [vmem:[#allocation7 + $0x1e8] sm:$0xff]
    %v1717 = vld [vmem:[#allocation7 + $0x1f0] sm:$0xff]
    %v1718 = vld [vmem:[#allocation7 + $0x1f8] sm:$0xff]
    %v1719 = vld [vmem:[#allocation7 + $0x200] sm:$0xff]
    %v1720 = vld [vmem:[#allocation7 + $0x208] sm:$0xff]
    %v1721 = vld [vmem:[#allocation7 + $0x210] sm:$0xff]
    %v1722 = vld [vmem:[#allocation7 + $0x218] sm:$0xff]
    %v1723 = vld [vmem:[#allocation7 + $0x220] sm:$0xff]
    %v1724 = vld [vmem:[#allocation7 + $0x228] sm:$0xff]
    %v1725 = vld [vmem:[#allocation7 + $0x230] sm:$0xff]
    %v1726 = vld [vmem:[#allocation7 + $0x238] sm:$0xff]
    %v1727 = vld [vmem:[#allocation7 + $0x240] sm:$0xff]
    %v1728 = vld [vmem:[#allocation7 + $0x248] sm:$0xff]
    %v1729 = vld [vmem:[#allocation7 + $0x250] sm:$0xff]
    %v1730 = vld [vmem:[#allocation7 + $0x258] sm:$0xff]
    %v1731 = vld [vmem:[#allocation7 + $0x260] sm:$0xff]
    %v1732 = vld [vmem:[#allocation7 + $0x268] sm:$0xff]
    %v1733 = vld [vmem:[#allocation7 + $0x270] sm:$0xff]
    %v1734 = vld [vmem:[#allocation7 + $0x278] sm:$0xff]
    %v1735 = vld [vmem:[#allocation7 + $0x280] sm:$0xff]
    %v1736 = vld [vmem:[#allocation7 + $0x288] sm:$0xff]
    %v1737 = vld [vmem:[#allocation7 + $0x290] sm:$0xff]
    %v1738 = vld [vmem:[#allocation7 + $0x298] sm:$0xff]
    %v1739 = vld [vmem:[#allocation7 + $0x2a0] sm:$0xff]
    %v1740 = vld [vmem:[#allocation7 + $0x2a8] sm:$0xff]
    %v1741 = vld [vmem:[#allocation7 + $0x2b0] sm:$0xff]
    %v1742 = vld [vmem:[#allocation7 + $0x2b8] sm:$0xff]
    %v1743 = vld [vmem:[#allocation7 + $0x2c0] sm:$0xff]
    %v1744 = vld [vmem:[#allocation7 + $0x2c8] sm:$0xff]
    %v1745 = vld [vmem:[#allocation7 + $0x2d0] sm:$0xff]
    %v1746 = vld [vmem:[#allocation7 + $0x2d8] sm:$0xff]
    %v1747 = vld [vmem:[#allocation7 + $0x2e0] sm:$0xff]
    %v1748 = vld [vmem:[#allocation7 + $0x2e8] sm:$0xff]
    %v1749 = vld [vmem:[#allocation7 + $0x2f0] sm:$0xff]
    %v1750 = vld [vmem:[#allocation7 + $0x2f8] sm:$0xff]
    %v1751 = vld [vmem:[#allocation7 + $0x300] sm:$0xff]
    %v1752 = vld [vmem:[#allocation7 + $0x308] sm:$0xff]
    %v1753 = vld [vmem:[#allocation7 + $0x310] sm:$0xff]
    %v1754 = vld [vmem:[#allocation7 + $0x318] sm:$0xff]
    %v1755 = vld [vmem:[#allocation7 + $0x320] sm:$0xff]
    %v1756 = vld [vmem:[#allocation7 + $0x328] sm:$0xff]
    %v1757 = vld [vmem:[#allocation7 + $0x330] sm:$0xff]
    %v1758 = vld [vmem:[#allocation7 + $0x338] sm:$0xff]
    %v1759 = vld [vmem:[#allocation7 + $0x340] sm:$0xff]
    %v1760 = vld [vmem:[#allocation7 + $0x348] sm:$0xff]
    %v1761 = vld [vmem:[#allocation7 + $0x350] sm:$0xff]
    %v1762 = vld [vmem:[#allocation7 + $0x358] sm:$0xff]
    %v1763 = vld [vmem:[#allocation7 + $0x360] sm:$0xff]
    %v1764 = vld [vmem:[#allocation7 + $0x368] sm:$0xff]
    %v1765 = vld [vmem:[#allocation7 + $0x370] sm:$0xff]
    %v1766 = vld [vmem:[#allocation7 + $0x378] sm:$0xff]
    %v1767 = vld [vmem:[#allocation7 + $0x380] sm:$0xff]
    %v1768 = vld [vmem:[#allocation7 + $0x388] sm:$0xff]
    %v1769 = vld [vmem:[#allocation7 + $0x390] sm:$0xff]
    %v1770 = vld [vmem:[#allocation7 + $0x398] sm:$0xff]
    %v1771 = vld [vmem:[#allocation7 + $0x3a0] sm:$0xff]
    %v1772 = vld [vmem:[#allocation7 + $0x3a8] sm:$0xff]
    %v1773 = vld [vmem:[#allocation7 + $0x3b0] sm:$0xff]
    %v1774 = vld [vmem:[#allocation7 + $0x3b8] sm:$0xff]
    %v1775 = vld [vmem:[#allocation7 + $0x3c0] sm:$0xff]
    %v1776 = vld [vmem:[#allocation7 + $0x3c8] sm:$0xff]
    %v1777 = vld [vmem:[#allocation7 + $0x3d0] sm:$0xff]
    %v1778 = vld [vmem:[#allocation7 + $0x3d8] sm:$0xff]
    %v1779 = vld [vmem:[#allocation7 + $0x3e0] sm:$0xff]
    %v1780 = vld [vmem:[#allocation7 + $0x3e8] sm:$0xff]
    %v1781 = vld [vmem:[#allocation7 + $0x3f0] sm:$0xff]
    %v1782 = vld [vmem:[#allocation7 + $0x3f8] sm:$0xff]
    %v1783 = vld [vmem:[#allocation7 + $0x400] sm:$0xff]
    %v1784 = vld [vmem:[#allocation7 + $0x408] sm:$0xff]
    %v1785 = vld [vmem:[#allocation7 + $0x410] sm:$0xff]
    %v1786 = vld [vmem:[#allocation7 + $0x418] sm:$0xff]
    %v1787 = vld [vmem:[#allocation7 + $0x420] sm:$0xff]
    %v1788 = vld [vmem:[#allocation7 + $0x428] sm:$0xff]
    %v1789 = vld [vmem:[#allocation7 + $0x430] sm:$0xff]
    %v1790 = vld [vmem:[#allocation7 + $0x438] sm:$0xff]
    %v1791 = vld [vmem:[#allocation7 + $0x440] sm:$0xff]
    %v1792 = vld [vmem:[#allocation7 + $0x448] sm:$0xff]
    %v1793 = vld [vmem:[#allocation7 + $0x450] sm:$0xff]
    %v1794 = vld [vmem:[#allocation7 + $0x458] sm:$0xff]
    %v1795 = vld [vmem:[#allocation7 + $0x460] sm:$0xff]
    %v1796 = vld [vmem:[#allocation7 + $0x468] sm:$0xff]
    %v1797 = vld [vmem:[#allocation7 + $0x470] sm:$0xff]
    %v1798 = vld [vmem:[#allocation7 + $0x478] sm:$0xff]
    %v1799 = vld [vmem:[#allocation7 + $0x480] sm:$0xff]
    %v1800 = vld [vmem:[#allocation7 + $0x488] sm:$0xff]
    %v1801 = vld [vmem:[#allocation7 + $0x490] sm:$0xff]
    %v1802 = vld [vmem:[#allocation7 + $0x498] sm:$0xff]
    %v1803 = vld [vmem:[#allocation7 + $0x4a0] sm:$0xff]
    %v1804 = vld [vmem:[#allocation7 + $0x4a8] sm:$0xff]
    %v1805 = vld [vmem:[#allocation7 + $0x4b0] sm:$0xff]
    %v1806 = vld [vmem:[#allocation7 + $0x4b8] sm:$0xff]
    %v1807 = vld [vmem:[#allocation7 + $0x4c0] sm:$0xff]
    %v1808 = vld [vmem:[#allocation7 + $0x4c8] sm:$0xff]
    %v1809 = vld [vmem:[#allocation7 + $0x4d0] sm:$0xff]
    %v1810 = vld [vmem:[#allocation7 + $0x4d8] sm:$0xff]
    %v1811 = vld [vmem:[#allocation7 + $0x4e0] sm:$0xff]
    %v1812 = vld [vmem:[#allocation7 + $0x4e8] sm:$0xff]
    %v1813 = vld [vmem:[#allocation7 + $0x4f0] sm:$0xff]
    %v1814 = vld [vmem:[#allocation7 + $0x4f8] sm:$0xff]
    %v1815 = vld [vmem:[#allocation7 + $0x500] sm:$0xff]
    %v1816 = vld [vmem:[#allocation7 + $0x508] sm:$0xff]
    %v1817 = vld [vmem:[#allocation7 + $0x510] sm:$0xff]
    %v1818 = vld [vmem:[#allocation7 + $0x518] sm:$0xff]
    %v1819 = vld [vmem:[#allocation7 + $0x520] sm:$0xff]
    %v1820 = vld [vmem:[#allocation7 + $0x528] sm:$0xff]
    %v1821 = vld [vmem:[#allocation7 + $0x530] sm:$0xff]
    %v1822 = vld [vmem:[#allocation7 + $0x538] sm:$0xff]
    %v1823 = vld [vmem:[#allocation7 + $0x540] sm:$0xff]
    %v1824 = vld [vmem:[#allocation7 + $0x548] sm:$0xff]
    %v1825 = vld [vmem:[#allocation7 + $0x550] sm:$0xff]
    %v1826 = vld [vmem:[#allocation7 + $0x558] sm:$0xff]
    %v1827 = vld [vmem:[#allocation7 + $0x560] sm:$0xff]
    %v1828 = vld [vmem:[#allocation7 + $0x568] sm:$0xff]
    %v1829 = vld [vmem:[#allocation7 + $0x570] sm:$0xff]
    %v1830 = vld [vmem:[#allocation7 + $0x578] sm:$0xff]
    %v1831 = vld [vmem:[#allocation7 + $0x580] sm:$0xff]
    %v1832 = vld [vmem:[#allocation7 + $0x588] sm:$0xff]
    %v1833 = vld [vmem:[#allocation7 + $0x590] sm:$0xff]
    %v1834 = vld [vmem:[#allocation7 + $0x598] sm:$0xff]
    %v1835 = vld [vmem:[#allocation7 + $0x5a0] sm:$0xff]
    %v1836 = vld [vmem:[#allocation7 + $0x5a8] sm:$0xff]
    %v1837 = vld [vmem:[#allocation7 + $0x5b0] sm:$0xff]
    %v1838 = vld [vmem:[#allocation7 + $0x5b8] sm:$0xff]
    %v1839 = vld [vmem:[#allocation7 + $0x5c0] sm:$0xff]
    %v1840 = vld [vmem:[#allocation7 + $0x5c8] sm:$0xff]
    %v1841 = vld [vmem:[#allocation7 + $0x5d0] sm:$0xff]
    %v1842 = vld [vmem:[#allocation7 + $0x5d8] sm:$0xff]
    %v1843 = vld [vmem:[#allocation7 + $0x5e0] sm:$0xff]
    %v1844 = vld [vmem:[#allocation7 + $0x5e8] sm:$0xff]
    %v1845 = vld [vmem:[#allocation7 + $0x5f0] sm:$0xff]
    %v1846 = vld [vmem:[#allocation7 + $0x5f8] sm:$0xff]
    %v1847 = vld [vmem:[#allocation7 + $0x600] sm:$0xff]
    %v1848 = vld [vmem:[#allocation7 + $0x608] sm:$0xff]
    %v1849 = vld [vmem:[#allocation7 + $0x610] sm:$0xff]
    %v1850 = vld [vmem:[#allocation7 + $0x618] sm:$0xff]
    %v1851 = vld [vmem:[#allocation7 + $0x620] sm:$0xff]
    %v1852 = vld [vmem:[#allocation7 + $0x628] sm:$0xff]
    %v1853 = vld [vmem:[#allocation7 + $0x630] sm:$0xff]
    %v1854 = vld [vmem:[#allocation7 + $0x638] sm:$0xff]
    %v1855 = vld [vmem:[#allocation7 + $0x640] sm:$0xff]
    %v1856 = vld [vmem:[#allocation7 + $0x648] sm:$0xff]
    %v1857 = vld [vmem:[#allocation7 + $0x650] sm:$0xff]
    %v1858 = vld [vmem:[#allocation7 + $0x658] sm:$0xff]
    %v1859 = vld [vmem:[#allocation7 + $0x660] sm:$0xff]
    %v1860 = vld [vmem:[#allocation7 + $0x668] sm:$0xff]
    %v1861 = vld [vmem:[#allocation7 + $0x670] sm:$0xff]
    %v1862 = vld [vmem:[#allocation7 + $0x678] sm:$0xff]
    %v1863 = vld [vmem:[#allocation7 + $0x680] sm:$0xff]
    %v1864 = vld [vmem:[#allocation7 + $0x688] sm:$0xff]
    %v1865 = vld [vmem:[#allocation7 + $0x690] sm:$0xff]
    %v1866 = vld [vmem:[#allocation7 + $0x698] sm:$0xff]
    %v1867 = vld [vmem:[#allocation7 + $0x6a0] sm:$0xff]
    %v1868 = vld [vmem:[#allocation7 + $0x6a8] sm:$0xff]
    %v1869 = vld [vmem:[#allocation7 + $0x6b0] sm:$0xff]
    %v1870 = vld [vmem:[#allocation7 + $0x6b8] sm:$0xff]
    %v1871 = vld [vmem:[#allocation7 + $0x6c0] sm:$0xff]
    %v1872 = vld [vmem:[#allocation7 + $0x6c8] sm:$0xff]
    %v1873 = vld [vmem:[#allocation7 + $0x6d0] sm:$0xff]
    %v1874 = vld [vmem:[#allocation7 + $0x6d8] sm:$0xff]
    %v1875 = vld [vmem:[#allocation7 + $0x6e0] sm:$0xff]
    %v1876 = vld [vmem:[#allocation7 + $0x6e8] sm:$0xff]
    %v1877 = vld [vmem:[#allocation7 + $0x6f0] sm:$0xff]
    %v1878 = vld [vmem:[#allocation7 + $0x6f8] sm:$0xff]
    %v1879 = vld [vmem:[#allocation7 + $0x700] sm:$0xff]
    %v1880 = vld [vmem:[#allocation7 + $0x708] sm:$0xff]
    %v1881 = vld [vmem:[#allocation7 + $0x710] sm:$0xff]
    %v1882 = vld [vmem:[#allocation7 + $0x718] sm:$0xff]
    %v1883 = vld [vmem:[#allocation7 + $0x720] sm:$0xff]
    %v1884 = vld [vmem:[#allocation7 + $0x728] sm:$0xff]
    %v1885 = vld [vmem:[#allocation7 + $0x730] sm:$0xff]
    %v1886 = vld [vmem:[#allocation7 + $0x738] sm:$0xff]
    %v1887 = vld [vmem:[#allocation7 + $0x740] sm:$0xff]
    %v1888 = vld [vmem:[#allocation7 + $0x748] sm:$0xff]
    %v1889 = vld [vmem:[#allocation7 + $0x750] sm:$0xff]
    %v1890 = vld [vmem:[#allocation7 + $0x758] sm:$0xff]
    %v1891 = vld [vmem:[#allocation7 + $0x760] sm:$0xff]
    %v1892 = vld [vmem:[#allocation7 + $0x768] sm:$0xff]
    %v1893 = vld [vmem:[#allocation7 + $0x770] sm:$0xff]
    %v1894 = vld [vmem:[#allocation7 + $0x778] sm:$0xff]
    %v1895 = vld [vmem:[#allocation7 + $0x780] sm:$0xff]
    %v1896 = vld [vmem:[#allocation7 + $0x788] sm:$0xff]
    %v1897 = vld [vmem:[#allocation7 + $0x790] sm:$0xff]
    %v1898 = vld [vmem:[#allocation7 + $0x798] sm:$0xff]
    %v1899 = vld [vmem:[#allocation7 + $0x7a0] sm:$0xff]
    %v1900 = vld [vmem:[#allocation7 + $0x7a8] sm:$0xff]
    %v1901 = vld [vmem:[#allocation7 + $0x7b0] sm:$0xff]
    %v1902 = vld [vmem:[#allocation7 + $0x7b8] sm:$0xff]
    %v1903 = vld [vmem:[#allocation7 + $0x7c0] sm:$0xff]
    %v1904 = vld [vmem:[#allocation7 + $0x7c8] sm:$0xff]
    %v1905 = vld [vmem:[#allocation7 + $0x7d0] sm:$0xff]
    %v1906 = vld [vmem:[#allocation7 + $0x7d8] sm:$0xff]
    %v1907 = vld [vmem:[#allocation7 + $0x7e0] sm:$0xff]
    %v1908 = vld [vmem:[#allocation7 + $0x7e8] sm:$0xff]
    %v1909 = vld [vmem:[#allocation7 + $0x7f0] sm:$0xff]
    %v1910 = vld [vmem:[#allocation7 + $0x7f8] sm:$0xff]
    %v1911 = vld [vmem:[#allocation7 + $0x800] sm:$0xff]
    %v1912 = vld [vmem:[#allocation7 + $0x808] sm:$0xff]
    %v1913 = vld [vmem:[#allocation7 + $0x810] sm:$0xff]
    %v1914 = vld [vmem:[#allocation7 + $0x818] sm:$0xff]
    %v1915 = vld [vmem:[#allocation7 + $0x820] sm:$0xff]
    %v1916 = vld [vmem:[#allocation7 + $0x828] sm:$0xff]
    %v1917 = vld [vmem:[#allocation7 + $0x830] sm:$0xff]
    %v1918 = vld [vmem:[#allocation7 + $0x838] sm:$0xff]
    %v1919 = vld [vmem:[#allocation7 + $0x840] sm:$0xff]
    %v1920 = vld [vmem:[#allocation7 + $0x848] sm:$0xff]
    %v1921 = vld [vmem:[#allocation7 + $0x850] sm:$0xff]
    %v1922 = vld [vmem:[#allocation7 + $0x858] sm:$0xff]
    %v1923 = vld [vmem:[#allocation7 + $0x860] sm:$0xff]
    %v1924 = vld [vmem:[#allocation7 + $0x868] sm:$0xff]
    %v1925 = vld [vmem:[#allocation7 + $0x870] sm:$0xff]
    %v1926 = vld [vmem:[#allocation7 + $0x878] sm:$0xff]
    %v1927 = vld [vmem:[#allocation7 + $0x880] sm:$0xff]
    %v1928 = vld [vmem:[#allocation7 + $0x888] sm:$0xff]
    %v1929 = vld [vmem:[#allocation7 + $0x890] sm:$0xff]
    %v1930 = vld [vmem:[#allocation7 + $0x898] sm:$0xff]
    %v1931 = vld [vmem:[#allocation7 + $0x8a0] sm:$0xff]
    %v1932 = vld [vmem:[#allocation7 + $0x8a8] sm:$0xff]
    %v1933 = vld [vmem:[#allocation7 + $0x8b0] sm:$0xff]
    %v1934 = vld [vmem:[#allocation7 + $0x8b8] sm:$0xff]
    %v1935 = vld [vmem:[#allocation7 + $0x8c0] sm:$0xff]
    %v1936 = vld [vmem:[#allocation7 + $0x8c8] sm:$0xff]
    %v1937 = vld [vmem:[#allocation7 + $0x8d0] sm:$0xff]
    %v1938 = vld [vmem:[#allocation7 + $0x8d8] sm:$0xff]
    %v1939 = vld [vmem:[#allocation7 + $0x8e0] sm:$0xff]
    %v1940 = vld [vmem:[#allocation7 + $0x8e8] sm:$0xff]
    %v1941 = vld [vmem:[#allocation7 + $0x8f0] sm:$0xff]
    %v1942 = vld [vmem:[#allocation7 + $0x8f8] sm:$0xff]
    %v1943 = vld [vmem:[#allocation7 + $0x900] sm:$0xff]
    %v1944 = vld [vmem:[#allocation7 + $0x908] sm:$0xff]
    %v1945 = vld [vmem:[#allocation7 + $0x910] sm:$0xff]
    %v1946 = vld [vmem:[#allocation7 + $0x918] sm:$0xff]
    %v1947 = vld [vmem:[#allocation7 + $0x920] sm:$0xff]
    %v1948 = vld [vmem:[#allocation7 + $0x928] sm:$0xff]
    %v1949 = vld [vmem:[#allocation7 + $0x930] sm:$0xff]
    %v1950 = vld [vmem:[#allocation7 + $0x938] sm:$0xff]
    %v1951 = vld [vmem:[#allocation7 + $0x940] sm:$0xff]
    %v1952 = vld [vmem:[#allocation7 + $0x948] sm:$0xff]
    %v1953 = vld [vmem:[#allocation7 + $0x950] sm:$0xff]
    %v1954 = vld [vmem:[#allocation7 + $0x958] sm:$0xff]
    %v1955 = vld [vmem:[#allocation7 + $0x960] sm:$0xff]
    %v1956 = vld [vmem:[#allocation7 + $0x968] sm:$0xff]
    %v1957 = vld [vmem:[#allocation7 + $0x970] sm:$0xff]
    %v1958 = vld [vmem:[#allocation7 + $0x978] sm:$0xff]
    %v1959 = vld [vmem:[#allocation7 + $0x980] sm:$0xff]
    %v1960 = vld [vmem:[#allocation7 + $0x988] sm:$0xff]
    %v1961 = vld [vmem:[#allocation7 + $0x990] sm:$0xff]
    %v1962 = vld [vmem:[#allocation7 + $0x998] sm:$0xff]
    %v1963 = vld [vmem:[#allocation7 + $0x9a0] sm:$0xff]
    %v1964 = vld [vmem:[#allocation7 + $0x9a8] sm:$0xff]
    %v1965 = vld [vmem:[#allocation7 + $0x9b0] sm:$0xff]
    %v1966 = vld [vmem:[#allocation7 + $0x9b8] sm:$0xff]
    %v1967 = vld [vmem:[#allocation7 + $0x9c0] sm:$0xff]
    %v1968 = vld [vmem:[#allocation7 + $0x9c8] sm:$0xff]
    %v1969 = vld [vmem:[#allocation7 + $0x9d0] sm:$0xff]
    %v1970 = vld [vmem:[#allocation7 + $0x9d8] sm:$0xff]
    %v1971 = vld [vmem:[#allocation7 + $0x9e0] sm:$0xff]
    %v1972 = vld [vmem:[#allocation7 + $0x9e8] sm:$0xff]
    %v1973 = vld [vmem:[#allocation7 + $0x9f0] sm:$0xff]
    %v1974 = vld [vmem:[#allocation7 + $0x9f8] sm:$0xff]
    %v1975 = vld [vmem:[#allocation7 + $0xa00] sm:$0xff]
    %v1976 = vld [vmem:[#allocation7 + $0xa08] sm:$0xff]
    %v1977 = vld [vmem:[#allocation7 + $0xa10] sm:$0xff]
    %v1978 = vld [vmem:[#allocation7 + $0xa18] sm:$0xff]
    %v1979 = vld [vmem:[#allocation7 + $0xa20] sm:$0xff]
    %v1980 = vld [vmem:[#allocation7 + $0xa28] sm:$0xff]
    %v1981 = vld [vmem:[#allocation7 + $0xa30] sm:$0xff]
    %v1982 = vld [vmem:[#allocation7 + $0xa38] sm:$0xff]
    %v1983 = vld [vmem:[#allocation7 + $0xa40] sm:$0xff]
    %v1984 = vld [vmem:[#allocation7 + $0xa48] sm:$0xff]
    %v1985 = vld [vmem:[#allocation7 + $0xa50] sm:$0xff]
    %v1986 = vld [vmem:[#allocation7 + $0xa58] sm:$0xff]
    %v1987 = vld [vmem:[#allocation7 + $0xa60] sm:$0xff]
    %v1988 = vld [vmem:[#allocation7 + $0xa68] sm:$0xff]
    %v1989 = vld [vmem:[#allocation7 + $0xa70] sm:$0xff]
    %v1990 = vld [vmem:[#allocation7 + $0xa78] sm:$0xff]
    %v1991 = vld [vmem:[#allocation7 + $0xa80] sm:$0xff]
    %v1992 = vld [vmem:[#allocation7 + $0xa88] sm:$0xff]
    %v1993 = vld [vmem:[#allocation7 + $0xa90] sm:$0xff]
    %v1994 = vld [vmem:[#allocation7 + $0xa98] sm:$0xff]
    %v1995 = vld [vmem:[#allocation7 + $0xaa0] sm:$0xff]
    %v1996 = vld [vmem:[#allocation7 + $0xaa8] sm:$0xff]
    %v1997 = vld [vmem:[#allocation7 + $0xab0] sm:$0xff]
    %v1998 = vld [vmem:[#allocation7 + $0xab8] sm:$0xff]
    %v1999 = vld [vmem:[#allocation7 + $0xac0] sm:$0xff]
    %v2000 = vld [vmem:[#allocation7 + $0xac8] sm:$0xff]
    %v2001 = vld [vmem:[#allocation7 + $0xad0] sm:$0xff]
    %v2002 = vld [vmem:[#allocation7 + $0xad8] sm:$0xff]
    %v2003 = vld [vmem:[#allocation7 + $0xae0] sm:$0xff]
    %v2004 = vld [vmem:[#allocation7 + $0xae8] sm:$0xff]
    %v2005 = vld [vmem:[#allocation7 + $0xaf0] sm:$0xff]
    %v2006 = vld [vmem:[#allocation7 + $0xaf8] sm:$0xff]
    %v2007 = vld [vmem:[#allocation7 + $0xb00] sm:$0xff]
    %v2008 = vld [vmem:[#allocation7 + $0xb08] sm:$0xff]
    %v2009 = vld [vmem:[#allocation7 + $0xb10] sm:$0xff]
    %v2010 = vld [vmem:[#allocation7 + $0xb18] sm:$0xff]
    %v2011 = vld [vmem:[#allocation7 + $0xb20] sm:$0xff]
    %v2012 = vld [vmem:[#allocation7 + $0xb28] sm:$0xff]
    %v2013 = vld [vmem:[#allocation7 + $0xb30] sm:$0xff]
    %v2014 = vld [vmem:[#allocation7 + $0xb38] sm:$0xff]
    %v2015 = vld [vmem:[#allocation7 + $0xb40] sm:$0xff]
    %v2016 = vld [vmem:[#allocation7 + $0xb48] sm:$0xff]
    %v2017 = vld [vmem:[#allocation7 + $0xb50] sm:$0xff]
    %v2018 = vld [vmem:[#allocation7 + $0xb58] sm:$0xff]
    %v2019 = vld [vmem:[#allocation7 + $0xb60] sm:$0xff]
    %v2020 = vld [vmem:[#allocation7 + $0xb68] sm:$0xff]
    %v2021 = vld [vmem:[#allocation7 + $0xb70] sm:$0xff]
    %v2022 = vld [vmem:[#allocation7 + $0xb78] sm:$0xff]
    %v2023 = vld [vmem:[#allocation7 + $0xb80] sm:$0xff]
    %v2024 = vld [vmem:[#allocation7 + $0xb88] sm:$0xff]
    %v2025 = vld [vmem:[#allocation7 + $0xb90] sm:$0xff]
    %v2026 = vld [vmem:[#allocation7 + $0xb98] sm:$0xff]
    %v2027 = vld [vmem:[#allocation7 + $0xba0] sm:$0xff]
    %v2028 = vld [vmem:[#allocation7 + $0xba8] sm:$0xff]
    %v2029 = vld [vmem:[#allocation7 + $0xbb0] sm:$0xff]
    %v2030 = vld [vmem:[#allocation7 + $0xbb8] sm:$0xff]
    %v2031 = vld [vmem:[#allocation7 + $0xbc0] sm:$0xff]
    %v2032 = vld [vmem:[#allocation7 + $0xbc8] sm:$0xff]
    %v2033 = vld [vmem:[#allocation7 + $0xbd0] sm:$0xff]
    %v2034 = vld [vmem:[#allocation7 + $0xbd8] sm:$0xff]
    %v2035 = vld [vmem:[#allocation7 + $0xbe0] sm:$0xff]
    %v2036 = vld [vmem:[#allocation7 + $0xbe8] sm:$0xff]
    %v2037 = vld [vmem:[#allocation7 + $0xbf0] sm:$0xff]
    %v2038 = vld [vmem:[#allocation7 + $0xbf8] sm:$0xff]
    %v2039 = vld [vmem:[#allocation7 + $0xc00] sm:$0xff]
    %v2040 = vld [vmem:[#allocation7 + $0xc08] sm:$0xff]
    %v2041 = vld [vmem:[#allocation7 + $0xc10] sm:$0xff]
    %v2042 = vld [vmem:[#allocation7 + $0xc18] sm:$0xff]
    %v2043 = vld [vmem:[#allocation7 + $0xc20] sm:$0xff]
    %v2044 = vld [vmem:[#allocation7 + $0xc28] sm:$0xff]
    %v2045 = vld [vmem:[#allocation7 + $0xc30] sm:$0xff]
    %v2046 = vld [vmem:[#allocation7 + $0xc38] sm:$0xff]
    %v2047 = vld [vmem:[#allocation7 + $0xc40] sm:$0xff]
    %v2048 = vld [vmem:[#allocation7 + $0xc48] sm:$0xff]
    %v2049 = vld [vmem:[#allocation7 + $0xc50] sm:$0xff]
    %v2050 = vld [vmem:[#allocation7 + $0xc58] sm:$0xff]
    %v2051 = vld [vmem:[#allocation7 + $0xc60] sm:$0xff]
    %v2052 = vld [vmem:[#allocation7 + $0xc68] sm:$0xff]
    %v2053 = vld [vmem:[#allocation7 + $0xc70] sm:$0xff]
    %v2054 = vld [vmem:[#allocation7 + $0xc78] sm:$0xff]
    %v2055 = vld [vmem:[#allocation7 + $0xc80] sm:$0xff]
    %v2056 = vld [vmem:[#allocation7 + $0xc88] sm:$0xff]
    %v2057 = vld [vmem:[#allocation7 + $0xc90] sm:$0xff]
    %v2058 = vld [vmem:[#allocation7 + $0xc98] sm:$0xff]
    %v2059 = vld [vmem:[#allocation7 + $0xca0] sm:$0xff]
    %v2060 = vld [vmem:[#allocation7 + $0xca8] sm:$0xff]
    %v2061 = vld [vmem:[#allocation7 + $0xcb0] sm:$0xff]
    %v2062 = vld [vmem:[#allocation7 + $0xcb8] sm:$0xff]
    %v2063 = vld [vmem:[#allocation7 + $0xcc0] sm:$0xff]
    %v2064 = vld [vmem:[#allocation7 + $0xcc8] sm:$0xff]
    %v2065 = vld [vmem:[#allocation7 + $0xcd0] sm:$0xff]
    %v2066 = vld [vmem:[#allocation7 + $0xcd8] sm:$0xff]
    %v2067 = vld [vmem:[#allocation7 + $0xce0] sm:$0xff]
    %v2068 = vld [vmem:[#allocation7 + $0xce8] sm:$0xff]
    %v2069 = vld [vmem:[#allocation7 + $0xcf0] sm:$0xff]
    %v2070 = vld [vmem:[#allocation7 + $0xcf8] sm:$0xff]
    %v2071 = vld [vmem:[#allocation7 + $0xd00] sm:$0xff]
    %v2072 = vld [vmem:[#allocation7 + $0xd08] sm:$0xff]
    %v2073 = vld [vmem:[#allocation7 + $0xd10] sm:$0xff]
    %v2074 = vld [vmem:[#allocation7 + $0xd18] sm:$0xff]
    %v2075 = vld [vmem:[#allocation7 + $0xd20] sm:$0xff]
    %v2076 = vld [vmem:[#allocation7 + $0xd28] sm:$0xff]
    %v2077 = vld [vmem:[#allocation7 + $0xd30] sm:$0xff]
    %v2078 = vld [vmem:[#allocation7 + $0xd38] sm:$0xff]
    %v2079 = vld [vmem:[#allocation7 + $0xd40] sm:$0xff]
    %v2080 = vld [vmem:[#allocation7 + $0xd48] sm:$0xff]
    %v2081 = vld [vmem:[#allocation7 + $0xd50] sm:$0xff]
    %v2082 = vld [vmem:[#allocation7 + $0xd58] sm:$0xff]
    %v2083 = vld [vmem:[#allocation7 + $0xd60] sm:$0xff]
    %v2084 = vld [vmem:[#allocation7 + $0xd68] sm:$0xff]
    %v2085 = vld [vmem:[#allocation7 + $0xd70] sm:$0xff]
    %v2086 = vld [vmem:[#allocation7 + $0xd78] sm:$0xff]
    %v2087 = vld [vmem:[#allocation7 + $0xd80] sm:$0xff]
    %v2088 = vld [vmem:[#allocation7 + $0xd88] sm:$0xff]
    %v2089 = vld [vmem:[#allocation7 + $0xd90] sm:$0xff]
    %v2090 = vld [vmem:[#allocation7 + $0xd98] sm:$0xff]
    %v2091 = vld [vmem:[#allocation7 + $0xda0] sm:$0xff]
    %v2092 = vld [vmem:[#allocation7 + $0xda8] sm:$0xff]
    %v2093 = vld [vmem:[#allocation7 + $0xdb0] sm:$0xff]
    %v2094 = vld [vmem:[#allocation7 + $0xdb8] sm:$0xff]
    %v2095 = vld [vmem:[#allocation7 + $0xdc0] sm:$0xff]
    %v2096 = vld [vmem:[#allocation7 + $0xdc8] sm:$0xff]
    %v2097 = vld [vmem:[#allocation7 + $0xdd0] sm:$0xff]
    %v2098 = vld [vmem:[#allocation7 + $0xdd8] sm:$0xff]
    %v2099 = vld [vmem:[#allocation7 + $0xde0] sm:$0xff]
    %v2100 = vld [vmem:[#allocation7 + $0xde8] sm:$0xff]
    %v2101 = vld [vmem:[#allocation7 + $0xdf0] sm:$0xff]
    %v2102 = vld [vmem:[#allocation7 + $0xdf8] sm:$0xff]
    %v2103 = vld [vmem:[#allocation7 + $0xe00] sm:$0xff]
    %v2104 = vld [vmem:[#allocation7 + $0xe08] sm:$0xff]
    %v2105 = vld [vmem:[#allocation7 + $0xe10] sm:$0xff]
    %v2106 = vld [vmem:[#allocation7 + $0xe18] sm:$0xff]
    %v2107 = vld [vmem:[#allocation7 + $0xe20] sm:$0xff]
    %v2108 = vld [vmem:[#allocation7 + $0xe28] sm:$0xff]
    %v2109 = vld [vmem:[#allocation7 + $0xe30] sm:$0xff]
    %v2110 = vld [vmem:[#allocation7 + $0xe38] sm:$0xff]
    %v2111 = vld [vmem:[#allocation7 + $0xe40] sm:$0xff]
    %v2112 = vld [vmem:[#allocation7 + $0xe48] sm:$0xff]
    %v2113 = vld [vmem:[#allocation7 + $0xe50] sm:$0xff]
    %v2114 = vld [vmem:[#allocation7 + $0xe58] sm:$0xff]
    %v2115 = vld [vmem:[#allocation7 + $0xe60] sm:$0xff]
    %v2116 = vld [vmem:[#allocation7 + $0xe68] sm:$0xff]
    %v2117 = vld [vmem:[#allocation7 + $0xe70] sm:$0xff]
    %v2118 = vld [vmem:[#allocation7 + $0xe78] sm:$0xff]
    %v2119 = vld [vmem:[#allocation7 + $0xe80] sm:$0xff]
    %v2120 = vld [vmem:[#allocation7 + $0xe88] sm:$0xff]
    %v2121 = vld [vmem:[#allocation7 + $0xe90] sm:$0xff]
    %v2122 = vld [vmem:[#allocation7 + $0xe98] sm:$0xff]
    %v2123 = vld [vmem:[#allocation7 + $0xea0] sm:$0xff]
    %v2124 = vld [vmem:[#allocation7 + $0xea8] sm:$0xff]
    %v2125 = vld [vmem:[#allocation7 + $0xeb0] sm:$0xff]
    %v2126 = vld [vmem:[#allocation7 + $0xeb8] sm:$0xff]
    %v2127 = vld [vmem:[#allocation7 + $0xec0] sm:$0xff]
    %v2128 = vld [vmem:[#allocation7 + $0xec8] sm:$0xff]
    %v2129 = vld [vmem:[#allocation7 + $0xed0] sm:$0xff]
    %v2130 = vld [vmem:[#allocation7 + $0xed8] sm:$0xff]
    %v2131 = vld [vmem:[#allocation7 + $0xee0] sm:$0xff]
    %v2132 = vld [vmem:[#allocation7 + $0xee8] sm:$0xff]
    %v2133 = vld [vmem:[#allocation7 + $0xef0] sm:$0xff]
    %v2134 = vld [vmem:[#allocation7 + $0xef8] sm:$0xff]
    %v2135 = vld [vmem:[#allocation7 + $0xf00] sm:$0xff]
    %v2136 = vld [vmem:[#allocation7 + $0xf08] sm:$0xff]
    %v2137 = vld [vmem:[#allocation7 + $0xf10] sm:$0xff]
    %v2138 = vld [vmem:[#allocation7 + $0xf18] sm:$0xff]
    %v2139 = vld [vmem:[#allocation7 + $0xf20] sm:$0xff]
    %v2140 = vld [vmem:[#allocation7 + $0xf28] sm:$0xff]
    %v2141 = vld [vmem:[#allocation7 + $0xf30] sm:$0xff]
    %v2142 = vld [vmem:[#allocation7 + $0xf38] sm:$0xff]
    %v2143 = vld [vmem:[#allocation7 + $0xf40] sm:$0xff]
    %v2144 = vld [vmem:[#allocation7 + $0xf48] sm:$0xff]
    %v2145 = vld [vmem:[#allocation7 + $0xf50] sm:$0xff]
    %v2146 = vld [vmem:[#allocation7 + $0xf58] sm:$0xff]
    %v2147 = vld [vmem:[#allocation7 + $0xf60] sm:$0xff]
    %v2148 = vld [vmem:[#allocation7 + $0xf68] sm:$0xff]
    %v2149 = vld [vmem:[#allocation7 + $0xf70] sm:$0xff]
    %v2150 = vld [vmem:[#allocation7 + $0xf78] sm:$0xff]
    %v2151 = vld [vmem:[#allocation7 + $0xf80] sm:$0xff]
    %v2152 = vld [vmem:[#allocation7 + $0xf88] sm:$0xff]
    %v2153 = vld [vmem:[#allocation7 + $0xf90] sm:$0xff]
    %v2154 = vld [vmem:[#allocation7 + $0xf98] sm:$0xff]
    %v2155 = vld [vmem:[#allocation7 + $0xfa0] sm:$0xff]
    %v2156 = vld [vmem:[#allocation7 + $0xfa8] sm:$0xff]
    %v2157 = vld [vmem:[#allocation7 + $0xfb0] sm:$0xff]
    %v2158 = vld [vmem:[#allocation7 + $0xfb8] sm:$0xff]
    %v2159 = vld [vmem:[#allocation7 + $0xfc0] sm:$0xff]
    %v2160 = vld [vmem:[#allocation7 + $0xfc8] sm:$0xff]
    %v2161 = vld [vmem:[#allocation7 + $0xfd0] sm:$0xff]
    %v2162 = vld [vmem:[#allocation7 + $0xfd8] sm:$0xff]
    %v2163 = vld [vmem:[#allocation7 + $0xfe0] sm:$0xff]
    %v2164 = vld [vmem:[#allocation7 + $0xfe8] sm:$0xff]
    %v2165 = vld [vmem:[#allocation7 + $0xff0] sm:$0xff]
    %v2166 = vld [vmem:[#allocation7 + $0xff8] sm:$0xff]
    %v2167 = vld [vmem:[#allocation7 + $0x1000] sm:$0xff]
    %v2168 = vld [vmem:[#allocation7 + $0x1008] sm:$0xff]
    %v2169 = vld [vmem:[#allocation7 + $0x1010] sm:$0xff]
    %v2170 = vld [vmem:[#allocation7 + $0x1018] sm:$0xff]
    %v2171 = vld [vmem:[#allocation7 + $0x1020] sm:$0xff]
    %v2172 = vld [vmem:[#allocation7 + $0x1028] sm:$0xff]
    %v2173 = vld [vmem:[#allocation7 + $0x1030] sm:$0xff]
    %v2174 = vld [vmem:[#allocation7 + $0x1038] sm:$0xff]
    %v2175 = vld [vmem:[#allocation7 + $0x1040] sm:$0xff]
    %v2176 = vld [vmem:[#allocation7 + $0x1048] sm:$0xff]
    %v2177 = vld [vmem:[#allocation7 + $0x1050] sm:$0xff]
    %v2178 = vld [vmem:[#allocation7 + $0x1058] sm:$0xff]
    %v2179 = vld [vmem:[#allocation7 + $0x1060] sm:$0xff]
    %v2180 = vld [vmem:[#allocation7 + $0x1068] sm:$0xff]
    %v2181 = vld [vmem:[#allocation7 + $0x1070] sm:$0xff]
    %v2182 = vld [vmem:[#allocation7 + $0x1078] sm:$0xff]
    %v2183 = vld [vmem:[#allocation7 + $0x1080] sm:$0xff]
    %v2184 = vld [vmem:[#allocation7 + $0x1088] sm:$0xff]
    %v2185 = vld [vmem:[#allocation7 + $0x1090] sm:$0xff]
    %v2186 = vld [vmem:[#allocation7 + $0x1098] sm:$0xff]
    %v2187 = vld [vmem:[#allocation7 + $0x10a0] sm:$0xff]
    %v2188 = vld [vmem:[#allocation7 + $0x10a8] sm:$0xff]
    %v2189 = vld [vmem:[#allocation7 + $0x10b0] sm:$0xff]
    %v2190 = vld [vmem:[#allocation7 + $0x10b8] sm:$0xff]
    %v2191 = vld [vmem:[#allocation7 + $0x10c0] sm:$0xff]
    %v2192 = vld [vmem:[#allocation7 + $0x10c8] sm:$0xff]
    %v2193 = vld [vmem:[#allocation7 + $0x10d0] sm:$0xff]
    %v2194 = vld [vmem:[#allocation7 + $0x10d8] sm:$0xff]
    %v2195 = vld [vmem:[#allocation7 + $0x10e0] sm:$0xff]
    %v2196 = vld [vmem:[#allocation7 + $0x10e8] sm:$0xff]
    %v2197 = vld [vmem:[#allocation7 + $0x10f0] sm:$0xff]
    %v2198 = vld [vmem:[#allocation7 + $0x10f8] sm:$0xff]
    %v2199 = vld [vmem:[#allocation7 + $0x1100] sm:$0xff]
    %v2200 = vld [vmem:[#allocation7 + $0x1108] sm:$0xff]
    %v2201 = vld [vmem:[#allocation7 + $0x1110] sm:$0xff]
    %v2202 = vld [vmem:[#allocation7 + $0x1118] sm:$0xff]
    %v2203 = vld [vmem:[#allocation7 + $0x1120] sm:$0xff]
    %v2204 = vld [vmem:[#allocation7 + $0x1128] sm:$0xff]
    %v2205 = vld [vmem:[#allocation7 + $0x1130] sm:$0xff]
    %v2206 = vld [vmem:[#allocation7 + $0x1138] sm:$0xff]
    %v2207 = vld [vmem:[#allocation7 + $0x1140] sm:$0xff]
    %v2208 = vld [vmem:[#allocation7 + $0x1148] sm:$0xff]
    %v2209 = vld [vmem:[#allocation7 + $0x1150] sm:$0xff]
    %v2210 = vld [vmem:[#allocation7 + $0x1158] sm:$0xff]
    %v2211 = vld [vmem:[#allocation7 + $0x1160] sm:$0xff]
    %v2212 = vld [vmem:[#allocation7 + $0x1168] sm:$0xff]
    %v2213 = vld [vmem:[#allocation7 + $0x1170] sm:$0xff]
    %v2214 = vld [vmem:[#allocation7 + $0x1178] sm:$0xff]
    %v2215 = vld [vmem:[#allocation7 + $0x1180] sm:$0xff]
    %v2216 = vld [vmem:[#allocation7 + $0x1188] sm:$0xff]
    %v2217 = vld [vmem:[#allocation7 + $0x1190] sm:$0xff]
    %v2218 = vld [vmem:[#allocation7 + $0x1198] sm:$0xff]
    %v2219 = vld [vmem:[#allocation7 + $0x11a0] sm:$0xff]
    %v2220 = vld [vmem:[#allocation7 + $0x11a8] sm:$0xff]
    %v2221 = vld [vmem:[#allocation7 + $0x11b0] sm:$0xff]
    %v2222 = vld [vmem:[#allocation7 + $0x11b8] sm:$0xff]
    %v2223 = vld [vmem:[#allocation7 + $0x11c0] sm:$0xff]
    %v2224 = vld [vmem:[#allocation7 + $0x11c8] sm:$0xff]
    %v2225 = vld [vmem:[#allocation7 + $0x11d0] sm:$0xff]
    %v2226 = vld [vmem:[#allocation7 + $0x11d8] sm:$0xff]
    %v2227 = vld [vmem:[#allocation7 + $0x11e0] sm:$0xff]
    %v2228 = vld [vmem:[#allocation7 + $0x11e8] sm:$0xff]
    %v2229 = vld [vmem:[#allocation7 + $0x11f0] sm:$0xff]
    %v2230 = vld [vmem:[#allocation7 + $0x11f8] sm:$0xff]
    %v2231 = vld [vmem:[#allocation7 + $0x1200] sm:$0xff]
    %v2232 = vld [vmem:[#allocation7 + $0x1208] sm:$0xff]
    %v2233 = vld [vmem:[#allocation7 + $0x1210] sm:$0xff]
    %v2234 = vld [vmem:[#allocation7 + $0x1218] sm:$0xff]
    %v2235 = vld [vmem:[#allocation7 + $0x1220] sm:$0xff]
    %v2236 = vld [vmem:[#allocation7 + $0x1228] sm:$0xff]
    %v2237 = vld [vmem:[#allocation7 + $0x1230] sm:$0xff]
    %v2238 = vld [vmem:[#allocation7 + $0x1238] sm:$0xff]
    %v2239 = vld [vmem:[#allocation7 + $0x1240] sm:$0xff]
    %v2240 = vld [vmem:[#allocation7 + $0x1248] sm:$0xff]
    %v2241 = vld [vmem:[#allocation7 + $0x1250] sm:$0xff]
    %v2242 = vld [vmem:[#allocation7 + $0x1258] sm:$0xff]
    %v2243 = vld [vmem:[#allocation7 + $0x1260] sm:$0xff]
    %v2244 = vld [vmem:[#allocation7 + $0x1268] sm:$0xff]
    %v2245 = vld [vmem:[#allocation7 + $0x1270] sm:$0xff]
    %v2246 = vld [vmem:[#allocation7 + $0x1278] sm:$0xff]
    %v2247 = vld [vmem:[#allocation7 + $0x1280] sm:$0xff]
    %v2248 = vld [vmem:[#allocation7 + $0x1288] sm:$0xff]
    %v2249 = vld [vmem:[#allocation7 + $0x1290] sm:$0xff]
    %v2250 = vld [vmem:[#allocation7 + $0x1298] sm:$0xff]
    %v2251 = vld [vmem:[#allocation7 + $0x12a0] sm:$0xff]
    %v2252 = vld [vmem:[#allocation7 + $0x12a8] sm:$0xff]
    %v2253 = vld [vmem:[#allocation7 + $0x12b0] sm:$0xff]
    %v2254 = vld [vmem:[#allocation7 + $0x12b8] sm:$0xff]
    %v2255 = vld [vmem:[#allocation7 + $0x12c0] sm:$0xff]
    %v2256 = vld [vmem:[#allocation7 + $0x12c8] sm:$0xff]
    %v2257 = vld [vmem:[#allocation7 + $0x12d0] sm:$0xff]
    %v2258 = vld [vmem:[#allocation7 + $0x12d8] sm:$0xff]
    %v2259 = vld [vmem:[#allocation7 + $0x12e0] sm:$0xff]
    %v2260 = vld [vmem:[#allocation7 + $0x12e8] sm:$0xff]
    %v2261 = vld [vmem:[#allocation7 + $0x12f0] sm:$0xff]
    %v2262 = vld [vmem:[#allocation7 + $0x12f8] sm:$0xff]
    %v2263 = vld [vmem:[#allocation7 + $0x1300] sm:$0xff]
    %v2264 = vld [vmem:[#allocation7 + $0x1308] sm:$0xff]
    %v2265 = vld [vmem:[#allocation7 + $0x1310] sm:$0xff]
    %v2266 = vld [vmem:[#allocation7 + $0x1318] sm:$0xff]
    %v2267 = vld [vmem:[#allocation7 + $0x1320] sm:$0xff]
    %v2268 = vld [vmem:[#allocation7 + $0x1328] sm:$0xff]
    %v2269 = vld [vmem:[#allocation7 + $0x1330] sm:$0xff]
    %v2270 = vld [vmem:[#allocation7 + $0x1338] sm:$0xff]
    %v2271 = vld [vmem:[#allocation7 + $0x1340] sm:$0xff]
    %v2272 = vld [vmem:[#allocation7 + $0x1348] sm:$0xff]
    %v2273 = vld [vmem:[#allocation7 + $0x1350] sm:$0xff]
    %v2274 = vld [vmem:[#allocation7 + $0x1358] sm:$0xff]
    %v2275 = vld [vmem:[#allocation7 + $0x1360] sm:$0xff]
    %v2276 = vld [vmem:[#allocation7 + $0x1368] sm:$0xff]
    %v2277 = vld [vmem:[#allocation7 + $0x1370] sm:$0xff]
    %v2278 = vld [vmem:[#allocation7 + $0x1378] sm:$0xff]
    %v2279 = vld [vmem:[#allocation7 + $0x1380] sm:$0xff]
    %v2280 = vld [vmem:[#allocation7 + $0x1388] sm:$0xff]
    %v2281 = vld [vmem:[#allocation7 + $0x1390] sm:$0xff]
    %v2282 = vld [vmem:[#allocation7 + $0x1398] sm:$0xff]
    %v2283 = vld [vmem:[#allocation7 + $0x13a0] sm:$0xff]
    %v2284 = vld [vmem:[#allocation7 + $0x13a8] sm:$0xff]
    %v2285 = vld [vmem:[#allocation7 + $0x13b0] sm:$0xff]
    %v2286 = vld [vmem:[#allocation7 + $0x13b8] sm:$0xff]
    %v2287 = vld [vmem:[#allocation7 + $0x13c0] sm:$0xff]
    %v2288 = vld [vmem:[#allocation7 + $0x13c8] sm:$0xff]
    %v2289 = vld [vmem:[#allocation7 + $0x13d0] sm:$0xff]
    %v2290 = vld [vmem:[#allocation7 + $0x13d8] sm:$0xff]
    %v2291 = vld [vmem:[#allocation7 + $0x13e0] sm:$0xff]
    %v2292 = vld [vmem:[#allocation7 + $0x13e8] sm:$0xff]
    %v2293 = vld [vmem:[#allocation7 + $0x13f0] sm:$0xff]
    %v2294 = vld [vmem:[#allocation7 + $0x13f8] sm:$0xff]
    %v2295 = vld [vmem:[#allocation7 + $0x1400] sm:$0xff]
    %v2296 = vld [vmem:[#allocation7 + $0x1408] sm:$0xff]
    %v2297 = vld [vmem:[#allocation7 + $0x1410] sm:$0xff]
    %v2298 = vld [vmem:[#allocation7 + $0x1418] sm:$0xff]
    %v2299 = vld [vmem:[#allocation7 + $0x1420] sm:$0xff]
    %v2300 = vld [vmem:[#allocation7 + $0x1428] sm:$0xff]
    %v2301 = vld [vmem:[#allocation7 + $0x1430] sm:$0xff]
    %v2302 = vld [vmem:[#allocation7 + $0x1438] sm:$0xff]
    %v2303 = vld [vmem:[#allocation7 + $0x1440] sm:$0xff]
    %v2304 = vld [vmem:[#allocation7 + $0x1448] sm:$0xff]
    %v2305 = vld [vmem:[#allocation7 + $0x1450] sm:$0xff]
    %v2306 = vld [vmem:[#allocation7 + $0x1458] sm:$0xff]
    %v2307 = vld [vmem:[#allocation7 + $0x1460] sm:$0xff]
    %v2308 = vld [vmem:[#allocation7 + $0x1468] sm:$0xff]
    %v2309 = vld [vmem:[#allocation7 + $0x1470] sm:$0xff]
    %v2310 = vld [vmem:[#allocation7 + $0x1478] sm:$0xff]
    %v2311 = vld [vmem:[#allocation7 + $0x1480] sm:$0xff]
    %v2312 = vld [vmem:[#allocation7 + $0x1488] sm:$0xff]
    %v2313 = vld [vmem:[#allocation7 + $0x1490] sm:$0xff]
    %v2314 = vld [vmem:[#allocation7 + $0x1498] sm:$0xff]
    %v2315 = vld [vmem:[#allocation7 + $0x14a0] sm:$0xff]
    %v2316 = vld [vmem:[#allocation7 + $0x14a8] sm:$0xff]
    %v2317 = vld [vmem:[#allocation7 + $0x14b0] sm:$0xff]
    %v2318 = vld [vmem:[#allocation7 + $0x14b8] sm:$0xff]
    %v2319 = vld [vmem:[#allocation7 + $0x14c0] sm:$0xff]
    %v2320 = vld [vmem:[#allocation7 + $0x14c8] sm:$0xff]
    %v2321 = vld [vmem:[#allocation7 + $0x14d0] sm:$0xff]
    %v2322 = vld [vmem:[#allocation7 + $0x14d8] sm:$0xff]
    %v2323 = vld [vmem:[#allocation7 + $0x14e0] sm:$0xff]
    %v2324 = vld [vmem:[#allocation7 + $0x14e8] sm:$0xff]
    %v2325 = vld [vmem:[#allocation7 + $0x14f0] sm:$0xff]
    %v2326 = vld [vmem:[#allocation7 + $0x14f8] sm:$0xff]
    %v2327 = vld [vmem:[#allocation7 + $0x1500] sm:$0xff]
    %v2328 = vld [vmem:[#allocation7 + $0x1508] sm:$0xff]
    %v2329 = vld [vmem:[#allocation7 + $0x1510] sm:$0xff]
    %v2330 = vld [vmem:[#allocation7 + $0x1518] sm:$0xff]
    %v2331 = vld [vmem:[#allocation7 + $0x1520] sm:$0xff]
    %v2332 = vld [vmem:[#allocation7 + $0x1528] sm:$0xff]
    %v2333 = vld [vmem:[#allocation7 + $0x1530] sm:$0xff]
    %v2334 = vld [vmem:[#allocation7 + $0x1538] sm:$0xff]
    %v2335 = vld [vmem:[#allocation7 + $0x1540] sm:$0xff]
    %v2336 = vld [vmem:[#allocation7 + $0x1548] sm:$0xff]
    %v2337 = vld [vmem:[#allocation7 + $0x1550] sm:$0xff]
    %v2338 = vld [vmem:[#allocation7 + $0x1558] sm:$0xff]
    %v2339 = vld [vmem:[#allocation7 + $0x1560] sm:$0xff]
    %v2340 = vld [vmem:[#allocation7 + $0x1568] sm:$0xff]
    %v2341 = vld [vmem:[#allocation7 + $0x1570] sm:$0xff]
    %v2342 = vld [vmem:[#allocation7 + $0x1578] sm:$0xff]
    %v2343 = vld [vmem:[#allocation7 + $0x1580] sm:$0xff]
    %v2344 = vld [vmem:[#allocation7 + $0x1588] sm:$0xff]
    %v2345 = vld [vmem:[#allocation7 + $0x1590] sm:$0xff]
    %v2346 = vld [vmem:[#allocation7 + $0x1598] sm:$0xff]
    %v2347 = vld [vmem:[#allocation7 + $0x15a0] sm:$0xff]
    %v2348 = vld [vmem:[#allocation7 + $0x15a8] sm:$0xff]
    %v2349 = vld [vmem:[#allocation7 + $0x15b0] sm:$0xff]
    %v2350 = vld [vmem:[#allocation7 + $0x15b8] sm:$0xff]
    %v2351 = vld [vmem:[#allocation7 + $0x15c0] sm:$0xff]
    %v2352 = vld [vmem:[#allocation7 + $0x15c8] sm:$0xff]
    %v2353 = vld [vmem:[#allocation7 + $0x15d0] sm:$0xff]
    %v2354 = vld [vmem:[#allocation7 + $0x15d8] sm:$0xff]
    %v2355 = vld [vmem:[#allocation7 + $0x15e0] sm:$0xff]
    %v2356 = vld [vmem:[#allocation7 + $0x15e8] sm:$0xff]
    %v2357 = vld [vmem:[#allocation7 + $0x15f0] sm:$0xff]
    %v2358 = vld [vmem:[#allocation7 + $0x15f8] sm:$0xff]
    %v2359 = vld [vmem:[#allocation7 + $0x1600] sm:$0xff]
    %v2360 = vld [vmem:[#allocation7 + $0x1608] sm:$0xff]
    %v2361 = vld [vmem:[#allocation7 + $0x1610] sm:$0xff]
    %v2362 = vld [vmem:[#allocation7 + $0x1618] sm:$0xff]
    %v2363 = vld [vmem:[#allocation7 + $0x1620] sm:$0xff]
    %v2364 = vld [vmem:[#allocation7 + $0x1628] sm:$0xff]
    %v2365 = vld [vmem:[#allocation7 + $0x1630] sm:$0xff]
    %v2366 = vld [vmem:[#allocation7 + $0x1638] sm:$0xff]
    %v2367 = vld [vmem:[#allocation7 + $0x1640] sm:$0xff]
    %v2368 = vld [vmem:[#allocation7 + $0x1648] sm:$0xff]
    %v2369 = vld [vmem:[#allocation7 + $0x1650] sm:$0xff]
    %v2370 = vld [vmem:[#allocation7 + $0x1658] sm:$0xff]
    %v2371 = vld [vmem:[#allocation7 + $0x1660] sm:$0xff]
    %v2372 = vld [vmem:[#allocation7 + $0x1668] sm:$0xff]
    %v2373 = vld [vmem:[#allocation7 + $0x1670] sm:$0xff]
    %v2374 = vld [vmem:[#allocation7 + $0x1678] sm:$0xff]
    %v2375 = vld [vmem:[#allocation7 + $0x1680] sm:$0xff]
    %v2376 = vld [vmem:[#allocation7 + $0x1688] sm:$0xff]
    %v2377 = vld [vmem:[#allocation7 + $0x1690] sm:$0xff]
    %v2378 = vld [vmem:[#allocation7 + $0x1698] sm:$0xff]
    %v2379 = vld [vmem:[#allocation7 + $0x16a0] sm:$0xff]
    %v2380 = vld [vmem:[#allocation7 + $0x16a8] sm:$0xff]
    %v2381 = vld [vmem:[#allocation7 + $0x16b0] sm:$0xff]
    %v2382 = vld [vmem:[#allocation7 + $0x16b8] sm:$0xff]
    %v2383 = vld [vmem:[#allocation7 + $0x16c0] sm:$0xff]
    %v2384 = vld [vmem:[#allocation7 + $0x16c8] sm:$0xff]
    %v2385 = vld [vmem:[#allocation7 + $0x16d0] sm:$0xff]
    %v2386 = vld [vmem:[#allocation7 + $0x16d8] sm:$0xff]
    %v2387 = vld [vmem:[#allocation7 + $0x16e0] sm:$0xff]
    %v2388 = vld [vmem:[#allocation7 + $0x16e8] sm:$0xff]
    %v2389 = vld [vmem:[#allocation7 + $0x16f0] sm:$0xff]
    %v2390 = vld [vmem:[#allocation7 + $0x16f8] sm:$0xff]
    %v2391 = vld [vmem:[#allocation7 + $0x1700] sm:$0xff]
    %v2392 = vld [vmem:[#allocation7 + $0x1708] sm:$0xff]
    %v2393 = vld [vmem:[#allocation7 + $0x1710] sm:$0xff]
    %v2394 = vld [vmem:[#allocation7 + $0x1718] sm:$0xff]
    %v2395 = vld [vmem:[#allocation7 + $0x1720] sm:$0xff]
    %v2396 = vld [vmem:[#allocation7 + $0x1728] sm:$0xff]
    %v2397 = vld [vmem:[#allocation7 + $0x1730] sm:$0xff]
    %v2398 = vld [vmem:[#allocation7 + $0x1738] sm:$0xff]
    %v2399 = vld [vmem:[#allocation7 + $0x1740] sm:$0xff]
    %v2400 = vld [vmem:[#allocation7 + $0x1748] sm:$0xff]
    %v2401 = vld [vmem:[#allocation7 + $0x1750] sm:$0xff]
    %v2402 = vld [vmem:[#allocation7 + $0x1758] sm:$0xff]
    %v2403 = vld [vmem:[#allocation7 + $0x1760] sm:$0xff]
    %v2404 = vld [vmem:[#allocation7 + $0x1768] sm:$0xff]
    %v2405 = vld [vmem:[#allocation7 + $0x1770] sm:$0xff]
    %v2406 = vld [vmem:[#allocation7 + $0x1778] sm:$0xff]
    %v2407 = vld [vmem:[#allocation7 + $0x1780] sm:$0xff]
    %v2408 = vld [vmem:[#allocation7 + $0x1788] sm:$0xff]
    %v2409 = vld [vmem:[#allocation7 + $0x1790] sm:$0xff]
    %v2410 = vld [vmem:[#allocation7 + $0x1798] sm:$0xff]
    %v2411 = vld [vmem:[#allocation7 + $0x17a0] sm:$0xff]
    %v2412 = vld [vmem:[#allocation7 + $0x17a8] sm:$0xff]
    %v2413 = vld [vmem:[#allocation7 + $0x17b0] sm:$0xff]
    %v2414 = vld [vmem:[#allocation7 + $0x17b8] sm:$0xff]
    %v2415 = vld [vmem:[#allocation7 + $0x17c0] sm:$0xff]
    %v2416 = vld [vmem:[#allocation7 + $0x17c8] sm:$0xff]
    %v2417 = vld [vmem:[#allocation7 + $0x17d0] sm:$0xff]
    %v2418 = vld [vmem:[#allocation7 + $0x17d8] sm:$0xff]
    %v2419 = vld [vmem:[#allocation7 + $0x17e0] sm:$0xff]
    %v2420 = vld [vmem:[#allocation7 + $0x17e8] sm:$0xff]
    %v2421 = vld [vmem:[#allocation7 + $0x17f0] sm:$0xff]
    %v2422 = vld [vmem:[#allocation7 + $0x17f8] sm:$0xff]
    %v2423 = vld [vmem:[#allocation7 + $0x1800] sm:$0xff]
    %v2424 = vld [vmem:[#allocation7 + $0x1808] sm:$0xff]
    %v2425 = vld [vmem:[#allocation7 + $0x1810] sm:$0xff]
    %v2426 = vld [vmem:[#allocation7 + $0x1818] sm:$0xff]
    %v2427 = vld [vmem:[#allocation7 + $0x1820] sm:$0xff]
    %v2428 = vld [vmem:[#allocation7 + $0x1828] sm:$0xff]
    %v2429 = vld [vmem:[#allocation7 + $0x1830] sm:$0xff]
    %v2430 = vld [vmem:[#allocation7 + $0x1838] sm:$0xff]
    %v2431 = vld [vmem:[#allocation7 + $0x1840] sm:$0xff]
    %v2432 = vld [vmem:[#allocation7 + $0x1848] sm:$0xff]
    %v2433 = vld [vmem:[#allocation7 + $0x1850] sm:$0xff]
    %v2434 = vld [vmem:[#allocation7 + $0x1858] sm:$0xff]
    %v2435 = vld [vmem:[#allocation7 + $0x1860] sm:$0xff]
    %v2436 = vld [vmem:[#allocation7 + $0x1868] sm:$0xff]
    %v2437 = vld [vmem:[#allocation7 + $0x1870] sm:$0xff]
    %v2438 = vld [vmem:[#allocation7 + $0x1878] sm:$0xff]
    %v2439 = vld [vmem:[#allocation8] sm:$0xf]
    %v2441 = vlaneseq
    %v2442 = vshrl.u32 %v2441, 7
    %v2443 = vsub.s32 0, %v2442
    %v2444 = vrot.slane %v2439, %v2443
    %v2445 = vlaneseq
    %v2446 = vshrl.u32 %v2445, 7
    %v2447 = vsub.s32 1, %v2446
    %v2448 = vrot.slane %v2439, %v2447
    %v2449 = vlaneseq
    %v2450 = vshrl.u32 %v2449, 7
    %v2451 = vsub.s32 2, %v2450
    %v2452 = vrot.slane %v2439, %v2451
    %v2453 = vlaneseq
    %v2454 = vshrl.u32 %v2453, 7
    %v2455 = vsub.s32 3, %v2454
    %v2456 = vrot.slane %v2439, %v2455
    %v3245 = vunpack.c.l.b16 %v1655
    %v3246 = vunpack.c.h.b16 %v1655
    %v3247 = vunpack.c.l.b16 %v1656
    %v3248 = vunpack.c.h.b16 %v1656
    %v3249 = vunpack.c.l.b16 %v1657
    %v3250 = vunpack.c.h.b16 %v1657
    %v3251 = vunpack.c.l.b16 %v1658
    %v3252 = vunpack.c.h.b16 %v1658
    %v3253 = vunpack.c.l.b16 %v1659
    %v3254 = vunpack.c.h.b16 %v1659
    %v3255 = vunpack.c.l.b16 %v1660
    %v3256 = vunpack.c.h.b16 %v1660
    %v3257 = vunpack.c.l.b16 %v1661
    %v3258 = vunpack.c.h.b16 %v1661
    %v3259 = vunpack.c.l.b16 %v1662
    %v3260 = vunpack.c.h.b16 %v1662
    %v3261 = vunpack.c.l.b16 %v1663
    %v3262 = vunpack.c.h.b16 %v1663
    %v3263 = vunpack.c.l.b16 %v1664
    %v3264 = vunpack.c.h.b16 %v1664
    %v3265 = vunpack.c.l.b16 %v1665
    %v3266 = vunpack.c.h.b16 %v1665
    %v3267 = vunpack.c.l.b16 %v1666
    %v3268 = vunpack.c.h.b16 %v1666
    %v3269 = vunpack.c.l.b16 %v1667
    %v3270 = vunpack.c.h.b16 %v1667
    %v3271 = vunpack.c.l.b16 %v1668
    %v3272 = vunpack.c.h.b16 %v1668
    %v3273 = vunpack.c.l.b16 %v1669
    %v3274 = vunpack.c.h.b16 %v1669
    %v3275 = vunpack.c.l.b16 %v1670
    %v3276 = vunpack.c.h.b16 %v1670
    %v3277 = vunpack.c.l.b16 %v1671
    %v3278 = vunpack.c.h.b16 %v1671
    %v3279 = vunpack.c.l.b16 %v1672
    %v3280 = vunpack.c.h.b16 %v1672
    %v3281 = vunpack.c.l.b16 %v1673
    %v3282 = vunpack.c.h.b16 %v1673
    %v3283 = vunpack.c.l.b16 %v1674
    %v3284 = vunpack.c.h.b16 %v1674
    %v3285 = vunpack.c.l.b16 %v1675
    %v3286 = vunpack.c.h.b16 %v1675
    %v3287 = vunpack.c.l.b16 %v1676
    %v3288 = vunpack.c.h.b16 %v1676
    %v3289 = vunpack.c.l.b16 %v1677
    %v3290 = vunpack.c.h.b16 %v1677
    %v3291 = vunpack.c.l.b16 %v1678
    %v3292 = vunpack.c.h.b16 %v1678
    %v3293 = vunpack.c.l.b16 %v1679
    %v3294 = vunpack.c.h.b16 %v1679
    %v3295 = vunpack.c.l.b16 %v1680
    %v3296 = vunpack.c.h.b16 %v1680
    %v3297 = vunpack.c.l.b16 %v1681
    %v3298 = vunpack.c.h.b16 %v1681
    %v3299 = vunpack.c.l.b16 %v1682
    %v3300 = vunpack.c.h.b16 %v1682
    %v3301 = vunpack.c.l.b16 %v1683
    %v3302 = vunpack.c.h.b16 %v1683
    %v3303 = vunpack.c.l.b16 %v1684
    %v3304 = vunpack.c.h.b16 %v1684
    %v3305 = vunpack.c.l.b16 %v1685
    %v3306 = vunpack.c.h.b16 %v1685
    %v3307 = vunpack.c.l.b16 %v1686
    %v3308 = vunpack.c.h.b16 %v1686
    %v3309 = vunpack.c.l.b16 %v1687
    %v3310 = vunpack.c.h.b16 %v1687
    %v3311 = vunpack.c.l.b16 %v1688
    %v3312 = vunpack.c.h.b16 %v1688
    %v3313 = vunpack.c.l.b16 %v1689
    %v3314 = vunpack.c.h.b16 %v1689
    %v3315 = vunpack.c.l.b16 %v1690
    %v3316 = vunpack.c.h.b16 %v1690
    %v3317 = vunpack.c.l.b16 %v1691
    %v3318 = vunpack.c.h.b16 %v1691
    %v3319 = vunpack.c.l.b16 %v1692
    %v3320 = vunpack.c.h.b16 %v1692
    %v3321 = vunpack.c.l.b16 %v1693
    %v3322 = vunpack.c.h.b16 %v1693
    %v3323 = vunpack.c.l.b16 %v1694
    %v3324 = vunpack.c.h.b16 %v1694
    %v3325 = vunpack.c.l.b16 %v1695
    %v3326 = vunpack.c.h.b16 %v1695
    %v3327 = vunpack.c.l.b16 %v1696
    %v3328 = vunpack.c.h.b16 %v1696
    %v3329 = vunpack.c.l.b16 %v1697
    %v3330 = vunpack.c.h.b16 %v1697
    %v3331 = vunpack.c.l.b16 %v1698
    %v3332 = vunpack.c.h.b16 %v1698
    %v3333 = vunpack.c.l.b16 %v1699
    %v3334 = vunpack.c.h.b16 %v1699
    %v3335 = vunpack.c.l.b16 %v1700
    %v3336 = vunpack.c.h.b16 %v1700
    %v3337 = vunpack.c.l.b16 %v1701
    %v3338 = vunpack.c.h.b16 %v1701
    %v3339 = vunpack.c.l.b16 %v1702
    %v3340 = vunpack.c.h.b16 %v1702
    %v3341 = vunpack.c.l.b16 %v1703
    %v3342 = vunpack.c.h.b16 %v1703
    %v3343 = vunpack.c.l.b16 %v1704
    %v3344 = vunpack.c.h.b16 %v1704
    %v3345 = vunpack.c.l.b16 %v1705
    %v3346 = vunpack.c.h.b16 %v1705
    %v3347 = vunpack.c.l.b16 %v1706
    %v3348 = vunpack.c.h.b16 %v1706
    %v3349 = vunpack.c.l.b16 %v1707
    %v3350 = vunpack.c.h.b16 %v1707
    %v3351 = vunpack.c.l.b16 %v1708
    %v3352 = vunpack.c.h.b16 %v1708
    %v3353 = vunpack.c.l.b16 %v1709
    %v3354 = vunpack.c.h.b16 %v1709
    %v3355 = vunpack.c.l.b16 %v1710
    %v3356 = vunpack.c.h.b16 %v1710
    %v3357 = vunpack.c.l.b16 %v1711
    %v3358 = vunpack.c.h.b16 %v1711
    %v3359 = vunpack.c.l.b16 %v1712
    %v3360 = vunpack.c.h.b16 %v1712
    %v3361 = vunpack.c.l.b16 %v1713
    %v3362 = vunpack.c.h.b16 %v1713
    %v3363 = vunpack.c.l.b16 %v1714
    %v3364 = vunpack.c.h.b16 %v1714
    %v3365 = vunpack.c.l.b16 %v1715
    %v3366 = vunpack.c.h.b16 %v1715
    %v3367 = vunpack.c.l.b16 %v1716
    %v3368 = vunpack.c.h.b16 %v1716
    %v3369 = vunpack.c.l.b16 %v1717
    %v3370 = vunpack.c.h.b16 %v1717
    %v3371 = vunpack.c.l.b16 %v1718
    %v3372 = vunpack.c.h.b16 %v1718
    %v3373 = vunpack.c.l.b16 %v1719
    %v3374 = vunpack.c.h.b16 %v1719
    %v3375 = vunpack.c.l.b16 %v1720
    %v3376 = vunpack.c.h.b16 %v1720
    %v3377 = vunpack.c.l.b16 %v1721
    %v3378 = vunpack.c.h.b16 %v1721
    %v3379 = vunpack.c.l.b16 %v1722
    %v3380 = vunpack.c.h.b16 %v1722
    %v3381 = vunpack.c.l.b16 %v1723
    %v3382 = vunpack.c.h.b16 %v1723
    %v3383 = vunpack.c.l.b16 %v1724
    %v3384 = vunpack.c.h.b16 %v1724
    %v3385 = vunpack.c.l.b16 %v1725
    %v3386 = vunpack.c.h.b16 %v1725
    %v3387 = vunpack.c.l.b16 %v1726
    %v3388 = vunpack.c.h.b16 %v1726
    %v3389 = vunpack.c.l.b16 %v1727
    %v3390 = vunpack.c.h.b16 %v1727
    %v3391 = vunpack.c.l.b16 %v1728
    %v3392 = vunpack.c.h.b16 %v1728
    %v3393 = vunpack.c.l.b16 %v1729
    %v3394 = vunpack.c.h.b16 %v1729
    %v3395 = vunpack.c.l.b16 %v1730
    %v3396 = vunpack.c.h.b16 %v1730
    %v3397 = vunpack.c.l.b16 %v1731
    %v3398 = vunpack.c.h.b16 %v1731
    %v3399 = vunpack.c.l.b16 %v1732
    %v3400 = vunpack.c.h.b16 %v1732
    %v3401 = vunpack.c.l.b16 %v1733
    %v3402 = vunpack.c.h.b16 %v1733
    %v3403 = vunpack.c.l.b16 %v1734
    %v3404 = vunpack.c.h.b16 %v1734
    %v3405 = vunpack.c.l.b16 %v1735
    %v3406 = vunpack.c.h.b16 %v1735
    %v3407 = vunpack.c.l.b16 %v1736
    %v3408 = vunpack.c.h.b16 %v1736
    %v3409 = vunpack.c.l.b16 %v1737
    %v3410 = vunpack.c.h.b16 %v1737
    %v3411 = vunpack.c.l.b16 %v1738
    %v3412 = vunpack.c.h.b16 %v1738
    %v3413 = vunpack.c.l.b16 %v1739
    %v3414 = vunpack.c.h.b16 %v1739
    %v3415 = vunpack.c.l.b16 %v1740
    %v3416 = vunpack.c.h.b16 %v1740
    %v3417 = vunpack.c.l.b16 %v1741
    %v3418 = vunpack.c.h.b16 %v1741
    %v3419 = vunpack.c.l.b16 %v1742
    %v3420 = vunpack.c.h.b16 %v1742
    %v3421 = vunpack.c.l.b16 %v1743
    %v3422 = vunpack.c.h.b16 %v1743
    %v3423 = vunpack.c.l.b16 %v1744
    %v3424 = vunpack.c.h.b16 %v1744
    %v3425 = vunpack.c.l.b16 %v1745
    %v3426 = vunpack.c.h.b16 %v1745
    %v3427 = vunpack.c.l.b16 %v1746
    %v3428 = vunpack.c.h.b16 %v1746
    %v3429 = vunpack.c.l.b16 %v1747
    %v3430 = vunpack.c.h.b16 %v1747
    %v3431 = vunpack.c.l.b16 %v1748
    %v3432 = vunpack.c.h.b16 %v1748
    %v3433 = vunpack.c.l.b16 %v1749
    %v3434 = vunpack.c.h.b16 %v1749
    %v3435 = vunpack.c.l.b16 %v1750
    %v3436 = vunpack.c.h.b16 %v1750
    %v3437 = vunpack.c.l.b16 %v1751
    %v3438 = vunpack.c.h.b16 %v1751
    %v3439 = vunpack.c.l.b16 %v1752
    %v3440 = vunpack.c.h.b16 %v1752
    %v3441 = vunpack.c.l.b16 %v1753
    %v3442 = vunpack.c.h.b16 %v1753
    %v3443 = vunpack.c.l.b16 %v1754
    %v3444 = vunpack.c.h.b16 %v1754
    %v3445 = vunpack.c.l.b16 %v1755
    %v3446 = vunpack.c.h.b16 %v1755
    %v3447 = vunpack.c.l.b16 %v1756
    %v3448 = vunpack.c.h.b16 %v1756
    %v3449 = vunpack.c.l.b16 %v1757
    %v3450 = vunpack.c.h.b16 %v1757
    %v3451 = vunpack.c.l.b16 %v1758
    %v3452 = vunpack.c.h.b16 %v1758
    %v3453 = vunpack.c.l.b16 %v1759
    %v3454 = vunpack.c.h.b16 %v1759
    %v3455 = vunpack.c.l.b16 %v1760
    %v3456 = vunpack.c.h.b16 %v1760
    %v3457 = vunpack.c.l.b16 %v1761
    %v3458 = vunpack.c.h.b16 %v1761
    %v3459 = vunpack.c.l.b16 %v1762
    %v3460 = vunpack.c.h.b16 %v1762
    %v3461 = vunpack.c.l.b16 %v1763
    %v3462 = vunpack.c.h.b16 %v1763
    %v3463 = vunpack.c.l.b16 %v1764
    %v3464 = vunpack.c.h.b16 %v1764
    %v3465 = vunpack.c.l.b16 %v1765
    %v3466 = vunpack.c.h.b16 %v1765
    %v3467 = vunpack.c.l.b16 %v1766
    %v3468 = vunpack.c.h.b16 %v1766
    %v3469 = vunpack.c.l.b16 %v1767
    %v3470 = vunpack.c.h.b16 %v1767
    %v3471 = vunpack.c.l.b16 %v1768
    %v3472 = vunpack.c.h.b16 %v1768
    %v3473 = vunpack.c.l.b16 %v1769
    %v3474 = vunpack.c.h.b16 %v1769
    %v3475 = vunpack.c.l.b16 %v1770
    %v3476 = vunpack.c.h.b16 %v1770
    %v3477 = vunpack.c.l.b16 %v1771
    %v3478 = vunpack.c.h.b16 %v1771
    %v3479 = vunpack.c.l.b16 %v1772
    %v3480 = vunpack.c.h.b16 %v1772
    %v3481 = vunpack.c.l.b16 %v1773
    %v3482 = vunpack.c.h.b16 %v1773
    %v3483 = vunpack.c.l.b16 %v1774
    %v3484 = vunpack.c.h.b16 %v1774
    %v3485 = vunpack.c.l.b16 %v1775
    %v3486 = vunpack.c.h.b16 %v1775
    %v3487 = vunpack.c.l.b16 %v1776
    %v3488 = vunpack.c.h.b16 %v1776
    %v3489 = vunpack.c.l.b16 %v1777
    %v3490 = vunpack.c.h.b16 %v1777
    %v3491 = vunpack.c.l.b16 %v1778
    %v3492 = vunpack.c.h.b16 %v1778
    %v3493 = vunpack.c.l.b16 %v1779
    %v3494 = vunpack.c.h.b16 %v1779
    %v3495 = vunpack.c.l.b16 %v1780
    %v3496 = vunpack.c.h.b16 %v1780
    %v3497 = vunpack.c.l.b16 %v1781
    %v3498 = vunpack.c.h.b16 %v1781
    %v3499 = vunpack.c.l.b16 %v1782
    %v3500 = vunpack.c.h.b16 %v1782
    %v3501 = vunpack.c.l.b16 %v1783
    %v3502 = vunpack.c.h.b16 %v1783
    %v3503 = vunpack.c.l.b16 %v1784
    %v3504 = vunpack.c.h.b16 %v1784
    %v3505 = vunpack.c.l.b16 %v1785
    %v3506 = vunpack.c.h.b16 %v1785
    %v3507 = vunpack.c.l.b16 %v1786
    %v3508 = vunpack.c.h.b16 %v1786
    %v3509 = vunpack.c.l.b16 %v1787
    %v3510 = vunpack.c.h.b16 %v1787
    %v3511 = vunpack.c.l.b16 %v1788
    %v3512 = vunpack.c.h.b16 %v1788
    %v3513 = vunpack.c.l.b16 %v1789
    %v3514 = vunpack.c.h.b16 %v1789
    %v3515 = vunpack.c.l.b16 %v1790
    %v3516 = vunpack.c.h.b16 %v1790
    %v3517 = vunpack.c.l.b16 %v1791
    %v3518 = vunpack.c.h.b16 %v1791
    %v3519 = vunpack.c.l.b16 %v1792
    %v3520 = vunpack.c.h.b16 %v1792
    %v3521 = vunpack.c.l.b16 %v1793
    %v3522 = vunpack.c.h.b16 %v1793
    %v3523 = vunpack.c.l.b16 %v1794
    %v3524 = vunpack.c.h.b16 %v1794
    %v3525 = vunpack.c.l.b16 %v1795
    %v3526 = vunpack.c.h.b16 %v1795
    %v3527 = vunpack.c.l.b16 %v1796
    %v3528 = vunpack.c.h.b16 %v1796
    %v3529 = vunpack.c.l.b16 %v1797
    %v3530 = vunpack.c.h.b16 %v1797
    %v3531 = vunpack.c.l.b16 %v1798
    %v3532 = vunpack.c.h.b16 %v1798
    %v3533 = vunpack.c.l.b16 %v1799
    %v3534 = vunpack.c.h.b16 %v1799
    %v3535 = vunpack.c.l.b16 %v1800
    %v3536 = vunpack.c.h.b16 %v1800
    %v3537 = vunpack.c.l.b16 %v1801
    %v3538 = vunpack.c.h.b16 %v1801
    %v3539 = vunpack.c.l.b16 %v1802
    %v3540 = vunpack.c.h.b16 %v1802
    %v3541 = vunpack.c.l.b16 %v1803
    %v3542 = vunpack.c.h.b16 %v1803
    %v3543 = vunpack.c.l.b16 %v1804
    %v3544 = vunpack.c.h.b16 %v1804
    %v3545 = vunpack.c.l.b16 %v1805
    %v3546 = vunpack.c.h.b16 %v1805
    %v3547 = vunpack.c.l.b16 %v1806
    %v3548 = vunpack.c.h.b16 %v1806
    %v3549 = vunpack.c.l.b16 %v1807
    %v3550 = vunpack.c.h.b16 %v1807
    %v3551 = vunpack.c.l.b16 %v1808
    %v3552 = vunpack.c.h.b16 %v1808
    %v3553 = vunpack.c.l.b16 %v1809
    %v3554 = vunpack.c.h.b16 %v1809
    %v3555 = vunpack.c.l.b16 %v1810
    %v3556 = vunpack.c.h.b16 %v1810
    %v3557 = vunpack.c.l.b16 %v1811
    %v3558 = vunpack.c.h.b16 %v1811
    %v3559 = vunpack.c.l.b16 %v1812
    %v3560 = vunpack.c.h.b16 %v1812
    %v3561 = vunpack.c.l.b16 %v1813
    %v3562 = vunpack.c.h.b16 %v1813
    %v3563 = vunpack.c.l.b16 %v1814
    %v3564 = vunpack.c.h.b16 %v1814
    %v3565 = vunpack.c.l.b16 %v1815
    %v3566 = vunpack.c.h.b16 %v1815
    %v3567 = vunpack.c.l.b16 %v1816
    %v3568 = vunpack.c.h.b16 %v1816
    %v3569 = vunpack.c.l.b16 %v1817
    %v3570 = vunpack.c.h.b16 %v1817
    %v3571 = vunpack.c.l.b16 %v1818
    %v3572 = vunpack.c.h.b16 %v1818
    %v3573 = vunpack.c.l.b16 %v1819
    %v3574 = vunpack.c.h.b16 %v1819
    %v3575 = vunpack.c.l.b16 %v1820
    %v3576 = vunpack.c.h.b16 %v1820
    %v3577 = vunpack.c.l.b16 %v1821
    %v3578 = vunpack.c.h.b16 %v1821
    %v3579 = vunpack.c.l.b16 %v1822
    %v3580 = vunpack.c.h.b16 %v1822
    %v3581 = vunpack.c.l.b16 %v1823
    %v3582 = vunpack.c.h.b16 %v1823
    %v3583 = vunpack.c.l.b16 %v1824
    %v3584 = vunpack.c.h.b16 %v1824
    %v3585 = vunpack.c.l.b16 %v1825
    %v3586 = vunpack.c.h.b16 %v1825
    %v3587 = vunpack.c.l.b16 %v1826
    %v3588 = vunpack.c.h.b16 %v1826
    %v3589 = vunpack.c.l.b16 %v1827
    %v3590 = vunpack.c.h.b16 %v1827
    %v3591 = vunpack.c.l.b16 %v1828
    %v3592 = vunpack.c.h.b16 %v1828
    %v3593 = vunpack.c.l.b16 %v1829
    %v3594 = vunpack.c.h.b16 %v1829
    %v3595 = vunpack.c.l.b16 %v1830
    %v3596 = vunpack.c.h.b16 %v1830
    %v3597 = vunpack.c.l.b16 %v1831
    %v3598 = vunpack.c.h.b16 %v1831
    %v3599 = vunpack.c.l.b16 %v1832
    %v3600 = vunpack.c.h.b16 %v1832
    %v3601 = vunpack.c.l.b16 %v1833
    %v3602 = vunpack.c.h.b16 %v1833
    %v3603 = vunpack.c.l.b16 %v1834
    %v3604 = vunpack.c.h.b16 %v1834
    %v3605 = vunpack.c.l.b16 %v1835
    %v3606 = vunpack.c.h.b16 %v1835
    %v3607 = vunpack.c.l.b16 %v1836
    %v3608 = vunpack.c.h.b16 %v1836
    %v3609 = vunpack.c.l.b16 %v1837
    %v3610 = vunpack.c.h.b16 %v1837
    %v3611 = vunpack.c.l.b16 %v1838
    %v3612 = vunpack.c.h.b16 %v1838
    %v3613 = vunpack.c.l.b16 %v1839
    %v3614 = vunpack.c.h.b16 %v1839
    %v3615 = vunpack.c.l.b16 %v1840
    %v3616 = vunpack.c.h.b16 %v1840
    %v3617 = vunpack.c.l.b16 %v1841
    %v3618 = vunpack.c.h.b16 %v1841
    %v3619 = vunpack.c.l.b16 %v1842
    %v3620 = vunpack.c.h.b16 %v1842
    %v3621 = vunpack.c.l.b16 %v1843
    %v3622 = vunpack.c.h.b16 %v1843
    %v3623 = vunpack.c.l.b16 %v1844
    %v3624 = vunpack.c.h.b16 %v1844
    %v3625 = vunpack.c.l.b16 %v1845
    %v3626 = vunpack.c.h.b16 %v1845
    %v3627 = vunpack.c.l.b16 %v1846
    %v3628 = vunpack.c.h.b16 %v1846
    %v3629 = vunpack.c.l.b16 %v1847
    %v3630 = vunpack.c.h.b16 %v1847
    %v3631 = vunpack.c.l.b16 %v1848
    %v3632 = vunpack.c.h.b16 %v1848
    %v3633 = vunpack.c.l.b16 %v1849
    %v3634 = vunpack.c.h.b16 %v1849
    %v3635 = vunpack.c.l.b16 %v1850
    %v3636 = vunpack.c.h.b16 %v1850
    %v3637 = vunpack.c.l.b16 %v1851
    %v3638 = vunpack.c.h.b16 %v1851
    %v3639 = vunpack.c.l.b16 %v1852
    %v3640 = vunpack.c.h.b16 %v1852
    %v3641 = vunpack.c.l.b16 %v1853
    %v3642 = vunpack.c.h.b16 %v1853
    %v3643 = vunpack.c.l.b16 %v1854
    %v3644 = vunpack.c.h.b16 %v1854
    %v3645 = vunpack.c.l.b16 %v1855
    %v3646 = vunpack.c.h.b16 %v1855
    %v3647 = vunpack.c.l.b16 %v1856
    %v3648 = vunpack.c.h.b16 %v1856
    %v3649 = vunpack.c.l.b16 %v1857
    %v3650 = vunpack.c.h.b16 %v1857
    %v3651 = vunpack.c.l.b16 %v1858
    %v3652 = vunpack.c.h.b16 %v1858
    %v3653 = vunpack.c.l.b16 %v1859
    %v3654 = vunpack.c.h.b16 %v1859
    %v3655 = vunpack.c.l.b16 %v1860
    %v3656 = vunpack.c.h.b16 %v1860
    %v3657 = vunpack.c.l.b16 %v1861
    %v3658 = vunpack.c.h.b16 %v1861
    %v3659 = vunpack.c.l.b16 %v1862
    %v3660 = vunpack.c.h.b16 %v1862
    %v3661 = vunpack.c.l.b16 %v1863
    %v3662 = vunpack.c.h.b16 %v1863
    %v3663 = vunpack.c.l.b16 %v1864
    %v3664 = vunpack.c.h.b16 %v1864
    %v3665 = vunpack.c.l.b16 %v1865
    %v3666 = vunpack.c.h.b16 %v1865
    %v3667 = vunpack.c.l.b16 %v1866
    %v3668 = vunpack.c.h.b16 %v1866
    %v3669 = vunpack.c.l.b16 %v1867
    %v3670 = vunpack.c.h.b16 %v1867
    %v3671 = vunpack.c.l.b16 %v1868
    %v3672 = vunpack.c.h.b16 %v1868
    %v3673 = vunpack.c.l.b16 %v1869
    %v3674 = vunpack.c.h.b16 %v1869
    %v3675 = vunpack.c.l.b16 %v1870
    %v3676 = vunpack.c.h.b16 %v1870
    %v3677 = vunpack.c.l.b16 %v1871
    %v3678 = vunpack.c.h.b16 %v1871
    %v3679 = vunpack.c.l.b16 %v1872
    %v3680 = vunpack.c.h.b16 %v1872
    %v3681 = vunpack.c.l.b16 %v1873
    %v3682 = vunpack.c.h.b16 %v1873
    %v3683 = vunpack.c.l.b16 %v1874
    %v3684 = vunpack.c.h.b16 %v1874
    %v3685 = vunpack.c.l.b16 %v1875
    %v3686 = vunpack.c.h.b16 %v1875
    %v3687 = vunpack.c.l.b16 %v1876
    %v3688 = vunpack.c.h.b16 %v1876
    %v3689 = vunpack.c.l.b16 %v1877
    %v3690 = vunpack.c.h.b16 %v1877
    %v3691 = vunpack.c.l.b16 %v1878
    %v3692 = vunpack.c.h.b16 %v1878
    %v3693 = vunpack.c.l.b16 %v1879
    %v3694 = vunpack.c.h.b16 %v1879
    %v3695 = vunpack.c.l.b16 %v1880
    %v3696 = vunpack.c.h.b16 %v1880
    %v3697 = vunpack.c.l.b16 %v1881
    %v3698 = vunpack.c.h.b16 %v1881
    %v3699 = vunpack.c.l.b16 %v1882
    %v3700 = vunpack.c.h.b16 %v1882
    %v3701 = vunpack.c.l.b16 %v1883
    %v3702 = vunpack.c.h.b16 %v1883
    %v3703 = vunpack.c.l.b16 %v1884
    %v3704 = vunpack.c.h.b16 %v1884
    %v3705 = vunpack.c.l.b16 %v1885
    %v3706 = vunpack.c.h.b16 %v1885
    %v3707 = vunpack.c.l.b16 %v1886
    %v3708 = vunpack.c.h.b16 %v1886
    %v3709 = vunpack.c.l.b16 %v1887
    %v3710 = vunpack.c.h.b16 %v1887
    %v3711 = vunpack.c.l.b16 %v1888
    %v3712 = vunpack.c.h.b16 %v1888
    %v3713 = vunpack.c.l.b16 %v1889
    %v3714 = vunpack.c.h.b16 %v1889
    %v3715 = vunpack.c.l.b16 %v1890
    %v3716 = vunpack.c.h.b16 %v1890
    %v3717 = vunpack.c.l.b16 %v1891
    %v3718 = vunpack.c.h.b16 %v1891
    %v3719 = vunpack.c.l.b16 %v1892
    %v3720 = vunpack.c.h.b16 %v1892
    %v3721 = vunpack.c.l.b16 %v1893
    %v3722 = vunpack.c.h.b16 %v1893
    %v3723 = vunpack.c.l.b16 %v1894
    %v3724 = vunpack.c.h.b16 %v1894
    %v3725 = vunpack.c.l.b16 %v1895
    %v3726 = vunpack.c.h.b16 %v1895
    %v3727 = vunpack.c.l.b16 %v1896
    %v3728 = vunpack.c.h.b16 %v1896
    %v3729 = vunpack.c.l.b16 %v1897
    %v3730 = vunpack.c.h.b16 %v1897
    %v3731 = vunpack.c.l.b16 %v1898
    %v3732 = vunpack.c.h.b16 %v1898
    %v3733 = vunpack.c.l.b16 %v1899
    %v3734 = vunpack.c.h.b16 %v1899
    %v3735 = vunpack.c.l.b16 %v1900
    %v3736 = vunpack.c.h.b16 %v1900
    %v3737 = vunpack.c.l.b16 %v1901
    %v3738 = vunpack.c.h.b16 %v1901
    %v3739 = vunpack.c.l.b16 %v1902
    %v3740 = vunpack.c.h.b16 %v1902
    %v3741 = vunpack.c.l.b16 %v1903
    %v3742 = vunpack.c.h.b16 %v1903
    %v3743 = vunpack.c.l.b16 %v1904
    %v3744 = vunpack.c.h.b16 %v1904
    %v3745 = vunpack.c.l.b16 %v1905
    %v3746 = vunpack.c.h.b16 %v1905
    %v3747 = vunpack.c.l.b16 %v1906
    %v3748 = vunpack.c.h.b16 %v1906
    %v3749 = vunpack.c.l.b16 %v1907
    %v3750 = vunpack.c.h.b16 %v1907
    %v3751 = vunpack.c.l.b16 %v1908
    %v3752 = vunpack.c.h.b16 %v1908
    %v3753 = vunpack.c.l.b16 %v1909
    %v3754 = vunpack.c.h.b16 %v1909
    %v3755 = vunpack.c.l.b16 %v1910
    %v3756 = vunpack.c.h.b16 %v1910
    %v3757 = vunpack.c.l.b16 %v1911
    %v3758 = vunpack.c.h.b16 %v1911
    %v3759 = vunpack.c.l.b16 %v1912
    %v3760 = vunpack.c.h.b16 %v1912
    %v3761 = vunpack.c.l.b16 %v1913
    %v3762 = vunpack.c.h.b16 %v1913
    %v3763 = vunpack.c.l.b16 %v1914
    %v3764 = vunpack.c.h.b16 %v1914
    %v3765 = vunpack.c.l.b16 %v1915
    %v3766 = vunpack.c.h.b16 %v1915
    %v3767 = vunpack.c.l.b16 %v1916
    %v3768 = vunpack.c.h.b16 %v1916
    %v3769 = vunpack.c.l.b16 %v1917
    %v3770 = vunpack.c.h.b16 %v1917
    %v3771 = vunpack.c.l.b16 %v1918
    %v3772 = vunpack.c.h.b16 %v1918
    %v3773 = vunpack.c.l.b16 %v1919
    %v3774 = vunpack.c.h.b16 %v1919
    %v3775 = vunpack.c.l.b16 %v1920
    %v3776 = vunpack.c.h.b16 %v1920
    %v3777 = vunpack.c.l.b16 %v1921
    %v3778 = vunpack.c.h.b16 %v1921
    %v3779 = vunpack.c.l.b16 %v1922
    %v3780 = vunpack.c.h.b16 %v1922
    %v3781 = vunpack.c.l.b16 %v1923
    %v3782 = vunpack.c.h.b16 %v1923
    %v3783 = vunpack.c.l.b16 %v1924
    %v3784 = vunpack.c.h.b16 %v1924
    %v3785 = vunpack.c.l.b16 %v1925
    %v3786 = vunpack.c.h.b16 %v1925
    %v3787 = vunpack.c.l.b16 %v1926
    %v3788 = vunpack.c.h.b16 %v1926
    %v3789 = vunpack.c.l.b16 %v1927
    %v3790 = vunpack.c.h.b16 %v1927
    %v3791 = vunpack.c.l.b16 %v1928
    %v3792 = vunpack.c.h.b16 %v1928
    %v3793 = vunpack.c.l.b16 %v1929
    %v3794 = vunpack.c.h.b16 %v1929
    %v3795 = vunpack.c.l.b16 %v1930
    %v3796 = vunpack.c.h.b16 %v1930
    %v3797 = vunpack.c.l.b16 %v1931
    %v3798 = vunpack.c.h.b16 %v1931
    %v3799 = vunpack.c.l.b16 %v1932
    %v3800 = vunpack.c.h.b16 %v1932
    %v3801 = vunpack.c.l.b16 %v1933
    %v3802 = vunpack.c.h.b16 %v1933
    %v3803 = vunpack.c.l.b16 %v1934
    %v3804 = vunpack.c.h.b16 %v1934
    %v3805 = vunpack.c.l.b16 %v1935
    %v3806 = vunpack.c.h.b16 %v1935
    %v3807 = vunpack.c.l.b16 %v1936
    %v3808 = vunpack.c.h.b16 %v1936
    %v3809 = vunpack.c.l.b16 %v1937
    %v3810 = vunpack.c.h.b16 %v1937
    %v3811 = vunpack.c.l.b16 %v1938
    %v3812 = vunpack.c.h.b16 %v1938
    %v3813 = vunpack.c.l.b16 %v1939
    %v3814 = vunpack.c.h.b16 %v1939
    %v3815 = vunpack.c.l.b16 %v1940
    %v3816 = vunpack.c.h.b16 %v1940
    %v3817 = vunpack.c.l.b16 %v1941
    %v3818 = vunpack.c.h.b16 %v1941
    %v3819 = vunpack.c.l.b16 %v1942
    %v3820 = vunpack.c.h.b16 %v1942
    %v3821 = vunpack.c.l.b16 %v1943
    %v3822 = vunpack.c.h.b16 %v1943
    %v3823 = vunpack.c.l.b16 %v1944
    %v3824 = vunpack.c.h.b16 %v1944
    %v3825 = vunpack.c.l.b16 %v1945
    %v3826 = vunpack.c.h.b16 %v1945
    %v3827 = vunpack.c.l.b16 %v1946
    %v3828 = vunpack.c.h.b16 %v1946
    %v3829 = vunpack.c.l.b16 %v1947
    %v3830 = vunpack.c.h.b16 %v1947
    %v3831 = vunpack.c.l.b16 %v1948
    %v3832 = vunpack.c.h.b16 %v1948
    %v3833 = vunpack.c.l.b16 %v1949
    %v3834 = vunpack.c.h.b16 %v1949
    %v3835 = vunpack.c.l.b16 %v1950
    %v3836 = vunpack.c.h.b16 %v1950
    %v3837 = vunpack.c.l.b16 %v1951
    %v3838 = vunpack.c.h.b16 %v1951
    %v3839 = vunpack.c.l.b16 %v1952
    %v3840 = vunpack.c.h.b16 %v1952
    %v3841 = vunpack.c.l.b16 %v1953
    %v3842 = vunpack.c.h.b16 %v1953
    %v3843 = vunpack.c.l.b16 %v1954
    %v3844 = vunpack.c.h.b16 %v1954
    %v3845 = vunpack.c.l.b16 %v1955
    %v3846 = vunpack.c.h.b16 %v1955
    %v3847 = vunpack.c.l.b16 %v1956
    %v3848 = vunpack.c.h.b16 %v1956
    %v3849 = vunpack.c.l.b16 %v1957
    %v3850 = vunpack.c.h.b16 %v1957
    %v3851 = vunpack.c.l.b16 %v1958
    %v3852 = vunpack.c.h.b16 %v1958
    %v3853 = vunpack.c.l.b16 %v1959
    %v3854 = vunpack.c.h.b16 %v1959
    %v3855 = vunpack.c.l.b16 %v1960
    %v3856 = vunpack.c.h.b16 %v1960
    %v3857 = vunpack.c.l.b16 %v1961
    %v3858 = vunpack.c.h.b16 %v1961
    %v3859 = vunpack.c.l.b16 %v1962
    %v3860 = vunpack.c.h.b16 %v1962
    %v3861 = vunpack.c.l.b16 %v1963
    %v3862 = vunpack.c.h.b16 %v1963
    %v3863 = vunpack.c.l.b16 %v1964
    %v3864 = vunpack.c.h.b16 %v1964
    %v3865 = vunpack.c.l.b16 %v1965
    %v3866 = vunpack.c.h.b16 %v1965
    %v3867 = vunpack.c.l.b16 %v1966
    %v3868 = vunpack.c.h.b16 %v1966
    %v3869 = vunpack.c.l.b16 %v1967
    %v3870 = vunpack.c.h.b16 %v1967
    %v3871 = vunpack.c.l.b16 %v1968
    %v3872 = vunpack.c.h.b16 %v1968
    %v3873 = vunpack.c.l.b16 %v1969
    %v3874 = vunpack.c.h.b16 %v1969
    %v3875 = vunpack.c.l.b16 %v1970
    %v3876 = vunpack.c.h.b16 %v1970
    %v3877 = vunpack.c.l.b16 %v1971
    %v3878 = vunpack.c.h.b16 %v1971
    %v3879 = vunpack.c.l.b16 %v1972
    %v3880 = vunpack.c.h.b16 %v1972
    %v3881 = vunpack.c.l.b16 %v1973
    %v3882 = vunpack.c.h.b16 %v1973
    %v3883 = vunpack.c.l.b16 %v1974
    %v3884 = vunpack.c.h.b16 %v1974
    %v3885 = vunpack.c.l.b16 %v1975
    %v3886 = vunpack.c.h.b16 %v1975
    %v3887 = vunpack.c.l.b16 %v1976
    %v3888 = vunpack.c.h.b16 %v1976
    %v3889 = vunpack.c.l.b16 %v1977
    %v3890 = vunpack.c.h.b16 %v1977
    %v3891 = vunpack.c.l.b16 %v1978
    %v3892 = vunpack.c.h.b16 %v1978
    %v3893 = vunpack.c.l.b16 %v1979
    %v3894 = vunpack.c.h.b16 %v1979
    %v3895 = vunpack.c.l.b16 %v1980
    %v3896 = vunpack.c.h.b16 %v1980
    %v3897 = vunpack.c.l.b16 %v1981
    %v3898 = vunpack.c.h.b16 %v1981
    %v3899 = vunpack.c.l.b16 %v1982
    %v3900 = vunpack.c.h.b16 %v1982
    %v3901 = vunpack.c.l.b16 %v1983
    %v3902 = vunpack.c.h.b16 %v1983
    %v3903 = vunpack.c.l.b16 %v1984
    %v3904 = vunpack.c.h.b16 %v1984
    %v3905 = vunpack.c.l.b16 %v1985
    %v3906 = vunpack.c.h.b16 %v1985
    %v3907 = vunpack.c.l.b16 %v1986
    %v3908 = vunpack.c.h.b16 %v1986
    %v3909 = vunpack.c.l.b16 %v1987
    %v3910 = vunpack.c.h.b16 %v1987
    %v3911 = vunpack.c.l.b16 %v1988
    %v3912 = vunpack.c.h.b16 %v1988
    %v3913 = vunpack.c.l.b16 %v1989
    %v3914 = vunpack.c.h.b16 %v1989
    %v3915 = vunpack.c.l.b16 %v1990
    %v3916 = vunpack.c.h.b16 %v1990
    %v3917 = vunpack.c.l.b16 %v1991
    %v3918 = vunpack.c.h.b16 %v1991
    %v3919 = vunpack.c.l.b16 %v1992
    %v3920 = vunpack.c.h.b16 %v1992
    %v3921 = vunpack.c.l.b16 %v1993
    %v3922 = vunpack.c.h.b16 %v1993
    %v3923 = vunpack.c.l.b16 %v1994
    %v3924 = vunpack.c.h.b16 %v1994
    %v3925 = vunpack.c.l.b16 %v1995
    %v3926 = vunpack.c.h.b16 %v1995
    %v3927 = vunpack.c.l.b16 %v1996
    %v3928 = vunpack.c.h.b16 %v1996
    %v3929 = vunpack.c.l.b16 %v1997
    %v3930 = vunpack.c.h.b16 %v1997
    %v3931 = vunpack.c.l.b16 %v1998
    %v3932 = vunpack.c.h.b16 %v1998
    %v3933 = vunpack.c.l.b16 %v1999
    %v3934 = vunpack.c.h.b16 %v1999
    %v3935 = vunpack.c.l.b16 %v2000
    %v3936 = vunpack.c.h.b16 %v2000
    %v3937 = vunpack.c.l.b16 %v2001
    %v3938 = vunpack.c.h.b16 %v2001
    %v3939 = vunpack.c.l.b16 %v2002
    %v3940 = vunpack.c.h.b16 %v2002
    %v3941 = vunpack.c.l.b16 %v2003
    %v3942 = vunpack.c.h.b16 %v2003
    %v3943 = vunpack.c.l.b16 %v2004
    %v3944 = vunpack.c.h.b16 %v2004
    %v3945 = vunpack.c.l.b16 %v2005
    %v3946 = vunpack.c.h.b16 %v2005
    %v3947 = vunpack.c.l.b16 %v2006
    %v3948 = vunpack.c.h.b16 %v2006
    %v3949 = vunpack.c.l.b16 %v2007
    %v3950 = vunpack.c.h.b16 %v2007
    %v3951 = vunpack.c.l.b16 %v2008
    %v3952 = vunpack.c.h.b16 %v2008
    %v3953 = vunpack.c.l.b16 %v2009
    %v3954 = vunpack.c.h.b16 %v2009
    %v3955 = vunpack.c.l.b16 %v2010
    %v3956 = vunpack.c.h.b16 %v2010
    %v3957 = vunpack.c.l.b16 %v2011
    %v3958 = vunpack.c.h.b16 %v2011
    %v3959 = vunpack.c.l.b16 %v2012
    %v3960 = vunpack.c.h.b16 %v2012
    %v3961 = vunpack.c.l.b16 %v2013
    %v3962 = vunpack.c.h.b16 %v2013
    %v3963 = vunpack.c.l.b16 %v2014
    %v3964 = vunpack.c.h.b16 %v2014
    %v3965 = vunpack.c.l.b16 %v2015
    %v3966 = vunpack.c.h.b16 %v2015
    %v3967 = vunpack.c.l.b16 %v2016
    %v3968 = vunpack.c.h.b16 %v2016
    %v3969 = vunpack.c.l.b16 %v2017
    %v3970 = vunpack.c.h.b16 %v2017
    %v3971 = vunpack.c.l.b16 %v2018
    %v3972 = vunpack.c.h.b16 %v2018
    %v3973 = vunpack.c.l.b16 %v2019
    %v3974 = vunpack.c.h.b16 %v2019
    %v3975 = vunpack.c.l.b16 %v2020
    %v3976 = vunpack.c.h.b16 %v2020
    %v3977 = vunpack.c.l.b16 %v2021
    %v3978 = vunpack.c.h.b16 %v2021
    %v3979 = vunpack.c.l.b16 %v2022
    %v3980 = vunpack.c.h.b16 %v2022
    %v3981 = vunpack.c.l.b16 %v2023
    %v3982 = vunpack.c.h.b16 %v2023
    %v3983 = vunpack.c.l.b16 %v2024
    %v3984 = vunpack.c.h.b16 %v2024
    %v3985 = vunpack.c.l.b16 %v2025
    %v3986 = vunpack.c.h.b16 %v2025
    %v3987 = vunpack.c.l.b16 %v2026
    %v3988 = vunpack.c.h.b16 %v2026
    %v3989 = vunpack.c.l.b16 %v2027
    %v3990 = vunpack.c.h.b16 %v2027
    %v3991 = vunpack.c.l.b16 %v2028
    %v3992 = vunpack.c.h.b16 %v2028
    %v3993 = vunpack.c.l.b16 %v2029
    %v3994 = vunpack.c.h.b16 %v2029
    %v3995 = vunpack.c.l.b16 %v2030
    %v3996 = vunpack.c.h.b16 %v2030
    %v3997 = vunpack.c.l.b16 %v2031
    %v3998 = vunpack.c.h.b16 %v2031
    %v3999 = vunpack.c.l.b16 %v2032
    %v4000 = vunpack.c.h.b16 %v2032
    %v4001 = vunpack.c.l.b16 %v2033
    %v4002 = vunpack.c.h.b16 %v2033
    %v4003 = vunpack.c.l.b16 %v2034
    %v4004 = vunpack.c.h.b16 %v2034
    %v4005 = vunpack.c.l.b16 %v2035
    %v4006 = vunpack.c.h.b16 %v2035
    %v4007 = vunpack.c.l.b16 %v2036
    %v4008 = vunpack.c.h.b16 %v2036
    %v4009 = vunpack.c.l.b16 %v2037
    %v4010 = vunpack.c.h.b16 %v2037
    %v4011 = vunpack.c.l.b16 %v2038
    %v4012 = vunpack.c.h.b16 %v2038
    %v4013 = vunpack.c.l.b16 %v2039
    %v4014 = vunpack.c.h.b16 %v2039
    %v4015 = vunpack.c.l.b16 %v2040
    %v4016 = vunpack.c.h.b16 %v2040
    %v4017 = vunpack.c.l.b16 %v2041
    %v4018 = vunpack.c.h.b16 %v2041
    %v4019 = vunpack.c.l.b16 %v2042
    %v4020 = vunpack.c.h.b16 %v2042
    %v4021 = vunpack.c.l.b16 %v2043
    %v4022 = vunpack.c.h.b16 %v2043
    %v4023 = vunpack.c.l.b16 %v2044
    %v4024 = vunpack.c.h.b16 %v2044
    %v4025 = vunpack.c.l.b16 %v2045
    %v4026 = vunpack.c.h.b16 %v2045
    %v4027 = vunpack.c.l.b16 %v2046
    %v4028 = vunpack.c.h.b16 %v2046
    %v4029 = vunpack.c.l.b16 %v2047
    %v4030 = vunpack.c.h.b16 %v2047
    %v4031 = vunpack.c.l.b16 %v2048
    %v4032 = vunpack.c.h.b16 %v2048
    %v4033 = vunpack.c.l.b16 %v2049
    %v4034 = vunpack.c.h.b16 %v2049
    %v4035 = vunpack.c.l.b16 %v2050
    %v4036 = vunpack.c.h.b16 %v2050
    %v4037 = vunpack.c.l.b16 %v2051
    %v4038 = vunpack.c.h.b16 %v2051
    %v4039 = vunpack.c.l.b16 %v2052
    %v4040 = vunpack.c.h.b16 %v2052
    %v4041 = vunpack.c.l.b16 %v2053
    %v4042 = vunpack.c.h.b16 %v2053
    %v4043 = vunpack.c.l.b16 %v2054
    %v4044 = vunpack.c.h.b16 %v2054
    %v4045 = vunpack.c.l.b16 %v2055
    %v4046 = vunpack.c.h.b16 %v2055
    %v4047 = vunpack.c.l.b16 %v2056
    %v4048 = vunpack.c.h.b16 %v2056
    %v4049 = vunpack.c.l.b16 %v2057
    %v4050 = vunpack.c.h.b16 %v2057
    %v4051 = vunpack.c.l.b16 %v2058
    %v4052 = vunpack.c.h.b16 %v2058
    %v4053 = vunpack.c.l.b16 %v2059
    %v4054 = vunpack.c.h.b16 %v2059
    %v4055 = vunpack.c.l.b16 %v2060
    %v4056 = vunpack.c.h.b16 %v2060
    %v4057 = vunpack.c.l.b16 %v2061
    %v4058 = vunpack.c.h.b16 %v2061
    %v4059 = vunpack.c.l.b16 %v2062
    %v4060 = vunpack.c.h.b16 %v2062
    %v4061 = vunpack.c.l.b16 %v2063
    %v4062 = vunpack.c.h.b16 %v2063
    %v4063 = vunpack.c.l.b16 %v2064
    %v4064 = vunpack.c.h.b16 %v2064
    %v4065 = vunpack.c.l.b16 %v2065
    %v4066 = vunpack.c.h.b16 %v2065
    %v4067 = vunpack.c.l.b16 %v2066
    %v4068 = vunpack.c.h.b16 %v2066
    %v4069 = vunpack.c.l.b16 %v2067
    %v4070 = vunpack.c.h.b16 %v2067
    %v4071 = vunpack.c.l.b16 %v2068
    %v4072 = vunpack.c.h.b16 %v2068
    %v4073 = vunpack.c.l.b16 %v2069
    %v4074 = vunpack.c.h.b16 %v2069
    %v4075 = vunpack.c.l.b16 %v2070
    %v4076 = vunpack.c.h.b16 %v2070
    %v4077 = vunpack.c.l.b16 %v2071
    %v4078 = vunpack.c.h.b16 %v2071
    %v4079 = vunpack.c.l.b16 %v2072
    %v4080 = vunpack.c.h.b16 %v2072
    %v4081 = vunpack.c.l.b16 %v2073
    %v4082 = vunpack.c.h.b16 %v2073
    %v4083 = vunpack.c.l.b16 %v2074
    %v4084 = vunpack.c.h.b16 %v2074
    %v4085 = vunpack.c.l.b16 %v2075
    %v4086 = vunpack.c.h.b16 %v2075
    %v4087 = vunpack.c.l.b16 %v2076
    %v4088 = vunpack.c.h.b16 %v2076
    %v4089 = vunpack.c.l.b16 %v2077
    %v4090 = vunpack.c.h.b16 %v2077
    %v4091 = vunpack.c.l.b16 %v2078
    %v4092 = vunpack.c.h.b16 %v2078
    %v4093 = vunpack.c.l.b16 %v2079
    %v4094 = vunpack.c.h.b16 %v2079
    %v4095 = vunpack.c.l.b16 %v2080
    %v4096 = vunpack.c.h.b16 %v2080
    %v4097 = vunpack.c.l.b16 %v2081
    %v4098 = vunpack.c.h.b16 %v2081
    %v4099 = vunpack.c.l.b16 %v2082
    %v4100 = vunpack.c.h.b16 %v2082
    %v4101 = vunpack.c.l.b16 %v2083
    %v4102 = vunpack.c.h.b16 %v2083
    %v4103 = vunpack.c.l.b16 %v2084
    %v4104 = vunpack.c.h.b16 %v2084
    %v4105 = vunpack.c.l.b16 %v2085
    %v4106 = vunpack.c.h.b16 %v2085
    %v4107 = vunpack.c.l.b16 %v2086
    %v4108 = vunpack.c.h.b16 %v2086
    %v4109 = vunpack.c.l.b16 %v2087
    %v4110 = vunpack.c.h.b16 %v2087
    %v4111 = vunpack.c.l.b16 %v2088
    %v4112 = vunpack.c.h.b16 %v2088
    %v4113 = vunpack.c.l.b16 %v2089
    %v4114 = vunpack.c.h.b16 %v2089
    %v4115 = vunpack.c.l.b16 %v2090
    %v4116 = vunpack.c.h.b16 %v2090
    %v4117 = vunpack.c.l.b16 %v2091
    %v4118 = vunpack.c.h.b16 %v2091
    %v4119 = vunpack.c.l.b16 %v2092
    %v4120 = vunpack.c.h.b16 %v2092
    %v4121 = vunpack.c.l.b16 %v2093
    %v4122 = vunpack.c.h.b16 %v2093
    %v4123 = vunpack.c.l.b16 %v2094
    %v4124 = vunpack.c.h.b16 %v2094
    %v4125 = vunpack.c.l.b16 %v2095
    %v4126 = vunpack.c.h.b16 %v2095
    %v4127 = vunpack.c.l.b16 %v2096
    %v4128 = vunpack.c.h.b16 %v2096
    %v4129 = vunpack.c.l.b16 %v2097
    %v4130 = vunpack.c.h.b16 %v2097
    %v4131 = vunpack.c.l.b16 %v2098
    %v4132 = vunpack.c.h.b16 %v2098
    %v4133 = vunpack.c.l.b16 %v2099
    %v4134 = vunpack.c.h.b16 %v2099
    %v4135 = vunpack.c.l.b16 %v2100
    %v4136 = vunpack.c.h.b16 %v2100
    %v4137 = vunpack.c.l.b16 %v2101
    %v4138 = vunpack.c.h.b16 %v2101
    %v4139 = vunpack.c.l.b16 %v2102
    %v4140 = vunpack.c.h.b16 %v2102
    %v4141 = vunpack.c.l.b16 %v2103
    %v4142 = vunpack.c.h.b16 %v2103
    %v4143 = vunpack.c.l.b16 %v2104
    %v4144 = vunpack.c.h.b16 %v2104
    %v4145 = vunpack.c.l.b16 %v2105
    %v4146 = vunpack.c.h.b16 %v2105
    %v4147 = vunpack.c.l.b16 %v2106
    %v4148 = vunpack.c.h.b16 %v2106
    %v4149 = vunpack.c.l.b16 %v2107
    %v4150 = vunpack.c.h.b16 %v2107
    %v4151 = vunpack.c.l.b16 %v2108
    %v4152 = vunpack.c.h.b16 %v2108
    %v4153 = vunpack.c.l.b16 %v2109
    %v4154 = vunpack.c.h.b16 %v2109
    %v4155 = vunpack.c.l.b16 %v2110
    %v4156 = vunpack.c.h.b16 %v2110
    %v4157 = vunpack.c.l.b16 %v2111
    %v4158 = vunpack.c.h.b16 %v2111
    %v4159 = vunpack.c.l.b16 %v2112
    %v4160 = vunpack.c.h.b16 %v2112
    %v4161 = vunpack.c.l.b16 %v2113
    %v4162 = vunpack.c.h.b16 %v2113
    %v4163 = vunpack.c.l.b16 %v2114
    %v4164 = vunpack.c.h.b16 %v2114
    %v4165 = vunpack.c.l.b16 %v2115
    %v4166 = vunpack.c.h.b16 %v2115
    %v4167 = vunpack.c.l.b16 %v2116
    %v4168 = vunpack.c.h.b16 %v2116
    %v4169 = vunpack.c.l.b16 %v2117
    %v4170 = vunpack.c.h.b16 %v2117
    %v4171 = vunpack.c.l.b16 %v2118
    %v4172 = vunpack.c.h.b16 %v2118
    %v4173 = vunpack.c.l.b16 %v2119
    %v4174 = vunpack.c.h.b16 %v2119
    %v4175 = vunpack.c.l.b16 %v2120
    %v4176 = vunpack.c.h.b16 %v2120
    %v4177 = vunpack.c.l.b16 %v2121
    %v4178 = vunpack.c.h.b16 %v2121
    %v4179 = vunpack.c.l.b16 %v2122
    %v4180 = vunpack.c.h.b16 %v2122
    %v4181 = vunpack.c.l.b16 %v2123
    %v4182 = vunpack.c.h.b16 %v2123
    %v4183 = vunpack.c.l.b16 %v2124
    %v4184 = vunpack.c.h.b16 %v2124
    %v4185 = vunpack.c.l.b16 %v2125
    %v4186 = vunpack.c.h.b16 %v2125
    %v4187 = vunpack.c.l.b16 %v2126
    %v4188 = vunpack.c.h.b16 %v2126
    %v4189 = vunpack.c.l.b16 %v2127
    %v4190 = vunpack.c.h.b16 %v2127
    %v4191 = vunpack.c.l.b16 %v2128
    %v4192 = vunpack.c.h.b16 %v2128
    %v4193 = vunpack.c.l.b16 %v2129
    %v4194 = vunpack.c.h.b16 %v2129
    %v4195 = vunpack.c.l.b16 %v2130
    %v4196 = vunpack.c.h.b16 %v2130
    %v4197 = vunpack.c.l.b16 %v2131
    %v4198 = vunpack.c.h.b16 %v2131
    %v4199 = vunpack.c.l.b16 %v2132
    %v4200 = vunpack.c.h.b16 %v2132
    %v4201 = vunpack.c.l.b16 %v2133
    %v4202 = vunpack.c.h.b16 %v2133
    %v4203 = vunpack.c.l.b16 %v2134
    %v4204 = vunpack.c.h.b16 %v2134
    %v4205 = vunpack.c.l.b16 %v2135
    %v4206 = vunpack.c.h.b16 %v2135
    %v4207 = vunpack.c.l.b16 %v2136
    %v4208 = vunpack.c.h.b16 %v2136
    %v4209 = vunpack.c.l.b16 %v2137
    %v4210 = vunpack.c.h.b16 %v2137
    %v4211 = vunpack.c.l.b16 %v2138
    %v4212 = vunpack.c.h.b16 %v2138
    %v4213 = vunpack.c.l.b16 %v2139
    %v4214 = vunpack.c.h.b16 %v2139
    %v4215 = vunpack.c.l.b16 %v2140
    %v4216 = vunpack.c.h.b16 %v2140
    %v4217 = vunpack.c.l.b16 %v2141
    %v4218 = vunpack.c.h.b16 %v2141
    %v4219 = vunpack.c.l.b16 %v2142
    %v4220 = vunpack.c.h.b16 %v2142
    %v4221 = vunpack.c.l.b16 %v2143
    %v4222 = vunpack.c.h.b16 %v2143
    %v4223 = vunpack.c.l.b16 %v2144
    %v4224 = vunpack.c.h.b16 %v2144
    %v4225 = vunpack.c.l.b16 %v2145
    %v4226 = vunpack.c.h.b16 %v2145
    %v4227 = vunpack.c.l.b16 %v2146
    %v4228 = vunpack.c.h.b16 %v2146
    %v4229 = vunpack.c.l.b16 %v2147
    %v4230 = vunpack.c.h.b16 %v2147
    %v4231 = vunpack.c.l.b16 %v2148
    %v4232 = vunpack.c.h.b16 %v2148
    %v4233 = vunpack.c.l.b16 %v2149
    %v4234 = vunpack.c.h.b16 %v2149
    %v4235 = vunpack.c.l.b16 %v2150
    %v4236 = vunpack.c.h.b16 %v2150
    %v4237 = vunpack.c.l.b16 %v2151
    %v4238 = vunpack.c.h.b16 %v2151
    %v4239 = vunpack.c.l.b16 %v2152
    %v4240 = vunpack.c.h.b16 %v2152
    %v4241 = vunpack.c.l.b16 %v2153
    %v4242 = vunpack.c.h.b16 %v2153
    %v4243 = vunpack.c.l.b16 %v2154
    %v4244 = vunpack.c.h.b16 %v2154
    %v4245 = vunpack.c.l.b16 %v2155
    %v4246 = vunpack.c.h.b16 %v2155
    %v4247 = vunpack.c.l.b16 %v2156
    %v4248 = vunpack.c.h.b16 %v2156
    %v4249 = vunpack.c.l.b16 %v2157
    %v4250 = vunpack.c.h.b16 %v2157
    %v4251 = vunpack.c.l.b16 %v2158
    %v4252 = vunpack.c.h.b16 %v2158
    %v4253 = vunpack.c.l.b16 %v2159
    %v4254 = vunpack.c.h.b16 %v2159
    %v4255 = vunpack.c.l.b16 %v2160
    %v4256 = vunpack.c.h.b16 %v2160
    %v4257 = vunpack.c.l.b16 %v2161
    %v4258 = vunpack.c.h.b16 %v2161
    %v4259 = vunpack.c.l.b16 %v2162
    %v4260 = vunpack.c.h.b16 %v2162
    %v4261 = vunpack.c.l.b16 %v2163
    %v4262 = vunpack.c.h.b16 %v2163
    %v4263 = vunpack.c.l.b16 %v2164
    %v4264 = vunpack.c.h.b16 %v2164
    %v4265 = vunpack.c.l.b16 %v2165
    %v4266 = vunpack.c.h.b16 %v2165
    %v4267 = vunpack.c.l.b16 %v2166
    %v4268 = vunpack.c.h.b16 %v2166
    %v4269 = vunpack.c.l.b16 %v2167
    %v4270 = vunpack.c.h.b16 %v2167
    %v4271 = vunpack.c.l.b16 %v2168
    %v4272 = vunpack.c.h.b16 %v2168
    %v4273 = vunpack.c.l.b16 %v2169
    %v4274 = vunpack.c.h.b16 %v2169
    %v4275 = vunpack.c.l.b16 %v2170
    %v4276 = vunpack.c.h.b16 %v2170
    %v4277 = vunpack.c.l.b16 %v2171
    %v4278 = vunpack.c.h.b16 %v2171
    %v4279 = vunpack.c.l.b16 %v2172
    %v4280 = vunpack.c.h.b16 %v2172
    %v4281 = vunpack.c.l.b16 %v2173
    %v4282 = vunpack.c.h.b16 %v2173
    %v4283 = vunpack.c.l.b16 %v2174
    %v4284 = vunpack.c.h.b16 %v2174
    %v4285 = vunpack.c.l.b16 %v2175
    %v4286 = vunpack.c.h.b16 %v2175
    %v4287 = vunpack.c.l.b16 %v2176
    %v4288 = vunpack.c.h.b16 %v2176
    %v4289 = vunpack.c.l.b16 %v2177
    %v4290 = vunpack.c.h.b16 %v2177
    %v4291 = vunpack.c.l.b16 %v2178
    %v4292 = vunpack.c.h.b16 %v2178
    %v4293 = vunpack.c.l.b16 %v2179
    %v4294 = vunpack.c.h.b16 %v2179
    %v4295 = vunpack.c.l.b16 %v2180
    %v4296 = vunpack.c.h.b16 %v2180
    %v4297 = vunpack.c.l.b16 %v2181
    %v4298 = vunpack.c.h.b16 %v2181
    %v4299 = vunpack.c.l.b16 %v2182
    %v4300 = vunpack.c.h.b16 %v2182
    %v4301 = vunpack.c.l.b16 %v2183
    %v4302 = vunpack.c.h.b16 %v2183
    %v4303 = vunpack.c.l.b16 %v2184
    %v4304 = vunpack.c.h.b16 %v2184
    %v4305 = vunpack.c.l.b16 %v2185
    %v4306 = vunpack.c.h.b16 %v2185
    %v4307 = vunpack.c.l.b16 %v2186
    %v4308 = vunpack.c.h.b16 %v2186
    %v4309 = vunpack.c.l.b16 %v2187
    %v4310 = vunpack.c.h.b16 %v2187
    %v4311 = vunpack.c.l.b16 %v2188
    %v4312 = vunpack.c.h.b16 %v2188
    %v4313 = vunpack.c.l.b16 %v2189
    %v4314 = vunpack.c.h.b16 %v2189
    %v4315 = vunpack.c.l.b16 %v2190
    %v4316 = vunpack.c.h.b16 %v2190
    %v4317 = vunpack.c.l.b16 %v2191
    %v4318 = vunpack.c.h.b16 %v2191
    %v4319 = vunpack.c.l.b16 %v2192
    %v4320 = vunpack.c.h.b16 %v2192
    %v4321 = vunpack.c.l.b16 %v2193
    %v4322 = vunpack.c.h.b16 %v2193
    %v4323 = vunpack.c.l.b16 %v2194
    %v4324 = vunpack.c.h.b16 %v2194
    %v4325 = vunpack.c.l.b16 %v2195
    %v4326 = vunpack.c.h.b16 %v2195
    %v4327 = vunpack.c.l.b16 %v2196
    %v4328 = vunpack.c.h.b16 %v2196
    %v4329 = vunpack.c.l.b16 %v2197
    %v4330 = vunpack.c.h.b16 %v2197
    %v4331 = vunpack.c.l.b16 %v2198
    %v4332 = vunpack.c.h.b16 %v2198
    %v4333 = vunpack.c.l.b16 %v2199
    %v4334 = vunpack.c.h.b16 %v2199
    %v4335 = vunpack.c.l.b16 %v2200
    %v4336 = vunpack.c.h.b16 %v2200
    %v4337 = vunpack.c.l.b16 %v2201
    %v4338 = vunpack.c.h.b16 %v2201
    %v4339 = vunpack.c.l.b16 %v2202
    %v4340 = vunpack.c.h.b16 %v2202
    %v4341 = vunpack.c.l.b16 %v2203
    %v4342 = vunpack.c.h.b16 %v2203
    %v4343 = vunpack.c.l.b16 %v2204
    %v4344 = vunpack.c.h.b16 %v2204
    %v4345 = vunpack.c.l.b16 %v2205
    %v4346 = vunpack.c.h.b16 %v2205
    %v4347 = vunpack.c.l.b16 %v2206
    %v4348 = vunpack.c.h.b16 %v2206
    %v4349 = vunpack.c.l.b16 %v2207
    %v4350 = vunpack.c.h.b16 %v2207
    %v4351 = vunpack.c.l.b16 %v2208
    %v4352 = vunpack.c.h.b16 %v2208
    %v4353 = vunpack.c.l.b16 %v2209
    %v4354 = vunpack.c.h.b16 %v2209
    %v4355 = vunpack.c.l.b16 %v2210
    %v4356 = vunpack.c.h.b16 %v2210
    %v4357 = vunpack.c.l.b16 %v2211
    %v4358 = vunpack.c.h.b16 %v2211
    %v4359 = vunpack.c.l.b16 %v2212
    %v4360 = vunpack.c.h.b16 %v2212
    %v4361 = vunpack.c.l.b16 %v2213
    %v4362 = vunpack.c.h.b16 %v2213
    %v4363 = vunpack.c.l.b16 %v2214
    %v4364 = vunpack.c.h.b16 %v2214
    %v4365 = vunpack.c.l.b16 %v2215
    %v4366 = vunpack.c.h.b16 %v2215
    %v4367 = vunpack.c.l.b16 %v2216
    %v4368 = vunpack.c.h.b16 %v2216
    %v4369 = vunpack.c.l.b16 %v2217
    %v4370 = vunpack.c.h.b16 %v2217
    %v4371 = vunpack.c.l.b16 %v2218
    %v4372 = vunpack.c.h.b16 %v2218
    %v4373 = vunpack.c.l.b16 %v2219
    %v4374 = vunpack.c.h.b16 %v2219
    %v4375 = vunpack.c.l.b16 %v2220
    %v4376 = vunpack.c.h.b16 %v2220
    %v4377 = vunpack.c.l.b16 %v2221
    %v4378 = vunpack.c.h.b16 %v2221
    %v4379 = vunpack.c.l.b16 %v2222
    %v4380 = vunpack.c.h.b16 %v2222
    %v4381 = vunpack.c.l.b16 %v2223
    %v4382 = vunpack.c.h.b16 %v2223
    %v4383 = vunpack.c.l.b16 %v2224
    %v4384 = vunpack.c.h.b16 %v2224
    %v4385 = vunpack.c.l.b16 %v2225
    %v4386 = vunpack.c.h.b16 %v2225
    %v4387 = vunpack.c.l.b16 %v2226
    %v4388 = vunpack.c.h.b16 %v2226
    %v4389 = vunpack.c.l.b16 %v2227
    %v4390 = vunpack.c.h.b16 %v2227
    %v4391 = vunpack.c.l.b16 %v2228
    %v4392 = vunpack.c.h.b16 %v2228
    %v4393 = vunpack.c.l.b16 %v2229
    %v4394 = vunpack.c.h.b16 %v2229
    %v4395 = vunpack.c.l.b16 %v2230
    %v4396 = vunpack.c.h.b16 %v2230
    %v4397 = vunpack.c.l.b16 %v2231
    %v4398 = vunpack.c.h.b16 %v2231
    %v4399 = vunpack.c.l.b16 %v2232
    %v4400 = vunpack.c.h.b16 %v2232
    %v4401 = vunpack.c.l.b16 %v2233
    %v4402 = vunpack.c.h.b16 %v2233
    %v4403 = vunpack.c.l.b16 %v2234
    %v4404 = vunpack.c.h.b16 %v2234
    %v4405 = vunpack.c.l.b16 %v2235
    %v4406 = vunpack.c.h.b16 %v2235
    %v4407 = vunpack.c.l.b16 %v2236
    %v4408 = vunpack.c.h.b16 %v2236
    %v4409 = vunpack.c.l.b16 %v2237
    %v4410 = vunpack.c.h.b16 %v2237
    %v4411 = vunpack.c.l.b16 %v2238
    %v4412 = vunpack.c.h.b16 %v2238
    %v4413 = vunpack.c.l.b16 %v2239
    %v4414 = vunpack.c.h.b16 %v2239
    %v4415 = vunpack.c.l.b16 %v2240
    %v4416 = vunpack.c.h.b16 %v2240
    %v4417 = vunpack.c.l.b16 %v2241
    %v4418 = vunpack.c.h.b16 %v2241
    %v4419 = vunpack.c.l.b16 %v2242
    %v4420 = vunpack.c.h.b16 %v2242
    %v4421 = vunpack.c.l.b16 %v2243
    %v4422 = vunpack.c.h.b16 %v2243
    %v4423 = vunpack.c.l.b16 %v2244
    %v4424 = vunpack.c.h.b16 %v2244
    %v4425 = vunpack.c.l.b16 %v2245
    %v4426 = vunpack.c.h.b16 %v2245
    %v4427 = vunpack.c.l.b16 %v2246
    %v4428 = vunpack.c.h.b16 %v2246
    %v4429 = vunpack.c.l.b16 %v2247
    %v4430 = vunpack.c.h.b16 %v2247
    %v4431 = vunpack.c.l.b16 %v2248
    %v4432 = vunpack.c.h.b16 %v2248
    %v4433 = vunpack.c.l.b16 %v2249
    %v4434 = vunpack.c.h.b16 %v2249
    %v4435 = vunpack.c.l.b16 %v2250
    %v4436 = vunpack.c.h.b16 %v2250
    %v4437 = vunpack.c.l.b16 %v2251
    %v4438 = vunpack.c.h.b16 %v2251
    %v4439 = vunpack.c.l.b16 %v2252
    %v4440 = vunpack.c.h.b16 %v2252
    %v4441 = vunpack.c.l.b16 %v2253
    %v4442 = vunpack.c.h.b16 %v2253
    %v4443 = vunpack.c.l.b16 %v2254
    %v4444 = vunpack.c.h.b16 %v2254
    %v4445 = vunpack.c.l.b16 %v2255
    %v4446 = vunpack.c.h.b16 %v2255
    %v4447 = vunpack.c.l.b16 %v2256
    %v4448 = vunpack.c.h.b16 %v2256
    %v4449 = vunpack.c.l.b16 %v2257
    %v4450 = vunpack.c.h.b16 %v2257
    %v4451 = vunpack.c.l.b16 %v2258
    %v4452 = vunpack.c.h.b16 %v2258
    %v4453 = vunpack.c.l.b16 %v2259
    %v4454 = vunpack.c.h.b16 %v2259
    %v4455 = vunpack.c.l.b16 %v2260
    %v4456 = vunpack.c.h.b16 %v2260
    %v4457 = vunpack.c.l.b16 %v2261
    %v4458 = vunpack.c.h.b16 %v2261
    %v4459 = vunpack.c.l.b16 %v2262
    %v4460 = vunpack.c.h.b16 %v2262
    %v4461 = vunpack.c.l.b16 %v2263
    %v4462 = vunpack.c.h.b16 %v2263
    %v4463 = vunpack.c.l.b16 %v2264
    %v4464 = vunpack.c.h.b16 %v2264
    %v4465 = vunpack.c.l.b16 %v2265
    %v4466 = vunpack.c.h.b16 %v2265
    %v4467 = vunpack.c.l.b16 %v2266
    %v4468 = vunpack.c.h.b16 %v2266
    %v4469 = vunpack.c.l.b16 %v2267
    %v4470 = vunpack.c.h.b16 %v2267
    %v4471 = vunpack.c.l.b16 %v2268
    %v4472 = vunpack.c.h.b16 %v2268
    %v4473 = vunpack.c.l.b16 %v2269
    %v4474 = vunpack.c.h.b16 %v2269
    %v4475 = vunpack.c.l.b16 %v2270
    %v4476 = vunpack.c.h.b16 %v2270
    %v4477 = vunpack.c.l.b16 %v2271
    %v4478 = vunpack.c.h.b16 %v2271
    %v4479 = vunpack.c.l.b16 %v2272
    %v4480 = vunpack.c.h.b16 %v2272
    %v4481 = vunpack.c.l.b16 %v2273
    %v4482 = vunpack.c.h.b16 %v2273
    %v4483 = vunpack.c.l.b16 %v2274
    %v4484 = vunpack.c.h.b16 %v2274
    %v4485 = vunpack.c.l.b16 %v2275
    %v4486 = vunpack.c.h.b16 %v2275
    %v4487 = vunpack.c.l.b16 %v2276
    %v4488 = vunpack.c.h.b16 %v2276
    %v4489 = vunpack.c.l.b16 %v2277
    %v4490 = vunpack.c.h.b16 %v2277
    %v4491 = vunpack.c.l.b16 %v2278
    %v4492 = vunpack.c.h.b16 %v2278
    %v4493 = vunpack.c.l.b16 %v2279
    %v4494 = vunpack.c.h.b16 %v2279
    %v4495 = vunpack.c.l.b16 %v2280
    %v4496 = vunpack.c.h.b16 %v2280
    %v4497 = vunpack.c.l.b16 %v2281
    %v4498 = vunpack.c.h.b16 %v2281
    %v4499 = vunpack.c.l.b16 %v2282
    %v4500 = vunpack.c.h.b16 %v2282
    %v4501 = vunpack.c.l.b16 %v2283
    %v4502 = vunpack.c.h.b16 %v2283
    %v4503 = vunpack.c.l.b16 %v2284
    %v4504 = vunpack.c.h.b16 %v2284
    %v4505 = vunpack.c.l.b16 %v2285
    %v4506 = vunpack.c.h.b16 %v2285
    %v4507 = vunpack.c.l.b16 %v2286
    %v4508 = vunpack.c.h.b16 %v2286
    %v4509 = vunpack.c.l.b16 %v2287
    %v4510 = vunpack.c.h.b16 %v2287
    %v4511 = vunpack.c.l.b16 %v2288
    %v4512 = vunpack.c.h.b16 %v2288
    %v4513 = vunpack.c.l.b16 %v2289
    %v4514 = vunpack.c.h.b16 %v2289
    %v4515 = vunpack.c.l.b16 %v2290
    %v4516 = vunpack.c.h.b16 %v2290
    %v4517 = vunpack.c.l.b16 %v2291
    %v4518 = vunpack.c.h.b16 %v2291
    %v4519 = vunpack.c.l.b16 %v2292
    %v4520 = vunpack.c.h.b16 %v2292
    %v4521 = vunpack.c.l.b16 %v2293
    %v4522 = vunpack.c.h.b16 %v2293
    %v4523 = vunpack.c.l.b16 %v2294
    %v4524 = vunpack.c.h.b16 %v2294
    %v4525 = vunpack.c.l.b16 %v2295
    %v4526 = vunpack.c.h.b16 %v2295
    %v4527 = vunpack.c.l.b16 %v2296
    %v4528 = vunpack.c.h.b16 %v2296
    %v4529 = vunpack.c.l.b16 %v2297
    %v4530 = vunpack.c.h.b16 %v2297
    %v4531 = vunpack.c.l.b16 %v2298
    %v4532 = vunpack.c.h.b16 %v2298
    %v4533 = vunpack.c.l.b16 %v2299
    %v4534 = vunpack.c.h.b16 %v2299
    %v4535 = vunpack.c.l.b16 %v2300
    %v4536 = vunpack.c.h.b16 %v2300
    %v4537 = vunpack.c.l.b16 %v2301
    %v4538 = vunpack.c.h.b16 %v2301
    %v4539 = vunpack.c.l.b16 %v2302
    %v4540 = vunpack.c.h.b16 %v2302
    %v4541 = vunpack.c.l.b16 %v2303
    %v4542 = vunpack.c.h.b16 %v2303
    %v4543 = vunpack.c.l.b16 %v2304
    %v4544 = vunpack.c.h.b16 %v2304
    %v4545 = vunpack.c.l.b16 %v2305
    %v4546 = vunpack.c.h.b16 %v2305
    %v4547 = vunpack.c.l.b16 %v2306
    %v4548 = vunpack.c.h.b16 %v2306
    %v4549 = vunpack.c.l.b16 %v2307
    %v4550 = vunpack.c.h.b16 %v2307
    %v4551 = vunpack.c.l.b16 %v2308
    %v4552 = vunpack.c.h.b16 %v2308
    %v4553 = vunpack.c.l.b16 %v2309
    %v4554 = vunpack.c.h.b16 %v2309
    %v4555 = vunpack.c.l.b16 %v2310
    %v4556 = vunpack.c.h.b16 %v2310
    %v4557 = vunpack.c.l.b16 %v2311
    %v4558 = vunpack.c.h.b16 %v2311
    %v4559 = vunpack.c.l.b16 %v2312
    %v4560 = vunpack.c.h.b16 %v2312
    %v4561 = vunpack.c.l.b16 %v2313
    %v4562 = vunpack.c.h.b16 %v2313
    %v4563 = vunpack.c.l.b16 %v2314
    %v4564 = vunpack.c.h.b16 %v2314
    %v4565 = vunpack.c.l.b16 %v2315
    %v4566 = vunpack.c.h.b16 %v2315
    %v4567 = vunpack.c.l.b16 %v2316
    %v4568 = vunpack.c.h.b16 %v2316
    %v4569 = vunpack.c.l.b16 %v2317
    %v4570 = vunpack.c.h.b16 %v2317
    %v4571 = vunpack.c.l.b16 %v2318
    %v4572 = vunpack.c.h.b16 %v2318
    %v4573 = vunpack.c.l.b16 %v2319
    %v4574 = vunpack.c.h.b16 %v2319
    %v4575 = vunpack.c.l.b16 %v2320
    %v4576 = vunpack.c.h.b16 %v2320
    %v4577 = vunpack.c.l.b16 %v2321
    %v4578 = vunpack.c.h.b16 %v2321
    %v4579 = vunpack.c.l.b16 %v2322
    %v4580 = vunpack.c.h.b16 %v2322
    %v4581 = vunpack.c.l.b16 %v2323
    %v4582 = vunpack.c.h.b16 %v2323
    %v4583 = vunpack.c.l.b16 %v2324
    %v4584 = vunpack.c.h.b16 %v2324
    %v4585 = vunpack.c.l.b16 %v2325
    %v4586 = vunpack.c.h.b16 %v2325
    %v4587 = vunpack.c.l.b16 %v2326
    %v4588 = vunpack.c.h.b16 %v2326
    %v4589 = vunpack.c.l.b16 %v2327
    %v4590 = vunpack.c.h.b16 %v2327
    %v4591 = vunpack.c.l.b16 %v2328
    %v4592 = vunpack.c.h.b16 %v2328
    %v4593 = vunpack.c.l.b16 %v2329
    %v4594 = vunpack.c.h.b16 %v2329
    %v4595 = vunpack.c.l.b16 %v2330
    %v4596 = vunpack.c.h.b16 %v2330
    %v4597 = vunpack.c.l.b16 %v2331
    %v4598 = vunpack.c.h.b16 %v2331
    %v4599 = vunpack.c.l.b16 %v2332
    %v4600 = vunpack.c.h.b16 %v2332
    %v4601 = vunpack.c.l.b16 %v2333
    %v4602 = vunpack.c.h.b16 %v2333
    %v4603 = vunpack.c.l.b16 %v2334
    %v4604 = vunpack.c.h.b16 %v2334
    %v4605 = vunpack.c.l.b16 %v2335
    %v4606 = vunpack.c.h.b16 %v2335
    %v4607 = vunpack.c.l.b16 %v2336
    %v4608 = vunpack.c.h.b16 %v2336
    %v4609 = vunpack.c.l.b16 %v2337
    %v4610 = vunpack.c.h.b16 %v2337
    %v4611 = vunpack.c.l.b16 %v2338
    %v4612 = vunpack.c.h.b16 %v2338
    %v4613 = vunpack.c.l.b16 %v2339
    %v4614 = vunpack.c.h.b16 %v2339
    %v4615 = vunpack.c.l.b16 %v2340
    %v4616 = vunpack.c.h.b16 %v2340
    %v4617 = vunpack.c.l.b16 %v2341
    %v4618 = vunpack.c.h.b16 %v2341
    %v4619 = vunpack.c.l.b16 %v2342
    %v4620 = vunpack.c.h.b16 %v2342
    %v4621 = vunpack.c.l.b16 %v2343
    %v4622 = vunpack.c.h.b16 %v2343
    %v4623 = vunpack.c.l.b16 %v2344
    %v4624 = vunpack.c.h.b16 %v2344
    %v4625 = vunpack.c.l.b16 %v2345
    %v4626 = vunpack.c.h.b16 %v2345
    %v4627 = vunpack.c.l.b16 %v2346
    %v4628 = vunpack.c.h.b16 %v2346
    %v4629 = vunpack.c.l.b16 %v2347
    %v4630 = vunpack.c.h.b16 %v2347
    %v4631 = vunpack.c.l.b16 %v2348
    %v4632 = vunpack.c.h.b16 %v2348
    %v4633 = vunpack.c.l.b16 %v2349
    %v4634 = vunpack.c.h.b16 %v2349
    %v4635 = vunpack.c.l.b16 %v2350
    %v4636 = vunpack.c.h.b16 %v2350
    %v4637 = vunpack.c.l.b16 %v2351
    %v4638 = vunpack.c.h.b16 %v2351
    %v4639 = vunpack.c.l.b16 %v2352
    %v4640 = vunpack.c.h.b16 %v2352
    %v4641 = vunpack.c.l.b16 %v2353
    %v4642 = vunpack.c.h.b16 %v2353
    %v4643 = vunpack.c.l.b16 %v2354
    %v4644 = vunpack.c.h.b16 %v2354
    %v4645 = vunpack.c.l.b16 %v2355
    %v4646 = vunpack.c.h.b16 %v2355
    %v4647 = vunpack.c.l.b16 %v2356
    %v4648 = vunpack.c.h.b16 %v2356
    %v4649 = vunpack.c.l.b16 %v2357
    %v4650 = vunpack.c.h.b16 %v2357
    %v4651 = vunpack.c.l.b16 %v2358
    %v4652 = vunpack.c.h.b16 %v2358
    %v4653 = vunpack.c.l.b16 %v2359
    %v4654 = vunpack.c.h.b16 %v2359
    %v4655 = vunpack.c.l.b16 %v2360
    %v4656 = vunpack.c.h.b16 %v2360
    %v4657 = vunpack.c.l.b16 %v2361
    %v4658 = vunpack.c.h.b16 %v2361
    %v4659 = vunpack.c.l.b16 %v2362
    %v4660 = vunpack.c.h.b16 %v2362
    %v4661 = vunpack.c.l.b16 %v2363
    %v4662 = vunpack.c.h.b16 %v2363
    %v4663 = vunpack.c.l.b16 %v2364
    %v4664 = vunpack.c.h.b16 %v2364
    %v4665 = vunpack.c.l.b16 %v2365
    %v4666 = vunpack.c.h.b16 %v2365
    %v4667 = vunpack.c.l.b16 %v2366
    %v4668 = vunpack.c.h.b16 %v2366
    %v4669 = vunpack.c.l.b16 %v2367
    %v4670 = vunpack.c.h.b16 %v2367
    %v4671 = vunpack.c.l.b16 %v2368
    %v4672 = vunpack.c.h.b16 %v2368
    %v4673 = vunpack.c.l.b16 %v2369
    %v4674 = vunpack.c.h.b16 %v2369
    %v4675 = vunpack.c.l.b16 %v2370
    %v4676 = vunpack.c.h.b16 %v2370
    %v4677 = vunpack.c.l.b16 %v2371
    %v4678 = vunpack.c.h.b16 %v2371
    %v4679 = vunpack.c.l.b16 %v2372
    %v4680 = vunpack.c.h.b16 %v2372
    %v4681 = vunpack.c.l.b16 %v2373
    %v4682 = vunpack.c.h.b16 %v2373
    %v4683 = vunpack.c.l.b16 %v2374
    %v4684 = vunpack.c.h.b16 %v2374
    %v4685 = vunpack.c.l.b16 %v2375
    %v4686 = vunpack.c.h.b16 %v2375
    %v4687 = vunpack.c.l.b16 %v2376
    %v4688 = vunpack.c.h.b16 %v2376
    %v4689 = vunpack.c.l.b16 %v2377
    %v4690 = vunpack.c.h.b16 %v2377
    %v4691 = vunpack.c.l.b16 %v2378
    %v4692 = vunpack.c.h.b16 %v2378
    %v4693 = vunpack.c.l.b16 %v2379
    %v4694 = vunpack.c.h.b16 %v2379
    %v4695 = vunpack.c.l.b16 %v2380
    %v4696 = vunpack.c.h.b16 %v2380
    %v4697 = vunpack.c.l.b16 %v2381
    %v4698 = vunpack.c.h.b16 %v2381
    %v4699 = vunpack.c.l.b16 %v2382
    %v4700 = vunpack.c.h.b16 %v2382
    %v4701 = vunpack.c.l.b16 %v2383
    %v4702 = vunpack.c.h.b16 %v2383
    %v4703 = vunpack.c.l.b16 %v2384
    %v4704 = vunpack.c.h.b16 %v2384
    %v4705 = vunpack.c.l.b16 %v2385
    %v4706 = vunpack.c.h.b16 %v2385
    %v4707 = vunpack.c.l.b16 %v2386
    %v4708 = vunpack.c.h.b16 %v2386
    %v4709 = vunpack.c.l.b16 %v2387
    %v4710 = vunpack.c.h.b16 %v2387
    %v4711 = vunpack.c.l.b16 %v2388
    %v4712 = vunpack.c.h.b16 %v2388
    %v4713 = vunpack.c.l.b16 %v2389
    %v4714 = vunpack.c.h.b16 %v2389
    %v4715 = vunpack.c.l.b16 %v2390
    %v4716 = vunpack.c.h.b16 %v2390
    %v4717 = vunpack.c.l.b16 %v2391
    %v4718 = vunpack.c.h.b16 %v2391
    %v4719 = vunpack.c.l.b16 %v2392
    %v4720 = vunpack.c.h.b16 %v2392
    %v4721 = vunpack.c.l.b16 %v2393
    %v4722 = vunpack.c.h.b16 %v2393
    %v4723 = vunpack.c.l.b16 %v2394
    %v4724 = vunpack.c.h.b16 %v2394
    %v4725 = vunpack.c.l.b16 %v2395
    %v4726 = vunpack.c.h.b16 %v2395
    %v4727 = vunpack.c.l.b16 %v2396
    %v4728 = vunpack.c.h.b16 %v2396
    %v4729 = vunpack.c.l.b16 %v2397
    %v4730 = vunpack.c.h.b16 %v2397
    %v4731 = vunpack.c.l.b16 %v2398
    %v4732 = vunpack.c.h.b16 %v2398
    %v4733 = vunpack.c.l.b16 %v2399
    %v4734 = vunpack.c.h.b16 %v2399
    %v4735 = vunpack.c.l.b16 %v2400
    %v4736 = vunpack.c.h.b16 %v2400
    %v4737 = vunpack.c.l.b16 %v2401
    %v4738 = vunpack.c.h.b16 %v2401
    %v4739 = vunpack.c.l.b16 %v2402
    %v4740 = vunpack.c.h.b16 %v2402
    %v4741 = vunpack.c.l.b16 %v2403
    %v4742 = vunpack.c.h.b16 %v2403
    %v4743 = vunpack.c.l.b16 %v2404
    %v4744 = vunpack.c.h.b16 %v2404
    %v4745 = vunpack.c.l.b16 %v2405
    %v4746 = vunpack.c.h.b16 %v2405
    %v4747 = vunpack.c.l.b16 %v2406
    %v4748 = vunpack.c.h.b16 %v2406
    %v4749 = vunpack.c.l.b16 %v2407
    %v4750 = vunpack.c.h.b16 %v2407
    %v4751 = vunpack.c.l.b16 %v2408
    %v4752 = vunpack.c.h.b16 %v2408
    %v4753 = vunpack.c.l.b16 %v2409
    %v4754 = vunpack.c.h.b16 %v2409
    %v4755 = vunpack.c.l.b16 %v2410
    %v4756 = vunpack.c.h.b16 %v2410
    %v4757 = vunpack.c.l.b16 %v2411
    %v4758 = vunpack.c.h.b16 %v2411
    %v4759 = vunpack.c.l.b16 %v2412
    %v4760 = vunpack.c.h.b16 %v2412
    %v4761 = vunpack.c.l.b16 %v2413
    %v4762 = vunpack.c.h.b16 %v2413
    %v4763 = vunpack.c.l.b16 %v2414
    %v4764 = vunpack.c.h.b16 %v2414
    %v4765 = vunpack.c.l.b16 %v2415
    %v4766 = vunpack.c.h.b16 %v2415
    %v4767 = vunpack.c.l.b16 %v2416
    %v4768 = vunpack.c.h.b16 %v2416
    %v4769 = vunpack.c.l.b16 %v2417
    %v4770 = vunpack.c.h.b16 %v2417
    %v4771 = vunpack.c.l.b16 %v2418
    %v4772 = vunpack.c.h.b16 %v2418
    %v4773 = vunpack.c.l.b16 %v2419
    %v4774 = vunpack.c.h.b16 %v2419
    %v4775 = vunpack.c.l.b16 %v2420
    %v4776 = vunpack.c.h.b16 %v2420
    %v4777 = vunpack.c.l.b16 %v2421
    %v4778 = vunpack.c.h.b16 %v2421
    %v4779 = vunpack.c.l.b16 %v2422
    %v4780 = vunpack.c.h.b16 %v2422
    %v4781 = vunpack.c.l.b16 %v2423
    %v4782 = vunpack.c.h.b16 %v2423
    %v4783 = vunpack.c.l.b16 %v2424
    %v4784 = vunpack.c.h.b16 %v2424
    %v4785 = vunpack.c.l.b16 %v2425
    %v4786 = vunpack.c.h.b16 %v2425
    %v4787 = vunpack.c.l.b16 %v2426
    %v4788 = vunpack.c.h.b16 %v2426
    %v4789 = vunpack.c.l.b16 %v2427
    %v4790 = vunpack.c.h.b16 %v2427
    %v4791 = vunpack.c.l.b16 %v2428
    %v4792 = vunpack.c.h.b16 %v2428
    %v4793 = vunpack.c.l.b16 %v2429
    %v4794 = vunpack.c.h.b16 %v2429
    %v4795 = vunpack.c.l.b16 %v2430
    %v4796 = vunpack.c.h.b16 %v2430
    %v4797 = vunpack.c.l.b16 %v2431
    %v4798 = vunpack.c.h.b16 %v2431
    %v4799 = vunpack.c.l.b16 %v2432
    %v4800 = vunpack.c.h.b16 %v2432
    %v4801 = vunpack.c.l.b16 %v2433
    %v4802 = vunpack.c.h.b16 %v2433
    %v4803 = vunpack.c.l.b16 %v2434
    %v4804 = vunpack.c.h.b16 %v2434
    %v4805 = vunpack.c.l.b16 %v2435
    %v4806 = vunpack.c.h.b16 %v2435
    %v4807 = vunpack.c.l.b16 %v2436
    %v4808 = vunpack.c.h.b16 %v2436
    %v4809 = vunpack.c.l.b16 %v2437
    %v4810 = vunpack.c.h.b16 %v2437
    %v4811 = vunpack.c.l.b16 %v2438
    %v4812 = vunpack.c.h.b16 %v2438
    %v4813 = vpack.c.b16 %v3249, %v3245
    %v4814 = vpack.c.b16 %v3250, %v3246
    %v4815 = vpack.c.b16 %v3251, %v3247
    %v4816 = vpack.c.b16 %v3252, %v3248
    %v4817 = vpack.c.b16 %v3257, %v3253
    %v4818 = vpack.c.b16 %v3258, %v3254
    %v4819 = vpack.c.b16 %v3259, %v3255
    %v4820 = vpack.c.b16 %v3260, %v3256
    %v4821 = vpack.c.b16 %v3265, %v3261
    %v4822 = vpack.c.b16 %v3266, %v3262
    %v4823 = vpack.c.b16 %v3267, %v3263
    %v4824 = vpack.c.b16 %v3268, %v3264
    %v4825 = vpack.c.b16 %v3273, %v3269
    %v4826 = vpack.c.b16 %v3274, %v3270
    %v4827 = vpack.c.b16 %v3275, %v3271
    %v4828 = vpack.c.b16 %v3276, %v3272
    %v4829 = vpack.c.b16 %v3281, %v3277
    %v4830 = vpack.c.b16 %v3282, %v3278
    %v4831 = vpack.c.b16 %v3283, %v3279
    %v4832 = vpack.c.b16 %v3284, %v3280
    %v4833 = vpack.c.b16 %v3289, %v3285
    %v4834 = vpack.c.b16 %v3290, %v3286
    %v4835 = vpack.c.b16 %v3291, %v3287
    %v4836 = vpack.c.b16 %v3292, %v3288
    %v4837 = vpack.c.b16 %v3297, %v3293
    %v4838 = vpack.c.b16 %v3298, %v3294
    %v4839 = vpack.c.b16 %v3299, %v3295
    %v4840 = vpack.c.b16 %v3300, %v3296
    %v4841 = vpack.c.b16 %v3305, %v3301
    %v4842 = vpack.c.b16 %v3306, %v3302
    %v4843 = vpack.c.b16 %v3307, %v3303
    %v4844 = vpack.c.b16 %v3308, %v3304
    %v4845 = vpack.c.b16 %v3313, %v3309
    %v4846 = vpack.c.b16 %v3314, %v3310
    %v4847 = vpack.c.b16 %v3315, %v3311
    %v4848 = vpack.c.b16 %v3316, %v3312
    %v4849 = vpack.c.b16 %v3321, %v3317
    %v4850 = vpack.c.b16 %v3322, %v3318
    %v4851 = vpack.c.b16 %v3323, %v3319
    %v4852 = vpack.c.b16 %v3324, %v3320
    %v4853 = vpack.c.b16 %v3329, %v3325
    %v4854 = vpack.c.b16 %v3330, %v3326
    %v4855 = vpack.c.b16 %v3331, %v3327
    %v4856 = vpack.c.b16 %v3332, %v3328
    %v4857 = vpack.c.b16 %v3337, %v3333
    %v4858 = vpack.c.b16 %v3338, %v3334
    %v4859 = vpack.c.b16 %v3339, %v3335
    %v4860 = vpack.c.b16 %v3340, %v3336
    %v4861 = vpack.c.b16 %v3345, %v3341
    %v4862 = vpack.c.b16 %v3346, %v3342
    %v4863 = vpack.c.b16 %v3347, %v3343
    %v4864 = vpack.c.b16 %v3348, %v3344
    %v4865 = vpack.c.b16 %v3353, %v3349
    %v4866 = vpack.c.b16 %v3354, %v3350
    %v4867 = vpack.c.b16 %v3355, %v3351
    %v4868 = vpack.c.b16 %v3356, %v3352
    %v4869 = vpack.c.b16 %v3361, %v3357
    %v4870 = vpack.c.b16 %v3362, %v3358
    %v4871 = vpack.c.b16 %v3363, %v3359
    %v4872 = vpack.c.b16 %v3364, %v3360
    %v4873 = vpack.c.b16 %v3369, %v3365
    %v4874 = vpack.c.b16 %v3370, %v3366
    %v4875 = vpack.c.b16 %v3371, %v3367
    %v4876 = vpack.c.b16 %v3372, %v3368
    %v4877 = vpack.c.b16 %v3377, %v3373
    %v4878 = vpack.c.b16 %v3378, %v3374
    %v4879 = vpack.c.b16 %v3379, %v3375
    %v4880 = vpack.c.b16 %v3380, %v3376
    %v4881 = vpack.c.b16 %v3385, %v3381
    %v4882 = vpack.c.b16 %v3386, %v3382
    %v4883 = vpack.c.b16 %v3387, %v3383
    %v4884 = vpack.c.b16 %v3388, %v3384
    %v4885 = vpack.c.b16 %v3393, %v3389
    %v4886 = vpack.c.b16 %v3394, %v3390
    %v4887 = vpack.c.b16 %v3395, %v3391
    %v4888 = vpack.c.b16 %v3396, %v3392
    %v4889 = vpack.c.b16 %v3401, %v3397
    %v4890 = vpack.c.b16 %v3402, %v3398
    %v4891 = vpack.c.b16 %v3403, %v3399
    %v4892 = vpack.c.b16 %v3404, %v3400
    %v4893 = vpack.c.b16 %v3409, %v3405
    %v4894 = vpack.c.b16 %v3410, %v3406
    %v4895 = vpack.c.b16 %v3411, %v3407
    %v4896 = vpack.c.b16 %v3412, %v3408
    %v4897 = vpack.c.b16 %v3417, %v3413
    %v4898 = vpack.c.b16 %v3418, %v3414
    %v4899 = vpack.c.b16 %v3419, %v3415
    %v4900 = vpack.c.b16 %v3420, %v3416
    %v4901 = vpack.c.b16 %v3425, %v3421
    %v4902 = vpack.c.b16 %v3426, %v3422
    %v4903 = vpack.c.b16 %v3427, %v3423
    %v4904 = vpack.c.b16 %v3428, %v3424
    %v4905 = vpack.c.b16 %v3433, %v3429
    %v4906 = vpack.c.b16 %v3434, %v3430
    %v4907 = vpack.c.b16 %v3435, %v3431
    %v4908 = vpack.c.b16 %v3436, %v3432
    %v4909 = vpack.c.b16 %v3441, %v3437
    %v4910 = vpack.c.b16 %v3442, %v3438
    %v4911 = vpack.c.b16 %v3443, %v3439
    %v4912 = vpack.c.b16 %v3444, %v3440
    %v4913 = vpack.c.b16 %v3449, %v3445
    %v4914 = vpack.c.b16 %v3450, %v3446
    %v4915 = vpack.c.b16 %v3451, %v3447
    %v4916 = vpack.c.b16 %v3452, %v3448
    %v4917 = vpack.c.b16 %v3457, %v3453
    %v4918 = vpack.c.b16 %v3458, %v3454
    %v4919 = vpack.c.b16 %v3459, %v3455
    %v4920 = vpack.c.b16 %v3460, %v3456
    %v4921 = vpack.c.b16 %v3465, %v3461
    %v4922 = vpack.c.b16 %v3466, %v3462
    %v4923 = vpack.c.b16 %v3467, %v3463
    %v4924 = vpack.c.b16 %v3468, %v3464
    %v4925 = vpack.c.b16 %v3473, %v3469
    %v4926 = vpack.c.b16 %v3474, %v3470
    %v4927 = vpack.c.b16 %v3475, %v3471
    %v4928 = vpack.c.b16 %v3476, %v3472
    %v4929 = vpack.c.b16 %v3481, %v3477
    %v4930 = vpack.c.b16 %v3482, %v3478
    %v4931 = vpack.c.b16 %v3483, %v3479
    %v4932 = vpack.c.b16 %v3484, %v3480
    %v4933 = vpack.c.b16 %v3489, %v3485
    %v4934 = vpack.c.b16 %v3490, %v3486
    %v4935 = vpack.c.b16 %v3491, %v3487
    %v4936 = vpack.c.b16 %v3492, %v3488
    %v4937 = vpack.c.b16 %v3497, %v3493
    %v4938 = vpack.c.b16 %v3498, %v3494
    %v4939 = vpack.c.b16 %v3499, %v3495
    %v4940 = vpack.c.b16 %v3500, %v3496
    %v4941 = vpack.c.b16 %v3505, %v3501
    %v4942 = vpack.c.b16 %v3506, %v3502
    %v4943 = vpack.c.b16 %v3507, %v3503
    %v4944 = vpack.c.b16 %v3508, %v3504
    %v4945 = vpack.c.b16 %v3513, %v3509
    %v4946 = vpack.c.b16 %v3514, %v3510
    %v4947 = vpack.c.b16 %v3515, %v3511
    %v4948 = vpack.c.b16 %v3516, %v3512
    %v4949 = vpack.c.b16 %v3521, %v3517
    %v4950 = vpack.c.b16 %v3522, %v3518
    %v4951 = vpack.c.b16 %v3523, %v3519
    %v4952 = vpack.c.b16 %v3524, %v3520
    %v4953 = vpack.c.b16 %v3529, %v3525
    %v4954 = vpack.c.b16 %v3530, %v3526
    %v4955 = vpack.c.b16 %v3531, %v3527
    %v4956 = vpack.c.b16 %v3532, %v3528
    %v4957 = vpack.c.b16 %v3537, %v3533
    %v4958 = vpack.c.b16 %v3538, %v3534
    %v4959 = vpack.c.b16 %v3539, %v3535
    %v4960 = vpack.c.b16 %v3540, %v3536
    %v4961 = vpack.c.b16 %v3545, %v3541
    %v4962 = vpack.c.b16 %v3546, %v3542
    %v4963 = vpack.c.b16 %v3547, %v3543
    %v4964 = vpack.c.b16 %v3548, %v3544
    %v4965 = vpack.c.b16 %v3553, %v3549
    %v4966 = vpack.c.b16 %v3554, %v3550
    %v4967 = vpack.c.b16 %v3555, %v3551
    %v4968 = vpack.c.b16 %v3556, %v3552
    %v4969 = vpack.c.b16 %v3561, %v3557
    %v4970 = vpack.c.b16 %v3562, %v3558
    %v4971 = vpack.c.b16 %v3563, %v3559
    %v4972 = vpack.c.b16 %v3564, %v3560
    %v4973 = vpack.c.b16 %v3569, %v3565
    %v4974 = vpack.c.b16 %v3570, %v3566
    %v4975 = vpack.c.b16 %v3571, %v3567
    %v4976 = vpack.c.b16 %v3572, %v3568
    %v4977 = vpack.c.b16 %v3577, %v3573
    %v4978 = vpack.c.b16 %v3578, %v3574
    %v4979 = vpack.c.b16 %v3579, %v3575
    %v4980 = vpack.c.b16 %v3580, %v3576
    %v4981 = vpack.c.b16 %v3585, %v3581
    %v4982 = vpack.c.b16 %v3586, %v3582
    %v4983 = vpack.c.b16 %v3587, %v3583
    %v4984 = vpack.c.b16 %v3588, %v3584
    %v4985 = vpack.c.b16 %v3593, %v3589
    %v4986 = vpack.c.b16 %v3594, %v3590
    %v4987 = vpack.c.b16 %v3595, %v3591
    %v4988 = vpack.c.b16 %v3596, %v3592
    %v4989 = vpack.c.b16 %v3601, %v3597
    %v4990 = vpack.c.b16 %v3602, %v3598
    %v4991 = vpack.c.b16 %v3603, %v3599
    %v4992 = vpack.c.b16 %v3604, %v3600
    %v4993 = vpack.c.b16 %v3609, %v3605
    %v4994 = vpack.c.b16 %v3610, %v3606
    %v4995 = vpack.c.b16 %v3611, %v3607
    %v4996 = vpack.c.b16 %v3612, %v3608
    %v4997 = vpack.c.b16 %v3617, %v3613
    %v4998 = vpack.c.b16 %v3618, %v3614
    %v4999 = vpack.c.b16 %v3619, %v3615
    %v5000 = vpack.c.b16 %v3620, %v3616
    %v5001 = vpack.c.b16 %v3625, %v3621
    %v5002 = vpack.c.b16 %v3626, %v3622
    %v5003 = vpack.c.b16 %v3627, %v3623
    %v5004 = vpack.c.b16 %v3628, %v3624
    %v5005 = vpack.c.b16 %v3633, %v3629
    %v5006 = vpack.c.b16 %v3634, %v3630
    %v5007 = vpack.c.b16 %v3635, %v3631
    %v5008 = vpack.c.b16 %v3636, %v3632
    %v5009 = vpack.c.b16 %v3641, %v3637
    %v5010 = vpack.c.b16 %v3642, %v3638
    %v5011 = vpack.c.b16 %v3643, %v3639
    %v5012 = vpack.c.b16 %v3644, %v3640
    %v5013 = vpack.c.b16 %v3649, %v3645
    %v5014 = vpack.c.b16 %v3650, %v3646
    %v5015 = vpack.c.b16 %v3651, %v3647
    %v5016 = vpack.c.b16 %v3652, %v3648
    %v5017 = vpack.c.b16 %v3657, %v3653
    %v5018 = vpack.c.b16 %v3658, %v3654
    %v5019 = vpack.c.b16 %v3659, %v3655
    %v5020 = vpack.c.b16 %v3660, %v3656
    %v5021 = vpack.c.b16 %v3665, %v3661
    %v5022 = vpack.c.b16 %v3666, %v3662
    %v5023 = vpack.c.b16 %v3667, %v3663
    %v5024 = vpack.c.b16 %v3668, %v3664
    %v5025 = vpack.c.b16 %v3673, %v3669
    %v5026 = vpack.c.b16 %v3674, %v3670
    %v5027 = vpack.c.b16 %v3675, %v3671
    %v5028 = vpack.c.b16 %v3676, %v3672
    %v5029 = vpack.c.b16 %v3681, %v3677
    %v5030 = vpack.c.b16 %v3682, %v3678
    %v5031 = vpack.c.b16 %v3683, %v3679
    %v5032 = vpack.c.b16 %v3684, %v3680
    %v5033 = vpack.c.b16 %v3689, %v3685
    %v5034 = vpack.c.b16 %v3690, %v3686
    %v5035 = vpack.c.b16 %v3691, %v3687
    %v5036 = vpack.c.b16 %v3692, %v3688
    %v5037 = vpack.c.b16 %v3697, %v3693
    %v5038 = vpack.c.b16 %v3698, %v3694
    %v5039 = vpack.c.b16 %v3699, %v3695
    %v5040 = vpack.c.b16 %v3700, %v3696
    %v5041 = vpack.c.b16 %v3705, %v3701
    %v5042 = vpack.c.b16 %v3706, %v3702
    %v5043 = vpack.c.b16 %v3707, %v3703
    %v5044 = vpack.c.b16 %v3708, %v3704
    %v5045 = vpack.c.b16 %v3713, %v3709
    %v5046 = vpack.c.b16 %v3714, %v3710
    %v5047 = vpack.c.b16 %v3715, %v3711
    %v5048 = vpack.c.b16 %v3716, %v3712
    %v5049 = vpack.c.b16 %v3721, %v3717
    %v5050 = vpack.c.b16 %v3722, %v3718
    %v5051 = vpack.c.b16 %v3723, %v3719
    %v5052 = vpack.c.b16 %v3724, %v3720
    %v5053 = vpack.c.b16 %v3729, %v3725
    %v5054 = vpack.c.b16 %v3730, %v3726
    %v5055 = vpack.c.b16 %v3731, %v3727
    %v5056 = vpack.c.b16 %v3732, %v3728
    %v5057 = vpack.c.b16 %v3737, %v3733
    %v5058 = vpack.c.b16 %v3738, %v3734
    %v5059 = vpack.c.b16 %v3739, %v3735
    %v5060 = vpack.c.b16 %v3740, %v3736
    %v5061 = vpack.c.b16 %v3745, %v3741
    %v5062 = vpack.c.b16 %v3746, %v3742
    %v5063 = vpack.c.b16 %v3747, %v3743
    %v5064 = vpack.c.b16 %v3748, %v3744
    %v5065 = vpack.c.b16 %v3753, %v3749
    %v5066 = vpack.c.b16 %v3754, %v3750
    %v5067 = vpack.c.b16 %v3755, %v3751
    %v5068 = vpack.c.b16 %v3756, %v3752
    %v5069 = vpack.c.b16 %v3761, %v3757
    %v5070 = vpack.c.b16 %v3762, %v3758
    %v5071 = vpack.c.b16 %v3763, %v3759
    %v5072 = vpack.c.b16 %v3764, %v3760
    %v5073 = vpack.c.b16 %v3769, %v3765
    %v5074 = vpack.c.b16 %v3770, %v3766
    %v5075 = vpack.c.b16 %v3771, %v3767
    %v5076 = vpack.c.b16 %v3772, %v3768
    %v5077 = vpack.c.b16 %v3777, %v3773
    %v5078 = vpack.c.b16 %v3778, %v3774
    %v5079 = vpack.c.b16 %v3779, %v3775
    %v5080 = vpack.c.b16 %v3780, %v3776
    %v5081 = vpack.c.b16 %v3785, %v3781
    %v5082 = vpack.c.b16 %v3786, %v3782
    %v5083 = vpack.c.b16 %v3787, %v3783
    %v5084 = vpack.c.b16 %v3788, %v3784
    %v5085 = vpack.c.b16 %v3793, %v3789
    %v5086 = vpack.c.b16 %v3794, %v3790
    %v5087 = vpack.c.b16 %v3795, %v3791
    %v5088 = vpack.c.b16 %v3796, %v3792
    %v5089 = vpack.c.b16 %v3801, %v3797
    %v5090 = vpack.c.b16 %v3802, %v3798
    %v5091 = vpack.c.b16 %v3803, %v3799
    %v5092 = vpack.c.b16 %v3804, %v3800
    %v5093 = vpack.c.b16 %v3809, %v3805
    %v5094 = vpack.c.b16 %v3810, %v3806
    %v5095 = vpack.c.b16 %v3811, %v3807
    %v5096 = vpack.c.b16 %v3812, %v3808
    %v5097 = vpack.c.b16 %v3817, %v3813
    %v5098 = vpack.c.b16 %v3818, %v3814
    %v5099 = vpack.c.b16 %v3819, %v3815
    %v5100 = vpack.c.b16 %v3820, %v3816
    %v5101 = vpack.c.b16 %v3825, %v3821
    %v5102 = vpack.c.b16 %v3826, %v3822
    %v5103 = vpack.c.b16 %v3827, %v3823
    %v5104 = vpack.c.b16 %v3828, %v3824
    %v5105 = vpack.c.b16 %v3833, %v3829
    %v5106 = vpack.c.b16 %v3834, %v3830
    %v5107 = vpack.c.b16 %v3835, %v3831
    %v5108 = vpack.c.b16 %v3836, %v3832
    %v5109 = vpack.c.b16 %v3841, %v3837
    %v5110 = vpack.c.b16 %v3842, %v3838
    %v5111 = vpack.c.b16 %v3843, %v3839
    %v5112 = vpack.c.b16 %v3844, %v3840
    %v5113 = vpack.c.b16 %v3849, %v3845
    %v5114 = vpack.c.b16 %v3850, %v3846
    %v5115 = vpack.c.b16 %v3851, %v3847
    %v5116 = vpack.c.b16 %v3852, %v3848
    %v5117 = vpack.c.b16 %v3857, %v3853
    %v5118 = vpack.c.b16 %v3858, %v3854
    %v5119 = vpack.c.b16 %v3859, %v3855
    %v5120 = vpack.c.b16 %v3860, %v3856
    %v5121 = vpack.c.b16 %v3865, %v3861
    %v5122 = vpack.c.b16 %v3866, %v3862
    %v5123 = vpack.c.b16 %v3867, %v3863
    %v5124 = vpack.c.b16 %v3868, %v3864
    %v5125 = vpack.c.b16 %v3873, %v3869
    %v5126 = vpack.c.b16 %v3874, %v3870
    %v5127 = vpack.c.b16 %v3875, %v3871
    %v5128 = vpack.c.b16 %v3876, %v3872
    %v5129 = vpack.c.b16 %v3881, %v3877
    %v5130 = vpack.c.b16 %v3882, %v3878
    %v5131 = vpack.c.b16 %v3883, %v3879
    %v5132 = vpack.c.b16 %v3884, %v3880
    %v5133 = vpack.c.b16 %v3889, %v3885
    %v5134 = vpack.c.b16 %v3890, %v3886
    %v5135 = vpack.c.b16 %v3891, %v3887
    %v5136 = vpack.c.b16 %v3892, %v3888
    %v5137 = vpack.c.b16 %v3897, %v3893
    %v5138 = vpack.c.b16 %v3898, %v3894
    %v5139 = vpack.c.b16 %v3899, %v3895
    %v5140 = vpack.c.b16 %v3900, %v3896
    %v5141 = vpack.c.b16 %v3905, %v3901
    %v5142 = vpack.c.b16 %v3906, %v3902
    %v5143 = vpack.c.b16 %v3907, %v3903
    %v5144 = vpack.c.b16 %v3908, %v3904
    %v5145 = vpack.c.b16 %v3913, %v3909
    %v5146 = vpack.c.b16 %v3914, %v3910
    %v5147 = vpack.c.b16 %v3915, %v3911
    %v5148 = vpack.c.b16 %v3916, %v3912
    %v5149 = vpack.c.b16 %v3921, %v3917
    %v5150 = vpack.c.b16 %v3922, %v3918
    %v5151 = vpack.c.b16 %v3923, %v3919
    %v5152 = vpack.c.b16 %v3924, %v3920
    %v5153 = vpack.c.b16 %v3929, %v3925
    %v5154 = vpack.c.b16 %v3930, %v3926
    %v5155 = vpack.c.b16 %v3931, %v3927
    %v5156 = vpack.c.b16 %v3932, %v3928
    %v5157 = vpack.c.b16 %v3937, %v3933
    %v5158 = vpack.c.b16 %v3938, %v3934
    %v5159 = vpack.c.b16 %v3939, %v3935
    %v5160 = vpack.c.b16 %v3940, %v3936
    %v5161 = vpack.c.b16 %v3945, %v3941
    %v5162 = vpack.c.b16 %v3946, %v3942
    %v5163 = vpack.c.b16 %v3947, %v3943
    %v5164 = vpack.c.b16 %v3948, %v3944
    %v5165 = vpack.c.b16 %v3953, %v3949
    %v5166 = vpack.c.b16 %v3954, %v3950
    %v5167 = vpack.c.b16 %v3955, %v3951
    %v5168 = vpack.c.b16 %v3956, %v3952
    %v5169 = vpack.c.b16 %v3961, %v3957
    %v5170 = vpack.c.b16 %v3962, %v3958
    %v5171 = vpack.c.b16 %v3963, %v3959
    %v5172 = vpack.c.b16 %v3964, %v3960
    %v5173 = vpack.c.b16 %v3969, %v3965
    %v5174 = vpack.c.b16 %v3970, %v3966
    %v5175 = vpack.c.b16 %v3971, %v3967
    %v5176 = vpack.c.b16 %v3972, %v3968
    %v5177 = vpack.c.b16 %v3977, %v3973
    %v5178 = vpack.c.b16 %v3978, %v3974
    %v5179 = vpack.c.b16 %v3979, %v3975
    %v5180 = vpack.c.b16 %v3980, %v3976
    %v5181 = vpack.c.b16 %v3985, %v3981
    %v5182 = vpack.c.b16 %v3986, %v3982
    %v5183 = vpack.c.b16 %v3987, %v3983
    %v5184 = vpack.c.b16 %v3988, %v3984
    %v5185 = vpack.c.b16 %v3993, %v3989
    %v5186 = vpack.c.b16 %v3994, %v3990
    %v5187 = vpack.c.b16 %v3995, %v3991
    %v5188 = vpack.c.b16 %v3996, %v3992
    %v5189 = vpack.c.b16 %v4001, %v3997
    %v5190 = vpack.c.b16 %v4002, %v3998
    %v5191 = vpack.c.b16 %v4003, %v3999
    %v5192 = vpack.c.b16 %v4004, %v4000
    %v5193 = vpack.c.b16 %v4009, %v4005
    %v5194 = vpack.c.b16 %v4010, %v4006
    %v5195 = vpack.c.b16 %v4011, %v4007
    %v5196 = vpack.c.b16 %v4012, %v4008
    %v5197 = vpack.c.b16 %v4017, %v4013
    %v5198 = vpack.c.b16 %v4018, %v4014
    %v5199 = vpack.c.b16 %v4019, %v4015
    %v5200 = vpack.c.b16 %v4020, %v4016
    %v5201 = vpack.c.b16 %v4025, %v4021
    %v5202 = vpack.c.b16 %v4026, %v4022
    %v5203 = vpack.c.b16 %v4027, %v4023
    %v5204 = vpack.c.b16 %v4028, %v4024
    %v5205 = vpack.c.b16 %v4033, %v4029
    %v5206 = vpack.c.b16 %v4034, %v4030
    %v5207 = vpack.c.b16 %v4035, %v4031
    %v5208 = vpack.c.b16 %v4036, %v4032
    %v5209 = vpack.c.b16 %v4041, %v4037
    %v5210 = vpack.c.b16 %v4042, %v4038
    %v5211 = vpack.c.b16 %v4043, %v4039
    %v5212 = vpack.c.b16 %v4044, %v4040
    %v5213 = vpack.c.b16 %v4049, %v4045
    %v5214 = vpack.c.b16 %v4050, %v4046
    %v5215 = vpack.c.b16 %v4051, %v4047
    %v5216 = vpack.c.b16 %v4052, %v4048
    %v5217 = vpack.c.b16 %v4057, %v4053
    %v5218 = vpack.c.b16 %v4058, %v4054
    %v5219 = vpack.c.b16 %v4059, %v4055
    %v5220 = vpack.c.b16 %v4060, %v4056
    %v5221 = vpack.c.b16 %v4065, %v4061
    %v5222 = vpack.c.b16 %v4066, %v4062
    %v5223 = vpack.c.b16 %v4067, %v4063
    %v5224 = vpack.c.b16 %v4068, %v4064
    %v5225 = vpack.c.b16 %v4073, %v4069
    %v5226 = vpack.c.b16 %v4074, %v4070
    %v5227 = vpack.c.b16 %v4075, %v4071
    %v5228 = vpack.c.b16 %v4076, %v4072
    %v5229 = vpack.c.b16 %v4081, %v4077
    %v5230 = vpack.c.b16 %v4082, %v4078
    %v5231 = vpack.c.b16 %v4083, %v4079
    %v5232 = vpack.c.b16 %v4084, %v4080
    %v5233 = vpack.c.b16 %v4089, %v4085
    %v5234 = vpack.c.b16 %v4090, %v4086
    %v5235 = vpack.c.b16 %v4091, %v4087
    %v5236 = vpack.c.b16 %v4092, %v4088
    %v5237 = vpack.c.b16 %v4097, %v4093
    %v5238 = vpack.c.b16 %v4098, %v4094
    %v5239 = vpack.c.b16 %v4099, %v4095
    %v5240 = vpack.c.b16 %v4100, %v4096
    %v5241 = vpack.c.b16 %v4105, %v4101
    %v5242 = vpack.c.b16 %v4106, %v4102
    %v5243 = vpack.c.b16 %v4107, %v4103
    %v5244 = vpack.c.b16 %v4108, %v4104
    %v5245 = vpack.c.b16 %v4113, %v4109
    %v5246 = vpack.c.b16 %v4114, %v4110
    %v5247 = vpack.c.b16 %v4115, %v4111
    %v5248 = vpack.c.b16 %v4116, %v4112
    %v5249 = vpack.c.b16 %v4121, %v4117
    %v5250 = vpack.c.b16 %v4122, %v4118
    %v5251 = vpack.c.b16 %v4123, %v4119
    %v5252 = vpack.c.b16 %v4124, %v4120
    %v5253 = vpack.c.b16 %v4129, %v4125
    %v5254 = vpack.c.b16 %v4130, %v4126
    %v5255 = vpack.c.b16 %v4131, %v4127
    %v5256 = vpack.c.b16 %v4132, %v4128
    %v5257 = vpack.c.b16 %v4137, %v4133
    %v5258 = vpack.c.b16 %v4138, %v4134
    %v5259 = vpack.c.b16 %v4139, %v4135
    %v5260 = vpack.c.b16 %v4140, %v4136
    %v5261 = vpack.c.b16 %v4145, %v4141
    %v5262 = vpack.c.b16 %v4146, %v4142
    %v5263 = vpack.c.b16 %v4147, %v4143
    %v5264 = vpack.c.b16 %v4148, %v4144
    %v5265 = vpack.c.b16 %v4153, %v4149
    %v5266 = vpack.c.b16 %v4154, %v4150
    %v5267 = vpack.c.b16 %v4155, %v4151
    %v5268 = vpack.c.b16 %v4156, %v4152
    %v5269 = vpack.c.b16 %v4161, %v4157
    %v5270 = vpack.c.b16 %v4162, %v4158
    %v5271 = vpack.c.b16 %v4163, %v4159
    %v5272 = vpack.c.b16 %v4164, %v4160
    %v5273 = vpack.c.b16 %v4169, %v4165
    %v5274 = vpack.c.b16 %v4170, %v4166
    %v5275 = vpack.c.b16 %v4171, %v4167
    %v5276 = vpack.c.b16 %v4172, %v4168
    %v5277 = vpack.c.b16 %v4177, %v4173
    %v5278 = vpack.c.b16 %v4178, %v4174
    %v5279 = vpack.c.b16 %v4179, %v4175
    %v5280 = vpack.c.b16 %v4180, %v4176
    %v5281 = vpack.c.b16 %v4185, %v4181
    %v5282 = vpack.c.b16 %v4186, %v4182
    %v5283 = vpack.c.b16 %v4187, %v4183
    %v5284 = vpack.c.b16 %v4188, %v4184
    %v5285 = vpack.c.b16 %v4193, %v4189
    %v5286 = vpack.c.b16 %v4194, %v4190
    %v5287 = vpack.c.b16 %v4195, %v4191
    %v5288 = vpack.c.b16 %v4196, %v4192
    %v5289 = vpack.c.b16 %v4201, %v4197
    %v5290 = vpack.c.b16 %v4202, %v4198
    %v5291 = vpack.c.b16 %v4203, %v4199
    %v5292 = vpack.c.b16 %v4204, %v4200
    %v5293 = vpack.c.b16 %v4209, %v4205
    %v5294 = vpack.c.b16 %v4210, %v4206
    %v5295 = vpack.c.b16 %v4211, %v4207
    %v5296 = vpack.c.b16 %v4212, %v4208
    %v5297 = vpack.c.b16 %v4217, %v4213
    %v5298 = vpack.c.b16 %v4218, %v4214
    %v5299 = vpack.c.b16 %v4219, %v4215
    %v5300 = vpack.c.b16 %v4220, %v4216
    %v5301 = vpack.c.b16 %v4225, %v4221
    %v5302 = vpack.c.b16 %v4226, %v4222
    %v5303 = vpack.c.b16 %v4227, %v4223
    %v5304 = vpack.c.b16 %v4228, %v4224
    %v5305 = vpack.c.b16 %v4233, %v4229
    %v5306 = vpack.c.b16 %v4234, %v4230
    %v5307 = vpack.c.b16 %v4235, %v4231
    %v5308 = vpack.c.b16 %v4236, %v4232
    %v5309 = vpack.c.b16 %v4241, %v4237
    %v5310 = vpack.c.b16 %v4242, %v4238
    %v5311 = vpack.c.b16 %v4243, %v4239
    %v5312 = vpack.c.b16 %v4244, %v4240
    %v5313 = vpack.c.b16 %v4249, %v4245
    %v5314 = vpack.c.b16 %v4250, %v4246
    %v5315 = vpack.c.b16 %v4251, %v4247
    %v5316 = vpack.c.b16 %v4252, %v4248
    %v5317 = vpack.c.b16 %v4257, %v4253
    %v5318 = vpack.c.b16 %v4258, %v4254
    %v5319 = vpack.c.b16 %v4259, %v4255
    %v5320 = vpack.c.b16 %v4260, %v4256
    %v5321 = vpack.c.b16 %v4265, %v4261
    %v5322 = vpack.c.b16 %v4266, %v4262
    %v5323 = vpack.c.b16 %v4267, %v4263
    %v5324 = vpack.c.b16 %v4268, %v4264
    %v5325 = vpack.c.b16 %v4273, %v4269
    %v5326 = vpack.c.b16 %v4274, %v4270
    %v5327 = vpack.c.b16 %v4275, %v4271
    %v5328 = vpack.c.b16 %v4276, %v4272
    %v5329 = vpack.c.b16 %v4281, %v4277
    %v5330 = vpack.c.b16 %v4282, %v4278
    %v5331 = vpack.c.b16 %v4283, %v4279
    %v5332 = vpack.c.b16 %v4284, %v4280
    %v5333 = vpack.c.b16 %v4289, %v4285
    %v5334 = vpack.c.b16 %v4290, %v4286
    %v5335 = vpack.c.b16 %v4291, %v4287
    %v5336 = vpack.c.b16 %v4292, %v4288
    %v5337 = vpack.c.b16 %v4297, %v4293
    %v5338 = vpack.c.b16 %v4298, %v4294
    %v5339 = vpack.c.b16 %v4299, %v4295
    %v5340 = vpack.c.b16 %v4300, %v4296
    %v5341 = vpack.c.b16 %v4305, %v4301
    %v5342 = vpack.c.b16 %v4306, %v4302
    %v5343 = vpack.c.b16 %v4307, %v4303
    %v5344 = vpack.c.b16 %v4308, %v4304
    %v5345 = vpack.c.b16 %v4313, %v4309
    %v5346 = vpack.c.b16 %v4314, %v4310
    %v5347 = vpack.c.b16 %v4315, %v4311
    %v5348 = vpack.c.b16 %v4316, %v4312
    %v5349 = vpack.c.b16 %v4321, %v4317
    %v5350 = vpack.c.b16 %v4322, %v4318
    %v5351 = vpack.c.b16 %v4323, %v4319
    %v5352 = vpack.c.b16 %v4324, %v4320
    %v5353 = vpack.c.b16 %v4329, %v4325
    %v5354 = vpack.c.b16 %v4330, %v4326
    %v5355 = vpack.c.b16 %v4331, %v4327
    %v5356 = vpack.c.b16 %v4332, %v4328
    %v5357 = vpack.c.b16 %v4337, %v4333
    %v5358 = vpack.c.b16 %v4338, %v4334
    %v5359 = vpack.c.b16 %v4339, %v4335
    %v5360 = vpack.c.b16 %v4340, %v4336
    %v5361 = vpack.c.b16 %v4345, %v4341
    %v5362 = vpack.c.b16 %v4346, %v4342
    %v5363 = vpack.c.b16 %v4347, %v4343
    %v5364 = vpack.c.b16 %v4348, %v4344
    %v5365 = vpack.c.b16 %v4353, %v4349
    %v5366 = vpack.c.b16 %v4354, %v4350
    %v5367 = vpack.c.b16 %v4355, %v4351
    %v5368 = vpack.c.b16 %v4356, %v4352
    %v5369 = vpack.c.b16 %v4361, %v4357
    %v5370 = vpack.c.b16 %v4362, %v4358
    %v5371 = vpack.c.b16 %v4363, %v4359
    %v5372 = vpack.c.b16 %v4364, %v4360
    %v5373 = vpack.c.b16 %v4369, %v4365
    %v5374 = vpack.c.b16 %v4370, %v4366
    %v5375 = vpack.c.b16 %v4371, %v4367
    %v5376 = vpack.c.b16 %v4372, %v4368
    %v5377 = vpack.c.b16 %v4377, %v4373
    %v5378 = vpack.c.b16 %v4378, %v4374
    %v5379 = vpack.c.b16 %v4379, %v4375
    %v5380 = vpack.c.b16 %v4380, %v4376
    %v5381 = vpack.c.b16 %v4385, %v4381
    %v5382 = vpack.c.b16 %v4386, %v4382
    %v5383 = vpack.c.b16 %v4387, %v4383
    %v5384 = vpack.c.b16 %v4388, %v4384
    %v5385 = vpack.c.b16 %v4393, %v4389
    %v5386 = vpack.c.b16 %v4394, %v4390
    %v5387 = vpack.c.b16 %v4395, %v4391
    %v5388 = vpack.c.b16 %v4396, %v4392
    %v5389 = vpack.c.b16 %v4401, %v4397
    %v5390 = vpack.c.b16 %v4402, %v4398
    %v5391 = vpack.c.b16 %v4403, %v4399
    %v5392 = vpack.c.b16 %v4404, %v4400
    %v5393 = vpack.c.b16 %v4409, %v4405
    %v5394 = vpack.c.b16 %v4410, %v4406
    %v5395 = vpack.c.b16 %v4411, %v4407
    %v5396 = vpack.c.b16 %v4412, %v4408
    %v5397 = vpack.c.b16 %v4417, %v4413
    %v5398 = vpack.c.b16 %v4418, %v4414
    %v5399 = vpack.c.b16 %v4419, %v4415
    %v5400 = vpack.c.b16 %v4420, %v4416
    %v5401 = vpack.c.b16 %v4425, %v4421
    %v5402 = vpack.c.b16 %v4426, %v4422
    %v5403 = vpack.c.b16 %v4427, %v4423
    %v5404 = vpack.c.b16 %v4428, %v4424
    %v5405 = vpack.c.b16 %v4433, %v4429
    %v5406 = vpack.c.b16 %v4434, %v4430
    %v5407 = vpack.c.b16 %v4435, %v4431
    %v5408 = vpack.c.b16 %v4436, %v4432
    %v5409 = vpack.c.b16 %v4441, %v4437
    %v5410 = vpack.c.b16 %v4442, %v4438
    %v5411 = vpack.c.b16 %v4443, %v4439
    %v5412 = vpack.c.b16 %v4444, %v4440
    %v5413 = vpack.c.b16 %v4449, %v4445
    %v5414 = vpack.c.b16 %v4450, %v4446
    %v5415 = vpack.c.b16 %v4451, %v4447
    %v5416 = vpack.c.b16 %v4452, %v4448
    %v5417 = vpack.c.b16 %v4457, %v4453
    %v5418 = vpack.c.b16 %v4458, %v4454
    %v5419 = vpack.c.b16 %v4459, %v4455
    %v5420 = vpack.c.b16 %v4460, %v4456
    %v5421 = vpack.c.b16 %v4465, %v4461
    %v5422 = vpack.c.b16 %v4466, %v4462
    %v5423 = vpack.c.b16 %v4467, %v4463
    %v5424 = vpack.c.b16 %v4468, %v4464
    %v5425 = vpack.c.b16 %v4473, %v4469
    %v5426 = vpack.c.b16 %v4474, %v4470
    %v5427 = vpack.c.b16 %v4475, %v4471
    %v5428 = vpack.c.b16 %v4476, %v4472
    %v5429 = vpack.c.b16 %v4481, %v4477
    %v5430 = vpack.c.b16 %v4482, %v4478
    %v5431 = vpack.c.b16 %v4483, %v4479
    %v5432 = vpack.c.b16 %v4484, %v4480
    %v5433 = vpack.c.b16 %v4489, %v4485
    %v5434 = vpack.c.b16 %v4490, %v4486
    %v5435 = vpack.c.b16 %v4491, %v4487
    %v5436 = vpack.c.b16 %v4492, %v4488
    %v5437 = vpack.c.b16 %v4497, %v4493
    %v5438 = vpack.c.b16 %v4498, %v4494
    %v5439 = vpack.c.b16 %v4499, %v4495
    %v5440 = vpack.c.b16 %v4500, %v4496
    %v5441 = vpack.c.b16 %v4505, %v4501
    %v5442 = vpack.c.b16 %v4506, %v4502
    %v5443 = vpack.c.b16 %v4507, %v4503
    %v5444 = vpack.c.b16 %v4508, %v4504
    %v5445 = vpack.c.b16 %v4513, %v4509
    %v5446 = vpack.c.b16 %v4514, %v4510
    %v5447 = vpack.c.b16 %v4515, %v4511
    %v5448 = vpack.c.b16 %v4516, %v4512
    %v5449 = vpack.c.b16 %v4521, %v4517
    %v5450 = vpack.c.b16 %v4522, %v4518
    %v5451 = vpack.c.b16 %v4523, %v4519
    %v5452 = vpack.c.b16 %v4524, %v4520
    %v5453 = vpack.c.b16 %v4529, %v4525
    %v5454 = vpack.c.b16 %v4530, %v4526
    %v5455 = vpack.c.b16 %v4531, %v4527
    %v5456 = vpack.c.b16 %v4532, %v4528
    %v5457 = vpack.c.b16 %v4537, %v4533
    %v5458 = vpack.c.b16 %v4538, %v4534
    %v5459 = vpack.c.b16 %v4539, %v4535
    %v5460 = vpack.c.b16 %v4540, %v4536
    %v5461 = vpack.c.b16 %v4545, %v4541
    %v5462 = vpack.c.b16 %v4546, %v4542
    %v5463 = vpack.c.b16 %v4547, %v4543
    %v5464 = vpack.c.b16 %v4548, %v4544
    %v5465 = vpack.c.b16 %v4553, %v4549
    %v5466 = vpack.c.b16 %v4554, %v4550
    %v5467 = vpack.c.b16 %v4555, %v4551
    %v5468 = vpack.c.b16 %v4556, %v4552
    %v5469 = vpack.c.b16 %v4561, %v4557
    %v5470 = vpack.c.b16 %v4562, %v4558
    %v5471 = vpack.c.b16 %v4563, %v4559
    %v5472 = vpack.c.b16 %v4564, %v4560
    %v5473 = vpack.c.b16 %v4569, %v4565
    %v5474 = vpack.c.b16 %v4570, %v4566
    %v5475 = vpack.c.b16 %v4571, %v4567
    %v5476 = vpack.c.b16 %v4572, %v4568
    %v5477 = vpack.c.b16 %v4577, %v4573
    %v5478 = vpack.c.b16 %v4578, %v4574
    %v5479 = vpack.c.b16 %v4579, %v4575
    %v5480 = vpack.c.b16 %v4580, %v4576
    %v5481 = vpack.c.b16 %v4585, %v4581
    %v5482 = vpack.c.b16 %v4586, %v4582
    %v5483 = vpack.c.b16 %v4587, %v4583
    %v5484 = vpack.c.b16 %v4588, %v4584
    %v5485 = vpack.c.b16 %v4593, %v4589
    %v5486 = vpack.c.b16 %v4594, %v4590
    %v5487 = vpack.c.b16 %v4595, %v4591
    %v5488 = vpack.c.b16 %v4596, %v4592
    %v5489 = vpack.c.b16 %v4601, %v4597
    %v5490 = vpack.c.b16 %v4602, %v4598
    %v5491 = vpack.c.b16 %v4603, %v4599
    %v5492 = vpack.c.b16 %v4604, %v4600
    %v5493 = vpack.c.b16 %v4609, %v4605
    %v5494 = vpack.c.b16 %v4610, %v4606
    %v5495 = vpack.c.b16 %v4611, %v4607
    %v5496 = vpack.c.b16 %v4612, %v4608
    %v5497 = vpack.c.b16 %v4617, %v4613
    %v5498 = vpack.c.b16 %v4618, %v4614
    %v5499 = vpack.c.b16 %v4619, %v4615
    %v5500 = vpack.c.b16 %v4620, %v4616
    %v5501 = vpack.c.b16 %v4625, %v4621
    %v5502 = vpack.c.b16 %v4626, %v4622
    %v5503 = vpack.c.b16 %v4627, %v4623
    %v5504 = vpack.c.b16 %v4628, %v4624
    %v5505 = vpack.c.b16 %v4633, %v4629
    %v5506 = vpack.c.b16 %v4634, %v4630
    %v5507 = vpack.c.b16 %v4635, %v4631
    %v5508 = vpack.c.b16 %v4636, %v4632
    %v5509 = vpack.c.b16 %v4641, %v4637
    %v5510 = vpack.c.b16 %v4642, %v4638
    %v5511 = vpack.c.b16 %v4643, %v4639
    %v5512 = vpack.c.b16 %v4644, %v4640
    %v5513 = vpack.c.b16 %v4649, %v4645
    %v5514 = vpack.c.b16 %v4650, %v4646
    %v5515 = vpack.c.b16 %v4651, %v4647
    %v5516 = vpack.c.b16 %v4652, %v4648
    %v5517 = vpack.c.b16 %v4657, %v4653
    %v5518 = vpack.c.b16 %v4658, %v4654
    %v5519 = vpack.c.b16 %v4659, %v4655
    %v5520 = vpack.c.b16 %v4660, %v4656
    %v5521 = vpack.c.b16 %v4665, %v4661
    %v5522 = vpack.c.b16 %v4666, %v4662
    %v5523 = vpack.c.b16 %v4667, %v4663
    %v5524 = vpack.c.b16 %v4668, %v4664
    %v5525 = vpack.c.b16 %v4673, %v4669
    %v5526 = vpack.c.b16 %v4674, %v4670
    %v5527 = vpack.c.b16 %v4675, %v4671
    %v5528 = vpack.c.b16 %v4676, %v4672
    %v5529 = vpack.c.b16 %v4681, %v4677
    %v5530 = vpack.c.b16 %v4682, %v4678
    %v5531 = vpack.c.b16 %v4683, %v4679
    %v5532 = vpack.c.b16 %v4684, %v4680
    %v5533 = vpack.c.b16 %v4689, %v4685
    %v5534 = vpack.c.b16 %v4690, %v4686
    %v5535 = vpack.c.b16 %v4691, %v4687
    %v5536 = vpack.c.b16 %v4692, %v4688
    %v5537 = vpack.c.b16 %v4697, %v4693
    %v5538 = vpack.c.b16 %v4698, %v4694
    %v5539 = vpack.c.b16 %v4699, %v4695
    %v5540 = vpack.c.b16 %v4700, %v4696
    %v5541 = vpack.c.b16 %v4705, %v4701
    %v5542 = vpack.c.b16 %v4706, %v4702
    %v5543 = vpack.c.b16 %v4707, %v4703
    %v5544 = vpack.c.b16 %v4708, %v4704
    %v5545 = vpack.c.b16 %v4713, %v4709
    %v5546 = vpack.c.b16 %v4714, %v4710
    %v5547 = vpack.c.b16 %v4715, %v4711
    %v5548 = vpack.c.b16 %v4716, %v4712
    %v5549 = vpack.c.b16 %v4721, %v4717
    %v5550 = vpack.c.b16 %v4722, %v4718
    %v5551 = vpack.c.b16 %v4723, %v4719
    %v5552 = vpack.c.b16 %v4724, %v4720
    %v5553 = vpack.c.b16 %v4729, %v4725
    %v5554 = vpack.c.b16 %v4730, %v4726
    %v5555 = vpack.c.b16 %v4731, %v4727
    %v5556 = vpack.c.b16 %v4732, %v4728
    %v5557 = vpack.c.b16 %v4737, %v4733
    %v5558 = vpack.c.b16 %v4738, %v4734
    %v5559 = vpack.c.b16 %v4739, %v4735
    %v5560 = vpack.c.b16 %v4740, %v4736
    %v5561 = vpack.c.b16 %v4745, %v4741
    %v5562 = vpack.c.b16 %v4746, %v4742
    %v5563 = vpack.c.b16 %v4747, %v4743
    %v5564 = vpack.c.b16 %v4748, %v4744
    %v5565 = vpack.c.b16 %v4753, %v4749
    %v5566 = vpack.c.b16 %v4754, %v4750
    %v5567 = vpack.c.b16 %v4755, %v4751
    %v5568 = vpack.c.b16 %v4756, %v4752
    %v5569 = vpack.c.b16 %v4761, %v4757
    %v5570 = vpack.c.b16 %v4762, %v4758
    %v5571 = vpack.c.b16 %v4763, %v4759
    %v5572 = vpack.c.b16 %v4764, %v4760
    %v5573 = vpack.c.b16 %v4769, %v4765
    %v5574 = vpack.c.b16 %v4770, %v4766
    %v5575 = vpack.c.b16 %v4771, %v4767
    %v5576 = vpack.c.b16 %v4772, %v4768
    %v5577 = vpack.c.b16 %v4777, %v4773
    %v5578 = vpack.c.b16 %v4778, %v4774
    %v5579 = vpack.c.b16 %v4779, %v4775
    %v5580 = vpack.c.b16 %v4780, %v4776
    %v5581 = vpack.c.b16 %v4785, %v4781
    %v5582 = vpack.c.b16 %v4786, %v4782
    %v5583 = vpack.c.b16 %v4787, %v4783
    %v5584 = vpack.c.b16 %v4788, %v4784
    %v5585 = vpack.c.b16 %v4793, %v4789
    %v5586 = vpack.c.b16 %v4794, %v4790
    %v5587 = vpack.c.b16 %v4795, %v4791
    %v5588 = vpack.c.b16 %v4796, %v4792
    %v5589 = vpack.c.b16 %v4801, %v4797
    %v5590 = vpack.c.b16 %v4802, %v4798
    %v5591 = vpack.c.b16 %v4803, %v4799
    %v5592 = vpack.c.b16 %v4804, %v4800
    %v5593 = vpack.c.b16 %v4809, %v4805
    %v5594 = vpack.c.b16 %v4810, %v4806
    %v5595 = vpack.c.b16 %v4811, %v4807
    %v5596 = vpack.c.b16 %v4812, %v4808
    %vm6381 = vcmask 523264
    %v6383 = vsel %vm6381, %v1654, 0
    %6385 = vmatprep.subr.bf16.mxu0 %v4814
    %6386 = vmatpush1.bf16.msra.mxu0 %v4813
    %6387 = vmatprep.subr.bf16.mxu0 %v4818
    %6388 = vmatpush1.bf16.msra.mxu0 %v4817
    %6389 = vmatprep.subr.bf16.mxu0 %v4822
    %6390 = vmatpush1.bf16.msra.mxu0 %v4821
    %6391 = vmatprep.subr.bf16.mxu0 %v4826
    %6392 = vmatpush1.bf16.msra.mxu0 %v4825
    %6393 = vmatprep.subr.bf16.mxu0 %v4830
    %6394 = vmatpush1.bf16.msra.mxu0 %v4829
    %6395 = vmatprep.subr.bf16.mxu0 %v4834
    %6396 = vmatpush1.bf16.msra.mxu0 %v4833
    %6397 = vmatprep.subr.bf16.mxu0 %v4838
    %6398 = vmatpush1.bf16.msra.mxu0 %v4837
    %6399 = vmatprep.subr.bf16.mxu0 %v4842
    %6400 = vmatpush1.bf16.msra.mxu0 %v4841
    %6401 = vmatprep.subr.bf16.mxu0 %v4846
    %6402 = vmatpush1.bf16.msra.mxu0 %v4845
    %6403 = vmatprep.subr.bf16.mxu0 %v4850
    %6404 = vmatpush1.bf16.msra.mxu0 %v4849
    %6405 = vmatprep.subr.bf16.mxu0 %v4854
    %6406 = vmatpush1.bf16.msra.mxu0 %v4853
    %6407 = vmatprep.subr.bf16.mxu0 %v4858
    %6408 = vmatpush1.bf16.msra.mxu0 %v4857
    %6409 = vmatprep.subr.bf16.mxu0 %v4862
    %6410 = vmatpush1.bf16.msra.mxu0 %v4861
    %6411 = vmatprep.subr.bf16.mxu0 %v4866
    %6412 = vmatpush1.bf16.msra.mxu0 %v4865
    %6413 = vmatprep.subr.bf16.mxu0 %v4870
    %6414 = vmatpush1.bf16.msra.mxu0 %v4869
    %6415 = vmatprep.subr.bf16.mxu0 %v4874
    %6416 = vmatpush1.bf16.msra.mxu0 %v4873
    %6417 = vmatprep.mubr.bf16.mxu0 %v1631
    %6418 = vmatmul.mubr.bf16.gmra.mrb[0].mxu0 %v1630
    %v6419 = vpop.f32.mrb[0].mxu0
    %v6420 = vadd.f32 %v2444, %v6419
    %v6421 = vpop.f32.mrb[0].mxu0
    %v6422 = vadd.f32 %v2448, %v6421
    %v6423 = vpop.f32.mrb[0].mxu0
    %v6424 = vpop.f32.mrb[0].mxu0
    %6425 = vdwg.mxu0
    %6426 = vmatprep.subr.bf16.mxu0 %v4878
    %6427 = vmatpush1.bf16.msra.mxu0 %v4877
    %6428 = vmatprep.subr.bf16.mxu0 %v4882
    %6429 = vmatpush1.bf16.msra.mxu0 %v4881
    %6430 = vmatprep.subr.bf16.mxu0 %v4886
    %6431 = vmatpush1.bf16.msra.mxu0 %v4885
    %6432 = vmatprep.subr.bf16.mxu0 %v4890
    %6433 = vmatpush1.bf16.msra.mxu0 %v4889
    %6434 = vmatprep.subr.bf16.mxu0 %v4894
    %6435 = vmatpush1.bf16.msra.mxu0 %v4893
    %6436 = vmatprep.subr.bf16.mxu0 %v4898
    %6437 = vmatpush1.bf16.msra.mxu0 %v4897
    %6438 = vmatprep.subr.bf16.mxu0 %v4902
    %6439 = vmatpush1.bf16.msra.mxu0 %v4901
    %6440 = vmatprep.subr.bf16.mxu0 %v4906
    %6441 = vmatpush1.bf16.msra.mxu0 %v4905
    %6442 = vmatprep.subr.bf16.mxu0 %v4910
    %6443 = vmatpush1.bf16.msra.mxu0 %v4909
    %6444 = vmatprep.subr.bf16.mxu0 %v4914
    %6445 = vmatpush1.bf16.msra.mxu0 %v4913
    %6446 = vmatprep.subr.bf16.mxu0 %v4918
    %6447 = vmatpush1.bf16.msra.mxu0 %v4917
    %6448 = vmatprep.subr.bf16.mxu0 %v4922
    %6449 = vmatpush1.bf16.msra.mxu0 %v4921
    %6450 = vmatprep.subr.bf16.mxu0 %v4926
    %6451 = vmatpush1.bf16.msra.mxu0 %v4925
    %6452 = vmatprep.subr.bf16.mxu0 %v4930
    %6453 = vmatpush1.bf16.msra.mxu0 %v4929
    %6454 = vmatprep.subr.bf16.mxu0 %v4934
    %6455 = vmatpush1.bf16.msra.mxu0 %v4933
    %6456 = vmatprep.subr.bf16.mxu0 %v4938
    %6457 = vmatpush1.bf16.msra.mxu0 %v4937
    %6458 = vmatprep.mubr.bf16.mxu0 %v1633
    %6459 = vmatmul.mubr.bf16.gmra.mrb[0].mxu0 %v1632
    %v6460 = vpop.f32.mrb[0].mxu0
    %v6461 = vadd.f32 %v6420, %v6460
    %v6462 = vpop.f32.mrb[0].mxu0
    %v6463 = vadd.f32 %v6422, %v6462
    %v6464 = vpop.f32.mrb[0].mxu0
    %v6465 = vpop.f32.mrb[0].mxu0
    %6466 = vdwg.mxu0
    %6467 = vmatprep.subr.bf16.mxu0 %v4942
    %6468 = vmatpush1.bf16.msra.mxu0 %v4941
    %6469 = vmatprep.subr.bf16.mxu0 %v4946
    %6470 = vmatpush1.bf16.msra.mxu0 %v4945
    %6471 = vmatprep.subr.bf16.mxu0 %v4950
    %6472 = vmatpush1.bf16.msra.mxu0 %v4949
    %6473 = vmatprep.subr.bf16.mxu0 %v4954
    %6474 = vmatpush1.bf16.msra.mxu0 %v4953
    %6475 = vmatprep.subr.bf16.mxu0 %v4958
    %6476 = vmatpush1.bf16.msra.mxu0 %v4957
    %6477 = vmatprep.subr.bf16.mxu0 %v4962
    %6478 = vmatpush1.bf16.msra.mxu0 %v4961
    %6479 = vmatprep.subr.bf16.mxu0 %v4966
    %6480 = vmatpush1.bf16.msra.mxu0 %v4965
    %6481 = vmatprep.subr.bf16.mxu0 %v4970
    %6482 = vmatpush1.bf16.msra.mxu0 %v4969
    %6483 = vmatprep.subr.bf16.mxu0 %v4974
    %6484 = vmatpush1.bf16.msra.mxu0 %v4973
    %6485 = vmatprep.subr.bf16.mxu0 %v4978
    %6486 = vmatpush1.bf16.msra.mxu0 %v4977
    %6487 = vmatprep.subr.bf16.mxu0 %v4982
    %6488 = vmatpush1.bf16.msra.mxu0 %v4981
    %6489 = vmatprep.subr.bf16.mxu0 %v4986
    %6490 = vmatpush1.bf16.msra.mxu0 %v4985
    %6491 = vmatprep.subr.bf16.mxu0 %v4990
    %6492 = vmatpush1.bf16.msra.mxu0 %v4989
    %6493 = vmatprep.subr.bf16.mxu0 %v4994
    %6494 = vmatpush1.bf16.msra.mxu0 %v4993
    %6495 = vmatprep.subr.bf16.mxu0 %v4998
    %6496 = vmatpush1.bf16.msra.mxu0 %v4997
    %6497 = vmatprep.subr.bf16.mxu0 %v5002
    %6498 = vmatpush1.bf16.msra.mxu0 %v5001
    %6499 = vmatprep.mubr.bf16.mxu0 %v1635
    %6500 = vmatmul.mubr.bf16.gmra.mrb[0].mxu0 %v1634
    %v6501 = vpop.f32.mrb[0].mxu0
    %v6502 = vadd.f32 %v6461, %v6501
    %v6503 = vpop.f32.mrb[0].mxu0
    %v6504 = vadd.f32 %v6463, %v6503
    %v6505 = vpop.f32.mrb[0].mxu0
    %v6506 = vpop.f32.mrb[0].mxu0
    %6507 = vdwg.mxu0
    %6508 = vmatprep.subr.bf16.mxu0 %v5006
    %6509 = vmatpush1.bf16.msra.mxu0 %v5005
    %6510 = vmatprep.subr.bf16.mxu0 %v5010
    %6511 = vmatpush1.bf16.msra.mxu0 %v5009
    %6512 = vmatprep.subr.bf16.mxu0 %v5014
    %6513 = vmatpush1.bf16.msra.mxu0 %v5013
    %6514 = vmatprep.subr.bf16.mxu0 %v5018
    %6515 = vmatpush1.bf16.msra.mxu0 %v5017
    %6516 = vmatprep.subr.bf16.mxu0 %v5022
    %6517 = vmatpush1.bf16.msra.mxu0 %v5021
    %6518 = vmatprep.subr.bf16.mxu0 %v5026
    %6519 = vmatpush1.bf16.msra.mxu0 %v5025
    %6520 = vmatprep.subr.bf16.mxu0 %v5030
    %6521 = vmatpush1.bf16.msra.mxu0 %v5029
    %6522 = vmatprep.subr.bf16.mxu0 %v5034
    %6523 = vmatpush1.bf16.msra.mxu0 %v5033
    %6524 = vmatprep.subr.bf16.mxu0 %v5038
    %6525 = vmatpush1.bf16.msra.mxu0 %v5037
    %6526 = vmatprep.subr.bf16.mxu0 %v5042
    %6527 = vmatpush1.bf16.msra.mxu0 %v5041
    %6528 = vmatprep.subr.bf16.mxu0 %v5046
    %6529 = vmatpush1.bf16.msra.mxu0 %v5045
    %6530 = vmatprep.subr.bf16.mxu0 %v5050
    %6531 = vmatpush1.bf16.msra.mxu0 %v5049
    %6532 = vmatprep.subr.bf16.mxu0 %v5054
    %6533 = vmatpush1.bf16.msra.mxu0 %v5053
    %6534 = vmatprep.subr.bf16.mxu0 %v5058
    %6535 = vmatpush1.bf16.msra.mxu0 %v5057
    %6536 = vmatprep.subr.bf16.mxu0 %v5062
    %6537 = vmatpush1.bf16.msra.mxu0 %v5061
    %6538 = vmatprep.subr.bf16.mxu0 %v5066
    %6539 = vmatpush1.bf16.msra.mxu0 %v5065
    %6540 = vmatprep.mubr.bf16.mxu0 %v1637
    %6541 = vmatmul.mubr.bf16.gmra.mrb[0].mxu0 %v1636
    %v6542 = vpop.f32.mrb[0].mxu0
    %v6543 = vadd.f32 %v6502, %v6542
    %v6544 = vpop.f32.mrb[0].mxu0
    %v6545 = vadd.f32 %v6504, %v6544
    %v6546 = vpop.f32.mrb[0].mxu0
    %v6547 = vpop.f32.mrb[0].mxu0
    %6548 = vdwg.mxu0
    %6549 = vmatprep.subr.bf16.mxu0 %v5070
    %6550 = vmatpush1.bf16.msra.mxu0 %v5069
    %6551 = vmatprep.subr.bf16.mxu0 %v5074
    %6552 = vmatpush1.bf16.msra.mxu0 %v5073
    %6553 = vmatprep.subr.bf16.mxu0 %v5078
    %6554 = vmatpush1.bf16.msra.mxu0 %v5077
    %6555 = vmatprep.subr.bf16.mxu0 %v5082
    %6556 = vmatpush1.bf16.msra.mxu0 %v5081
    %6557 = vmatprep.subr.bf16.mxu0 %v5086
    %6558 = vmatpush1.bf16.msra.mxu0 %v5085
    %6559 = vmatprep.subr.bf16.mxu0 %v5090
    %6560 = vmatpush1.bf16.msra.mxu0 %v5089
    %6561 = vmatprep.subr.bf16.mxu0 %v5094
    %6562 = vmatpush1.bf16.msra.mxu0 %v5093
    %6563 = vmatprep.subr.bf16.mxu0 %v5098
    %6564 = vmatpush1.bf16.msra.mxu0 %v5097
    %6565 = vmatprep.subr.bf16.mxu0 %v5102
    %6566 = vmatpush1.bf16.msra.mxu0 %v5101
    %6567 = vmatprep.subr.bf16.mxu0 %v5106
    %6568 = vmatpush1.bf16.msra.mxu0 %v5105
    %6569 = vmatprep.subr.bf16.mxu0 %v5110
    %6570 = vmatpush1.bf16.msra.mxu0 %v5109
    %6571 = vmatprep.subr.bf16.mxu0 %v5114
    %6572 = vmatpush1.bf16.msra.mxu0 %v5113
    %6573 = vmatprep.subr.bf16.mxu0 %v5118
    %6574 = vmatpush1.bf16.msra.mxu0 %v5117
    %6575 = vmatprep.subr.bf16.mxu0 %v5122
    %6576 = vmatpush1.bf16.msra.mxu0 %v5121
    %6577 = vmatprep.subr.bf16.mxu0 %v5126
    %6578 = vmatpush1.bf16.msra.mxu0 %v5125
    %6579 = vmatprep.subr.bf16.mxu0 %v5130
    %6580 = vmatpush1.bf16.msra.mxu0 %v5129
    %6581 = vmatprep.mubr.bf16.mxu0 %v1639
    %6582 = vmatmul.mubr.bf16.gmra.mrb[0].mxu0 %v1638
    %v6583 = vpop.f32.mrb[0].mxu0
    %v6584 = vadd.f32 %v6543, %v6583
    %v6585 = vpop.f32.mrb[0].mxu0
    %v6586 = vadd.f32 %v6545, %v6585
    %v6587 = vpop.f32.mrb[0].mxu0
    %v6588 = vpop.f32.mrb[0].mxu0
    %6589 = vdwg.mxu0
    %6590 = vmatprep.subr.bf16.mxu0 %v5134
    %6591 = vmatpush1.bf16.msra.mxu0 %v5133
    %6592 = vmatprep.subr.bf16.mxu0 %v5138
    %6593 = vmatpush1.bf16.msra.mxu0 %v5137
    %6594 = vmatprep.subr.bf16.mxu0 %v5142
    %6595 = vmatpush1.bf16.msra.mxu0 %v5141
    %6596 = vmatprep.subr.bf16.mxu0 %v5146
    %6597 = vmatpush1.bf16.msra.mxu0 %v5145
    %6598 = vmatprep.subr.bf16.mxu0 %v5150
    %6599 = vmatpush1.bf16.msra.mxu0 %v5149
    %6600 = vmatprep.subr.bf16.mxu0 %v5154
    %6601 = vmatpush1.bf16.msra.mxu0 %v5153
    %6602 = vmatprep.subr.bf16.mxu0 %v5158
    %6603 = vmatpush1.bf16.msra.mxu0 %v5157
    %6604 = vmatprep.subr.bf16.mxu0 %v5162
    %6605 = vmatpush1.bf16.msra.mxu0 %v5161
    %6606 = vmatprep.subr.bf16.mxu0 %v5166
    %6607 = vmatpush1.bf16.msra.mxu0 %v5165
    %6608 = vmatprep.subr.bf16.mxu0 %v5170
    %6609 = vmatpush1.bf16.msra.mxu0 %v5169
    %6610 = vmatprep.subr.bf16.mxu0 %v5174
    %6611 = vmatpush1.bf16.msra.mxu0 %v5173
    %6612 = vmatprep.subr.bf16.mxu0 %v5178
    %6613 = vmatpush1.bf16.msra.mxu0 %v5177
    %6614 = vmatprep.subr.bf16.mxu0 %v5182
    %6615 = vmatpush1.bf16.msra.mxu0 %v5181
    %6616 = vmatprep.subr.bf16.mxu0 %v5186
    %6617 = vmatpush1.bf16.msra.mxu0 %v5185
    %6618 = vmatprep.subr.bf16.mxu0 %v5190
    %6619 = vmatpush1.bf16.msra.mxu0 %v5189
    %6620 = vmatprep.subr.bf16.mxu0 %v5194
    %6621 = vmatpush1.bf16.msra.mxu0 %v5193
    %6622 = vmatprep.mubr.bf16.mxu0 %v1641
    %6623 = vmatmul.mubr.bf16.gmra.mrb[0].mxu0 %v1640
    %v6624 = vpop.f32.mrb[0].mxu0
    %v6625 = vadd.f32 %v6584, %v6624
    %v6626 = vpop.f32.mrb[0].mxu0
    %v6627 = vadd.f32 %v6586, %v6626
    %v6628 = vpop.f32.mrb[0].mxu0
    %v6629 = vpop.f32.mrb[0].mxu0
    %6630 = vdwg.mxu0
    %6631 = vmatprep.subr.bf16.mxu0 %v5198
    %6632 = vmatpush1.bf16.msra.mxu0 %v5197
    %6633 = vmatprep.subr.bf16.mxu0 %v5202
    %6634 = vmatpush1.bf16.msra.mxu0 %v5201
    %6635 = vmatprep.subr.bf16.mxu0 %v5206
    %6636 = vmatpush1.bf16.msra.mxu0 %v5205
    %6637 = vmatprep.subr.bf16.mxu0 %v5210
    %6638 = vmatpush1.bf16.msra.mxu0 %v5209
    %6639 = vmatprep.subr.bf16.mxu0 %v5214
    %6640 = vmatpush1.bf16.msra.mxu0 %v5213
    %6641 = vmatprep.subr.bf16.mxu0 %v5218
    %6642 = vmatpush1.bf16.msra.mxu0 %v5217
    %6643 = vmatprep.subr.bf16.mxu0 %v5222
    %6644 = vmatpush1.bf16.msra.mxu0 %v5221
    %6645 = vmatprep.subr.bf16.mxu0 %v5226
    %6646 = vmatpush1.bf16.msra.mxu0 %v5225
    %6647 = vmatprep.subr.bf16.mxu0 %v5230
    %6648 = vmatpush1.bf16.msra.mxu0 %v5229
    %6649 = vmatprep.subr.bf16.mxu0 %v5234
    %6650 = vmatpush1.bf16.msra.mxu0 %v5233
    %6651 = vmatprep.subr.bf16.mxu0 %v5238
    %6652 = vmatpush1.bf16.msra.mxu0 %v5237
    %6653 = vmatprep.subr.bf16.mxu0 %v5242
    %6654 = vmatpush1.bf16.msra.mxu0 %v5241
    %6655 = vmatprep.subr.bf16.mxu0 %v5246
    %6656 = vmatpush1.bf16.msra.mxu0 %v5245
    %6657 = vmatprep.subr.bf16.mxu0 %v5250
    %6658 = vmatpush1.bf16.msra.mxu0 %v5249
    %6659 = vmatprep.subr.bf16.mxu0 %v5254
    %6660 = vmatpush1.bf16.msra.mxu0 %v5253
    %6661 = vmatprep.subr.bf16.mxu0 %v5258
    %6662 = vmatpush1.bf16.msra.mxu0 %v5257
    %6663 = vmatprep.mubr.bf16.mxu0 %v1643
    %6664 = vmatmul.mubr.bf16.gmra.mrb[0].mxu0 %v1642
    %v6665 = vpop.f32.mrb[0].mxu0
    %v6666 = vadd.f32 %v6625, %v6665
    %v6667 = vpop.f32.mrb[0].mxu0
    %v6668 = vadd.f32 %v6627, %v6667
    %v6669 = vpop.f32.mrb[0].mxu0
    %v6670 = vpop.f32.mrb[0].mxu0
    %6671 = vdwg.mxu0
    %6672 = vmatprep.subr.bf16.mxu0 %v5262
    %6673 = vmatpush1.bf16.msra.mxu0 %v5261
    %6674 = vmatprep.subr.bf16.mxu0 %v5266
    %6675 = vmatpush1.bf16.msra.mxu0 %v5265
    %6676 = vmatprep.subr.bf16.mxu0 %v5270
    %6677 = vmatpush1.bf16.msra.mxu0 %v5269
    %6678 = vmatprep.subr.bf16.mxu0 %v5274
    %6679 = vmatpush1.bf16.msra.mxu0 %v5273
    %6680 = vmatprep.subr.bf16.mxu0 %v5278
    %6681 = vmatpush1.bf16.msra.mxu0 %v5277
    %6682 = vmatprep.subr.bf16.mxu0 %v5282
    %6683 = vmatpush1.bf16.msra.mxu0 %v5281
    %6684 = vmatprep.subr.bf16.mxu0 %v5286
    %6685 = vmatpush1.bf16.msra.mxu0 %v5285
    %6686 = vmatprep.subr.bf16.mxu0 %v5290
    %6687 = vmatpush1.bf16.msra.mxu0 %v5289
    %6688 = vmatprep.subr.bf16.mxu0 %v5294
    %6689 = vmatpush1.bf16.msra.mxu0 %v5293
    %6690 = vmatprep.subr.bf16.mxu0 %v5298
    %6691 = vmatpush1.bf16.msra.mxu0 %v5297
    %6692 = vmatprep.subr.bf16.mxu0 %v5302
    %6693 = vmatpush1.bf16.msra.mxu0 %v5301
    %6694 = vmatprep.subr.bf16.mxu0 %v5306
    %6695 = vmatpush1.bf16.msra.mxu0 %v5305
    %6696 = vmatprep.subr.bf16.mxu0 %v5310
    %6697 = vmatpush1.bf16.msra.mxu0 %v5309
    %6698 = vmatprep.subr.bf16.mxu0 %v5314
    %6699 = vmatpush1.bf16.msra.mxu0 %v5313
    %6700 = vmatprep.subr.bf16.mxu0 %v5318
    %6701 = vmatpush1.bf16.msra.mxu0 %v5317
    %6702 = vmatprep.subr.bf16.mxu0 %v5322
    %6703 = vmatpush1.bf16.msra.mxu0 %v5321
    %6704 = vmatprep.mubr.bf16.mxu0 %v1645
    %6705 = vmatmul.mubr.bf16.gmra.mrb[0].mxu0 %v1644
    %v6706 = vpop.f32.mrb[0].mxu0
    %v6707 = vadd.f32 %v6666, %v6706
    %v6708 = vpop.f32.mrb[0].mxu0
    %v6709 = vadd.f32 %v6668, %v6708
    %v6710 = vpop.f32.mrb[0].mxu0
    %v6711 = vpop.f32.mrb[0].mxu0
    %6712 = vdwg.mxu0
    %6713 = vmatprep.subr.bf16.mxu0 %v5326
    %6714 = vmatpush1.bf16.msra.mxu0 %v5325
    %6715 = vmatprep.subr.bf16.mxu0 %v5330
    %6716 = vmatpush1.bf16.msra.mxu0 %v5329
    %6717 = vmatprep.subr.bf16.mxu0 %v5334
    %6718 = vmatpush1.bf16.msra.mxu0 %v5333
    %6719 = vmatprep.subr.bf16.mxu0 %v5338
    %6720 = vmatpush1.bf16.msra.mxu0 %v5337
    %6721 = vmatprep.subr.bf16.mxu0 %v5342
    %6722 = vmatpush1.bf16.msra.mxu0 %v5341
    %6723 = vmatprep.subr.bf16.mxu0 %v5346
    %6724 = vmatpush1.bf16.msra.mxu0 %v5345
    %6725 = vmatprep.subr.bf16.mxu0 %v5350
    %6726 = vmatpush1.bf16.msra.mxu0 %v5349
    %6727 = vmatprep.subr.bf16.mxu0 %v5354
    %6728 = vmatpush1.bf16.msra.mxu0 %v5353
    %6729 = vmatprep.subr.bf16.mxu0 %v5358
    %6730 = vmatpush1.bf16.msra.mxu0 %v5357
    %6731 = vmatprep.subr.bf16.mxu0 %v5362
    %6732 = vmatpush1.bf16.msra.mxu0 %v5361
    %6733 = vmatprep.subr.bf16.mxu0 %v5366
    %6734 = vmatpush1.bf16.msra.mxu0 %v5365
    %6735 = vmatprep.subr.bf16.mxu0 %v5370
    %6736 = vmatpush1.bf16.msra.mxu0 %v5369
    %6737 = vmatprep.subr.bf16.mxu0 %v5374
    %6738 = vmatpush1.bf16.msra.mxu0 %v5373
    %6739 = vmatprep.subr.bf16.mxu0 %v5378
    %6740 = vmatpush1.bf16.msra.mxu0 %v5377
    %6741 = vmatprep.subr.bf16.mxu0 %v5382
    %6742 = vmatpush1.bf16.msra.mxu0 %v5381
    %6743 = vmatprep.subr.bf16.mxu0 %v5386
    %6744 = vmatpush1.bf16.msra.mxu0 %v5385
    %6745 = vmatprep.mubr.bf16.mxu0 %v1647
    %6746 = vmatmul.mubr.bf16.gmra.mrb[0].mxu0 %v1646
    %v6747 = vpop.f32.mrb[0].mxu0
    %v6748 = vadd.f32 %v6707, %v6747
    %v6749 = vpop.f32.mrb[0].mxu0
    %v6750 = vadd.f32 %v6709, %v6749
    %v6751 = vpop.f32.mrb[0].mxu0
    %v6752 = vpop.f32.mrb[0].mxu0
    %6753 = vdwg.mxu0
    %6754 = vmatprep.subr.bf16.mxu0 %v5390
    %6755 = vmatpush1.bf16.msra.mxu0 %v5389
    %6756 = vmatprep.subr.bf16.mxu0 %v5394
    %6757 = vmatpush1.bf16.msra.mxu0 %v5393
    %6758 = vmatprep.subr.bf16.mxu0 %v5398
    %6759 = vmatpush1.bf16.msra.mxu0 %v5397
    %6760 = vmatprep.subr.bf16.mxu0 %v5402
    %6761 = vmatpush1.bf16.msra.mxu0 %v5401
    %6762 = vmatprep.subr.bf16.mxu0 %v5406
    %6763 = vmatpush1.bf16.msra.mxu0 %v5405
    %6764 = vmatprep.subr.bf16.mxu0 %v5410
    %6765 = vmatpush1.bf16.msra.mxu0 %v5409
    %6766 = vmatprep.subr.bf16.mxu0 %v5414
    %6767 = vmatpush1.bf16.msra.mxu0 %v5413
    %6768 = vmatprep.subr.bf16.mxu0 %v5418
    %6769 = vmatpush1.bf16.msra.mxu0 %v5417
    %6770 = vmatprep.subr.bf16.mxu0 %v5422
    %6771 = vmatpush1.bf16.msra.mxu0 %v5421
    %6772 = vmatprep.subr.bf16.mxu0 %v5426
    %6773 = vmatpush1.bf16.msra.mxu0 %v5425
    %6774 = vmatprep.subr.bf16.mxu0 %v5430
    %6775 = vmatpush1.bf16.msra.mxu0 %v5429
    %6776 = vmatprep.subr.bf16.mxu0 %v5434
    %6777 = vmatpush1.bf16.msra.mxu0 %v5433
    %6778 = vmatprep.subr.bf16.mxu0 %v5438
    %6779 = vmatpush1.bf16.msra.mxu0 %v5437
    %6780 = vmatprep.subr.bf16.mxu0 %v5442
    %6781 = vmatpush1.bf16.msra.mxu0 %v5441
    %6782 = vmatprep.subr.bf16.mxu0 %v5446
    %6783 = vmatpush1.bf16.msra.mxu0 %v5445
    %6784 = vmatprep.subr.bf16.mxu0 %v5450
    %6785 = vmatpush1.bf16.msra.mxu0 %v5449
    %6786 = vmatprep.mubr.bf16.mxu0 %v1649
    %6787 = vmatmul.mubr.bf16.gmra.mrb[0].mxu0 %v1648
    %v6788 = vpop.f32.mrb[0].mxu0
    %v6789 = vadd.f32 %v6748, %v6788
    %v6790 = vpop.f32.mrb[0].mxu0
    %v6791 = vadd.f32 %v6750, %v6790
    %v6792 = vpop.f32.mrb[0].mxu0
    %v6793 = vpop.f32.mrb[0].mxu0
    %6794 = vdwg.mxu0
    %6795 = vmatprep.subr.bf16.mxu0 %v5454
    %6796 = vmatpush1.bf16.msra.mxu0 %v5453
    %6797 = vmatprep.subr.bf16.mxu0 %v5458
    %6798 = vmatpush1.bf16.msra.mxu0 %v5457
    %6799 = vmatprep.subr.bf16.mxu0 %v5462
    %6800 = vmatpush1.bf16.msra.mxu0 %v5461
    %6801 = vmatprep.subr.bf16.mxu0 %v5466
    %6802 = vmatpush1.bf16.msra.mxu0 %v5465
    %6803 = vmatprep.subr.bf16.mxu0 %v5470
    %6804 = vmatpush1.bf16.msra.mxu0 %v5469
    %6805 = vmatprep.subr.bf16.mxu0 %v5474
    %6806 = vmatpush1.bf16.msra.mxu0 %v5473
    %6807 = vmatprep.subr.bf16.mxu0 %v5478
    %6808 = vmatpush1.bf16.msra.mxu0 %v5477
    %6809 = vmatprep.subr.bf16.mxu0 %v5482
    %6810 = vmatpush1.bf16.msra.mxu0 %v5481
    %6811 = vmatprep.subr.bf16.mxu0 %v5486
    %6812 = vmatpush1.bf16.msra.mxu0 %v5485
    %6813 = vmatprep.subr.bf16.mxu0 %v5490
    %6814 = vmatpush1.bf16.msra.mxu0 %v5489
    %6815 = vmatprep.subr.bf16.mxu0 %v5494
    %6816 = vmatpush1.bf16.msra.mxu0 %v5493
    %6817 = vmatprep.subr.bf16.mxu0 %v5498
    %6818 = vmatpush1.bf16.msra.mxu0 %v5497
    %6819 = vmatprep.subr.bf16.mxu0 %v5502
    %6820 = vmatpush1.bf16.msra.mxu0 %v5501
    %6821 = vmatprep.subr.bf16.mxu0 %v5506
    %6822 = vmatpush1.bf16.msra.mxu0 %v5505
    %6823 = vmatprep.subr.bf16.mxu0 %v5510
    %6824 = vmatpush1.bf16.msra.mxu0 %v5509
    %6825 = vmatprep.subr.bf16.mxu0 %v5514
    %6826 = vmatpush1.bf16.msra.mxu0 %v5513
    %6827 = vmatprep.mubr.bf16.mxu0 %v1651
    %6828 = vmatmul.mubr.bf16.gmra.mrb[0].mxu0 %v1650
    %v6829 = vpop.f32.mrb[0].mxu0
    %v6830 = vadd.f32 %v6789, %v6829
    %v6831 = vpop.f32.mrb[0].mxu0
    %v6832 = vadd.f32 %v6791, %v6831
    %v6833 = vpop.f32.mrb[0].mxu0
    %v6834 = vpop.f32.mrb[0].mxu0
    %6835 = vdwg.mxu0
    %6836 = vmatprep.subr.bf16.mxu0 %v5518
    %6837 = vmatpush1.bf16.msra.mxu0 %v5517
    %6838 = vmatprep.subr.bf16.mxu0 %v5522
    %6839 = vmatpush1.bf16.msra.mxu0 %v5521
    %6840 = vmatprep.subr.bf16.mxu0 %v5526
    %6841 = vmatpush1.bf16.msra.mxu0 %v5525
    %6842 = vmatprep.subr.bf16.mxu0 %v5530
    %6843 = vmatpush1.bf16.msra.mxu0 %v5529
    %6844 = vmatprep.subr.bf16.mxu0 %v5534
    %6845 = vmatpush1.bf16.msra.mxu0 %v5533
    %6846 = vmatprep.subr.bf16.mxu0 %v5538
    %6847 = vmatpush1.bf16.msra.mxu0 %v5537
    %6848 = vmatprep.subr.bf16.mxu0 %v5542
    %6849 = vmatpush1.bf16.msra.mxu0 %v5541
    %6850 = vmatprep.subr.bf16.mxu0 %v5546
    %6851 = vmatpush1.bf16.msra.mxu0 %v5545
    %6852 = vmatprep.subr.bf16.mxu0 %v5550
    %6853 = vmatpush1.bf16.msra.mxu0 %v5549
    %6854 = vmatprep.subr.bf16.mxu0 %v5554
    %6855 = vmatpush1.bf16.msra.mxu0 %v5553
    %6856 = vmatprep.subr.bf16.mxu0 %v5558
    %6857 = vmatpush1.bf16.msra.mxu0 %v5557
    %6858 = vmatprep.subr.bf16.mxu0 %v5562
    %6859 = vmatpush1.bf16.msra.mxu0 %v5561
    %6860 = vmatprep.subr.bf16.mxu0 %v5566
    %6861 = vmatpush1.bf16.msra.mxu0 %v5565
    %6862 = vmatprep.subr.bf16.mxu0 %v5570
    %6863 = vmatpush1.bf16.msra.mxu0 %v5569
    %6864 = vmatprep.subr.bf16.mxu0 %v5574
    %6865 = vmatpush1.bf16.msra.mxu0 %v5573
    %6866 = vmatprep.subr.bf16.mxu0 %v5578
    %6867 = vmatpush1.bf16.msra.mxu0 %v5577
    %6868 = vmatprep.mubr.bf16.mxu0 %v1653
    %6869 = vmatmul.mubr.bf16.gmra.mrb[0].mxu0 %v1652
    %v6870 = vpop.f32.mrb[0].mxu0
    %v6871 = vadd.f32 %v6830, %v6870
    %v6872 = vpop.f32.mrb[0].mxu0
    %v6873 = vadd.f32 %v6832, %v6872
    %v6874 = vpop.f32.mrb[0].mxu0
    %v6875 = vpop.f32.mrb[0].mxu0
    %6876 = vdwg.mxu0
    %6877 = vmatprep.subr.bf16.mxu0 %v5582
    %6878 = vmatpush1.bf16.msra.mxu0 %v5581
    %6879 = vmatprep.subr.bf16.mxu0 %v5586
    %6880 = vmatpush1.bf16.msra.mxu0 %v5585
    %6881 = vmatprep.subr.bf16.mxu0 %v5590
    %6882 = vmatpush1.bf16.msra.mxu0 %v5589
    %6883 = vmatprep.subr.bf16.mxu0 %v5594
    %6884 = vmatpush1.bf16.msra.mxu0 %v5593
    %6885 = vmatprep.subr.bf16.mxu0 0
    %6886 = vmatpush1.bf16.msra.mxu0 0
    %6887 = vmatprep.subr.bf16.mxu0 0
    %6888 = vmatpush1.bf16.msra.mxu0 0
    %6889 = vmatprep.subr.bf16.mxu0 0
    %6890 = vmatpush1.bf16.msra.mxu0 0
    %6891 = vmatprep.subr.bf16.mxu0 0
    %6892 = vmatpush1.bf16.msra.mxu0 0
    %6893 = vmatprep.subr.bf16.mxu0 0
    %6894 = vmatpush1.bf16.msra.mxu0 0
    %6895 = vmatprep.subr.bf16.mxu0 0
    %6896 = vmatpush1.bf16.msra.mxu0 0
    %6897 = vmatprep.subr.bf16.mxu0 0
    %6898 = vmatpush1.bf16.msra.mxu0 0
    %6899 = vmatprep.subr.bf16.mxu0 0
    %6900 = vmatpush1.bf16.msra.mxu0 0
    %6901 = vmatprep.subr.bf16.mxu0 0
    %6902 = vmatpush1.bf16.msra.mxu0 0
    %6903 = vmatprep.subr.bf16.mxu0 0
    %6904 = vmatpush1.bf16.msra.mxu0 0
    %6905 = vmatprep.subr.bf16.mxu0 0
    %6906 = vmatpush1.bf16.msra.mxu0 0
    %6907 = vmatprep.subr.bf16.mxu0 0
    %6908 = vmatpush1.bf16.msra.mxu0 0
    %6909 = vmatprep.mubr.bf16.mxu0 0
    %6910 = vmatmul.mubr.bf16.gmra.mrb[0].mxu0 %v6383
    %v6911 = vpop.f32.mrb[0].mxu0
    %v6912 = vadd.f32 %v6871, %v6911
    %v6913 = vpop.f32.mrb[0].mxu0
    %v6914 = vadd.f32 %v6873, %v6913
    %v6915 = vpop.f32.mrb[0].mxu0
    %v6916 = vpop.f32.mrb[0].mxu0
    %6917 = vdwg.mxu0
    %6918 = vmatprep.subr.bf16.mxu0 %v4816
    %6919 = vmatpush1.bf16.msra.mxu0 %v4815
    %6920 = vmatprep.subr.bf16.mxu0 %v4820
    %6921 = vmatpush1.bf16.msra.mxu0 %v4819
    %6922 = vmatprep.subr.bf16.mxu0 %v4824
    %6923 = vmatpush1.bf16.msra.mxu0 %v4823
    %6924 = vmatprep.subr.bf16.mxu0 %v4828
    %6925 = vmatpush1.bf16.msra.mxu0 %v4827
    %6926 = vmatprep.subr.bf16.mxu0 %v4832
    %6927 = vmatpush1.bf16.msra.mxu0 %v4831
    %6928 = vmatprep.subr.bf16.mxu0 %v4836
    %6929 = vmatpush1.bf16.msra.mxu0 %v4835
    %6930 = vmatprep.subr.bf16.mxu0 %v4840
    %6931 = vmatpush1.bf16.msra.mxu0 %v4839
    %6932 = vmatprep.subr.bf16.mxu0 %v4844
    %6933 = vmatpush1.bf16.msra.mxu0 %v4843
    %6934 = vmatprep.subr.bf16.mxu0 %v4848
    %6935 = vmatpush1.bf16.msra.mxu0 %v4847
    %6936 = vmatprep.subr.bf16.mxu0 %v4852
    %6937 = vmatpush1.bf16.msra.mxu0 %v4851
    %6938 = vmatprep.subr.bf16.mxu0 %v4856
    %6939 = vmatpush1.bf16.msra.mxu0 %v4855
    %6940 = vmatprep.subr.bf16.mxu0 %v4860
    %6941 = vmatpush1.bf16.msra.mxu0 %v4859
    %6942 = vmatprep.subr.bf16.mxu0 %v4864
    %6943 = vmatpush1.bf16.msra.mxu0 %v4863
    %6944 = vmatprep.subr.bf16.mxu0 %v4868
    %6945 = vmatpush1.bf16.msra.mxu0 %v4867
    %6946 = vmatprep.subr.bf16.mxu0 %v4872
    %6947 = vmatpush1.bf16.msra.mxu0 %v4871
    %6948 = vmatprep.subr.bf16.mxu0 %v4876
    %6949 = vmatpush1.bf16.msra.mxu0 %v4875
    %6950 = vmatprep.mubr.bf16.mxu0 %v1631
    %6951 = vmatmul.mubr.bf16.gmra.mrb[0].mxu0 %v1630
    %v6952 = vpop.f32.mrb[0].mxu0
    %v6953 = vadd.f32 %v2452, %v6952
    %v6954 = vpop.f32.mrb[0].mxu0
    %v6955 = vadd.f32 %v2456, %v6954
    %v6956 = vpop.f32.mrb[0].mxu0
    %v6957 = vpop.f32.mrb[0].mxu0
    %6958 = vdwg.mxu0
    %6959 = vmatprep.subr.bf16.mxu0 %v4880
    %6960 = vmatpush1.bf16.msra.mxu0 %v4879
    %6961 = vmatprep.subr.bf16.mxu0 %v4884
    %6962 = vmatpush1.bf16.msra.mxu0 %v4883
    %6963 = vmatprep.subr.bf16.mxu0 %v4888
    %6964 = vmatpush1.bf16.msra.mxu0 %v4887
    %6965 = vmatprep.subr.bf16.mxu0 %v4892
    %6966 = vmatpush1.bf16.msra.mxu0 %v4891
    %6967 = vmatprep.subr.bf16.mxu0 %v4896
    %6968 = vmatpush1.bf16.msra.mxu0 %v4895
    %6969 = vmatprep.subr.bf16.mxu0 %v4900
    %6970 = vmatpush1.bf16.msra.mxu0 %v4899
    %6971 = vmatprep.subr.bf16.mxu0 %v4904
    %6972 = vmatpush1.bf16.msra.mxu0 %v4903
    %6973 = vmatprep.subr.bf16.mxu0 %v4908
    %6974 = vmatpush1.bf16.msra.mxu0 %v4907
    %6975 = vmatprep.subr.bf16.mxu0 %v4912
    %6976 = vmatpush1.bf16.msra.mxu0 %v4911
    %6977 = vmatprep.subr.bf16.mxu0 %v4916
    %6978 = vmatpush1.bf16.msra.mxu0 %v4915
    %6979 = vmatprep.subr.bf16.mxu0 %v4920
    %6980 = vmatpush1.bf16.msra.mxu0 %v4919
    %6981 = vmatprep.subr.bf16.mxu0 %v4924
    %6982 = vmatpush1.bf16.msra.mxu0 %v4923
    %6983 = vmatprep.subr.bf16.mxu0 %v4928
    %6984 = vmatpush1.bf16.msra.mxu0 %v4927
    %6985 = vmatprep.subr.bf16.mxu0 %v4932
    %6986 = vmatpush1.bf16.msra.mxu0 %v4931
    %6987 = vmatprep.subr.bf16.mxu0 %v4936
    %6988 = vmatpush1.bf16.msra.mxu0 %v4935
    %6989 = vmatprep.subr.bf16.mxu0 %v4940
    %6990 = vmatpush1.bf16.msra.mxu0 %v4939
    %6991 = vmatprep.mubr.bf16.mxu0 %v1633
    %6992 = vmatmul.mubr.bf16.gmra.mrb[0].mxu0 %v1632
    %v6993 = vpop.f32.mrb[0].mxu0
    %v6994 = vadd.f32 %v6953, %v6993
    %v6995 = vpop.f32.mrb[0].mxu0
    %v6996 = vadd.f32 %v6955, %v6995
    %v6997 = vpop.f32.mrb[0].mxu0
    %v6998 = vpop.f32.mrb[0].mxu0
    %6999 = vdwg.mxu0
    %7000 = vmatprep.subr.bf16.mxu0 %v4944
    %7001 = vmatpush1.bf16.msra.mxu0 %v4943
    %7002 = vmatprep.subr.bf16.mxu0 %v4948
    %7003 = vmatpush1.bf16.msra.mxu0 %v4947
    %7004 = vmatprep.subr.bf16.mxu0 %v4952
    %7005 = vmatpush1.bf16.msra.mxu0 %v4951
    %7006 = vmatprep.subr.bf16.mxu0 %v4956
    %7007 = vmatpush1.bf16.msra.mxu0 %v4955
    %7008 = vmatprep.subr.bf16.mxu0 %v4960
    %7009 = vmatpush1.bf16.msra.mxu0 %v4959
    %7010 = vmatprep.subr.bf16.mxu0 %v4964
    %7011 = vmatpush1.bf16.msra.mxu0 %v4963
    %7012 = vmatprep.subr.bf16.mxu0 %v4968
    %7013 = vmatpush1.bf16.msra.mxu0 %v4967
    %7014 = vmatprep.subr.bf16.mxu0 %v4972
    %7015 = vmatpush1.bf16.msra.mxu0 %v4971
    %7016 = vmatprep.subr.bf16.mxu0 %v4976
    %7017 = vmatpush1.bf16.msra.mxu0 %v4975
    %7018 = vmatprep.subr.bf16.mxu0 %v4980
    %7019 = vmatpush1.bf16.msra.mxu0 %v4979
    %7020 = vmatprep.subr.bf16.mxu0 %v4984
    %7021 = vmatpush1.bf16.msra.mxu0 %v4983
    %7022 = vmatprep.subr.bf16.mxu0 %v4988
    %7023 = vmatpush1.bf16.msra.mxu0 %v4987
    %7024 = vmatprep.subr.bf16.mxu0 %v4992
    %7025 = vmatpush1.bf16.msra.mxu0 %v4991
    %7026 = vmatprep.subr.bf16.mxu0 %v4996
    %7027 = vmatpush1.bf16.msra.mxu0 %v4995
    %7028 = vmatprep.subr.bf16.mxu0 %v5000
    %7029 = vmatpush1.bf16.msra.mxu0 %v4999
    %7030 = vmatprep.subr.bf16.mxu0 %v5004
    %7031 = vmatpush1.bf16.msra.mxu0 %v5003
    %7032 = vmatprep.mubr.bf16.mxu0 %v1635
    %7033 = vmatmul.mubr.bf16.gmra.mrb[0].mxu0 %v1634
    %v7034 = vpop.f32.mrb[0].mxu0
    %v7035 = vadd.f32 %v6994, %v7034
    %v7036 = vpop.f32.mrb[0].mxu0
    %v7037 = vadd.f32 %v6996, %v7036
    %v7038 = vpop.f32.mrb[0].mxu0
    %v7039 = vpop.f32.mrb[0].mxu0
    %7040 = vdwg.mxu0
    %7041 = vmatprep.subr.bf16.mxu0 %v5008
    %7042 = vmatpush1.bf16.msra.mxu0 %v5007
    %7043 = vmatprep.subr.bf16.mxu0 %v5012
    %7044 = vmatpush1.bf16.msra.mxu0 %v5011
    %7045 = vmatprep.subr.bf16.mxu0 %v5016
    %7046 = vmatpush1.bf16.msra.mxu0 %v5015
    %7047 = vmatprep.subr.bf16.mxu0 %v5020
    %7048 = vmatpush1.bf16.msra.mxu0 %v5019
    %7049 = vmatprep.subr.bf16.mxu0 %v5024
    %7050 = vmatpush1.bf16.msra.mxu0 %v5023
    %7051 = vmatprep.subr.bf16.mxu0 %v5028
    %7052 = vmatpush1.bf16.msra.mxu0 %v5027
    %7053 = vmatprep.subr.bf16.mxu0 %v5032
    %7054 = vmatpush1.bf16.msra.mxu0 %v5031
    %7055 = vmatprep.subr.bf16.mxu0 %v5036
    %7056 = vmatpush1.bf16.msra.mxu0 %v5035
    %7057 = vmatprep.subr.bf16.mxu0 %v5040
    %7058 = vmatpush1.bf16.msra.mxu0 %v5039
    %7059 = vmatprep.subr.bf16.mxu0 %v5044
    %7060 = vmatpush1.bf16.msra.mxu0 %v5043
    %7061 = vmatprep.subr.bf16.mxu0 %v5048
    %7062 = vmatpush1.bf16.msra.mxu0 %v5047
    %7063 = vmatprep.subr.bf16.mxu0 %v5052
    %7064 = vmatpush1.bf16.msra.mxu0 %v5051
    %7065 = vmatprep.subr.bf16.mxu0 %v5056
    %7066 = vmatpush1.bf16.msra.mxu0 %v5055
    %7067 = vmatprep.subr.bf16.mxu0 %v5060
    %7068 = vmatpush1.bf16.msra.mxu0 %v5059
    %7069 = vmatprep.subr.bf16.mxu0 %v5064
    %7070 = vmatpush1.bf16.msra.mxu0 %v5063
    %7071 = vmatprep.subr.bf16.mxu0 %v5068
    %7072 = vmatpush1.bf16.msra.mxu0 %v5067
    %7073 = vmatprep.mubr.bf16.mxu0 %v1637
    %7074 = vmatmul.mubr.bf16.gmra.mrb[0].mxu0 %v1636
    %v7075 = vpop.f32.mrb[0].mxu0
    %v7076 = vadd.f32 %v7035, %v7075
    %v7077 = vpop.f32.mrb[0].mxu0
    %v7078 = vadd.f32 %v7037, %v7077
    %v7079 = vpop.f32.mrb[0].mxu0
    %v7080 = vpop.f32.mrb[0].mxu0
    %7081 = vdwg.mxu0
    %7082 = vmatprep.subr.bf16.mxu0 %v5072
    %7083 = vmatpush1.bf16.msra.mxu0 %v5071
    %7084 = vmatprep.subr.bf16.mxu0 %v5076
    %7085 = vmatpush1.bf16.msra.mxu0 %v5075
    %7086 = vmatprep.subr.bf16.mxu0 %v5080
    %7087 = vmatpush1.bf16.msra.mxu0 %v5079
    %7088 = vmatprep.subr.bf16.mxu0 %v5084
    %7089 = vmatpush1.bf16.msra.mxu0 %v5083
    %7090 = vmatprep.subr.bf16.mxu0 %v5088
    %7091 = vmatpush1.bf16.msra.mxu0 %v5087
    %7092 = vmatprep.subr.bf16.mxu0 %v5092
    %7093 = vmatpush1.bf16.msra.mxu0 %v5091
    %7094 = vmatprep.subr.bf16.mxu0 %v5096
    %7095 = vmatpush1.bf16.msra.mxu0 %v5095
    %7096 = vmatprep.subr.bf16.mxu0 %v5100
    %7097 = vmatpush1.bf16.msra.mxu0 %v5099
    %7098 = vmatprep.subr.bf16.mxu0 %v5104
    %7099 = vmatpush1.bf16.msra.mxu0 %v5103
    %7100 = vmatprep.subr.bf16.mxu0 %v5108
    %7101 = vmatpush1.bf16.msra.mxu0 %v5107
    %7102 = vmatprep.subr.bf16.mxu0 %v5112
    %7103 = vmatpush1.bf16.msra.mxu0 %v5111
    %7104 = vmatprep.subr.bf16.mxu0 %v5116
    %7105 = vmatpush1.bf16.msra.mxu0 %v5115
    %7106 = vmatprep.subr.bf16.mxu0 %v5120
    %7107 = vmatpush1.bf16.msra.mxu0 %v5119
    %7108 = vmatprep.subr.bf16.mxu0 %v5124
    %7109 = vmatpush1.bf16.msra.mxu0 %v5123
    %7110 = vmatprep.subr.bf16.mxu0 %v5128
    %7111 = vmatpush1.bf16.msra.mxu0 %v5127
    %7112 = vmatprep.subr.bf16.mxu0 %v5132
    %7113 = vmatpush1.bf16.msra.mxu0 %v5131
    %7114 = vmatprep.mubr.bf16.mxu0 %v1639
    %7115 = vmatmul.mubr.bf16.gmra.mrb[0].mxu0 %v1638
    %v7116 = vpop.f32.mrb[0].mxu0
    %v7117 = vadd.f32 %v7076, %v7116
    %v7118 = vpop.f32.mrb[0].mxu0
    %v7119 = vadd.f32 %v7078, %v7118
    %v7120 = vpop.f32.mrb[0].mxu0
    %v7121 = vpop.f32.mrb[0].mxu0
    %7122 = vdwg.mxu0
    %7123 = vmatprep.subr.bf16.mxu0 %v5136
    %7124 = vmatpush1.bf16.msra.mxu0 %v5135
    %7125 = vmatprep.subr.bf16.mxu0 %v5140
    %7126 = vmatpush1.bf16.msra.mxu0 %v5139
    %7127 = vmatprep.subr.bf16.mxu0 %v5144
    %7128 = vmatpush1.bf16.msra.mxu0 %v5143
    %7129 = vmatprep.subr.bf16.mxu0 %v5148
    %7130 = vmatpush1.bf16.msra.mxu0 %v5147
    %7131 = vmatprep.subr.bf16.mxu0 %v5152
    %7132 = vmatpush1.bf16.msra.mxu0 %v5151
    %7133 = vmatprep.subr.bf16.mxu0 %v5156
    %7134 = vmatpush1.bf16.msra.mxu0 %v5155
    %7135 = vmatprep.subr.bf16.mxu0 %v5160
    %7136 = vmatpush1.bf16.msra.mxu0 %v5159
    %7137 = vmatprep.subr.bf16.mxu0 %v5164
    %7138 = vmatpush1.bf16.msra.mxu0 %v5163
    %7139 = vmatprep.subr.bf16.mxu0 %v5168
    %7140 = vmatpush1.bf16.msra.mxu0 %v5167
    %7141 = vmatprep.subr.bf16.mxu0 %v5172
    %7142 = vmatpush1.bf16.msra.mxu0 %v5171
    %7143 = vmatprep.subr.bf16.mxu0 %v5176
    %7144 = vmatpush1.bf16.msra.mxu0 %v5175
    %7145 = vmatprep.subr.bf16.mxu0 %v5180
    %7146 = vmatpush1.bf16.msra.mxu0 %v5179
    %7147 = vmatprep.subr.bf16.mxu0 %v5184
    %7148 = vmatpush1.bf16.msra.mxu0 %v5183
    %7149 = vmatprep.subr.bf16.mxu0 %v5188
    %7150 = vmatpush1.bf16.msra.mxu0 %v5187
    %7151 = vmatprep.subr.bf16.mxu0 %v5192
    %7152 = vmatpush1.bf16.msra.mxu0 %v5191
    %7153 = vmatprep.subr.bf16.mxu0 %v5196
    %7154 = vmatpush1.bf16.msra.mxu0 %v5195
    %7155 = vmatprep.mubr.bf16.mxu0 %v1641
    %7156 = vmatmul.mubr.bf16.gmra.mrb[0].mxu0 %v1640
    %v7157 = vpop.f32.mrb[0].mxu0
    %v7158 = vadd.f32 %v7117, %v7157
    %v7159 = vpop.f32.mrb[0].mxu0
    %v7160 = vadd.f32 %v7119, %v7159
    %v7161 = vpop.f32.mrb[0].mxu0
    %v7162 = vpop.f32.mrb[0].mxu0
    %7163 = vdwg.mxu0
    %7164 = vmatprep.subr.bf16.mxu0 %v5200
    %7165 = vmatpush1.bf16.msra.mxu0 %v5199
    %7166 = vmatprep.subr.bf16.mxu0 %v5204
    %7167 = vmatpush1.bf16.msra.mxu0 %v5203
    %7168 = vmatprep.subr.bf16.mxu0 %v5208
    %7169 = vmatpush1.bf16.msra.mxu0 %v5207
    %7170 = vmatprep.subr.bf16.mxu0 %v5212
    %7171 = vmatpush1.bf16.msra.mxu0 %v5211
    %7172 = vmatprep.subr.bf16.mxu0 %v5216
    %7173 = vmatpush1.bf16.msra.mxu0 %v5215
    %7174 = vmatprep.subr.bf16.mxu0 %v5220
    %7175 = vmatpush1.bf16.msra.mxu0 %v5219
    %7176 = vmatprep.subr.bf16.mxu0 %v5224
    %7177 = vmatpush1.bf16.msra.mxu0 %v5223
    %7178 = vmatprep.subr.bf16.mxu0 %v5228
    %7179 = vmatpush1.bf16.msra.mxu0 %v5227
    %7180 = vmatprep.subr.bf16.mxu0 %v5232
    %7181 = vmatpush1.bf16.msra.mxu0 %v5231
    %7182 = vmatprep.subr.bf16.mxu0 %v5236
    %7183 = vmatpush1.bf16.msra.mxu0 %v5235
    %7184 = vmatprep.subr.bf16.mxu0 %v5240
    %7185 = vmatpush1.bf16.msra.mxu0 %v5239
    %7186 = vmatprep.subr.bf16.mxu0 %v5244
    %7187 = vmatpush1.bf16.msra.mxu0 %v5243
    %7188 = vmatprep.subr.bf16.mxu0 %v5248
    %7189 = vmatpush1.bf16.msra.mxu0 %v5247
    %7190 = vmatprep.subr.bf16.mxu0 %v5252
    %7191 = vmatpush1.bf16.msra.mxu0 %v5251
    %7192 = vmatprep.subr.bf16.mxu0 %v5256
    %7193 = vmatpush1.bf16.msra.mxu0 %v5255
    %7194 = vmatprep.subr.bf16.mxu0 %v5260
    %7195 = vmatpush1.bf16.msra.mxu0 %v5259
    %7196 = vmatprep.mubr.bf16.mxu0 %v1643
    %7197 = vmatmul.mubr.bf16.gmra.mrb[0].mxu0 %v1642
    %v7198 = vpop.f32.mrb[0].mxu0
    %v7199 = vadd.f32 %v7158, %v7198
    %v7200 = vpop.f32.mrb[0].mxu0
    %v7201 = vadd.f32 %v7160, %v7200
    %v7202 = vpop.f32.mrb[0].mxu0
    %v7203 = vpop.f32.mrb[0].mxu0
    %7204 = vdwg.mxu0
    %7205 = vmatprep.subr.bf16.mxu0 %v5264
    %7206 = vmatpush1.bf16.msra.mxu0 %v5263
    %7207 = vmatprep.subr.bf16.mxu0 %v5268
    %7208 = vmatpush1.bf16.msra.mxu0 %v5267
    %7209 = vmatprep.subr.bf16.mxu0 %v5272
    %7210 = vmatpush1.bf16.msra.mxu0 %v5271
    %7211 = vmatprep.subr.bf16.mxu0 %v5276
    %7212 = vmatpush1.bf16.msra.mxu0 %v5275
    %7213 = vmatprep.subr.bf16.mxu0 %v5280
    %7214 = vmatpush1.bf16.msra.mxu0 %v5279
    %7215 = vmatprep.subr.bf16.mxu0 %v5284
    %7216 = vmatpush1.bf16.msra.mxu0 %v5283
    %7217 = vmatprep.subr.bf16.mxu0 %v5288
    %7218 = vmatpush1.bf16.msra.mxu0 %v5287
    %7219 = vmatprep.subr.bf16.mxu0 %v5292
    %7220 = vmatpush1.bf16.msra.mxu0 %v5291
    %7221 = vmatprep.subr.bf16.mxu0 %v5296
    %7222 = vmatpush1.bf16.msra.mxu0 %v5295
    %7223 = vmatprep.subr.bf16.mxu0 %v5300
    %7224 = vmatpush1.bf16.msra.mxu0 %v5299
    %7225 = vmatprep.subr.bf16.mxu0 %v5304
    %7226 = vmatpush1.bf16.msra.mxu0 %v5303
    %7227 = vmatprep.subr.bf16.mxu0 %v5308
    %7228 = vmatpush1.bf16.msra.mxu0 %v5307
    %7229 = vmatprep.subr.bf16.mxu0 %v5312
    %7230 = vmatpush1.bf16.msra.mxu0 %v5311
    %7231 = vmatprep.subr.bf16.mxu0 %v5316
    %7232 = vmatpush1.bf16.msra.mxu0 %v5315
    %7233 = vmatprep.subr.bf16.mxu0 %v5320
    %7234 = vmatpush1.bf16.msra.mxu0 %v5319
    %7235 = vmatprep.subr.bf16.mxu0 %v5324
    %7236 = vmatpush1.bf16.msra.mxu0 %v5323
    %7237 = vmatprep.mubr.bf16.mxu0 %v1645
    %7238 = vmatmul.mubr.bf16.gmra.mrb[0].mxu0 %v1644
    %v7239 = vpop.f32.mrb[0].mxu0
    %v7240 = vadd.f32 %v7199, %v7239
    %v7241 = vpop.f32.mrb[0].mxu0
    %v7242 = vadd.f32 %v7201, %v7241
    %v7243 = vpop.f32.mrb[0].mxu0
    %v7244 = vpop.f32.mrb[0].mxu0
    %7245 = vdwg.mxu0
    %7246 = vmatprep.subr.bf16.mxu0 %v5328
    %7247 = vmatpush1.bf16.msra.mxu0 %v5327
    %7248 = vmatprep.subr.bf16.mxu0 %v5332
    %7249 = vmatpush1.bf16.msra.mxu0 %v5331
    %7250 = vmatprep.subr.bf16.mxu0 %v5336
    %7251 = vmatpush1.bf16.msra.mxu0 %v5335
    %7252 = vmatprep.subr.bf16.mxu0 %v5340
    %7253 = vmatpush1.bf16.msra.mxu0 %v5339
    %7254 = vmatprep.subr.bf16.mxu0 %v5344
    %7255 = vmatpush1.bf16.msra.mxu0 %v5343
    %7256 = vmatprep.subr.bf16.mxu0 %v5348
    %7257 = vmatpush1.bf16.msra.mxu0 %v5347
    %7258 = vmatprep.subr.bf16.mxu0 %v5352
    %7259 = vmatpush1.bf16.msra.mxu0 %v5351
    %7260 = vmatprep.subr.bf16.mxu0 %v5356
    %7261 = vmatpush1.bf16.msra.mxu0 %v5355
    %7262 = vmatprep.subr.bf16.mxu0 %v5360
    %7263 = vmatpush1.bf16.msra.mxu0 %v5359
    %7264 = vmatprep.subr.bf16.mxu0 %v5364
    %7265 = vmatpush1.bf16.msra.mxu0 %v5363
    %7266 = vmatprep.subr.bf16.mxu0 %v5368
    %7267 = vmatpush1.bf16.msra.mxu0 %v5367
    %7268 = vmatprep.subr.bf16.mxu0 %v5372
    %7269 = vmatpush1.bf16.msra.mxu0 %v5371
    %7270 = vmatprep.subr.bf16.mxu0 %v5376
    %7271 = vmatpush1.bf16.msra.mxu0 %v5375
    %7272 = vmatprep.subr.bf16.mxu0 %v5380
    %7273 = vmatpush1.bf16.msra.mxu0 %v5379
    %7274 = vmatprep.subr.bf16.mxu0 %v5384
    %7275 = vmatpush1.bf16.msra.mxu0 %v5383
    %7276 = vmatprep.subr.bf16.mxu0 %v5388
    %7277 = vmatpush1.bf16.msra.mxu0 %v5387
    %7278 = vmatprep.mubr.bf16.mxu0 %v1647
    %7279 = vmatmul.mubr.bf16.gmra.mrb[0].mxu0 %v1646
    %v7280 = vpop.f32.mrb[0].mxu0
    %v7281 = vadd.f32 %v7240, %v7280
    %v7282 = vpop.f32.mrb[0].mxu0
    %v7283 = vadd.f32 %v7242, %v7282
    %v7284 = vpop.f32.mrb[0].mxu0
    %v7285 = vpop.f32.mrb[0].mxu0
    %7286 = vdwg.mxu0
    %7287 = vmatprep.subr.bf16.mxu0 %v5392
    %7288 = vmatpush1.bf16.msra.mxu0 %v5391
    %7289 = vmatprep.subr.bf16.mxu0 %v5396
    %7290 = vmatpush1.bf16.msra.mxu0 %v5395
    %7291 = vmatprep.subr.bf16.mxu0 %v5400
    %7292 = vmatpush1.bf16.msra.mxu0 %v5399
    %7293 = vmatprep.subr.bf16.mxu0 %v5404
    %7294 = vmatpush1.bf16.msra.mxu0 %v5403
    %7295 = vmatprep.subr.bf16.mxu0 %v5408
    %7296 = vmatpush1.bf16.msra.mxu0 %v5407
    %7297 = vmatprep.subr.bf16.mxu0 %v5412
    %7298 = vmatpush1.bf16.msra.mxu0 %v5411
    %7299 = vmatprep.subr.bf16.mxu0 %v5416
    %7300 = vmatpush1.bf16.msra.mxu0 %v5415
    %7301 = vmatprep.subr.bf16.mxu0 %v5420
    %7302 = vmatpush1.bf16.msra.mxu0 %v5419
    %7303 = vmatprep.subr.bf16.mxu0 %v5424
    %7304 = vmatpush1.bf16.msra.mxu0 %v5423
    %7305 = vmatprep.subr.bf16.mxu0 %v5428
    %7306 = vmatpush1.bf16.msra.mxu0 %v5427
    %7307 = vmatprep.subr.bf16.mxu0 %v5432
    %7308 = vmatpush1.bf16.msra.mxu0 %v5431
    %7309 = vmatprep.subr.bf16.mxu0 %v5436
    %7310 = vmatpush1.bf16.msra.mxu0 %v5435
    %7311 = vmatprep.subr.bf16.mxu0 %v5440
    %7312 = vmatpush1.bf16.msra.mxu0 %v5439
    %7313 = vmatprep.subr.bf16.mxu0 %v5444
    %7314 = vmatpush1.bf16.msra.mxu0 %v5443
    %7315 = vmatprep.subr.bf16.mxu0 %v5448
    %7316 = vmatpush1.bf16.msra.mxu0 %v5447
    %7317 = vmatprep.subr.bf16.mxu0 %v5452
    %7318 = vmatpush1.bf16.msra.mxu0 %v5451
    %7319 = vmatprep.mubr.bf16.mxu0 %v1649
    %7320 = vmatmul.mubr.bf16.gmra.mrb[0].mxu0 %v1648
    %v7321 = vpop.f32.mrb[0].mxu0
    %v7322 = vadd.f32 %v7281, %v7321
    %v7323 = vpop.f32.mrb[0].mxu0
    %v7324 = vadd.f32 %v7283, %v7323
    %v7325 = vpop.f32.mrb[0].mxu0
    %v7326 = vpop.f32.mrb[0].mxu0
    %7327 = vdwg.mxu0
    %7328 = vmatprep.subr.bf16.mxu0 %v5456
    %7329 = vmatpush1.bf16.msra.mxu0 %v5455
    %7330 = vmatprep.subr.bf16.mxu0 %v5460
    %7331 = vmatpush1.bf16.msra.mxu0 %v5459
    %7332 = vmatprep.subr.bf16.mxu0 %v5464
    %7333 = vmatpush1.bf16.msra.mxu0 %v5463
    %7334 = vmatprep.subr.bf16.mxu0 %v5468
    %7335 = vmatpush1.bf16.msra.mxu0 %v5467
    %7336 = vmatprep.subr.bf16.mxu0 %v5472
    %7337 = vmatpush1.bf16.msra.mxu0 %v5471
    %7338 = vmatprep.subr.bf16.mxu0 %v5476
    %7339 = vmatpush1.bf16.msra.mxu0 %v5475
    %7340 = vmatprep.subr.bf16.mxu0 %v5480
    %7341 = vmatpush1.bf16.msra.mxu0 %v5479
    %7342 = vmatprep.subr.bf16.mxu0 %v5484
    %7343 = vmatpush1.bf16.msra.mxu0 %v5483
    %7344 = vmatprep.subr.bf16.mxu0 %v5488
    %7345 = vmatpush1.bf16.msra.mxu0 %v5487
    %7346 = vmatprep.subr.bf16.mxu0 %v5492
    %7347 = vmatpush1.bf16.msra.mxu0 %v5491
    %7348 = vmatprep.subr.bf16.mxu0 %v5496
    %7349 = vmatpush1.bf16.msra.mxu0 %v5495
    %7350 = vmatprep.subr.bf16.mxu0 %v5500
    %7351 = vmatpush1.bf16.msra.mxu0 %v5499
    %7352 = vmatprep.subr.bf16.mxu0 %v5504
    %7353 = vmatpush1.bf16.msra.mxu0 %v5503
    %7354 = vmatprep.subr.bf16.mxu0 %v5508
    %7355 = vmatpush1.bf16.msra.mxu0 %v5507
    %7356 = vmatprep.subr.bf16.mxu0 %v5512
    %7357 = vmatpush1.bf16.msra.mxu0 %v5511
    %7358 = vmatprep.subr.bf16.mxu0 %v5516
    %7359 = vmatpush1.bf16.msra.mxu0 %v5515
    %7360 = vmatprep.mubr.bf16.mxu0 %v1651
    %7361 = vmatmul.mubr.bf16.gmra.mrb[0].mxu0 %v1650
    %v7362 = vpop.f32.mrb[0].mxu0
    %v7363 = vadd.f32 %v7322, %v7362
    %v7364 = vpop.f32.mrb[0].mxu0
    %v7365 = vadd.f32 %v7324, %v7364
    %v7366 = vpop.f32.mrb[0].mxu0
    %v7367 = vpop.f32.mrb[0].mxu0
    %7368 = vdwg.mxu0
    %7369 = vmatprep.subr.bf16.mxu0 %v5520
    %7370 = vmatpush1.bf16.msra.mxu0 %v5519
    %7371 = vmatprep.subr.bf16.mxu0 %v5524
    %7372 = vmatpush1.bf16.msra.mxu0 %v5523
    %7373 = vmatprep.subr.bf16.mxu0 %v5528
    %7374 = vmatpush1.bf16.msra.mxu0 %v5527
    %7375 = vmatprep.subr.bf16.mxu0 %v5532
    %7376 = vmatpush1.bf16.msra.mxu0 %v5531
    %7377 = vmatprep.subr.bf16.mxu0 %v5536
    %7378 = vmatpush1.bf16.msra.mxu0 %v5535
    %7379 = vmatprep.subr.bf16.mxu0 %v5540
    %7380 = vmatpush1.bf16.msra.mxu0 %v5539
    %7381 = vmatprep.subr.bf16.mxu0 %v5544
    %7382 = vmatpush1.bf16.msra.mxu0 %v5543
    %7383 = vmatprep.subr.bf16.mxu0 %v5548
    %7384 = vmatpush1.bf16.msra.mxu0 %v5547
    %7385 = vmatprep.subr.bf16.mxu0 %v5552
    %7386 = vmatpush1.bf16.msra.mxu0 %v5551
    %7387 = vmatprep.subr.bf16.mxu0 %v5556
    %7388 = vmatpush1.bf16.msra.mxu0 %v5555
    %7389 = vmatprep.subr.bf16.mxu0 %v5560
    %7390 = vmatpush1.bf16.msra.mxu0 %v5559
    %7391 = vmatprep.subr.bf16.mxu0 %v5564
    %7392 = vmatpush1.bf16.msra.mxu0 %v5563
    %7393 = vmatprep.subr.bf16.mxu0 %v5568
    %7394 = vmatpush1.bf16.msra.mxu0 %v5567
    %7395 = vmatprep.subr.bf16.mxu0 %v5572
    %7396 = vmatpush1.bf16.msra.mxu0 %v5571
    %7397 = vmatprep.subr.bf16.mxu0 %v5576
    %7398 = vmatpush1.bf16.msra.mxu0 %v5575
    %7399 = vmatprep.subr.bf16.mxu0 %v5580
    %7400 = vmatpush1.bf16.msra.mxu0 %v5579
    %7401 = vmatprep.mubr.bf16.mxu0 %v1653
    %7402 = vmatmul.mubr.bf16.gmra.mrb[0].mxu0 %v1652
    %v7403 = vpop.f32.mrb[0].mxu0
    %v7404 = vadd.f32 %v7363, %v7403
    %v7405 = vpop.f32.mrb[0].mxu0
    %v7406 = vadd.f32 %v7365, %v7405
    %v7407 = vpop.f32.mrb[0].mxu0
    %v7408 = vpop.f32.mrb[0].mxu0
    %7409 = vdwg.mxu0
    %7410 = vmatprep.subr.bf16.mxu0 %v5584
    %7411 = vmatpush1.bf16.msra.mxu0 %v5583
    %7412 = vmatprep.subr.bf16.mxu0 %v5588
    %7413 = vmatpush1.bf16.msra.mxu0 %v5587
    %7414 = vmatprep.subr.bf16.mxu0 %v5592
    %7415 = vmatpush1.bf16.msra.mxu0 %v5591
    %7416 = vmatprep.subr.bf16.mxu0 %v5596
    %7417 = vmatpush1.bf16.msra.mxu0 %v5595
    %7418 = vmatprep.subr.bf16.mxu0 0
    %7419 = vmatpush1.bf16.msra.mxu0 0
    %7420 = vmatprep.subr.bf16.mxu0 0
    %7421 = vmatpush1.bf16.msra.mxu0 0
    %7422 = vmatprep.subr.bf16.mxu0 0
    %7423 = vmatpush1.bf16.msra.mxu0 0
    %7424 = vmatprep.subr.bf16.mxu0 0
    %7425 = vmatpush1.bf16.msra.mxu0 0
    %7426 = vmatprep.subr.bf16.mxu0 0
    %7427 = vmatpush1.bf16.msra.mxu0 0
    %7428 = vmatprep.subr.bf16.mxu0 0
    %7429 = vmatpush1.bf16.msra.mxu0 0
    %7430 = vmatprep.subr.bf16.mxu0 0
    %7431 = vmatpush1.bf16.msra.mxu0 0
    %7432 = vmatprep.subr.bf16.mxu0 0
    %7433 = vmatpush1.bf16.msra.mxu0 0
    %7434 = vmatprep.subr.bf16.mxu0 0
    %7435 = vmatpush1.bf16.msra.mxu0 0
    %7436 = vmatprep.subr.bf16.mxu0 0
    %7437 = vmatpush1.bf16.msra.mxu0 0
    %7438 = vmatprep.subr.bf16.mxu0 0
    %7439 = vmatpush1.bf16.msra.mxu0 0
    %7440 = vmatprep.subr.bf16.mxu0 0
    %7441 = vmatpush1.bf16.msra.mxu0 0
    %7442 = vmatprep.mubr.bf16.mxu0 0
    %7443 = vmatmul.mubr.bf16.gmra.mrb[0].mxu0 %v6383
    %v7444 = vpop.f32.mrb[0].mxu0
    %v7445 = vadd.f32 %v7404, %v7444
    %v7446 = vpop.f32.mrb[0].mxu0
    %v7447 = vadd.f32 %v7406, %v7446
    %v7448 = vpop.f32.mrb[0].mxu0
    %v7449 = vpop.f32.mrb[0].mxu0
    %7450 = vdwg.mxu0
    %v7451 = vmax.f32 %v6912, 0.0
    %v7452 = vmax.f32 %v6914, 0.0
    %v7453 = vmax.f32 %v7445, 0.0
    %v7454 = vmax.f32 %v7447, 0.0
    %v7455 = vmul.u32 %v1127, 512
    %v7456 = vadd.s32 %v7455, %v1129
    %v7457 = vadd.s32 %v7455, %v1130
    %v7458 = vadd.s32 %v7455, %v1131
    %v7459 = vadd.s32 %v7455, %v1132
    %v7460 = vadd.s32 %v7456, %v1181
    %v7461 = vadd.s32 %v7457, %v1181
    %v7462 = vadd.s32 %v7458, %v1181
    %v7463 = vadd.s32 %v7459, %v1181
    %v7464 = vadd.s32 %v7460, 2246822507
    %v7465 = vadd.s32 %v7461, 2246822507
    %v7466 = vadd.s32 %v7462, 2246822507
    %v7467 = vadd.s32 %v7463, 2246822507
    %v7468 = vshrl.u32 %v7464, 16
    %v7469 = vshrl.u32 %v7465, 16
    %v7470 = vshrl.u32 %v7466, 16
    %v7471 = vshrl.u32 %v7467, 16
    %v7472 = vxor.u32 %v7464, %v7468
    %v7473 = vxor.u32 %v7465, %v7469
    %v7474 = vxor.u32 %v7466, %v7470
    %v7475 = vxor.u32 %v7467, %v7471
    %v7476 = vmul.u32 %v7472, 2146121005
    %v7477 = vmul.u32 %v7473, 2146121005
    %v7478 = vmul.u32 %v7474, 2146121005
    %v7479 = vmul.u32 %v7475, 2146121005
    %v7480 = vshrl.u32 %v7476, 15
    %v7481 = vshrl.u32 %v7477, 15
    %v7482 = vshrl.u32 %v7478, 15
    %v7483 = vshrl.u32 %v7479, 15
    %v7484 = vxor.u32 %v7476, %v7480
    %v7485 = vxor.u32 %v7477, %v7481
    %v7486 = vxor.u32 %v7478, %v7482
    %v7487 = vxor.u32 %v7479, %v7483
    %v7488 = vmul.u32 %v7484, 2221713035
    %v7489 = vmul.u32 %v7485, 2221713035
    %v7490 = vmul.u32 %v7486, 2221713035
    %v7491 = vmul.u32 %v7487, 2221713035
    %v7492 = vshrl.u32 %v7488, 16
    %v7493 = vshrl.u32 %v7489, 16
    %v7494 = vshrl.u32 %v7490, 16
    %v7495 = vshrl.u32 %v7491, 16
    %v7496 = vxor.u32 %v7488, %v7492
    %v7497 = vxor.u32 %v7489, %v7493
    %v7498 = vxor.u32 %v7490, %v7494
    %v7499 = vxor.u32 %v7491, %v7495
    %v7500 = vshrl.u32 %v7496, 1
    %v7501 = vshrl.u32 %v7497, 1
    %v7502 = vshrl.u32 %v7498, 1
    %v7503 = vshrl.u32 %v7499, 1
    %vm7504 = vcmp.ge.s32.totalorder %v7500, 107374182
    %vm7505 = vcmp.ge.s32.totalorder %v7501, 107374182
    %vm7506 = vcmp.ge.s32.totalorder %v7502, 107374182
    %vm7507 = vcmp.ge.s32.totalorder %v7503, 107374182
    %v7508 = vmul.f32 %v7451, 1.0526316
    %v7509 = vmul.f32 %v7452, 1.0526316
    %v7510 = vmul.f32 %v7453, 1.0526316
    %v7511 = vmul.f32 %v7454, 1.0526316
    %v7512 = vsel %vm7504, %v7508, 0.0
    %v7513 = vsel %vm7505, %v7509, 0.0
    %v7514 = vsel %vm7506, %v7510, 0.0
    %v7515 = vsel %vm7507, %v7511, 0.0
    %v7516 = vpack.c.bf16 %v7512, %v7512
    %v7517 = vpack.c.bf16 %v7513, %v7513
    %v7518 = vpack.c.bf16 %v7514, %v7514
    %v7519 = vpack.c.bf16 %v7515, %v7515
    %v7520 = vld [vmem:[#allocation10] sm:$0xf]
    %v7521 = vld [vmem:[#allocation10 + $0x4] sm:$0xf]
    %v7522 = vld [vmem:[#allocation10 + $0x8] sm:$0xf]
    %v7523 = vld [vmem:[#allocation10 + $0xc] sm:$0xf]
    %v7524 = vld [vmem:[#allocation10 + $0x10] sm:$0xf]
    %v7525 = vld [vmem:[#allocation10 + $0x14] sm:$0xf]
    %v7526 = vld [vmem:[#allocation10 + $0x18] sm:$0xf]
    %v7527 = vld [vmem:[#allocation10 + $0x1c] sm:$0xf]
    %v7528 = vld [vmem:[#allocation10 + $0x20] sm:$0xf]
    %v7529 = vld [vmem:[#allocation10 + $0x24] sm:$0xf]
    %v7530 = vld [vmem:[#allocation10 + $0x28] sm:$0xf]
    %v7531 = vld [vmem:[#allocation10 + $0x2c] sm:$0xf]
    %v7532 = vld [vmem:[#allocation10 + $0x30] sm:$0xf]
    %v7533 = vld [vmem:[#allocation10 + $0x34] sm:$0xf]
    %v7534 = vld [vmem:[#allocation10 + $0x38] sm:$0xf]
    %v7535 = vld [vmem:[#allocation10 + $0x3c] sm:$0xf]
    %v7536 = vld [vmem:[#allocation10 + $0x40] sm:$0xf]
    %v7537 = vld [vmem:[#allocation10 + $0x44] sm:$0xf]
    %v7538 = vld [vmem:[#allocation10 + $0x48] sm:$0xf]
    %v7539 = vld [vmem:[#allocation10 + $0x4c] sm:$0xf]
    %v7540 = vld [vmem:[#allocation10 + $0x50] sm:$0xf]
    %v7541 = vld [vmem:[#allocation10 + $0x54] sm:$0xf]
    %v7542 = vld [vmem:[#allocation10 + $0x58] sm:$0xf]
    %v7543 = vld [vmem:[#allocation10 + $0x5c] sm:$0xf]
    %v7544 = vld [vmem:[#allocation10 + $0x60] sm:$0xf]
    %v7545 = vld [vmem:[#allocation10 + $0x64] sm:$0xf]
    %v7546 = vld [vmem:[#allocation10 + $0x68] sm:$0xf]
    %v7547 = vld [vmem:[#allocation10 + $0x6c] sm:$0xf]
    %v7548 = vld [vmem:[#allocation10 + $0x70] sm:$0xf]
    %v7549 = vld [vmem:[#allocation10 + $0x74] sm:$0xf]
    %v7550 = vld [vmem:[#allocation10 + $0x78] sm:$0xf]
    %v7551 = vld [vmem:[#allocation10 + $0x7c] sm:$0xf]
    %v7552 = vld [vmem:[#allocation10 + $0x80] sm:$0xf]
    %v7553 = vld [vmem:[#allocation10 + $0x84] sm:$0xf]
    %v7554 = vld [vmem:[#allocation10 + $0x88] sm:$0xf]
    %v7555 = vld [vmem:[#allocation10 + $0x8c] sm:$0xf]
    %v7556 = vld [vmem:[#allocation10 + $0x90] sm:$0xf]
    %v7557 = vld [vmem:[#allocation10 + $0x94] sm:$0xf]
    %v7558 = vld [vmem:[#allocation10 + $0x98] sm:$0xf]
    %v7559 = vld [vmem:[#allocation10 + $0x9c] sm:$0xf]
    %v7560 = vld [vmem:[#allocation10 + $0xa0] sm:$0xf]
    %v7561 = vld [vmem:[#allocation10 + $0xa4] sm:$0xf]
    %v7562 = vld [vmem:[#allocation10 + $0xa8] sm:$0xf]
    %v7563 = vld [vmem:[#allocation10 + $0xac] sm:$0xf]
    %v7564 = vld [vmem:[#allocation10 + $0xb0] sm:$0xf]
    %v7565 = vld [vmem:[#allocation10 + $0xb4] sm:$0xf]
    %v7566 = vld [vmem:[#allocation10 + $0xb8] sm:$0xf]
    %v7567 = vld [vmem:[#allocation10 + $0xbc] sm:$0xf]
    %v7568 = vld [vmem:[#allocation10 + $0xc0] sm:$0xf]
    %v7569 = vld [vmem:[#allocation10 + $0xc4] sm:$0xf]
    %v7570 = vld [vmem:[#allocation10 + $0xc8] sm:$0xf]
    %v7571 = vld [vmem:[#allocation10 + $0xcc] sm:$0xf]
    %v7572 = vld [vmem:[#allocation10 + $0xd0] sm:$0xf]
    %v7573 = vld [vmem:[#allocation10 + $0xd4] sm:$0xf]
    %v7574 = vld [vmem:[#allocation10 + $0xd8] sm:$0xf]
    %v7575 = vld [vmem:[#allocation10 + $0xdc] sm:$0xf]
    %v7576 = vld [vmem:[#allocation10 + $0xe0] sm:$0xf]
    %v7577 = vld [vmem:[#allocation10 + $0xe4] sm:$0xf]
    %v7578 = vld [vmem:[#allocation10 + $0xe8] sm:$0xf]
    %v7579 = vld [vmem:[#allocation10 + $0xec] sm:$0xf]
    %v7580 = vld [vmem:[#allocation10 + $0xf0] sm:$0xf]
    %v7581 = vld [vmem:[#allocation10 + $0xf4] sm:$0xf]
    %v7582 = vld [vmem:[#allocation10 + $0xf8] sm:$0xf]
    %v7583 = vld [vmem:[#allocation10 + $0xfc] sm:$0xf]
    %v7584 = vld [vmem:[#allocation11] sm:$0x1]
    %v7586 = vlaneseq
    %v7587 = vshrl.u32 %v7586, 7
    %v7588 = vsub.s32 0, %v7587
    %v7589 = vrot.slane %v7584, %v7588
    %v7655 = vunpack.c.l.b16 %v7520
    %v7656 = vunpack.c.l.b16 %v7521
    %v7657 = vunpack.c.l.b16 %v7522
    %v7658 = vunpack.c.l.b16 %v7523
    %v7659 = vunpack.c.l.b16 %v7524
    %v7660 = vunpack.c.l.b16 %v7525
    %v7661 = vunpack.c.l.b16 %v7526
    %v7662 = vunpack.c.l.b16 %v7527
    %v7663 = vunpack.c.l.b16 %v7528
    %v7664 = vunpack.c.l.b16 %v7529
    %v7665 = vunpack.c.l.b16 %v7530
    %v7666 = vunpack.c.l.b16 %v7531
    %v7667 = vunpack.c.l.b16 %v7532
    %v7668 = vunpack.c.l.b16 %v7533
    %v7669 = vunpack.c.l.b16 %v7534
    %v7670 = vunpack.c.l.b16 %v7535
    %v7671 = vunpack.c.l.b16 %v7536
    %v7672 = vunpack.c.l.b16 %v7537
    %v7673 = vunpack.c.l.b16 %v7538
    %v7674 = vunpack.c.l.b16 %v7539
    %v7675 = vunpack.c.l.b16 %v7540
    %v7676 = vunpack.c.l.b16 %v7541
    %v7677 = vunpack.c.l.b16 %v7542
    %v7678 = vunpack.c.l.b16 %v7543
    %v7679 = vunpack.c.l.b16 %v7544
    %v7680 = vunpack.c.l.b16 %v7545
    %v7681 = vunpack.c.l.b16 %v7546
    %v7682 = vunpack.c.l.b16 %v7547
    %v7683 = vunpack.c.l.b16 %v7548
    %v7684 = vunpack.c.l.b16 %v7549
    %v7685 = vunpack.c.l.b16 %v7550
    %v7686 = vunpack.c.l.b16 %v7551
    %v7687 = vunpack.c.l.b16 %v7552
    %v7688 = vunpack.c.l.b16 %v7553
    %v7689 = vunpack.c.l.b16 %v7554
    %v7690 = vunpack.c.l.b16 %v7555
    %v7691 = vunpack.c.l.b16 %v7556
    %v7692 = vunpack.c.l.b16 %v7557
    %v7693 = vunpack.c.l.b16 %v7558
    %v7694 = vunpack.c.l.b16 %v7559
    %v7695 = vunpack.c.l.b16 %v7560
    %v7696 = vunpack.c.l.b16 %v7561
    %v7697 = vunpack.c.l.b16 %v7562
    %v7698 = vunpack.c.l.b16 %v7563
    %v7699 = vunpack.c.l.b16 %v7564
    %v7700 = vunpack.c.l.b16 %v7565
    %v7701 = vunpack.c.l.b16 %v7566
    %v7702 = vunpack.c.l.b16 %v7567
    %v7703 = vunpack.c.l.b16 %v7568
    %v7704 = vunpack.c.l.b16 %v7569
    %v7705 = vunpack.c.l.b16 %v7570
    %v7706 = vunpack.c.l.b16 %v7571
    %v7707 = vunpack.c.l.b16 %v7572
    %v7708 = vunpack.c.l.b16 %v7573
    %v7709 = vunpack.c.l.b16 %v7574
    %v7710 = vunpack.c.l.b16 %v7575
    %v7711 = vunpack.c.l.b16 %v7576
    %v7712 = vunpack.c.l.b16 %v7577
    %v7713 = vunpack.c.l.b16 %v7578
    %v7714 = vunpack.c.l.b16 %v7579
    %v7715 = vunpack.c.l.b16 %v7580
    %v7716 = vunpack.c.l.b16 %v7581
    %v7717 = vunpack.c.l.b16 %v7582
    %v7718 = vunpack.c.l.b16 %v7583
    %v7719 = vpack.c.b16 %v7656, %v7655
    %v7720 = vpack.c.b16 %v7658, %v7657
    %v7721 = vpack.c.b16 %v7660, %v7659
    %v7722 = vpack.c.b16 %v7662, %v7661
    %v7723 = vpack.c.b16 %v7664, %v7663
    %v7724 = vpack.c.b16 %v7666, %v7665
    %v7725 = vpack.c.b16 %v7668, %v7667
    %v7726 = vpack.c.b16 %v7670, %v7669
    %v7727 = vpack.c.b16 %v7672, %v7671
    %v7728 = vpack.c.b16 %v7674, %v7673
    %v7729 = vpack.c.b16 %v7676, %v7675
    %v7730 = vpack.c.b16 %v7678, %v7677
    %v7731 = vpack.c.b16 %v7680, %v7679
    %v7732 = vpack.c.b16 %v7682, %v7681
    %v7733 = vpack.c.b16 %v7684, %v7683
    %v7734 = vpack.c.b16 %v7686, %v7685
    %v7735 = vpack.c.b16 %v7688, %v7687
    %v7736 = vpack.c.b16 %v7690, %v7689
    %v7737 = vpack.c.b16 %v7692, %v7691
    %v7738 = vpack.c.b16 %v7694, %v7693
    %v7739 = vpack.c.b16 %v7696, %v7695
    %v7740 = vpack.c.b16 %v7698, %v7697
    %v7741 = vpack.c.b16 %v7700, %v7699
    %v7742 = vpack.c.b16 %v7702, %v7701
    %v7743 = vpack.c.b16 %v7704, %v7703
    %v7744 = vpack.c.b16 %v7706, %v7705
    %v7745 = vpack.c.b16 %v7708, %v7707
    %v7746 = vpack.c.b16 %v7710, %v7709
    %v7747 = vpack.c.b16 %v7712, %v7711
    %v7748 = vpack.c.b16 %v7714, %v7713
    %v7749 = vpack.c.b16 %v7716, %v7715
    %v7750 = vpack.c.b16 %v7718, %v7717
    %7783 = vmatprep.subr.bf16.mxu0 0
    %7784 = vmatpush1.bf16.msra.mxu0 %v7719
    %7785 = vmatprep.subr.bf16.mxu0 0
    %7786 = vmatpush1.bf16.msra.mxu0 %v7720
    %7787 = vmatprep.subr.bf16.mxu0 0
    %7788 = vmatpush1.bf16.msra.mxu0 %v7721
    %7789 = vmatprep.subr.bf16.mxu0 0
    %7790 = vmatpush1.bf16.msra.mxu0 %v7722
    %7791 = vmatprep.subr.bf16.mxu0 0
    %7792 = vmatpush1.bf16.msra.mxu0 %v7723
    %7793 = vmatprep.subr.bf16.mxu0 0
    %7794 = vmatpush1.bf16.msra.mxu0 %v7724
    %7795 = vmatprep.subr.bf16.mxu0 0
    %7796 = vmatpush1.bf16.msra.mxu0 %v7725
    %7797 = vmatprep.subr.bf16.mxu0 0
    %7798 = vmatpush1.bf16.msra.mxu0 %v7726
    %7799 = vmatprep.subr.bf16.mxu0 0
    %7800 = vmatpush1.bf16.msra.mxu0 %v7727
    %7801 = vmatprep.subr.bf16.mxu0 0
    %7802 = vmatpush1.bf16.msra.mxu0 %v7728
    %7803 = vmatprep.subr.bf16.mxu0 0
    %7804 = vmatpush1.bf16.msra.mxu0 %v7729
    %7805 = vmatprep.subr.bf16.mxu0 0
    %7806 = vmatpush1.bf16.msra.mxu0 %v7730
    %7807 = vmatprep.subr.bf16.mxu0 0
    %7808 = vmatpush1.bf16.msra.mxu0 %v7731
    %7809 = vmatprep.subr.bf16.mxu0 0
    %7810 = vmatpush1.bf16.msra.mxu0 %v7732
    %7811 = vmatprep.subr.bf16.mxu0 0
    %7812 = vmatpush1.bf16.msra.mxu0 %v7733
    %7813 = vmatprep.subr.bf16.mxu0 0
    %7814 = vmatpush1.bf16.msra.mxu0 %v7734
    %7815 = vmatprep.mubr.bf16.mxu0 %v7517
    %7816 = vmatmul.mubr.bf16.gmra.mrb[0].mxu0 %v7516
    %v7817 = vpop.f32.mrb[0].mxu0
    %v7818 = vadd.f32 %v7589, %v7817
    %v7819 = vpop.f32.mrb[0].mxu0
    %v7820 = vpop.f32.mrb[0].mxu0
    %v7821 = vpop.f32.mrb[0].mxu0
    %7822 = vdwg.mxu0
    %7823 = vmatprep.subr.bf16.mxu0 0
    %7824 = vmatpush1.bf16.msra.mxu0 %v7735
    %7825 = vmatprep.subr.bf16.mxu0 0
    %7826 = vmatpush1.bf16.msra.mxu0 %v7736
    %7827 = vmatprep.subr.bf16.mxu0 0
    %7828 = vmatpush1.bf16.msra.mxu0 %v7737
    %7829 = vmatprep.subr.bf16.mxu0 0
    %7830 = vmatpush1.bf16.msra.mxu0 %v7738
    %7831 = vmatprep.subr.bf16.mxu0 0
    %7832 = vmatpush1.bf16.msra.mxu0 %v7739
    %7833 = vmatprep.subr.bf16.mxu0 0
    %7834 = vmatpush1.bf16.msra.mxu0 %v7740
    %7835 = vmatprep.subr.bf16.mxu0 0
    %7836 = vmatpush1.bf16.msra.mxu0 %v7741
    %7837 = vmatprep.subr.bf16.mxu0 0
    %7838 = vmatpush1.bf16.msra.mxu0 %v7742
    %7839 = vmatprep.subr.bf16.mxu0 0
    %7840 = vmatpush1.bf16.msra.mxu0 %v7743
    %7841 = vmatprep.subr.bf16.mxu0 0
    %7842 = vmatpush1.bf16.msra.mxu0 %v7744
    %7843 = vmatprep.subr.bf16.mxu0 0
    %7844 = vmatpush1.bf16.msra.mxu0 %v7745
    %7845 = vmatprep.subr.bf16.mxu0 0
    %7846 = vmatpush1.bf16.msra.mxu0 %v7746
    %7847 = vmatprep.subr.bf16.mxu0 0
    %7848 = vmatpush1.bf16.msra.mxu0 %v7747
    %7849 = vmatprep.subr.bf16.mxu0 0
    %7850 = vmatpush1.bf16.msra.mxu0 %v7748
    %7851 = vmatprep.subr.bf16.mxu0 0
    %7852 = vmatpush1.bf16.msra.mxu0 %v7749
    %7853 = vmatprep.subr.bf16.mxu0 0
    %7854 = vmatpush1.bf16.msra.mxu0 %v7750
    %7855 = vmatprep.mubr.bf16.mxu0 %v7519
    %7856 = vmatmul.mubr.bf16.gmra.mrb[0].mxu0 %v7518
    %v7857 = vpop.f32.mrb[0].mxu0
    %v7858 = vadd.f32 %v7818, %v7857
    %v7859 = vpop.f32.mrb[0].mxu0
    %v7860 = vpop.f32.mrb[0].mxu0
    %v7861 = vpop.f32.mrb[0].mxu0
    %7862 = vdwg.mxu0
    %v7863 = vmax.f32 %v7858, 0.0
    %v7864 = vmul.u32 %v1127, 128
    %v7865 = vadd.s32 %v7864, %v1129
    %v7866 = vadd.s32 %v7865, %v1181
    %v7867 = vadd.s32 %v7866, 198677718
    %v7868 = vshrl.u32 %v7867, 16
    %v7869 = vxor.u32 %v7867, %v7868
    %v7870 = vmul.u32 %v7869, 2146121005
    %v7871 = vshrl.u32 %v7870, 15
    %v7872 = vxor.u32 %v7870, %v7871
    %v7873 = vmul.u32 %v7872, 2221713035
    %v7874 = vshrl.u32 %v7873, 16
    %v7875 = vxor.u32 %v7873, %v7874
    %v7876 = vshrl.u32 %v7875, 1
    %vm7877 = vcmp.ge.s32.totalorder %v7876, 107374182
    %v7878 = vmul.f32 %v7863, 1.0526316
    %v7879 = vsel %vm7877, %v7878, 0.0
    %v7880 = vpack.c.bf16 %v7879, %v7879
    %v7881 = vld [vmem:[%s8] sm:$0xf]
    %v7882 = vld [vmem:[%s8 + $0x4] sm:$0xf]
    %v7883 = vld [vmem:[%s8 + $0x8] sm:$0xf]
    %v7884 = vld [vmem:[%s8 + $0xc] sm:$0xf]
    %v7885 = vld [vmem:[%s8 + $0x10] sm:$0xf]
    %v7886 = vld [vmem:[%s8 + $0x14] sm:$0xf]
    %v7887 = vld [vmem:[%s8 + $0x18] sm:$0xf]
    %v7888 = vld [vmem:[%s8 + $0x1c] sm:$0xf]
    %v7889 = vld [vmem:[%s8 + $0x20] sm:$0xf]
    %v7890 = vld [vmem:[%s8 + $0x24] sm:$0xf]
    %v7891 = vld [vmem:[%s8 + $0x28] sm:$0xf]
    %v7892 = vld [vmem:[%s8 + $0x2c] sm:$0xf]
    %v7893 = vld [vmem:[%s8 + $0x30] sm:$0xf]
    %v7894 = vld [vmem:[%s8 + $0x34] sm:$0xf]
    %v7895 = vld [vmem:[%s8 + $0x38] sm:$0xf]
    %v7896 = vld [vmem:[%s8 + $0x3c] sm:$0xf]
    %v7897 = vld [vmem:[#allocation13] sm:$0x1]
    %v7899 = vlaneseq
    %v7900 = vshrl.u32 %v7899, 7
    %v7901 = vsub.s32 0, %v7900
    %v7902 = vrot.slane %v7897, %v7901
    %v7920 = vunpack.c.l.b16 %v7881
    %v7921 = vunpack.c.l.b16 %v7882
    %v7922 = vunpack.c.l.b16 %v7883
    %v7923 = vunpack.c.l.b16 %v7884
    %v7924 = vunpack.c.l.b16 %v7885
    %v7925 = vunpack.c.l.b16 %v7886
    %v7926 = vunpack.c.l.b16 %v7887
    %v7927 = vunpack.c.l.b16 %v7888
    %v7928 = vunpack.c.l.b16 %v7889
    %v7929 = vunpack.c.l.b16 %v7890
    %v7930 = vunpack.c.l.b16 %v7891
    %v7931 = vunpack.c.l.b16 %v7892
    %v7932 = vunpack.c.l.b16 %v7893
    %v7933 = vunpack.c.l.b16 %v7894
    %v7934 = vunpack.c.l.b16 %v7895
    %v7935 = vunpack.c.l.b16 %v7896
    %v7936 = vpack.c.b16 %v7921, %v7920
    %v7937 = vpack.c.b16 %v7923, %v7922
    %v7938 = vpack.c.b16 %v7925, %v7924
    %v7939 = vpack.c.b16 %v7927, %v7926
    %v7940 = vpack.c.b16 %v7929, %v7928
    %v7941 = vpack.c.b16 %v7931, %v7930
    %v7942 = vpack.c.b16 %v7933, %v7932
    %v7943 = vpack.c.b16 %v7935, %v7934
    %7952 = vmatprep.subr.bf16.mxu0 0
    %7953 = vmatpush1.bf16.msra.mxu0 %v7936
    %7954 = vmatprep.subr.bf16.mxu0 0
    %7955 = vmatpush1.bf16.msra.mxu0 %v7937
    %7956 = vmatprep.subr.bf16.mxu0 0
    %7957 = vmatpush1.bf16.msra.mxu0 %v7938
    %7958 = vmatprep.subr.bf16.mxu0 0
    %7959 = vmatpush1.bf16.msra.mxu0 %v7939
    %7960 = vmatprep.subr.bf16.mxu0 0
    %7961 = vmatpush1.bf16.msra.mxu0 %v7940
    %7962 = vmatprep.subr.bf16.mxu0 0
    %7963 = vmatpush1.bf16.msra.mxu0 %v7941
    %7964 = vmatprep.subr.bf16.mxu0 0
    %7965 = vmatpush1.bf16.msra.mxu0 %v7942
    %7966 = vmatprep.subr.bf16.mxu0 0
    %7967 = vmatpush1.bf16.msra.mxu0 %v7943
    %7968 = vmatprep.subr.bf16.mxu0 0
    %7969 = vmatpush1.bf16.msra.mxu0 0
    %7970 = vmatprep.subr.bf16.mxu0 0
    %7971 = vmatpush1.bf16.msra.mxu0 0
    %7972 = vmatprep.subr.bf16.mxu0 0
    %7973 = vmatpush1.bf16.msra.mxu0 0
    %7974 = vmatprep.subr.bf16.mxu0 0
    %7975 = vmatpush1.bf16.msra.mxu0 0
    %7976 = vmatprep.subr.bf16.mxu0 0
    %7977 = vmatpush1.bf16.msra.mxu0 0
    %7978 = vmatprep.subr.bf16.mxu0 0
    %7979 = vmatpush1.bf16.msra.mxu0 0
    %7980 = vmatprep.subr.bf16.mxu0 0
    %7981 = vmatpush1.bf16.msra.mxu0 0
    %7982 = vmatprep.subr.bf16.mxu0 0
    %7983 = vmatpush1.bf16.msra.mxu0 0
    %7984 = vmatprep.mubr.bf16.mxu0 0
    %7985 = vmatmul.mubr.bf16.gmra.mrb[0].mxu0 %v7880
    %v7986 = vpop.f32.mrb[0].mxu0
    %v7987 = vadd.f32 %v7902, %v7986
    %v7988 = vpop.f32.mrb[0].mxu0
    %v7989 = vpop.f32.mrb[0].mxu0
    %v7990 = vpop.f32.mrb[0].mxu0
    %7991 = vdwg.mxu0
    %v7992 = vmax.f32 %v7987, 0.0
    %v7993 = vld [vmem:[#allocation14] sm:$0xff]
    %v7994 = vld [vmem:[#allocation14 + $0x8] sm:$0xff]
    %v7995 = vld [vmem:[#allocation14 + $0x10] sm:$0xff]
    %v7996 = vld [vmem:[#allocation14 + $0x18] sm:$0xff]
    %v7997 = vld [vmem:[#allocation14 + $0x20] sm:$0xff]
    %v7998 = vld [vmem:[#allocation14 + $0x28] sm:$0xff]
    %v7999 = vld [vmem:[#allocation14 + $0x30] sm:$0xff]
    %v8000 = vld [vmem:[#allocation14 + $0x38] sm:$0xff]
    %v8001 = vld [vmem:[#allocation16] sm:$0x1]
    %v8003 = vlaneseq
    %v8004 = vshrl.u32 %v8003, 7
    %v8005 = vsub.s32 0, %v8004
    %v8006 = vrot.slane %v8001, %v8005
    %v8009 = vsel %vm6381, %v7992, 0
    %8011 = vmatprep.subr.mxu0 0.0
    %8012 = vmatpush1.msra.mxu0 %v7993
    %8013 = vmatprep.subr.mxu0 0.0
    %8014 = vmatpush1.msra.mxu0 %v7994
    %8015 = vmatprep.subr.mxu0 0.0
    %8016 = vmatpush1.msra.mxu0 %v7995
    %8017 = vmatprep.subr.mxu0 0.0
    %8018 = vmatpush1.msra.mxu0 %v7996
    %8019 = vmatprep.subr.mxu0 0.0
    %8020 = vmatpush1.msra.mxu0 %v7997
    %8021 = vmatprep.subr.mxu0 0.0
    %8022 = vmatpush1.msra.mxu0 %v7998
    %8023 = vmatprep.subr.mxu0 0.0
    %8024 = vmatpush1.msra.mxu0 %v7999
    %8025 = vmatprep.subr.mxu0 0.0
    %8026 = vmatpush1.msra.mxu0 %v8000
    %8027 = vmatprep.subr.mxu0 0.0
    %8028 = vmatpush1.msra.mxu0 0.0
    %8029 = vmatprep.subr.mxu0 0.0
    %8030 = vmatpush1.msra.mxu0 0.0
    %8031 = vmatprep.subr.mxu0 0.0
    %8032 = vmatpush1.msra.mxu0 0.0
    %8033 = vmatprep.subr.mxu0 0.0
    %8034 = vmatpush1.msra.mxu0 0.0
    %8035 = vmatprep.subr.mxu0 0.0
    %8036 = vmatpush1.msra.mxu0 0.0
    %8037 = vmatprep.subr.mxu0 0.0
    %8038 = vmatpush1.msra.mxu0 0.0
    %8039 = vmatprep.subr.mxu0 0.0
    %8040 = vmatpush1.msra.mxu0 0.0
    %8041 = vmatprep.subr.mxu0 0.0
    %8042 = vmatpush1.msra.mxu0 0.0
    %8043 = vmatprep.subr.mxu0 0.0
    %8044 = vmatpush1.msra.mxu0 0.0
    %8045 = vmatprep.subr.mxu0 0.0
    %8046 = vmatpush1.msra.mxu0 0.0
    %8047 = vmatprep.subr.mxu0 0.0
    %8048 = vmatpush1.msra.mxu0 0.0
    %8049 = vmatprep.subr.mxu0 0.0
    %8050 = vmatpush1.msra.mxu0 0.0
    %8051 = vmatprep.subr.mxu0 0.0
    %8052 = vmatpush1.msra.mxu0 0.0
    %8053 = vmatprep.subr.mxu0 0.0
    %8054 = vmatpush1.msra.mxu0 0.0
    %8055 = vmatprep.subr.mxu0 0.0
    %8056 = vmatpush1.msra.mxu0 0.0
    %8057 = vmatprep.subr.mxu0 0.0
    %8058 = vmatpush1.msra.mxu0 0.0
    %8059 = vmatprep.subr.mxu0 0.0
    %8060 = vmatpush1.msra.mxu0 0.0
    %8061 = vmatprep.subr.mxu0 0.0
    %8062 = vmatpush1.msra.mxu0 0.0
    %8063 = vmatprep.subr.mxu0 0.0
    %8064 = vmatpush1.msra.mxu0 0.0
    %8065 = vmatprep.subr.mxu0 0.0
    %8066 = vmatpush1.msra.mxu0 0.0
    %8067 = vmatprep.subr.mxu0 0.0
    %8068 = vmatpush1.msra.mxu0 0.0
    %8069 = vmatprep.subr.mxu0 0.0
    %8070 = vmatpush1.msra.mxu0 0.0
    %8071 = vmatprep.subr.mxu0 0.0
    %8072 = vmatpush1.msra.mxu0 0.0
    %8073 = vmatprep.subr.mxu0 0.0
    %8074 = vmatpush1.msra.mxu0 0.0
    %8075 = vmatprep.mubr.f32.mxu0 0.0
    %8076 = vmatmul.mubr.f32.gmra.mrb[0].mxu0 %v8009
    %v8077 = vpop.f32.mrb[0].mxu0
    %v8078 = vadd.f32 %v8006, %v8077
    %v8079 = vpop.f32.mrb[0].mxu0
    %8080 = vdwg.mxu0
    %vm8081 = vcmp.ge.s32.totalorder %v1129, 2
    %vm8082 = vcmp.lt.s32.totalorder %v1129, 7
    %vm8083 = vmand %vm8081, %vm8082
    %v8084 = vsel %vm8083, %v8078, -1e+30
    %vm8085 = vcmask 1041408
    %v8086 = vsel %vm8085, %v8084, -inf
    %8087 = vmax.xlane.f32.xlu0 %v8086
    %v8088 = vpop.xlane.xlu0 %8087
    %v8089 = vsub.f32 %v8084, %v8088
    %v8090 = vmul.f32 %v8089, 1.442695
    %v8091 = vpow.pop %v8090
    %v8092 = vsel %vm8085, %v8091, 0.0
    %8093 = vadd.xlane.f32.xlu0 %v8092
    %v8094 = vpop.xlane.xlu0 %8093
    %v8095 = vlog2.pop %v8094
    %v8096 = vmul.f32 %v8095, 0.6931472
    %v8097 = vadd.f32 %v8088, %v8096
    %v8098 = vsub.f32 %v8078, %v8097
    %v8099 = vsel %vm8083, %v8098, %v8078
    %8100 = vst [vmem:[%s12] sm:$0x3] %v8099
    // Predicated region
    $region86: #{boatnet_forward.1} parent=1 // pred_check
      _
    $region87: #{boatnet_forward.1} parent=1 // pred_check_branch
      %8102 = sbr.rel (0) target = $region89
    $region88: #{boatnet_forward.1} parent=1 // pred_region
      _
    $region89: #{boatnet_forward.1} parent=1 // pred_fallthru
      _
    // Predicated region
    $region90: #{boatnet_forward.1} parent=1 // pred_check
      _
    $region91: #{boatnet_forward.1} parent=1 // pred_check_branch
      %8104 = sbr.rel (0) target = $region93
    $region92: #{boatnet_forward.1} parent=1 // pred_region
      _
    $region93: #{boatnet_forward.1} parent=1 // pred_fallthru
      _
    %8105 = vsyncpa [#allocation4], 1
    %8106 = vsyncpa [#allocation6], 1
    %8107 = vsyncpa [#allocation9], 1
    %8108 = vsyncpa [#allocation12], 1
    %8109 = vsyncpa [#allocation15], 1

</llo_original>
